<compile_context>
chip_gen: v7x
topology: tpu7x:2x2x1
jax: 0.10.0
libtpu: 0.0.40
codegen_flags: <defaults>
</compile_context>

<pallas_src>
import jax
import jax.numpy as jnp
from jax import lax
from jax.experimental import pallas as pl
from jax.experimental.pallas import tpu as pltpu


def eegnet_kernel(xb_ref, t1_ref, dw_ref, p1_ref, sh_ref, w3_ref, wl_ref,
                  bl_ref, out_ref, h2_scr):
    bf16 = jnp.bfloat16
    nfilt = dw_ref.shape[0]                 # 8 temporal filters
    rows_f = dw_ref.shape[1]                # 2*Bt rows per depthwise slab
    t1p = t1_ref.shape[1] // nfilt          # truncated firstconv width
    bt = out_ref.shape[0]                   # batch tile
    ntaps = w3_ref.shape[0]                 # 16 separable taps
    nchan = wl_ref.shape[0]                 # 16 separable output channels
    t3p = wl_ref.shape[1]                   # truncated post-separable width

    # ---- firstconv as one Toeplitz matmul (BN1 scale folded), bf16 on MXU ---
    y = jnp.dot(xb_ref[...], t1_ref[...],
                preferred_element_type=jnp.float32)         # (Bt*Chans, 8*T1p)

    # ---- depthwise conv (BN2 scale folded into weights): block-diag matmuls
    #      written straight into a VMEM scratch slab (contiguous row slabs) ---
    for f in range(nfilt):
        h2_scr[f * rows_f:(f + 1) * rows_f, :] = jnp.dot(
            dw_ref[f], y[:, f * t1p:(f + 1) * t1p].astype(bf16),
            preferred_element_type=jnp.float32)

    # folded BN1-beta/BN2-beta shift + ELU (f32)
    h2 = h2_scr[...] + sh_ref[:, 0:1]
    h2 = jnp.where(h2 > 0, h2, jnp.exp(jnp.minimum(h2, 0.0)) - 1.0)

    # ---- AvgPool(1,4) with halos AND tap shifts baked into the pool matrix:
    #      one matmul; every tap below reads a lane-aligned 32-lane block -----
    padded = jnp.dot(h2.astype(bf16), p1_ref[...],
                     preferred_element_type=jnp.float32)    # (16*Bt, 16*T3p)

    # ---- separable conv: 16 aligned tap matmuls, kron(s3*ws_k, I_Bt) weights
    h3 = jnp.dot(w3_ref[0], padded[:, 0:t3p].astype(bf16),
                 preferred_element_type=jnp.float32)
    for k in range(1, ntaps):
        h3 = h3 + jnp.dot(w3_ref[k],
                          padded[:, k * t3p:(k + 1) * t3p].astype(bf16),
                          preferred_element_type=jnp.float32)
    h3 = h3 + sh_ref[:, 1:2]                                 # folded BN3 beta
    h3 = jnp.where(h3 > 0, h3, jnp.exp(jnp.minimum(h3, 0.0)) - 1.0)

    # ---- fused AvgPool(1,8) + channel-major flatten + classifier: pool2 and
    #      Wlin folded into (16, T3p, nc_pad); accumulate per-channel dots
    #      (no flatten scratch, no masked lane stores, lane-dense output) -----
    h3b = h3.astype(bf16)
    acc = jnp.dot(h3b[0:bt, :], wl_ref[0], preferred_element_type=jnp.float32)
    for o in range(1, nchan):
        acc = acc + jnp.dot(h3b[o * bt:(o + 1) * bt, :], wl_ref[o],
                            preferred_element_type=jnp.float32)
    out_ref[...] = acc + bl_ref[...]


def eegnet_forward(x, p, block_b=None):
    B, chans, S = x.shape
    nc = p["blin"].shape[0]
    t1 = S + 1
    t2 = t1 // 4
    t1p = 4 * t2
    t3 = t2 + 1
    t4 = t3 // 8
    t3p = 8 * t4
    spad = S + 64
    nc_pad = ((nc + 127) // 128) * 128
    assert 16 * t4 == p["Wlin"].shape[1], "flatten size must match Linear in_features"

    if block_b is None:
        # Fill the MXU M dimension (Bt*Chans >= 128 when possible) but keep at
        # least 2 grid steps so the "parallel" batch axis can split across
        # v7x's two TensorCores.  Raise block_b explicitly on v6e/v7x for large
        # B (then also raise vmem_limit_bytes / single-buffer the constants).
        block_b = max(1, 128 // chans)
        while block_b > 1 and (B % block_b != 0 or B // block_b < 2):
            block_b //= 2
    bt = min(block_b, B)
    assert B % bt == 0, "batch must be a multiple of the batch tile"
    assert (bt * chans) % 8 == 0 or B == bt, "batch-tile rows must be sublane aligned"

    f32, bf16 = jnp.float32, jnp.bfloat16
    x = x.astype(f32)

    # ---- kernel-format parameters (wrapper glue; all compute stays in-kernel)
    w1 = p["W1"][:, 0, 0, :]                                  # (8, 64)
    wd = p["Wd"][:, 0, :, 0]                                  # (16, Chans)
    wsk = jnp.transpose(p["Ws"][:, :, 0, :], (2, 0, 1))       # (taps, out, in)
    eye_b = jnp.eye(bt, dtype=f32)

    # firstconv as banded Toeplitz (BN1 scale folded), lanes = (filter, time)
    j = jnp.arange(spad)[:, None]
    t = jnp.arange(t1p)[None, :]
    d = j - t
    band = ((d >= 0) & (d < w1.shape[1])).astype(f32)
    toep = w1[:, jnp.clip(d, 0, w1.shape[1] - 1)] * band[None]   # (8, spad, t1p)
    toep = toep * p["s1"][:, None, None]
    toep = jnp.transpose(toep, (1, 0, 2)).reshape(spad, 8 * t1p).astype(bf16)

    # depthwise block-diag weights with BN2 scale folded into the rows
    wd3 = wd.reshape(8, 2, chans) * p["s2"].reshape(8, 2)[:, :, None]
    dwb = (wd3[:, :, None, None, :] * eye_b[None, None, :, :, None]
           ).reshape(8, 2 * bt, bt * chans).astype(bf16)

    # BN1 beta pushed through the depthwise sum; per-row shifts packed (f32)
    bias2 = jnp.repeat(p["b1"], 2) * wd.sum(axis=1)              # (16,)
    sh = jnp.stack([jnp.repeat(p["s2"] * bias2 + p["b2"], bt),
                    jnp.repeat(p["b3"], bt)], axis=1)            # (16*bt, 2)

    # AvgPool(1,4) matrix with zero halos AND the 16 tap shifts baked in, so
    # each separable tap reads a lane-aligned 32-lane block of `padded`.
    pool1 = (jnp.arange(t1p)[:, None] // 4 ==
             jnp.arange(t2)[None, :]).astype(f32) / 4.0
    pool1h = jnp.zeros((t1p, t2 + 16), f32).at[:, 8:8 + t2].set(pool1)
    p1 = jnp.concatenate([pool1h[:, k:k + t3p] for k in range(16)],
                         axis=1).astype(bf16)                    # (t1p, 16*t3p)

    # separable taps as kron(s3*ws_k, I_bt): rows o*bt + b, cols i*bt + b'
    wsk_s = wsk * p["s3"][None, :, None]
    w3 = (wsk_s[:, :, None, :, None] * eye_b[None, None, :, None, :]
          ).reshape(16, 16 * bt, 16 * bt).astype(bf16)

    # AvgPool(1,8) + channel-major flatten folded into the classifier weight:
    # wl[o, s, c] = Wlin[c, o*t4 + s//8] / 8, lane-padded to nc_pad columns.
    wl = jnp.transpose(p["Wlin"].reshape(nc, 16, t4), (1, 2, 0))
    wl = jnp.repeat(wl, 8, axis=1) / 8.0                         # (16, t3p, nc)
    wl = jnp.pad(wl, ((0, 0), (0, 0), (0, nc_pad - nc))).astype(bf16)
    bl = jnp.pad(p["blin"], (0, nc_pad - nc))[None, :].astype(f32)

    # input: pad time by 32 both sides, fold batch onto sublanes (b*chans + c)
    xb = jnp.pad(x, ((0, 0), (0, 0), (32, 32))).reshape(B * chans, spad)
    xb = xb.astype(bf16)

    const2 = lambda i: (0, 0)
    const3 = lambda i: (0, 0, 0)
    grid_spec = pltpu.PrefetchScalarGridSpec(
        num_scalar_prefetch=0,
        grid=(B // bt,),
        in_specs=[
            pl.BlockSpec((bt * chans, spad), lambda i: (i, 0)),   # xb (bf16)
            pl.BlockSpec((spad, 8 * t1p), const2),                # Toeplitz
            pl.BlockSpec((8, 2 * bt, bt * chans), const3),        # depthwise blocks
            pl.BlockSpec((t1p, 16 * t3p), const2),                # pool1 + tap shifts
            pl.BlockSpec((16 * bt, 2), const2),                   # sh2 | sh3
            pl.BlockSpec((16, 16 * bt, 16 * bt), const3),         # separable taps
            pl.BlockSpec((16, t3p, nc_pad), const3),              # pool2+Wlin fused
            pl.BlockSpec((1, nc_pad), const2),                    # linear bias
        ],
        out_specs=pl.BlockSpec((bt, nc_pad), lambda i: (i, 0)),
        scratch_shapes=[pltpu.VMEM((16 * bt, t1p), jnp.float32)],  # depthwise slab
    )
    out = pl.pallas_call(
        eegnet_kernel,
        out_shape=jax.ShapeDtypeStruct((B, nc_pad), jnp.float32),
        grid_spec=grid_spec,
        compiler_params=pltpu.CompilerParams(
            dimension_semantics=("parallel",),
            vmem_limit_bytes=32 * 1024 * 1024),
    )(xb, toep, dwb, p1, sh, w3, wl, bl)
    return out[:, :nc]


def init_params(key, chans, samples, nc):
    t4 = samples // 32
    ks = jax.random.split(key, 16)

    def bn(kg, kb, km, kv, n):
        gamma = 1.0 + 0.1 * jax.random.normal(kg, (n,), jnp.float32)
        beta = 0.1 * jax.random.normal(kb, (n,), jnp.float32)
        mean = 0.1 * jax.random.normal(km, (n,), jnp.float32)
        var = 0.5 + jax.random.uniform(kv, (n,), jnp.float32)
        s = gamma / jnp.sqrt(var + 1e-5)
        return s, beta - mean * s

    s1, b1 = bn(ks[0], ks[1], ks[2], ks[3], 8)
    s2, b2 = bn(ks[4], ks[5], ks[6], ks[7], 16)
    s3, b3 = bn(ks[8], ks[9], ks[10], ks[11], 16)
    W1 = 0.1 * jax.random.normal(ks[12], (8, 1, 1, 64), jnp.float32)
    Wd = 0.1 * jax.random.normal(ks[13], (16, 1, chans, 1), jnp.float32)
    Ws = 0.1 * jax.random.normal(ks[14], (16, 16, 1, 16), jnp.float32)
    kl, kb2 = jax.random.split(ks[15])
    Wlin = 0.1 * jax.random.normal(kl, (nc, 16 * t4), jnp.float32)
    blin = 0.01 * jax.random.normal(kb2, (nc,), jnp.float32)
    return dict(W1=W1, s1=s1, b1=b1, Wd=Wd, s2=s2, b2=b2, Ws=Ws, s3=s3, b3=b3,
                Wlin=Wlin, blin=blin)


def eegnet_reference(x, p):
    """Pure-JAX NCHW reference mirroring the PyTorch forward (eval mode)."""
    B = x.shape[0]
    y = x[:, None, :, :]
    y = lax.conv_general_dilated(y, p["W1"], (1, 1), ((0, 0), (32, 32)),
                                 dimension_numbers=("NCHW", "OIHW", "NCHW"))
    y = y * p["s1"][None, :, None, None] + p["b1"][None, :, None, None]
    y = lax.conv_general_dilated(y, p["Wd"], (1, 1), ((0, 0), (0, 0)),
                                 dimension_numbers=("NCHW", "OIHW", "NCHW"),
                                 feature_group_count=8)
    y = y * p["s2"][None, :, None, None] + p["b2"][None, :, None, None]
    y = jnp.where(y > 0, y, jnp.exp(jnp.minimum(y, 0.0)) - 1.0)
    t2 = y.shape[-1] // 4
    y = y[..., :4 * t2].reshape(B, 16, 1, t2, 4).mean(-1)
    y = lax.conv_general_dilated(y, p["Ws"], (1, 1), ((0, 0), (8, 8)),
                                 dimension_numbers=("NCHW", "OIHW", "NCHW"))
    y = y * p["s3"][None, :, None, None] + p["b3"][None, :, None, None]
    y = jnp.where(y > 0, y, jnp.exp(jnp.minimum(y, 0.0)) - 1.0)
    t4 = y.shape[-1] // 8
    y = y[..., :8 * t4].reshape(B, 16, 1, t4, 8).mean(-1)
    flat = y.reshape(B, -1)
    return flat @ p["Wlin"].T + p["blin"][None, :]


if __name__ == "__main__":
    # Small EEGNet instance: Chans=8, Samples=128, num_classes=4, batch=32.
    # Batch tile Bt=16 -> Bt*Chans = 128 MXU rows per matmul, grid of 2 so the
    # "parallel" batch axis can split across both v7x TensorCores.
    B, chans, samples, nc = 32, 8, 128, 4
    key = jax.random.PRNGKey(0)
    kx, kp = jax.random.split(key)
    x = jax.random.normal(kx, (B, chans, samples), jnp.float32)
    params = init_params(kp, chans, samples, nc)

    out = jax.block_until_ready(jax.jit(eegnet_forward)(x, params))

    ref = eegnet_reference(x, params)
    if not bool(jnp.allclose(out, ref, atol=2e-2, rtol=2e-2)):
        raise AssertionError(
            f"mismatch vs reference, max abs err = {float(jnp.max(jnp.abs(out - ref)))}")
    print("KERNEL_OK")
</pallas_src>

<mosaic_0001>
module attributes {stable_mosaic.version = 11 : i64} {
  func.func @eegnet_kernel(%arg0: i32, %arg1: memref<128x192xbf16, #tpu.memory_space<vmem>>, %arg2: memref<192x1024xbf16, #tpu.memory_space<vmem>>, %arg3: memref<8x32x128xbf16, #tpu.memory_space<vmem>>, %arg4: memref<128x512xbf16, #tpu.memory_space<vmem>>, %arg5: memref<256x2xf32, #tpu.memory_space<vmem>>, %arg6: memref<16x256x256xbf16, #tpu.memory_space<vmem>>, %arg7: memref<16x32x128xbf16, #tpu.memory_space<vmem>>, %arg8: memref<1x128xf32, #tpu.memory_space<vmem>>, %arg9: memref<16x128xf32, #tpu.memory_space<vmem>>, %arg10: memref<256x128xf32, #tpu.memory_space<vmem>>) attributes {dimension_semantics = [#tpu.dimension_semantics<parallel>], iteration_bounds = array<i64: 2>, scalar_prefetch = 0 : i64, scratch_operands = 1 : i64, tpu.core_type = #tpu.core_type<tc>, window_params = [{transform_indices = @transform_0, window_bounds = array<i64: 128, 192>}, {pipeline_mode = #tpu.pipeline_mode<synchronous>, transform_indices = @transform_1, window_bounds = array<i64: 192, 1024>}, {pipeline_mode = #tpu.pipeline_mode<synchronous>, transform_indices = @transform_2, window_bounds = array<i64: 8, 32, 128>}, {pipeline_mode = #tpu.pipeline_mode<synchronous>, transform_indices = @transform_3, window_bounds = array<i64: 128, 512>}, {pipeline_mode = #tpu.pipeline_mode<synchronous>, transform_indices = @transform_4, window_bounds = array<i64: 256, 2>}, {pipeline_mode = #tpu.pipeline_mode<synchronous>, transform_indices = @transform_5, window_bounds = array<i64: 16, 256, 256>}, {pipeline_mode = #tpu.pipeline_mode<synchronous>, transform_indices = @transform_6, window_bounds = array<i64: 16, 32, 128>}, {pipeline_mode = #tpu.pipeline_mode<synchronous>, transform_indices = @transform_7, window_bounds = array<i64: 1, 128>}, {transform_indices = @transform_8, window_bounds = array<i64: 16, 128>}]} {
    %c0 = arith.constant 0 : index
    %c0_0 = arith.constant 0 : index
    %0 = vector.load %arg1[%c0, %c0_0] : memref<128x192xbf16, #tpu.memory_space<vmem>>, vector<128x192xbf16>
    %c0_1 = arith.constant 0 : index
    %c0_2 = arith.constant 0 : index
    %1 = vector.load %arg2[%c0_1, %c0_2] : memref<192x1024xbf16, #tpu.memory_space<vmem>>, vector<192x1024xbf16>
    %cst = arith.constant dense<0.000000e+00> : vector<128x1024xf32>
    %2 = tpu.matmul %0, %1, %cst {dimension_numbers = #tpu.dot_dimension_numbers<[1], [0], [0], [1], [0, 0, 1, 1], [], []>} : vector<128x192xbf16>, vector<192x1024xbf16>, vector<128x1024xf32> -> vector<128x1024xf32>
    %c0_3 = arith.constant 0 : index
    %c0_4 = arith.constant 0 : index
    %c0_5 = arith.constant 0 : index
    %3 = vector.load %arg3[%c0_3, %c0_4, %c0_5] : memref<8x32x128xbf16, #tpu.memory_space<vmem>>, vector<1x32x128xbf16>
    %4 = vector.shape_cast %3 : vector<1x32x128xbf16> to vector<32x128xbf16>
    %5 = vector.extract_strided_slice %2 {offsets = [0, 0], sizes = [128, 128], strides = [1, 1]} : vector<128x1024xf32> to vector<128x128xf32>
    %6 = arith.truncf %5 : vector<128x128xf32> to vector<128x128xbf16>
    %cst_6 = arith.constant dense<0.000000e+00> : vector<32x128xf32>
    %7 = tpu.matmul %4, %6, %cst_6 {dimension_numbers = #tpu.dot_dimension_numbers<[1], [0], [0], [1], [0, 0, 1, 1], [], []>} : vector<32x128xbf16>, vector<128x128xbf16>, vector<32x128xf32> -> vector<32x128xf32>
    %c0_7 = arith.constant 0 : index
    %c0_8 = arith.constant 0 : index
    %8 = vector.load %arg10[%c0_7, %c0_8] : memref<256x128xf32, #tpu.memory_space<vmem>>, vector<32x128xf32>
    tpu.vector_store %arg10[%c0_7, %c0_8], %7 {strides = array<i32>} : memref<256x128xf32, #tpu.memory_space<vmem>>, vector<32x128xf32>,
    %c1 = arith.constant 1 : index
    %c0_9 = arith.constant 0 : index
    %c0_10 = arith.constant 0 : index
    %9 = vector.load %arg3[%c1, %c0_9, %c0_10] : memref<8x32x128xbf16, #tpu.memory_space<vmem>>, vector<1x32x128xbf16>
    %10 = vector.shape_cast %9 : vector<1x32x128xbf16> to vector<32x128xbf16>
    %11 = vector.extract_strided_slice %2 {offsets = [0, 128], sizes = [128, 128], strides = [1, 1]} : vector<128x1024xf32> to vector<128x128xf32>
    %12 = arith.truncf %11 : vector<128x128xf32> to vector<128x128xbf16>
    %cst_11 = arith.constant dense<0.000000e+00> : vector<32x128xf32>
    %13 = tpu.matmul %10, %12, %cst_11 {dimension_numbers = #tpu.dot_dimension_numbers<[1], [0], [0], [1], [0, 0, 1, 1], [], []>} : vector<32x128xbf16>, vector<128x128xbf16>, vector<32x128xf32> -> vector<32x128xf32>
    %c32 = arith.constant 32 : index
    %c0_12 = arith.constant 0 : index
    %14 = vector.load %arg10[%c32, %c0_12] : memref<256x128xf32, #tpu.memory_space<vmem>>, vector<32x128xf32>
    tpu.vector_store %arg10[%c32, %c0_12], %13 {strides = array<i32>} : memref<256x128xf32, #tpu.memory_space<vmem>>, vector<32x128xf32>,
    %c2 = arith.constant 2 : index
    %c0_13 = arith.constant 0 : index
    %c0_14 = arith.constant 0 : index
    %15 = vector.load %arg3[%c2, %c0_13, %c0_14] : memref<8x32x128xbf16, #tpu.memory_space<vmem>>, vector<1x32x128xbf16>
    %16 = vector.shape_cast %15 : vector<1x32x128xbf16> to vector<32x128xbf16>
    %17 = vector.extract_strided_slice %2 {offsets = [0, 256], sizes = [128, 128], strides = [1, 1]} : vector<128x1024xf32> to vector<128x128xf32>
    %18 = arith.truncf %17 : vector<128x128xf32> to vector<128x128xbf16>
    %cst_15 = arith.constant dense<0.000000e+00> : vector<32x128xf32>
    %19 = tpu.matmul %16, %18, %cst_15 {dimension_numbers = #tpu.dot_dimension_numbers<[1], [0], [0], [1], [0, 0, 1, 1], [], []>} : vector<32x128xbf16>, vector<128x128xbf16>, vector<32x128xf32> -> vector<32x128xf32>
    %c64 = arith.constant 64 : index
    %c0_16 = arith.constant 0 : index
    %20 = vector.load %arg10[%c64, %c0_16] : memref<256x128xf32, #tpu.memory_space<vmem>>, vector<32x128xf32>
    tpu.vector_store %arg10[%c64, %c0_16], %19 {strides = array<i32>} : memref<256x128xf32, #tpu.memory_space<vmem>>, vector<32x128xf32>,
    %c3 = arith.constant 3 : index
    %c0_17 = arith.constant 0 : index
    %c0_18 = arith.constant 0 : index
    %21 = vector.load %arg3[%c3, %c0_17, %c0_18] : memref<8x32x128xbf16, #tpu.memory_space<vmem>>, vector<1x32x128xbf16>
    %22 = vector.shape_cast %21 : vector<1x32x128xbf16> to vector<32x128xbf16>
    %23 = vector.extract_strided_slice %2 {offsets = [0, 384], sizes = [128, 128], strides = [1, 1]} : vector<128x1024xf32> to vector<128x128xf32>
    %24 = arith.truncf %23 : vector<128x128xf32> to vector<128x128xbf16>
    %cst_19 = arith.constant dense<0.000000e+00> : vector<32x128xf32>
    %25 = tpu.matmul %22, %24, %cst_19 {dimension_numbers = #tpu.dot_dimension_numbers<[1], [0], [0], [1], [0, 0, 1, 1], [], []>} : vector<32x128xbf16>, vector<128x128xbf16>, vector<32x128xf32> -> vector<32x128xf32>
    %c96 = arith.constant 96 : index
    %c0_20 = arith.constant 0 : index
    %26 = vector.load %arg10[%c96, %c0_20] : memref<256x128xf32, #tpu.memory_space<vmem>>, vector<32x128xf32>
    tpu.vector_store %arg10[%c96, %c0_20], %25 {strides = array<i32>} : memref<256x128xf32, #tpu.memory_space<vmem>>, vector<32x128xf32>,
    %c4 = arith.constant 4 : index
    %c0_21 = arith.constant 0 : index
    %c0_22 = arith.constant 0 : index
    %27 = vector.load %arg3[%c4, %c0_21, %c0_22] : memref<8x32x128xbf16, #tpu.memory_space<vmem>>, vector<1x32x128xbf16>
    %28 = vector.shape_cast %27 : vector<1x32x128xbf16> to vector<32x128xbf16>
    %29 = vector.extract_strided_slice %2 {offsets = [0, 512], sizes = [128, 128], strides = [1, 1]} : vector<128x1024xf32> to vector<128x128xf32>
    %30 = arith.truncf %29 : vector<128x128xf32> to vector<128x128xbf16>
    %cst_23 = arith.constant dense<0.000000e+00> : vector<32x128xf32>
    %31 = tpu.matmul %28, %30, %cst_23 {dimension_numbers = #tpu.dot_dimension_numbers<[1], [0], [0], [1], [0, 0, 1, 1], [], []>} : vector<32x128xbf16>, vector<128x128xbf16>, vector<32x128xf32> -> vector<32x128xf32>
    %c128 = arith.constant 128 : index
    %c0_24 = arith.constant 0 : index
    %32 = vector.load %arg10[%c128, %c0_24] : memref<256x128xf32, #tpu.memory_space<vmem>>, vector<32x128xf32>
    tpu.vector_store %arg10[%c128, %c0_24], %31 {strides = array<i32>} : memref<256x128xf32, #tpu.memory_space<vmem>>, vector<32x128xf32>,
    %c5 = arith.constant 5 : index
    %c0_25 = arith.constant 0 : index
    %c0_26 = arith.constant 0 : index
    %33 = vector.load %arg3[%c5, %c0_25, %c0_26] : memref<8x32x128xbf16, #tpu.memory_space<vmem>>, vector<1x32x128xbf16>
    %34 = vector.shape_cast %33 : vector<1x32x128xbf16> to vector<32x128xbf16>
    %35 = vector.extract_strided_slice %2 {offsets = [0, 640], sizes = [128, 128], strides = [1, 1]} : vector<128x1024xf32> to vector<128x128xf32>
    %36 = arith.truncf %35 : vector<128x128xf32> to vector<128x128xbf16>
    %cst_27 = arith.constant dense<0.000000e+00> : vector<32x128xf32>
    %37 = tpu.matmul %34, %36, %cst_27 {dimension_numbers = #tpu.dot_dimension_numbers<[1], [0], [0], [1], [0, 0, 1, 1], [], []>} : vector<32x128xbf16>, vector<128x128xbf16>, vector<32x128xf32> -> vector<32x128xf32>
    %c160 = arith.constant 160 : index
    %c0_28 = arith.constant 0 : index
    %38 = vector.load %arg10[%c160, %c0_28] : memref<256x128xf32, #tpu.memory_space<vmem>>, vector<32x128xf32>
    tpu.vector_store %arg10[%c160, %c0_28], %37 {strides = array<i32>} : memref<256x128xf32, #tpu.memory_space<vmem>>, vector<32x128xf32>,
    %c6 = arith.constant 6 : index
    %c0_29 = arith.constant 0 : index
    %c0_30 = arith.constant 0 : index
    %39 = vector.load %arg3[%c6, %c0_29, %c0_30] : memref<8x32x128xbf16, #tpu.memory_space<vmem>>, vector<1x32x128xbf16>
    %40 = vector.shape_cast %39 : vector<1x32x128xbf16> to vector<32x128xbf16>
    %41 = vector.extract_strided_slice %2 {offsets = [0, 768], sizes = [128, 128], strides = [1, 1]} : vector<128x1024xf32> to vector<128x128xf32>
    %42 = arith.truncf %41 : vector<128x128xf32> to vector<128x128xbf16>
    %cst_31 = arith.constant dense<0.000000e+00> : vector<32x128xf32>
    %43 = tpu.matmul %40, %42, %cst_31 {dimension_numbers = #tpu.dot_dimension_numbers<[1], [0], [0], [1], [0, 0, 1, 1], [], []>} : vector<32x128xbf16>, vector<128x128xbf16>, vector<32x128xf32> -> vector<32x128xf32>
    %c192 = arith.constant 192 : index
    %c0_32 = arith.constant 0 : index
    %44 = vector.load %arg10[%c192, %c0_32] : memref<256x128xf32, #tpu.memory_space<vmem>>, vector<32x128xf32>
    tpu.vector_store %arg10[%c192, %c0_32], %43 {strides = array<i32>} : memref<256x128xf32, #tpu.memory_space<vmem>>, vector<32x128xf32>,
    %c7 = arith.constant 7 : index
    %c0_33 = arith.constant 0 : index
    %c0_34 = arith.constant 0 : index
    %45 = vector.load %arg3[%c7, %c0_33, %c0_34] : memref<8x32x128xbf16, #tpu.memory_space<vmem>>, vector<1x32x128xbf16>
    %46 = vector.shape_cast %45 : vector<1x32x128xbf16> to vector<32x128xbf16>
    %47 = vector.extract_strided_slice %2 {offsets = [0, 896], sizes = [128, 128], strides = [1, 1]} : vector<128x1024xf32> to vector<128x128xf32>
    %48 = arith.truncf %47 : vector<128x128xf32> to vector<128x128xbf16>
    %cst_35 = arith.constant dense<0.000000e+00> : vector<32x128xf32>
    %49 = tpu.matmul %46, %48, %cst_35 {dimension_numbers = #tpu.dot_dimension_numbers<[1], [0], [0], [1], [0, 0, 1, 1], [], []>} : vector<32x128xbf16>, vector<128x128xbf16>, vector<32x128xf32> -> vector<32x128xf32>
    %c224 = arith.constant 224 : index
    %c0_36 = arith.constant 0 : index
    %50 = vector.load %arg10[%c224, %c0_36] : memref<256x128xf32, #tpu.memory_space<vmem>>, vector<32x128xf32>
    tpu.vector_store %arg10[%c224, %c0_36], %49 {strides = array<i32>} : memref<256x128xf32, #tpu.memory_space<vmem>>, vector<32x128xf32>,
    %c0_37 = arith.constant 0 : index
    %c0_38 = arith.constant 0 : index
    %51 = vector.load %arg10[%c0_37, %c0_38] : memref<256x128xf32, #tpu.memory_space<vmem>>, vector<256x128xf32>
    %c0_39 = arith.constant 0 : index
    %c0_40 = arith.constant 0 : index
    %52 = vector.load %arg5[%c0_39, %c0_40] : memref<256x2xf32, #tpu.memory_space<vmem>>, vector<256x1xf32>
    %53 = vector.broadcast %52 : vector<256x1xf32> to vector<256x128xf32>
    %54 = arith.addf %51, %53 : vector<256x128xf32>
    %cst_41 = arith.constant 0.000000e+00 : f32
    %55 = vector.broadcast %cst_41 : f32 to vector<256x128xf32>
    %56 = arith.cmpf ogt, %54, %55 : vector<256x128xf32>
    %cst_42 = arith.constant 0.000000e+00 : f32
    %57 = vector.broadcast %cst_42 : f32 to vector<256x128xf32>
    %58 = arith.minimumf %54, %57 : vector<256x128xf32>
    %59 = math.exp %58 : vector<256x128xf32>
    %cst_43 = arith.constant 1.000000e+00 : f32
    %60 = vector.broadcast %cst_43 : f32 to vector<256x128xf32>
    %61 = arith.subf %59, %60 : vector<256x128xf32>
    %62 = arith.select %56, %54, %61 : vector<256x128xi1>, vector<256x128xf32>
    %63 = arith.truncf %62 : vector<256x128xf32> to vector<256x128xbf16>
    %c0_44 = arith.constant 0 : index
    %c0_45 = arith.constant 0 : index
    %64 = vector.load %arg4[%c0_44, %c0_45] : memref<128x512xbf16, #tpu.memory_space<vmem>>, vector<128x512xbf16>
    %cst_46 = arith.constant dense<0.000000e+00> : vector<256x512xf32>
    %65 = tpu.matmul %63, %64, %cst_46 {dimension_numbers = #tpu.dot_dimension_numbers<[1], [0], [0], [1], [0, 0, 1, 1], [], []>} : vector<256x128xbf16>, vector<128x512xbf16>, vector<256x512xf32> -> vector<256x512xf32>
    %c0_47 = arith.constant 0 : index
    %c0_48 = arith.constant 0 : index
    %c0_49 = arith.constant 0 : index
    %66 = vector.load %arg6[%c0_47, %c0_48, %c0_49] : memref<16x256x256xbf16, #tpu.memory_space<vmem>>, vector<1x256x256xbf16>
    %67 = vector.shape_cast %66 : vector<1x256x256xbf16> to vector<256x256xbf16>
    %68 = vector.extract_strided_slice %65 {offsets = [0, 0], sizes = [256, 32], strides = [1, 1]} : vector<256x512xf32> to vector<256x32xf32>
    %69 = arith.truncf %68 : vector<256x32xf32> to vector<256x32xbf16>
    %cst_50 = arith.constant dense<0.000000e+00> : vector<256x32xf32>
    %70 = tpu.matmul %67, %69, %cst_50 {dimension_numbers = #tpu.dot_dimension_numbers<[1], [0], [0], [1], [0, 0, 1, 1], [], []>} : vector<256x256xbf16>, vector<256x32xbf16>, vector<256x32xf32> -> vector<256x32xf32>
    %c1_51 = arith.constant 1 : index
    %c0_52 = arith.constant 0 : index
    %c0_53 = arith.constant 0 : index
    %71 = vector.load %arg6[%c1_51, %c0_52, %c0_53] : memref<16x256x256xbf16, #tpu.memory_space<vmem>>, vector<1x256x256xbf16>
    %72 = vector.shape_cast %71 : vector<1x256x256xbf16> to vector<256x256xbf16>
    %73 = vector.extract_strided_slice %65 {offsets = [0, 32], sizes = [256, 32], strides = [1, 1]} : vector<256x512xf32> to vector<256x32xf32>
    %74 = arith.truncf %73 : vector<256x32xf32> to vector<256x32xbf16>
    %cst_54 = arith.constant dense<0.000000e+00> : vector<256x32xf32>
    %75 = tpu.matmul %72, %74, %cst_54 {dimension_numbers = #tpu.dot_dimension_numbers<[1], [0], [0], [1], [0, 0, 1, 1], [], []>} : vector<256x256xbf16>, vector<256x32xbf16>, vector<256x32xf32> -> vector<256x32xf32>
    %76 = arith.addf %70, %75 : vector<256x32xf32>
    %c2_55 = arith.constant 2 : index
    %c0_56 = arith.constant 0 : index
    %c0_57 = arith.constant 0 : index
    %77 = vector.load %arg6[%c2_55, %c0_56, %c0_57] : memref<16x256x256xbf16, #tpu.memory_space<vmem>>, vector<1x256x256xbf16>
    %78 = vector.shape_cast %77 : vector<1x256x256xbf16> to vector<256x256xbf16>
    %79 = vector.extract_strided_slice %65 {offsets = [0, 64], sizes = [256, 32], strides = [1, 1]} : vector<256x512xf32> to vector<256x32xf32>
    %80 = arith.truncf %79 : vector<256x32xf32> to vector<256x32xbf16>
    %cst_58 = arith.constant dense<0.000000e+00> : vector<256x32xf32>
    %81 = tpu.matmul %78, %80, %cst_58 {dimension_numbers = #tpu.dot_dimension_numbers<[1], [0], [0], [1], [0, 0, 1, 1], [], []>} : vector<256x256xbf16>, vector<256x32xbf16>, vector<256x32xf32> -> vector<256x32xf32>
    %82 = arith.addf %76, %81 : vector<256x32xf32>
    %c3_59 = arith.constant 3 : index
    %c0_60 = arith.constant 0 : index
    %c0_61 = arith.constant 0 : index
    %83 = vector.load %arg6[%c3_59, %c0_60, %c0_61] : memref<16x256x256xbf16, #tpu.memory_space<vmem>>, vector<1x256x256xbf16>
    %84 = vector.shape_cast %83 : vector<1x256x256xbf16> to vector<256x256xbf16>
    %85 = vector.extract_strided_slice %65 {offsets = [0, 96], sizes = [256, 32], strides = [1, 1]} : vector<256x512xf32> to vector<256x32xf32>
    %86 = arith.truncf %85 : vector<256x32xf32> to vector<256x32xbf16>
    %cst_62 = arith.constant dense<0.000000e+00> : vector<256x32xf32>
    %87 = tpu.matmul %84, %86, %cst_62 {dimension_numbers = #tpu.dot_dimension_numbers<[1], [0], [0], [1], [0, 0, 1, 1], [], []>} : vector<256x256xbf16>, vector<256x32xbf16>, vector<256x32xf32> -> vector<256x32xf32>
    %88 = arith.addf %82, %87 : vector<256x32xf32>
    %c4_63 = arith.constant 4 : index
    %c0_64 = arith.constant 0 : index
    %c0_65 = arith.constant 0 : index
    %89 = vector.load %arg6[%c4_63, %c0_64, %c0_65] : memref<16x256x256xbf16, #tpu.memory_space<vmem>>, vector<1x256x256xbf16>
    %90 = vector.shape_cast %89 : vector<1x256x256xbf16> to vector<256x256xbf16>
    %91 = vector.extract_strided_slice %65 {offsets = [0, 128], sizes = [256, 32], strides = [1, 1]} : vector<256x512xf32> to vector<256x32xf32>
    %92 = arith.truncf %91 : vector<256x32xf32> to vector<256x32xbf16>
    %cst_66 = arith.constant dense<0.000000e+00> : vector<256x32xf32>
    %93 = tpu.matmul %90, %92, %cst_66 {dimension_numbers = #tpu.dot_dimension_numbers<[1], [0], [0], [1], [0, 0, 1, 1], [], []>} : vector<256x256xbf16>, vector<256x32xbf16>, vector<256x32xf32> -> vector<256x32xf32>
    %94 = arith.addf %88, %93 : vector<256x32xf32>
    %c5_67 = arith.constant 5 : index
    %c0_68 = arith.constant 0 : index
    %c0_69 = arith.constant 0 : index
    %95 = vector.load %arg6[%c5_67, %c0_68, %c0_69] : memref<16x256x256xbf16, #tpu.memory_space<vmem>>, vector<1x256x256xbf16>
    %96 = vector.shape_cast %95 : vector<1x256x256xbf16> to vector<256x256xbf16>
    %97 = vector.extract_strided_slice %65 {offsets = [0, 160], sizes = [256, 32], strides = [1, 1]} : vector<256x512xf32> to vector<256x32xf32>
    %98 = arith.truncf %97 : vector<256x32xf32> to vector<256x32xbf16>
    %cst_70 = arith.constant dense<0.000000e+00> : vector<256x32xf32>
    %99 = tpu.matmul %96, %98, %cst_70 {dimension_numbers = #tpu.dot_dimension_numbers<[1], [0], [0], [1], [0, 0, 1, 1], [], []>} : vector<256x256xbf16>, vector<256x32xbf16>, vector<256x32xf32> -> vector<256x32xf32>
    %100 = arith.addf %94, %99 : vector<256x32xf32>
    %c6_71 = arith.constant 6 : index
    %c0_72 = arith.constant 0 : index
    %c0_73 = arith.constant 0 : index
    %101 = vector.load %arg6[%c6_71, %c0_72, %c0_73] : memref<16x256x256xbf16, #tpu.memory_space<vmem>>, vector<1x256x256xbf16>
    %102 = vector.shape_cast %101 : vector<1x256x256xbf16> to vector<256x256xbf16>
    %103 = vector.extract_strided_slice %65 {offsets = [0, 192], sizes = [256, 32], strides = [1, 1]} : vector<256x512xf32> to vector<256x32xf32>
    %104 = arith.truncf %103 : vector<256x32xf32> to vector<256x32xbf16>
    %cst_74 = arith.constant dense<0.000000e+00> : vector<256x32xf32>
    %105 = tpu.matmul %102, %104, %cst_74 {dimension_numbers = #tpu.dot_dimension_numbers<[1], [0], [0], [1], [0, 0, 1, 1], [], []>} : vector<256x256xbf16>, vector<256x32xbf16>, vector<256x32xf32> -> vector<256x32xf32>
    %106 = arith.addf %100, %105 : vector<256x32xf32>
    %c7_75 = arith.constant 7 : index
    %c0_76 = arith.constant 0 : index
    %c0_77 = arith.constant 0 : index
    %107 = vector.load %arg6[%c7_75, %c0_76, %c0_77] : memref<16x256x256xbf16, #tpu.memory_space<vmem>>, vector<1x256x256xbf16>
    %108 = vector.shape_cast %107 : vector<1x256x256xbf16> to vector<256x256xbf16>
    %109 = vector.extract_strided_slice %65 {offsets = [0, 224], sizes = [256, 32], strides = [1, 1]} : vector<256x512xf32> to vector<256x32xf32>
    %110 = arith.truncf %109 : vector<256x32xf32> to vector<256x32xbf16>
    %cst_78 = arith.constant dense<0.000000e+00> : vector<256x32xf32>
    %111 = tpu.matmul %108, %110, %cst_78 {dimension_numbers = #tpu.dot_dimension_numbers<[1], [0], [0], [1], [0, 0, 1, 1], [], []>} : vector<256x256xbf16>, vector<256x32xbf16>, vector<256x32xf32> -> vector<256x32xf32>
    %112 = arith.addf %106, %111 : vector<256x32xf32>
    %c8 = arith.constant 8 : index
    %c0_79 = arith.constant 0 : index
    %c0_80 = arith.constant 0 : index
    %113 = vector.load %arg6[%c8, %c0_79, %c0_80] : memref<16x256x256xbf16, #tpu.memory_space<vmem>>, vector<1x256x256xbf16>
    %114 = vector.shape_cast %113 : vector<1x256x256xbf16> to vector<256x256xbf16>
    %115 = vector.extract_strided_slice %65 {offsets = [0, 256], sizes = [256, 32], strides = [1, 1]} : vector<256x512xf32> to vector<256x32xf32>
    %116 = arith.truncf %115 : vector<256x32xf32> to vector<256x32xbf16>
    %cst_81 = arith.constant dense<0.000000e+00> : vector<256x32xf32>
    %117 = tpu.matmul %114, %116, %cst_81 {dimension_numbers = #tpu.dot_dimension_numbers<[1], [0], [0], [1], [0, 0, 1, 1], [], []>} : vector<256x256xbf16>, vector<256x32xbf16>, vector<256x32xf32> -> vector<256x32xf32>
    %118 = arith.addf %112, %117 : vector<256x32xf32>
    %c9 = arith.constant 9 : index
    %c0_82 = arith.constant 0 : index
    %c0_83 = arith.constant 0 : index
    %119 = vector.load %arg6[%c9, %c0_82, %c0_83] : memref<16x256x256xbf16, #tpu.memory_space<vmem>>, vector<1x256x256xbf16>
    %120 = vector.shape_cast %119 : vector<1x256x256xbf16> to vector<256x256xbf16>
    %121 = vector.extract_strided_slice %65 {offsets = [0, 288], sizes = [256, 32], strides = [1, 1]} : vector<256x512xf32> to vector<256x32xf32>
    %122 = arith.truncf %121 : vector<256x32xf32> to vector<256x32xbf16>
    %cst_84 = arith.constant dense<0.000000e+00> : vector<256x32xf32>
    %123 = tpu.matmul %120, %122, %cst_84 {dimension_numbers = #tpu.dot_dimension_numbers<[1], [0], [0], [1], [0, 0, 1, 1], [], []>} : vector<256x256xbf16>, vector<256x32xbf16>, vector<256x32xf32> -> vector<256x32xf32>
    %124 = arith.addf %118, %123 : vector<256x32xf32>
    %c10 = arith.constant 10 : index
    %c0_85 = arith.constant 0 : index
    %c0_86 = arith.constant 0 : index
    %125 = vector.load %arg6[%c10, %c0_85, %c0_86] : memref<16x256x256xbf16, #tpu.memory_space<vmem>>, vector<1x256x256xbf16>
    %126 = vector.shape_cast %125 : vector<1x256x256xbf16> to vector<256x256xbf16>
    %127 = vector.extract_strided_slice %65 {offsets = [0, 320], sizes = [256, 32], strides = [1, 1]} : vector<256x512xf32> to vector<256x32xf32>
    %128 = arith.truncf %127 : vector<256x32xf32> to vector<256x32xbf16>
    %cst_87 = arith.constant dense<0.000000e+00> : vector<256x32xf32>
    %129 = tpu.matmul %126, %128, %cst_87 {dimension_numbers = #tpu.dot_dimension_numbers<[1], [0], [0], [1], [0, 0, 1, 1], [], []>} : vector<256x256xbf16>, vector<256x32xbf16>, vector<256x32xf32> -> vector<256x32xf32>
    %130 = arith.addf %124, %129 : vector<256x32xf32>
    %c11 = arith.constant 11 : index
    %c0_88 = arith.constant 0 : index
    %c0_89 = arith.constant 0 : index
    %131 = vector.load %arg6[%c11, %c0_88, %c0_89] : memref<16x256x256xbf16, #tpu.memory_space<vmem>>, vector<1x256x256xbf16>
    %132 = vector.shape_cast %131 : vector<1x256x256xbf16> to vector<256x256xbf16>
    %133 = vector.extract_strided_slice %65 {offsets = [0, 352], sizes = [256, 32], strides = [1, 1]} : vector<256x512xf32> to vector<256x32xf32>
    %134 = arith.truncf %133 : vector<256x32xf32> to vector<256x32xbf16>
    %cst_90 = arith.constant dense<0.000000e+00> : vector<256x32xf32>
    %135 = tpu.matmul %132, %134, %cst_90 {dimension_numbers = #tpu.dot_dimension_numbers<[1], [0], [0], [1], [0, 0, 1, 1], [], []>} : vector<256x256xbf16>, vector<256x32xbf16>, vector<256x32xf32> -> vector<256x32xf32>
    %136 = arith.addf %130, %135 : vector<256x32xf32>
    %c12 = arith.constant 12 : index
    %c0_91 = arith.constant 0 : index
    %c0_92 = arith.constant 0 : index
    %137 = vector.load %arg6[%c12, %c0_91, %c0_92] : memref<16x256x256xbf16, #tpu.memory_space<vmem>>, vector<1x256x256xbf16>
    %138 = vector.shape_cast %137 : vector<1x256x256xbf16> to vector<256x256xbf16>
    %139 = vector.extract_strided_slice %65 {offsets = [0, 384], sizes = [256, 32], strides = [1, 1]} : vector<256x512xf32> to vector<256x32xf32>
    %140 = arith.truncf %139 : vector<256x32xf32> to vector<256x32xbf16>
    %cst_93 = arith.constant dense<0.000000e+00> : vector<256x32xf32>
    %141 = tpu.matmul %138, %140, %cst_93 {dimension_numbers = #tpu.dot_dimension_numbers<[1], [0], [0], [1], [0, 0, 1, 1], [], []>} : vector<256x256xbf16>, vector<256x32xbf16>, vector<256x32xf32> -> vector<256x32xf32>
    %142 = arith.addf %136, %141 : vector<256x32xf32>
    %c13 = arith.constant 13 : index
    %c0_94 = arith.constant 0 : index
    %c0_95 = arith.constant 0 : index
    %143 = vector.load %arg6[%c13, %c0_94, %c0_95] : memref<16x256x256xbf16, #tpu.memory_space<vmem>>, vector<1x256x256xbf16>
    %144 = vector.shape_cast %143 : vector<1x256x256xbf16> to vector<256x256xbf16>
    %145 = vector.extract_strided_slice %65 {offsets = [0, 416], sizes = [256, 32], strides = [1, 1]} : vector<256x512xf32> to vector<256x32xf32>
    %146 = arith.truncf %145 : vector<256x32xf32> to vector<256x32xbf16>
    %cst_96 = arith.constant dense<0.000000e+00> : vector<256x32xf32>
    %147 = tpu.matmul %144, %146, %cst_96 {dimension_numbers = #tpu.dot_dimension_numbers<[1], [0], [0], [1], [0, 0, 1, 1], [], []>} : vector<256x256xbf16>, vector<256x32xbf16>, vector<256x32xf32> -> vector<256x32xf32>
    %148 = arith.addf %142, %147 : vector<256x32xf32>
    %c14 = arith.constant 14 : index
    %c0_97 = arith.constant 0 : index
    %c0_98 = arith.constant 0 : index
    %149 = vector.load %arg6[%c14, %c0_97, %c0_98] : memref<16x256x256xbf16, #tpu.memory_space<vmem>>, vector<1x256x256xbf16>
    %150 = vector.shape_cast %149 : vector<1x256x256xbf16> to vector<256x256xbf16>
    %151 = vector.extract_strided_slice %65 {offsets = [0, 448], sizes = [256, 32], strides = [1, 1]} : vector<256x512xf32> to vector<256x32xf32>
    %152 = arith.truncf %151 : vector<256x32xf32> to vector<256x32xbf16>
    %cst_99 = arith.constant dense<0.000000e+00> : vector<256x32xf32>
    %153 = tpu.matmul %150, %152, %cst_99 {dimension_numbers = #tpu.dot_dimension_numbers<[1], [0], [0], [1], [0, 0, 1, 1], [], []>} : vector<256x256xbf16>, vector<256x32xbf16>, vector<256x32xf32> -> vector<256x32xf32>
    %154 = arith.addf %148, %153 : vector<256x32xf32>
    %c15 = arith.constant 15 : index
    %c0_100 = arith.constant 0 : index
    %c0_101 = arith.constant 0 : index
    %155 = vector.load %arg6[%c15, %c0_100, %c0_101] : memref<16x256x256xbf16, #tpu.memory_space<vmem>>, vector<1x256x256xbf16>
    %156 = vector.shape_cast %155 : vector<1x256x256xbf16> to vector<256x256xbf16>
    %157 = vector.extract_strided_slice %65 {offsets = [0, 480], sizes = [256, 32], strides = [1, 1]} : vector<256x512xf32> to vector<256x32xf32>
    %158 = arith.truncf %157 : vector<256x32xf32> to vector<256x32xbf16>
    %cst_102 = arith.constant dense<0.000000e+00> : vector<256x32xf32>
    %159 = tpu.matmul %156, %158, %cst_102 {dimension_numbers = #tpu.dot_dimension_numbers<[1], [0], [0], [1], [0, 0, 1, 1], [], []>} : vector<256x256xbf16>, vector<256x32xbf16>, vector<256x32xf32> -> vector<256x32xf32>
    %160 = arith.addf %154, %159 : vector<256x32xf32>
    %c0_103 = arith.constant 0 : index
    %c1_104 = arith.constant 1 : index
    %161 = vector.load %arg5[%c0_103, %c1_104] : memref<256x2xf32, #tpu.memory_space<vmem>>, vector<256x1xf32>
    %162 = vector.broadcast %161 : vector<256x1xf32> to vector<256x32xf32>
    %163 = arith.addf %160, %162 : vector<256x32xf32>
    %cst_105 = arith.constant 0.000000e+00 : f32
    %164 = vector.broadcast %cst_105 : f32 to vector<256x32xf32>
    %165 = arith.cmpf ogt, %163, %164 : vector<256x32xf32>
    %cst_106 = arith.constant 0.000000e+00 : f32
    %166 = vector.broadcast %cst_106 : f32 to vector<256x32xf32>
    %167 = arith.minimumf %163, %166 : vector<256x32xf32>
    %168 = math.exp %167 : vector<256x32xf32>
    %cst_107 = arith.constant 1.000000e+00 : f32
    %169 = vector.broadcast %cst_107 : f32 to vector<256x32xf32>
    %170 = arith.subf %168, %169 : vector<256x32xf32>
    %171 = arith.select %165, %163, %170 : vector<256x32xi1>, vector<256x32xf32>
    %172 = arith.truncf %171 : vector<256x32xf32> to vector<256x32xbf16>
    %173 = vector.extract_strided_slice %172 {offsets = [0, 0], sizes = [16, 32], strides = [1, 1]} : vector<256x32xbf16> to vector<16x32xbf16>
    %c0_108 = arith.constant 0 : index
    %c0_109 = arith.constant 0 : index
    %c0_110 = arith.constant 0 : index
    %174 = vector.load %arg7[%c0_108, %c0_109, %c0_110] : memref<16x32x128xbf16, #tpu.memory_space<vmem>>, vector<1x32x128xbf16>
    %175 = vector.shape_cast %174 : vector<1x32x128xbf16> to vector<32x128xbf16>
    %cst_111 = arith.constant dense<0.000000e+00> : vector<16x128xf32>
    %176 = tpu.matmul %173, %175, %cst_111 {dimension_numbers = #tpu.dot_dimension_numbers<[1], [0], [0], [1], [0, 0, 1, 1], [], []>} : vector<16x32xbf16>, vector<32x128xbf16>, vector<16x128xf32> -> vector<16x128xf32>
    %177 = vector.extract_strided_slice %172 {offsets = [16, 0], sizes = [16, 32], strides = [1, 1]} : vector<256x32xbf16> to vector<16x32xbf16>
    %c1_112 = arith.constant 1 : index
    %c0_113 = arith.constant 0 : index
    %c0_114 = arith.constant 0 : index
    %178 = vector.load %arg7[%c1_112, %c0_113, %c0_114] : memref<16x32x128xbf16, #tpu.memory_space<vmem>>, vector<1x32x128xbf16>
    %179 = vector.shape_cast %178 : vector<1x32x128xbf16> to vector<32x128xbf16>
    %cst_115 = arith.constant dense<0.000000e+00> : vector<16x128xf32>
    %180 = tpu.matmul %177, %179, %cst_115 {dimension_numbers = #tpu.dot_dimension_numbers<[1], [0], [0], [1], [0, 0, 1, 1], [], []>} : vector<16x32xbf16>, vector<32x128xbf16>, vector<16x128xf32> -> vector<16x128xf32>
    %181 = arith.addf %176, %180 : vector<16x128xf32>
    %182 = vector.extract_strided_slice %172 {offsets = [32, 0], sizes = [16, 32], strides = [1, 1]} : vector<256x32xbf16> to vector<16x32xbf16>
    %c2_116 = arith.constant 2 : index
    %c0_117 = arith.constant 0 : index
    %c0_118 = arith.constant 0 : index
    %183 = vector.load %arg7[%c2_116, %c0_117, %c0_118] : memref<16x32x128xbf16, #tpu.memory_space<vmem>>, vector<1x32x128xbf16>
    %184 = vector.shape_cast %183 : vector<1x32x128xbf16> to vector<32x128xbf16>
    %cst_119 = arith.constant dense<0.000000e+00> : vector<16x128xf32>
    %185 = tpu.matmul %182, %184, %cst_119 {dimension_numbers = #tpu.dot_dimension_numbers<[1], [0], [0], [1], [0, 0, 1, 1], [], []>} : vector<16x32xbf16>, vector<32x128xbf16>, vector<16x128xf32> -> vector<16x128xf32>
    %186 = arith.addf %181, %185 : vector<16x128xf32>
    %187 = vector.extract_strided_slice %172 {offsets = [48, 0], sizes = [16, 32], strides = [1, 1]} : vector<256x32xbf16> to vector<16x32xbf16>
    %c3_120 = arith.constant 3 : index
    %c0_121 = arith.constant 0 : index
    %c0_122 = arith.constant 0 : index
    %188 = vector.load %arg7[%c3_120, %c0_121, %c0_122] : memref<16x32x128xbf16, #tpu.memory_space<vmem>>, vector<1x32x128xbf16>
    %189 = vector.shape_cast %188 : vector<1x32x128xbf16> to vector<32x128xbf16>
    %cst_123 = arith.constant dense<0.000000e+00> : vector<16x128xf32>
    %190 = tpu.matmul %187, %189, %cst_123 {dimension_numbers = #tpu.dot_dimension_numbers<[1], [0], [0], [1], [0, 0, 1, 1], [], []>} : vector<16x32xbf16>, vector<32x128xbf16>, vector<16x128xf32> -> vector<16x128xf32>
    %191 = arith.addf %186, %190 : vector<16x128xf32>
    %192 = vector.extract_strided_slice %172 {offsets = [64, 0], sizes = [16, 32], strides = [1, 1]} : vector<256x32xbf16> to vector<16x32xbf16>
    %c4_124 = arith.constant 4 : index
    %c0_125 = arith.constant 0 : index
    %c0_126 = arith.constant 0 : index
    %193 = vector.load %arg7[%c4_124, %c0_125, %c0_126] : memref<16x32x128xbf16, #tpu.memory_space<vmem>>, vector<1x32x128xbf16>
    %194 = vector.shape_cast %193 : vector<1x32x128xbf16> to vector<32x128xbf16>
    %cst_127 = arith.constant dense<0.000000e+00> : vector<16x128xf32>
    %195 = tpu.matmul %192, %194, %cst_127 {dimension_numbers = #tpu.dot_dimension_numbers<[1], [0], [0], [1], [0, 0, 1, 1], [], []>} : vector<16x32xbf16>, vector<32x128xbf16>, vector<16x128xf32> -> vector<16x128xf32>
    %196 = arith.addf %191, %195 : vector<16x128xf32>
    %197 = vector.extract_strided_slice %172 {offsets = [80, 0], sizes = [16, 32], strides = [1, 1]} : vector<256x32xbf16> to vector<16x32xbf16>
    %c5_128 = arith.constant 5 : index
    %c0_129 = arith.constant 0 : index
    %c0_130 = arith.constant 0 : index
    %198 = vector.load %arg7[%c5_128, %c0_129, %c0_130] : memref<16x32x128xbf16, #tpu.memory_space<vmem>>, vector<1x32x128xbf16>
    %199 = vector.shape_cast %198 : vector<1x32x128xbf16> to vector<32x128xbf16>
    %cst_131 = arith.constant dense<0.000000e+00> : vector<16x128xf32>
    %200 = tpu.matmul %197, %199, %cst_131 {dimension_numbers = #tpu.dot_dimension_numbers<[1], [0], [0], [1], [0, 0, 1, 1], [], []>} : vector<16x32xbf16>, vector<32x128xbf16>, vector<16x128xf32> -> vector<16x128xf32>
    %201 = arith.addf %196, %200 : vector<16x128xf32>
    %202 = vector.extract_strided_slice %172 {offsets = [96, 0], sizes = [16, 32], strides = [1, 1]} : vector<256x32xbf16> to vector<16x32xbf16>
    %c6_132 = arith.constant 6 : index
    %c0_133 = arith.constant 0 : index
    %c0_134 = arith.constant 0 : index
    %203 = vector.load %arg7[%c6_132, %c0_133, %c0_134] : memref<16x32x128xbf16, #tpu.memory_space<vmem>>, vector<1x32x128xbf16>
    %204 = vector.shape_cast %203 : vector<1x32x128xbf16> to vector<32x128xbf16>
    %cst_135 = arith.constant dense<0.000000e+00> : vector<16x128xf32>
    %205 = tpu.matmul %202, %204, %cst_135 {dimension_numbers = #tpu.dot_dimension_numbers<[1], [0], [0], [1], [0, 0, 1, 1], [], []>} : vector<16x32xbf16>, vector<32x128xbf16>, vector<16x128xf32> -> vector<16x128xf32>
    %206 = arith.addf %201, %205 : vector<16x128xf32>
    %207 = vector.extract_strided_slice %172 {offsets = [112, 0], sizes = [16, 32], strides = [1, 1]} : vector<256x32xbf16> to vector<16x32xbf16>
    %c7_136 = arith.constant 7 : index
    %c0_137 = arith.constant 0 : index
    %c0_138 = arith.constant 0 : index
    %208 = vector.load %arg7[%c7_136, %c0_137, %c0_138] : memref<16x32x128xbf16, #tpu.memory_space<vmem>>, vector<1x32x128xbf16>
    %209 = vector.shape_cast %208 : vector<1x32x128xbf16> to vector<32x128xbf16>
    %cst_139 = arith.constant dense<0.000000e+00> : vector<16x128xf32>
    %210 = tpu.matmul %207, %209, %cst_139 {dimension_numbers = #tpu.dot_dimension_numbers<[1], [0], [0], [1], [0, 0, 1, 1], [], []>} : vector<16x32xbf16>, vector<32x128xbf16>, vector<16x128xf32> -> vector<16x128xf32>
    %211 = arith.addf %206, %210 : vector<16x128xf32>
    %212 = vector.extract_strided_slice %172 {offsets = [128, 0], sizes = [16, 32], strides = [1, 1]} : vector<256x32xbf16> to vector<16x32xbf16>
    %c8_140 = arith.constant 8 : index
    %c0_141 = arith.constant 0 : index
    %c0_142 = arith.constant 0 : index
    %213 = vector.load %arg7[%c8_140, %c0_141, %c0_142] : memref<16x32x128xbf16, #tpu.memory_space<vmem>>, vector<1x32x128xbf16>
    %214 = vector.shape_cast %213 : vector<1x32x128xbf16> to vector<32x128xbf16>
    %cst_143 = arith.constant dense<0.000000e+00> : vector<16x128xf32>
    %215 = tpu.matmul %212, %214, %cst_143 {dimension_numbers = #tpu.dot_dimension_numbers<[1], [0], [0], [1], [0, 0, 1, 1], [], []>} : vector<16x32xbf16>, vector<32x128xbf16>, vector<16x128xf32> -> vector<16x128xf32>
    %216 = arith.addf %211, %215 : vector<16x128xf32>
    %217 = vector.extract_strided_slice %172 {offsets = [144, 0], sizes = [16, 32], strides = [1, 1]} : vector<256x32xbf16> to vector<16x32xbf16>
    %c9_144 = arith.constant 9 : index
    %c0_145 = arith.constant 0 : index
    %c0_146 = arith.constant 0 : index
    %218 = vector.load %arg7[%c9_144, %c0_145, %c0_146] : memref<16x32x128xbf16, #tpu.memory_space<vmem>>, vector<1x32x128xbf16>
    %219 = vector.shape_cast %218 : vector<1x32x128xbf16> to vector<32x128xbf16>
    %cst_147 = arith.constant dense<0.000000e+00> : vector<16x128xf32>
    %220 = tpu.matmul %217, %219, %cst_147 {dimension_numbers = #tpu.dot_dimension_numbers<[1], [0], [0], [1], [0, 0, 1, 1], [], []>} : vector<16x32xbf16>, vector<32x128xbf16>, vector<16x128xf32> -> vector<16x128xf32>
    %221 = arith.addf %216, %220 : vector<16x128xf32>
    %222 = vector.extract_strided_slice %172 {offsets = [160, 0], sizes = [16, 32], strides = [1, 1]} : vector<256x32xbf16> to vector<16x32xbf16>
    %c10_148 = arith.constant 10 : index
    %c0_149 = arith.constant 0 : index
    %c0_150 = arith.constant 0 : index
    %223 = vector.load %arg7[%c10_148, %c0_149, %c0_150] : memref<16x32x128xbf16, #tpu.memory_space<vmem>>, vector<1x32x128xbf16>
    %224 = vector.shape_cast %223 : vector<1x32x128xbf16> to vector<32x128xbf16>
    %cst_151 = arith.constant dense<0.000000e+00> : vector<16x128xf32>
    %225 = tpu.matmul %222, %224, %cst_151 {dimension_numbers = #tpu.dot_dimension_numbers<[1], [0], [0], [1], [0, 0, 1, 1], [], []>} : vector<16x32xbf16>, vector<32x128xbf16>, vector<16x128xf32> -> vector<16x128xf32>
    %226 = arith.addf %221, %225 : vector<16x128xf32>
    %227 = vector.extract_strided_slice %172 {offsets = [176, 0], sizes = [16, 32], strides = [1, 1]} : vector<256x32xbf16> to vector<16x32xbf16>
    %c11_152 = arith.constant 11 : index
    %c0_153 = arith.constant 0 : index
    %c0_154 = arith.constant 0 : index
    %228 = vector.load %arg7[%c11_152, %c0_153, %c0_154] : memref<16x32x128xbf16, #tpu.memory_space<vmem>>, vector<1x32x128xbf16>
    %229 = vector.shape_cast %228 : vector<1x32x128xbf16> to vector<32x128xbf16>
    %cst_155 = arith.constant dense<0.000000e+00> : vector<16x128xf32>
    %230 = tpu.matmul %227, %229, %cst_155 {dimension_numbers = #tpu.dot_dimension_numbers<[1], [0], [0], [1], [0, 0, 1, 1], [], []>} : vector<16x32xbf16>, vector<32x128xbf16>, vector<16x128xf32> -> vector<16x128xf32>
    %231 = arith.addf %226, %230 : vector<16x128xf32>
    %232 = vector.extract_strided_slice %172 {offsets = [192, 0], sizes = [16, 32], strides = [1, 1]} : vector<256x32xbf16> to vector<16x32xbf16>
    %c12_156 = arith.constant 12 : index
    %c0_157 = arith.constant 0 : index
    %c0_158 = arith.constant 0 : index
    %233 = vector.load %arg7[%c12_156, %c0_157, %c0_158] : memref<16x32x128xbf16, #tpu.memory_space<vmem>>, vector<1x32x128xbf16>
    %234 = vector.shape_cast %233 : vector<1x32x128xbf16> to vector<32x128xbf16>
    %cst_159 = arith.constant dense<0.000000e+00> : vector<16x128xf32>
    %235 = tpu.matmul %232, %234, %cst_159 {dimension_numbers = #tpu.dot_dimension_numbers<[1], [0], [0], [1], [0, 0, 1, 1], [], []>} : vector<16x32xbf16>, vector<32x128xbf16>, vector<16x128xf32> -> vector<16x128xf32>
    %236 = arith.addf %231, %235 : vector<16x128xf32>
    %237 = vector.extract_strided_slice %172 {offsets = [208, 0], sizes = [16, 32], strides = [1, 1]} : vector<256x32xbf16> to vector<16x32xbf16>
    %c13_160 = arith.constant 13 : index
    %c0_161 = arith.constant 0 : index
    %c0_162 = arith.constant 0 : index
    %238 = vector.load %arg7[%c13_160, %c0_161, %c0_162] : memref<16x32x128xbf16, #tpu.memory_space<vmem>>, vector<1x32x128xbf16>
    %239 = vector.shape_cast %238 : vector<1x32x128xbf16> to vector<32x128xbf16>
    %cst_163 = arith.constant dense<0.000000e+00> : vector<16x128xf32>
    %240 = tpu.matmul %237, %239, %cst_163 {dimension_numbers = #tpu.dot_dimension_numbers<[1], [0], [0], [1], [0, 0, 1, 1], [], []>} : vector<16x32xbf16>, vector<32x128xbf16>, vector<16x128xf32> -> vector<16x128xf32>
    %241 = arith.addf %236, %240 : vector<16x128xf32>
    %242 = vector.extract_strided_slice %172 {offsets = [224, 0], sizes = [16, 32], strides = [1, 1]} : vector<256x32xbf16> to vector<16x32xbf16>
    %c14_164 = arith.constant 14 : index
    %c0_165 = arith.constant 0 : index
    %c0_166 = arith.constant 0 : index
    %243 = vector.load %arg7[%c14_164, %c0_165, %c0_166] : memref<16x32x128xbf16, #tpu.memory_space<vmem>>, vector<1x32x128xbf16>
    %244 = vector.shape_cast %243 : vector<1x32x128xbf16> to vector<32x128xbf16>
    %cst_167 = arith.constant dense<0.000000e+00> : vector<16x128xf32>
    %245 = tpu.matmul %242, %244, %cst_167 {dimension_numbers = #tpu.dot_dimension_numbers<[1], [0], [0], [1], [0, 0, 1, 1], [], []>} : vector<16x32xbf16>, vector<32x128xbf16>, vector<16x128xf32> -> vector<16x128xf32>
    %246 = arith.addf %241, %245 : vector<16x128xf32>
    %247 = vector.extract_strided_slice %172 {offsets = [240, 0], sizes = [16, 32], strides = [1, 1]} : vector<256x32xbf16> to vector<16x32xbf16>
    %c15_168 = arith.constant 15 : index
    %c0_169 = arith.constant 0 : index
    %c0_170 = arith.constant 0 : index
    %248 = vector.load %arg7[%c15_168, %c0_169, %c0_170] : memref<16x32x128xbf16, #tpu.memory_space<vmem>>, vector<1x32x128xbf16>
    %249 = vector.shape_cast %248 : vector<1x32x128xbf16> to vector<32x128xbf16>
    %cst_171 = arith.constant dense<0.000000e+00> : vector<16x128xf32>
    %250 = tpu.matmul %247, %249, %cst_171 {dimension_numbers = #tpu.dot_dimension_numbers<[1], [0], [0], [1], [0, 0, 1, 1], [], []>} : vector<16x32xbf16>, vector<32x128xbf16>, vector<16x128xf32> -> vector<16x128xf32>
    %251 = arith.addf %246, %250 : vector<16x128xf32>
    %c0_172 = arith.constant 0 : index
    %c0_173 = arith.constant 0 : index
    %252 = vector.load %arg8[%c0_172, %c0_173] : memref<1x128xf32, #tpu.memory_space<vmem>>, vector<1x128xf32>
    %253 = vector.broadcast %252 : vector<1x128xf32> to vector<16x128xf32>
    %254 = arith.addf %251, %253 : vector<16x128xf32>
    %c0_174 = arith.constant 0 : index
    %c0_175 = arith.constant 0 : index
    %255 = vector.load %arg9[%c0_174, %c0_175] : memref<16x128xf32, #tpu.memory_space<vmem>>, vector<16x128xf32>
    tpu.vector_store %arg9[%c0_174, %c0_175], %254 {strides = array<i32>} : memref<16x128xf32, #tpu.memory_space<vmem>>, vector<16x128xf32>,
    return
  }
  func.func @transform_0(%arg0: i32) -> (i32, i32) {
    %c0_i32 = arith.constant 0 : i32
    %c0_i32_0 = arith.constant 0 : i32
    return %arg0, %c0_i32 : i32, i32
  }
  func.func @transform_1(%arg0: i32) -> (i32, i32) {
    %c0_i32 = arith.constant 0 : i32
    %c0_i32_0 = arith.constant 0 : i32
    %c0_i32_1 = arith.constant 0 : i32
    return %c0_i32, %c0_i32_0 : i32, i32
  }
  func.func @transform_2(%arg0: i32) -> (i32, i32, i32) {
    %c0_i32 = arith.constant 0 : i32
    %c0_i32_0 = arith.constant 0 : i32
    %c0_i32_1 = arith.constant 0 : i32
    %c0_i32_2 = arith.constant 0 : i32
    return %c0_i32, %c0_i32_0, %c0_i32_1 : i32, i32, i32
  }
  func.func @transform_3(%arg0: i32) -> (i32, i32) {
    %c0_i32 = arith.constant 0 : i32
    %c0_i32_0 = arith.constant 0 : i32
    %c0_i32_1 = arith.constant 0 : i32
    return %c0_i32, %c0_i32_0 : i32, i32
  }
  func.func @transform_4(%arg0: i32) -> (i32, i32) {
    %c0_i32 = arith.constant 0 : i32
    %c0_i32_0 = arith.constant 0 : i32
    %c0_i32_1 = arith.constant 0 : i32
    return %c0_i32, %c0_i32_0 : i32, i32
  }
  func.func @transform_5(%arg0: i32) -> (i32, i32, i32) {
    %c0_i32 = arith.constant 0 : i32
    %c0_i32_0 = arith.constant 0 : i32
    %c0_i32_1 = arith.constant 0 : i32
    %c0_i32_2 = arith.constant 0 : i32
    return %c0_i32, %c0_i32_0, %c0_i32_1 : i32, i32, i32
  }
  func.func @transform_6(%arg0: i32) -> (i32, i32, i32) {
    %c0_i32 = arith.constant 0 : i32
    %c0_i32_0 = arith.constant 0 : i32
    %c0_i32_1 = arith.constant 0 : i32
    %c0_i32_2 = arith.constant 0 : i32
    return %c0_i32, %c0_i32_0, %c0_i32_1 : i32, i32, i32
  }
  func.func @transform_7(%arg0: i32) -> (i32, i32) {
    %c0_i32 = arith.constant 0 : i32
    %c0_i32_0 = arith.constant 0 : i32
    %c0_i32_1 = arith.constant 0 : i32
    return %c0_i32, %c0_i32_0 : i32, i32
  }
  func.func @transform_8(%arg0: i32) -> (i32, i32) {
    %c0_i32 = arith.constant 0 : i32
    %c0_i32_0 = arith.constant 0 : i32
    return %arg0, %c0_i32 : i32, i32
  }
}

</mosaic_0001>

<llo_original>
// kernel: mul.41
$region0: #{mul.41}
  %s0 = inlined_call_operand.vmem [shape: f32[16], index: 0, kind: input, shape index: {}]
  %s1 = inlined_call_operand.vmem [shape: f32[8,2], index: 1, kind: output, shape index: {}]
  $region1: #{mul.41} parent=0
    #allocation0 [shape = 'u8[4096]{0}', space=vmem, size = 0x1000, scoped, tag = 'scoped mem for input reshape']
    %s3 = sshllo.u32 0, 1
    %v4 = vld [vmem:[%s0] sm:%s3]
    %5 = vst [vmem:[#allocation0] sm:%s3] %v4
    %v6 = vld [vmem:[#allocation0] sm:$0x1]
    %vm7 = vcmask 15360
    %8 = vst.msk [vmem:[%s1] sm:$0x1] %vm7, %v6
    %v9 = vld [vmem:[#allocation0] sm:$0x1]
    %10 = vrot.lane.b32.xlu0 %v9, 126
    %v11 = vpop.permute.xlu0 %10
    %vm12 = vcmask 15360
    %s13 = scalar_lea.vmem %s1, 1
    %14 = vst.msk [vmem:[%s13] sm:$0x1] %vm12, %v11
    %v15 = vld [vmem:[#allocation0] sm:$0x1]
    %16 = vrot.lane.b32.xlu0 %v15, 124
    %v17 = vpop.permute.xlu0 %16
    %vm18 = vcmask 15360
    %s19 = scalar_lea.vmem %s1, 2
    %20 = vst.msk [vmem:[%s19] sm:$0x1] %vm18, %v17
    %v21 = vld [vmem:[#allocation0] sm:$0x1]
    %22 = vrot.lane.b32.xlu0 %v21, 122
    %v23 = vpop.permute.xlu0 %22
    %vm24 = vcmask 15360
    %s25 = scalar_lea.vmem %s1, 3
    %26 = vst.msk [vmem:[%s25] sm:$0x1] %vm24, %v23
    %v27 = vld [vmem:[#allocation0] sm:$0x1]
    %28 = vrot.lane.b32.xlu0 %v27, 120
    %v29 = vpop.permute.xlu0 %28
    %vm30 = vcmask 15360
    %s31 = scalar_lea.vmem %s1, 4
    %32 = vst.msk [vmem:[%s31] sm:$0x1] %vm30, %v29
    %v33 = vld [vmem:[#allocation0] sm:$0x1]
    %34 = vrot.lane.b32.xlu0 %v33, 118
    %v35 = vpop.permute.xlu0 %34
    %vm36 = vcmask 15360
    %s37 = scalar_lea.vmem %s1, 5
    %38 = vst.msk [vmem:[%s37] sm:$0x1] %vm36, %v35
    %v39 = vld [vmem:[#allocation0] sm:$0x1]
    %40 = vrot.lane.b32.xlu0 %v39, 116
    %v41 = vpop.permute.xlu0 %40
    %vm42 = vcmask 15360
    %s43 = scalar_lea.vmem %s1, 6
    %44 = vst.msk [vmem:[%s43] sm:$0x1] %vm42, %v41
    %v45 = vld [vmem:[#allocation0] sm:$0x1]
    %46 = vrot.lane.b32.xlu0 %v45, 114
    %v47 = vpop.permute.xlu0 %46
    %vm48 = vcmask 15360
    %s49 = scalar_lea.vmem %s1, 7
    %50 = vst.msk [vmem:[%s49] sm:$0x1] %vm48, %v47

// kernel: eegnet_forward.1
$region0: #{eegnet_forward.1}
  #allocation0 [shape = 'u32[]', space=smem, size = 0x4, offset = 0x4, fixed_abs, tag = 'smem constant byte address 0x4 - core index']
  #allocation1 [shape = 'u32[144,128]{1,0:T(1,128)}', space=vmem, size = 0x12000, scoped, tag = 'internal scratch']
  #allocation2 [shape = 'f32[256,128]{1,0:T(8,128)}', space=vmem, size = 0x20000, scoped, tag = 'scratch operand']
  %s0 = inlined_call_operand.vmem [shape: bf16[256,192], index: 0, kind: input, shape index: {}]
  %s1 = inlined_call_operand.vmem [shape: bf16[192,1024], index: 1, kind: input, shape index: {}]
  %s2 = inlined_call_operand.vmem [shape: bf16[8,32,128], index: 2, kind: input, shape index: {}]
  %s3 = inlined_call_operand.vmem [shape: bf16[128,512], index: 3, kind: input, shape index: {}]
  %s4 = inlined_call_operand.vmem [shape: f32[256,2], index: 4, kind: input, shape index: {}]
  %s5 = inlined_call_operand.vmem [shape: bf16[16,256,256], index: 5, kind: input, shape index: {}]
  %s6 = inlined_call_operand.vmem [shape: bf16[16,32,128], index: 6, kind: input, shape index: {}]
  %s7 = inlined_call_operand.vmem [shape: f32[1,128], index: 7, kind: input, shape index: {}]
  %s8 = inlined_call_operand.vmem [shape: f32[32,128], index: 8, kind: output, shape index: {}]
  %s9 = sld [smem:[#allocation0]]
  $region65: #{eegnet_forward.1} parent=0
    _
  %s11 = ssub.s32 1, %s9
  %s12 = scalar_select 0, %s11, %s9
  loop: start=0, step=1, limit=4
  $region2: #{eegnet_forward.1} parent=0 // loop_pre_header
    _
  $region3: #{eegnet_forward.1} parent=0 // loop_header
    %s14 = sphi 0, %s18
    %p15 = scmp.ge.s32.totalorder %s14, 4
    %s24 = sphi 0, %s26
    %s27 = sphi 0, %s24
    %s28 = sphi 0, %s27
    %s44 = sphi 0, %s28
    %s48 = sphi 0, %s48
    %s50 = sphi 0, %s48
    %s51 = sphi 0, %s50
    %s65 = sphi 0, %s51
    %s69 = sphi 0, %s69
    %s71 = sphi 0, %s69
    %s72 = sphi 0, %s71
    %s86 = sphi 0, %s72
    %s90 = sphi 0, %s90
    %s92 = sphi 0, %s90
    %s93 = sphi 0, %s92
    %s107 = sphi 0, %s93
    %s111 = sphi 0, %s111
    %s113 = sphi 0, %s111
    %s114 = sphi 0, %s113
    %s128 = sphi 0, %s114
    %s132 = sphi 0, %s132
    %s134 = sphi 0, %s132
    %s135 = sphi 0, %s134
    %s149 = sphi 0, %s135
    %s153 = sphi 0, %s153
    %s155 = sphi 0, %s153
    %s156 = sphi 0, %s155
    %s170 = sphi 0, %s156
    %s174 = sphi 0, %s174
    %s176 = sphi 0, %s174
    %s177 = sphi 0, %s176
    %s191 = sphi 0, %s177
    %s197 = sphi 0, %s199
    %s200 = sphi 0, %s197
    %s201 = sphi 0, %s200
    %s217 = sphi 0, %s201
  $region4: #{eegnet_forward.1} parent=0 // loop_header_branch
    %17 = sbr.rel (%p15) target = $region8
  $region5: #{eegnet_forward.1} parent=0 // loop_body
    %s19 = ssub.s32 %s14, 1
    %s20 = ssub.s32 %s14, 2
    %s21 = sadd.s32 %s14, 1
    %s22 = ssub.s32 %s14, %s21
    %p23 = scmp.eq.s32.totalorder %s22, 0
    %s25 = sadd.s32 %s24, 1
    %s26 = scalar_select %p23, %s24, %s25
    %p29 = pneg %p23
    %p30 = scmp.eq.s32.totalorder %s14, 1
    %p31 = por %p29, %p30
    %p32 = scmp.ne.s32.totalorder %s24, %s27
    %p33 = scmp.eq.s32.totalorder %s14, 0
    %p34 = por %p32, %p33
    %p35 = scmp.ne.s32.totalorder %s24, %s27
    %p36 = scmp.eq.s32.totalorder %s19, 1
    %p37 = por %p35, %p36
    %p38 = scmp.ne.s32.totalorder %s27, %s28
    %p39 = scmp.eq.s32.totalorder %s19, 0
    %p40 = por %p38, %p39
    %p41 = scmp.ne.s32.totalorder %s27, %s28
    %p42 = scmp.eq.s32.totalorder %s20, 1
    %p43 = por %p41, %p42
    %p45 = scmp.ne.s32.totalorder %s28, %s44
    %p46 = scmp.eq.s32.totalorder %s20, 0
    %p47 = por %p45, %p46
    %s49 = sadd.s32 %s48, 1
    %p52 = scmp.eq.s32.totalorder %s14, 1
    %p53 = scmp.ne.s32.totalorder %s48, %s50
    %p54 = scmp.eq.s32.totalorder %s14, 0
    %p55 = por %p53, %p54
    %p56 = scmp.ne.s32.totalorder %s48, %s50
    %p57 = scmp.eq.s32.totalorder %s19, 1
    %p58 = por %p56, %p57
    %p59 = scmp.ne.s32.totalorder %s50, %s51
    %p60 = scmp.eq.s32.totalorder %s19, 0
    %p61 = por %p59, %p60
    %p62 = scmp.ne.s32.totalorder %s50, %s51
    %p63 = scmp.eq.s32.totalorder %s20, 1
    %p64 = por %p62, %p63
    %p66 = scmp.ne.s32.totalorder %s51, %s65
    %p67 = scmp.eq.s32.totalorder %s20, 0
    %p68 = por %p66, %p67
    %s70 = sadd.s32 %s69, 1
    %p73 = scmp.eq.s32.totalorder %s14, 1
    %p74 = scmp.ne.s32.totalorder %s69, %s71
    %p75 = scmp.eq.s32.totalorder %s14, 0
    %p76 = por %p74, %p75
    %p77 = scmp.ne.s32.totalorder %s69, %s71
    %p78 = scmp.eq.s32.totalorder %s19, 1
    %p79 = por %p77, %p78
    %p80 = scmp.ne.s32.totalorder %s71, %s72
    %p81 = scmp.eq.s32.totalorder %s19, 0
    %p82 = por %p80, %p81
    %p83 = scmp.ne.s32.totalorder %s71, %s72
    %p84 = scmp.eq.s32.totalorder %s20, 1
    %p85 = por %p83, %p84
    %p87 = scmp.ne.s32.totalorder %s72, %s86
    %p88 = scmp.eq.s32.totalorder %s20, 0
    %p89 = por %p87, %p88
    %s91 = sadd.s32 %s90, 1
    %p94 = scmp.eq.s32.totalorder %s14, 1
    %p95 = scmp.ne.s32.totalorder %s90, %s92
    %p96 = scmp.eq.s32.totalorder %s14, 0
    %p97 = por %p95, %p96
    %p98 = scmp.ne.s32.totalorder %s90, %s92
    %p99 = scmp.eq.s32.totalorder %s19, 1
    %p100 = por %p98, %p99
    %p101 = scmp.ne.s32.totalorder %s92, %s93
    %p102 = scmp.eq.s32.totalorder %s19, 0
    %p103 = por %p101, %p102
    %p104 = scmp.ne.s32.totalorder %s92, %s93
    %p105 = scmp.eq.s32.totalorder %s20, 1
    %p106 = por %p104, %p105
    %p108 = scmp.ne.s32.totalorder %s93, %s107
    %p109 = scmp.eq.s32.totalorder %s20, 0
    %p110 = por %p108, %p109
    %s112 = sadd.s32 %s111, 1
    %p115 = scmp.eq.s32.totalorder %s14, 1
    %p116 = scmp.ne.s32.totalorder %s111, %s113
    %p117 = scmp.eq.s32.totalorder %s14, 0
    %p118 = por %p116, %p117
    %p119 = scmp.ne.s32.totalorder %s111, %s113
    %p120 = scmp.eq.s32.totalorder %s19, 1
    %p121 = por %p119, %p120
    %p122 = scmp.ne.s32.totalorder %s113, %s114
    %p123 = scmp.eq.s32.totalorder %s19, 0
    %p124 = por %p122, %p123
    %p125 = scmp.ne.s32.totalorder %s113, %s114
    %p126 = scmp.eq.s32.totalorder %s20, 1
    %p127 = por %p125, %p126
    %p129 = scmp.ne.s32.totalorder %s114, %s128
    %p130 = scmp.eq.s32.totalorder %s20, 0
    %p131 = por %p129, %p130
    %s133 = sadd.s32 %s132, 1
    %p136 = scmp.eq.s32.totalorder %s14, 1
    %p137 = scmp.ne.s32.totalorder %s132, %s134
    %p138 = scmp.eq.s32.totalorder %s14, 0
    %p139 = por %p137, %p138
    %p140 = scmp.ne.s32.totalorder %s132, %s134
    %p141 = scmp.eq.s32.totalorder %s19, 1
    %p142 = por %p140, %p141
    %p143 = scmp.ne.s32.totalorder %s134, %s135
    %p144 = scmp.eq.s32.totalorder %s19, 0
    %p145 = por %p143, %p144
    %p146 = scmp.ne.s32.totalorder %s134, %s135
    %p147 = scmp.eq.s32.totalorder %s20, 1
    %p148 = por %p146, %p147
    %p150 = scmp.ne.s32.totalorder %s135, %s149
    %p151 = scmp.eq.s32.totalorder %s20, 0
    %p152 = por %p150, %p151
    %s154 = sadd.s32 %s153, 1
    %p157 = scmp.eq.s32.totalorder %s14, 1
    %p158 = scmp.ne.s32.totalorder %s153, %s155
    %p159 = scmp.eq.s32.totalorder %s14, 0
    %p160 = por %p158, %p159
    %p161 = scmp.ne.s32.totalorder %s153, %s155
    %p162 = scmp.eq.s32.totalorder %s19, 1
    %p163 = por %p161, %p162
    %p164 = scmp.ne.s32.totalorder %s155, %s156
    %p165 = scmp.eq.s32.totalorder %s19, 0
    %p166 = por %p164, %p165
    %p167 = scmp.ne.s32.totalorder %s155, %s156
    %p168 = scmp.eq.s32.totalorder %s20, 1
    %p169 = por %p167, %p168
    %p171 = scmp.ne.s32.totalorder %s156, %s170
    %p172 = scmp.eq.s32.totalorder %s20, 0
    %p173 = por %p171, %p172
    %s175 = sadd.s32 %s174, 1
    %p178 = scmp.eq.s32.totalorder %s14, 1
    %p179 = scmp.ne.s32.totalorder %s174, %s176
    %p180 = scmp.eq.s32.totalorder %s14, 0
    %p181 = por %p179, %p180
    %p182 = scmp.ne.s32.totalorder %s174, %s176
    %p183 = scmp.eq.s32.totalorder %s19, 1
    %p184 = por %p182, %p183
    %p185 = scmp.ne.s32.totalorder %s176, %s177
    %p186 = scmp.eq.s32.totalorder %s19, 0
    %p187 = por %p185, %p186
    %p188 = scmp.ne.s32.totalorder %s176, %s177
    %p189 = scmp.eq.s32.totalorder %s20, 1
    %p190 = por %p188, %p189
    %p192 = scmp.ne.s32.totalorder %s177, %s191
    %p193 = scmp.eq.s32.totalorder %s20, 0
    %p194 = por %p192, %p193
    %s195 = ssub.s32 %s14, %s21
    %p196 = scmp.eq.s32.totalorder %s195, 0
    %s198 = sadd.s32 %s197, 1
    %s199 = scalar_select %p196, %s197, %s198
    %p202 = pneg %p196
    %p203 = scmp.eq.s32.totalorder %s14, 1
    %p204 = por %p202, %p203
    %p205 = scmp.ne.s32.totalorder %s197, %s200
    %p206 = scmp.eq.s32.totalorder %s14, 0
    %p207 = por %p205, %p206
    %p208 = scmp.ne.s32.totalorder %s197, %s200
    %p209 = scmp.eq.s32.totalorder %s19, 1
    %p210 = por %p208, %p209
    %p211 = scmp.ne.s32.totalorder %s200, %s201
    %p212 = scmp.eq.s32.totalorder %s19, 0
    %p213 = por %p211, %p212
    %p214 = scmp.ne.s32.totalorder %s200, %s201
    %p215 = scmp.eq.s32.totalorder %s20, 1
    %p216 = por %p214, %p215
    %p218 = scmp.ne.s32.totalorder %s201, %s217
    %p219 = scmp.eq.s32.totalorder %s20, 0
    %p220 = por %p218, %p219
    %p221 = scmp.le.s32.totalorder 1, %s14
    %p222 = scmp.lt.s32.totalorder %s14, 3
    %p223 = pnand %p221, %p222
    %p224 = pneg %p223
    // Predicated region
    $region9: #{eegnet_forward.1} parent=5 // pred_check
      _
    $region10: #{eegnet_forward.1} parent=5 // pred_check_branch
      %226 = sbr.rel (%p223) target = $region12
    $region11: #{eegnet_forward.1} parent=5 // pred_region
      %s227 = ssub.s32 %s14, 1
      // Predicated region
      $region13: #{eegnet_forward.1} parent=11 // pred_check
        %p228 = pneg %p61
      $region14: #{eegnet_forward.1} parent=11 // pred_check_branch
        %230 = sbr.rel (%p228) target = $region16
      $region15: #{eegnet_forward.1} parent=11 // pred_region
        _
      $region16: #{eegnet_forward.1} parent=11 // pred_fallthru
        _
      // Predicated region
      $region17: #{eegnet_forward.1} parent=11 // pred_check
        %p231 = pneg %p82
      $region18: #{eegnet_forward.1} parent=11 // pred_check_branch
        %233 = sbr.rel (%p231) target = $region20
      $region19: #{eegnet_forward.1} parent=11 // pred_region
        _
      $region20: #{eegnet_forward.1} parent=11 // pred_fallthru
        _
      // Predicated region
      $region21: #{eegnet_forward.1} parent=11 // pred_check
        %p234 = pneg %p103
      $region22: #{eegnet_forward.1} parent=11 // pred_check_branch
        %236 = sbr.rel (%p234) target = $region24
      $region23: #{eegnet_forward.1} parent=11 // pred_region
        _
      $region24: #{eegnet_forward.1} parent=11 // pred_fallthru
        _
      // Predicated region
      $region25: #{eegnet_forward.1} parent=11 // pred_check
        %p237 = pneg %p124
      $region26: #{eegnet_forward.1} parent=11 // pred_check_branch
        %239 = sbr.rel (%p237) target = $region28
      $region27: #{eegnet_forward.1} parent=11 // pred_region
        _
      $region28: #{eegnet_forward.1} parent=11 // pred_fallthru
        _
      // Predicated region
      $region29: #{eegnet_forward.1} parent=11 // pred_check
        %p240 = pneg %p145
      $region30: #{eegnet_forward.1} parent=11 // pred_check_branch
        %242 = sbr.rel (%p240) target = $region32
      $region31: #{eegnet_forward.1} parent=11 // pred_region
        _
      $region32: #{eegnet_forward.1} parent=11 // pred_fallthru
        _
      // Predicated region
      $region33: #{eegnet_forward.1} parent=11 // pred_check
        %p243 = pneg %p166
      $region34: #{eegnet_forward.1} parent=11 // pred_check_branch
        %245 = sbr.rel (%p243) target = $region36
      $region35: #{eegnet_forward.1} parent=11 // pred_region
        _
      $region36: #{eegnet_forward.1} parent=11 // pred_fallthru
        _
      // Predicated region
      $region37: #{eegnet_forward.1} parent=11 // pred_check
        %p246 = pneg %p187
      $region38: #{eegnet_forward.1} parent=11 // pred_check_branch
        %248 = sbr.rel (%p246) target = $region40
      $region39: #{eegnet_forward.1} parent=11 // pred_region
        _
      $region40: #{eegnet_forward.1} parent=11 // pred_fallthru
        _
    $region12: #{eegnet_forward.1} parent=5 // pred_fallthru
      _
    %p249 = scmp.lt.s32.totalorder %s14, 2
    // Predicated region
    $region41: #{eegnet_forward.1} parent=5 // pred_check
      %p250 = pneg %p249
    $region42: #{eegnet_forward.1} parent=5 // pred_check_branch
      %252 = sbr.rel (%p250) target = $region44
    $region43: #{eegnet_forward.1} parent=5 // pred_region
      // Predicated region
      $region45: #{eegnet_forward.1} parent=43 // pred_check
        %p253 = pneg %p34
      $region46: #{eegnet_forward.1} parent=43 // pred_check_branch
        %255 = sbr.rel (%p253) target = $region48
      $region47: #{eegnet_forward.1} parent=43 // pred_region
        %s256 = smul.u32 16, %s14
        %p257 = scmp.lt.s32.totalorder %s256, 31
        %s258 = scalar_select %p257, %s256, 31
        %s259 = smul.addr %s258, 2
        %s260 = smul.addr %s259, 4
        %s261 = scalar_lea.vmem %s0, %s260
        %s262 = smul.u32 16, %s14
      $region48: #{eegnet_forward.1} parent=43 // pred_fallthru
        _
    $region44: #{eegnet_forward.1} parent=5 // pred_fallthru
      _
    %p263 = scmp.le.s32.totalorder 1, %s14
    %p264 = scmp.lt.s32.totalorder %s14, 3
    %p265 = pnand %p263, %p264
    %p266 = pneg %p265
    // Predicated region
    $region49: #{eegnet_forward.1} parent=5 // pred_check
      _
    $region50: #{eegnet_forward.1} parent=5 // pred_check_branch
      %268 = sbr.rel (%p265) target = $region52
    $region51: #{eegnet_forward.1} parent=5 // pred_region
      %s269 = ssub.s32 %s14, 1
      %s270 = smul.u32 16, %s19
      %p271 = scmp.lt.s32.totalorder %s270, 31
      %s272 = scalar_select %p271, %s270, 31
      %s273 = smul.addr %s272, 2
      %s274 = smul.addr %s273, 4
      %s275 = scalar_lea.vmem %s0, %s274
      %p276 = pneg %p40
      %p277 = pneg %p37
      %p278 = pneg %p61
      %p279 = pneg %p58
      %p280 = pneg %p82
      %p281 = pneg %p79
      %p282 = pneg %p103
      %p283 = pneg %p100
      %p284 = pneg %p124
      %p285 = pneg %p121
      %p286 = pneg %p145
      %p287 = pneg %p142
      %p288 = pneg %p166
      %p289 = pneg %p163
      %p290 = pneg %p187
      %p291 = pneg %p184
      %p292 = pneg %p213
      %p293 = pneg %p210
      %s294 = smul.u32 2, %s19
      %p295 = scmp.lt.s32.totalorder %s294, 3
      %s296 = scalar_select %p295, %s294, 3
      %s297 = smul.addr %s296, 8
      %s298 = scalar_lea.vmem %s8, %s297
      %s299 = smul.u32 16, %s19
      %p300 = scmp.lt.s32.totalorder %s299, 31
      %s301 = scalar_select %p300, %s299, 31
      %s302 = smul.addr %s301, 2
      %s303 = smul.addr %s302, 4
      %s304 = scalar_lea.vmem %s0, %s303
      %s305 = smul.u32 16, %s19
      %s306 = smul.u32 2, %s19
      %p307 = scmp.lt.s32.totalorder %s306, 3
      %s308 = scalar_select %p307, %s306, 3
      %s309 = smul.addr %s308, 8
      %s310 = scalar_lea.vmem %s8, %s309
      %s311 = smul.u32 2, %s19
      %v313 = vld [vmem:[%s304] sm:$0xff]
      %v314 = vld [vmem:[%s304 + $0x8] sm:$0xff]
      %v315 = vld [vmem:[%s304 + $0x10] sm:$0xff]
      %v316 = vld [vmem:[%s304 + $0x18] sm:$0xff]
      %v317 = vld [vmem:[%s304 + $0x20] sm:$0xff]
      %v318 = vld [vmem:[%s304 + $0x28] sm:$0xff]
      %v319 = vld [vmem:[%s304 + $0x30] sm:$0xff]
      %v320 = vld [vmem:[%s304 + $0x38] sm:$0xff]
      %v321 = vld [vmem:[%s304 + $0x40] sm:$0xff]
      %v322 = vld [vmem:[%s304 + $0x48] sm:$0xff]
      %v323 = vld [vmem:[%s304 + $0x50] sm:$0xff]
      %v324 = vld [vmem:[%s304 + $0x58] sm:$0xff]
      %v325 = vld [vmem:[%s304 + $0x60] sm:$0xff]
      %v326 = vld [vmem:[%s304 + $0x68] sm:$0xff]
      %v327 = vld [vmem:[%s304 + $0x70] sm:$0xff]
      %v328 = vld [vmem:[%s304 + $0x78] sm:$0xff]
      %v329 = vld [vmem:[%s1] sm:$0xff]
      %v330 = vld [vmem:[%s1 + $0x8] sm:$0xff]
      %v331 = vld [vmem:[%s1 + $0x10] sm:$0xff]
      %v332 = vld [vmem:[%s1 + $0x18] sm:$0xff]
      %v333 = vld [vmem:[%s1 + $0x20] sm:$0xff]
      %v334 = vld [vmem:[%s1 + $0x28] sm:$0xff]
      %v335 = vld [vmem:[%s1 + $0x30] sm:$0xff]
      %v336 = vld [vmem:[%s1 + $0x38] sm:$0xff]
      %v337 = vld [vmem:[%s1 + $0x40] sm:$0xff]
      %v338 = vld [vmem:[%s1 + $0x48] sm:$0xff]
      %v339 = vld [vmem:[%s1 + $0x50] sm:$0xff]
      %v340 = vld [vmem:[%s1 + $0x58] sm:$0xff]
      %v341 = vld [vmem:[%s1 + $0x60] sm:$0xff]
      %v342 = vld [vmem:[%s1 + $0x68] sm:$0xff]
      %v343 = vld [vmem:[%s1 + $0x70] sm:$0xff]
      %v344 = vld [vmem:[%s1 + $0x78] sm:$0xff]
      %v345 = vld [vmem:[%s1 + $0x80] sm:$0xff]
      %v346 = vld [vmem:[%s1 + $0x88] sm:$0xff]
      %v347 = vld [vmem:[%s1 + $0x90] sm:$0xff]
      %v348 = vld [vmem:[%s1 + $0x98] sm:$0xff]
      %v349 = vld [vmem:[%s1 + $0xa0] sm:$0xff]
      %v350 = vld [vmem:[%s1 + $0xa8] sm:$0xff]
      %v351 = vld [vmem:[%s1 + $0xb0] sm:$0xff]
      %v352 = vld [vmem:[%s1 + $0xb8] sm:$0xff]
      %v353 = vld [vmem:[%s1 + $0xc0] sm:$0xff]
      %v354 = vld [vmem:[%s1 + $0xc8] sm:$0xff]
      %v355 = vld [vmem:[%s1 + $0xd0] sm:$0xff]
      %v356 = vld [vmem:[%s1 + $0xd8] sm:$0xff]
      %v357 = vld [vmem:[%s1 + $0xe0] sm:$0xff]
      %v358 = vld [vmem:[%s1 + $0xe8] sm:$0xff]
      %v359 = vld [vmem:[%s1 + $0xf0] sm:$0xff]
      %v360 = vld [vmem:[%s1 + $0xf8] sm:$0xff]
      %v361 = vld [vmem:[%s1 + $0x100] sm:$0xff]
      %v362 = vld [vmem:[%s1 + $0x108] sm:$0xff]
      %v363 = vld [vmem:[%s1 + $0x110] sm:$0xff]
      %v364 = vld [vmem:[%s1 + $0x118] sm:$0xff]
      %v365 = vld [vmem:[%s1 + $0x120] sm:$0xff]
      %v366 = vld [vmem:[%s1 + $0x128] sm:$0xff]
      %v367 = vld [vmem:[%s1 + $0x130] sm:$0xff]
      %v368 = vld [vmem:[%s1 + $0x138] sm:$0xff]
      %v369 = vld [vmem:[%s1 + $0x140] sm:$0xff]
      %v370 = vld [vmem:[%s1 + $0x148] sm:$0xff]
      %v371 = vld [vmem:[%s1 + $0x150] sm:$0xff]
      %v372 = vld [vmem:[%s1 + $0x158] sm:$0xff]
      %v373 = vld [vmem:[%s1 + $0x160] sm:$0xff]
      %v374 = vld [vmem:[%s1 + $0x168] sm:$0xff]
      %v375 = vld [vmem:[%s1 + $0x170] sm:$0xff]
      %v376 = vld [vmem:[%s1 + $0x178] sm:$0xff]
      %v377 = vld [vmem:[%s1 + $0x180] sm:$0xff]
      %v378 = vld [vmem:[%s1 + $0x188] sm:$0xff]
      %v379 = vld [vmem:[%s1 + $0x190] sm:$0xff]
      %v380 = vld [vmem:[%s1 + $0x198] sm:$0xff]
      %v381 = vld [vmem:[%s1 + $0x1a0] sm:$0xff]
      %v382 = vld [vmem:[%s1 + $0x1a8] sm:$0xff]
      %v383 = vld [vmem:[%s1 + $0x1b0] sm:$0xff]
      %v384 = vld [vmem:[%s1 + $0x1b8] sm:$0xff]
      %v385 = vld [vmem:[%s1 + $0x1c0] sm:$0xff]
      %v386 = vld [vmem:[%s1 + $0x1c8] sm:$0xff]
      %v387 = vld [vmem:[%s1 + $0x1d0] sm:$0xff]
      %v388 = vld [vmem:[%s1 + $0x1d8] sm:$0xff]
      %v389 = vld [vmem:[%s1 + $0x1e0] sm:$0xff]
      %v390 = vld [vmem:[%s1 + $0x1e8] sm:$0xff]
      %v391 = vld [vmem:[%s1 + $0x1f0] sm:$0xff]
      %v392 = vld [vmem:[%s1 + $0x1f8] sm:$0xff]
      %v393 = vld [vmem:[%s1 + $0x200] sm:$0xff]
      %v394 = vld [vmem:[%s1 + $0x208] sm:$0xff]
      %v395 = vld [vmem:[%s1 + $0x210] sm:$0xff]
      %v396 = vld [vmem:[%s1 + $0x218] sm:$0xff]
      %v397 = vld [vmem:[%s1 + $0x220] sm:$0xff]
      %v398 = vld [vmem:[%s1 + $0x228] sm:$0xff]
      %v399 = vld [vmem:[%s1 + $0x230] sm:$0xff]
      %v400 = vld [vmem:[%s1 + $0x238] sm:$0xff]
      %v401 = vld [vmem:[%s1 + $0x240] sm:$0xff]
      %v402 = vld [vmem:[%s1 + $0x248] sm:$0xff]
      %v403 = vld [vmem:[%s1 + $0x250] sm:$0xff]
      %v404 = vld [vmem:[%s1 + $0x258] sm:$0xff]
      %v405 = vld [vmem:[%s1 + $0x260] sm:$0xff]
      %v406 = vld [vmem:[%s1 + $0x268] sm:$0xff]
      %v407 = vld [vmem:[%s1 + $0x270] sm:$0xff]
      %v408 = vld [vmem:[%s1 + $0x278] sm:$0xff]
      %v409 = vld [vmem:[%s1 + $0x280] sm:$0xff]
      %v410 = vld [vmem:[%s1 + $0x288] sm:$0xff]
      %v411 = vld [vmem:[%s1 + $0x290] sm:$0xff]
      %v412 = vld [vmem:[%s1 + $0x298] sm:$0xff]
      %v413 = vld [vmem:[%s1 + $0x2a0] sm:$0xff]
      %v414 = vld [vmem:[%s1 + $0x2a8] sm:$0xff]
      %v415 = vld [vmem:[%s1 + $0x2b0] sm:$0xff]
      %v416 = vld [vmem:[%s1 + $0x2b8] sm:$0xff]
      %v417 = vld [vmem:[%s1 + $0x2c0] sm:$0xff]
      %v418 = vld [vmem:[%s1 + $0x2c8] sm:$0xff]
      %v419 = vld [vmem:[%s1 + $0x2d0] sm:$0xff]
      %v420 = vld [vmem:[%s1 + $0x2d8] sm:$0xff]
      %v421 = vld [vmem:[%s1 + $0x2e0] sm:$0xff]
      %v422 = vld [vmem:[%s1 + $0x2e8] sm:$0xff]
      %v423 = vld [vmem:[%s1 + $0x2f0] sm:$0xff]
      %v424 = vld [vmem:[%s1 + $0x2f8] sm:$0xff]
      %v441 = vunpack.c.l.b16 %v313
      %v442 = vunpack.c.h.b16 %v313
      %v443 = vunpack.c.l.b16 %v314
      %v444 = vunpack.c.h.b16 %v314
      %v445 = vunpack.c.l.b16 %v315
      %v446 = vunpack.c.h.b16 %v315
      %v447 = vunpack.c.l.b16 %v316
      %v448 = vunpack.c.h.b16 %v316
      %v449 = vunpack.c.l.b16 %v317
      %v450 = vunpack.c.h.b16 %v317
      %v451 = vunpack.c.l.b16 %v318
      %v452 = vunpack.c.h.b16 %v318
      %v453 = vunpack.c.l.b16 %v319
      %v454 = vunpack.c.h.b16 %v319
      %v455 = vunpack.c.l.b16 %v320
      %v456 = vunpack.c.h.b16 %v320
      %v457 = vunpack.c.l.b16 %v321
      %v458 = vunpack.c.h.b16 %v321
      %v459 = vunpack.c.l.b16 %v322
      %v460 = vunpack.c.h.b16 %v322
      %v461 = vunpack.c.l.b16 %v323
      %v462 = vunpack.c.h.b16 %v323
      %v463 = vunpack.c.l.b16 %v324
      %v464 = vunpack.c.h.b16 %v324
      %v465 = vunpack.c.l.b16 %v325
      %v466 = vunpack.c.h.b16 %v325
      %v467 = vunpack.c.l.b16 %v326
      %v468 = vunpack.c.h.b16 %v326
      %v469 = vunpack.c.l.b16 %v327
      %v470 = vunpack.c.h.b16 %v327
      %v471 = vunpack.c.l.b16 %v328
      %v472 = vunpack.c.h.b16 %v328
      %v473 = vpack.c.b16 %v443, %v441
      %v474 = vpack.c.b16 %v444, %v442
      %v475 = vpack.c.b16 %v447, %v445
      %v476 = vpack.c.b16 %v448, %v446
      %v477 = vpack.c.b16 %v451, %v449
      %v478 = vpack.c.b16 %v452, %v450
      %v479 = vpack.c.b16 %v455, %v453
      %v480 = vpack.c.b16 %v456, %v454
      %v481 = vpack.c.b16 %v459, %v457
      %v482 = vpack.c.b16 %v460, %v458
      %v483 = vpack.c.b16 %v463, %v461
      %v484 = vpack.c.b16 %v464, %v462
      %v485 = vpack.c.b16 %v467, %v465
      %v486 = vpack.c.b16 %v468, %v466
      %v487 = vpack.c.b16 %v471, %v469
      %v488 = vpack.c.b16 %v472, %v470
      %v593 = vunpack.c.l.b16 %v329
      %v594 = vunpack.c.h.b16 %v329
      %v595 = vunpack.c.l.b16 %v330
      %v596 = vunpack.c.h.b16 %v330
      %v597 = vunpack.c.l.b16 %v331
      %v598 = vunpack.c.h.b16 %v331
      %v599 = vunpack.c.l.b16 %v332
      %v600 = vunpack.c.h.b16 %v332
      %v601 = vunpack.c.l.b16 %v333
      %v602 = vunpack.c.h.b16 %v333
      %v603 = vunpack.c.l.b16 %v334
      %v604 = vunpack.c.h.b16 %v334
      %v605 = vunpack.c.l.b16 %v335
      %v606 = vunpack.c.h.b16 %v335
      %v607 = vunpack.c.l.b16 %v336
      %v608 = vunpack.c.h.b16 %v336
      %v609 = vunpack.c.l.b16 %v337
      %v610 = vunpack.c.h.b16 %v337
      %v611 = vunpack.c.l.b16 %v338
      %v612 = vunpack.c.h.b16 %v338
      %v613 = vunpack.c.l.b16 %v339
      %v614 = vunpack.c.h.b16 %v339
      %v615 = vunpack.c.l.b16 %v340
      %v616 = vunpack.c.h.b16 %v340
      %v617 = vunpack.c.l.b16 %v341
      %v618 = vunpack.c.h.b16 %v341
      %v619 = vunpack.c.l.b16 %v342
      %v620 = vunpack.c.h.b16 %v342
      %v621 = vunpack.c.l.b16 %v343
      %v622 = vunpack.c.h.b16 %v343
      %v623 = vunpack.c.l.b16 %v344
      %v624 = vunpack.c.h.b16 %v344
      %v625 = vunpack.c.l.b16 %v345
      %v626 = vunpack.c.h.b16 %v345
      %v627 = vunpack.c.l.b16 %v346
      %v628 = vunpack.c.h.b16 %v346
      %v629 = vunpack.c.l.b16 %v347
      %v630 = vunpack.c.h.b16 %v347
      %v631 = vunpack.c.l.b16 %v348
      %v632 = vunpack.c.h.b16 %v348
      %v633 = vunpack.c.l.b16 %v349
      %v634 = vunpack.c.h.b16 %v349
      %v635 = vunpack.c.l.b16 %v350
      %v636 = vunpack.c.h.b16 %v350
      %v637 = vunpack.c.l.b16 %v351
      %v638 = vunpack.c.h.b16 %v351
      %v639 = vunpack.c.l.b16 %v352
      %v640 = vunpack.c.h.b16 %v352
      %v641 = vunpack.c.l.b16 %v353
      %v642 = vunpack.c.h.b16 %v353
      %v643 = vunpack.c.l.b16 %v354
      %v644 = vunpack.c.h.b16 %v354
      %v645 = vunpack.c.l.b16 %v355
      %v646 = vunpack.c.h.b16 %v355
      %v647 = vunpack.c.l.b16 %v356
      %v648 = vunpack.c.h.b16 %v356
      %v649 = vunpack.c.l.b16 %v357
      %v650 = vunpack.c.h.b16 %v357
      %v651 = vunpack.c.l.b16 %v358
      %v652 = vunpack.c.h.b16 %v358
      %v653 = vunpack.c.l.b16 %v359
      %v654 = vunpack.c.h.b16 %v359
      %v655 = vunpack.c.l.b16 %v360
      %v656 = vunpack.c.h.b16 %v360
      %v657 = vunpack.c.l.b16 %v361
      %v658 = vunpack.c.h.b16 %v361
      %v659 = vunpack.c.l.b16 %v362
      %v660 = vunpack.c.h.b16 %v362
      %v661 = vunpack.c.l.b16 %v363
      %v662 = vunpack.c.h.b16 %v363
      %v663 = vunpack.c.l.b16 %v364
      %v664 = vunpack.c.h.b16 %v364
      %v665 = vunpack.c.l.b16 %v365
      %v666 = vunpack.c.h.b16 %v365
      %v667 = vunpack.c.l.b16 %v366
      %v668 = vunpack.c.h.b16 %v366
      %v669 = vunpack.c.l.b16 %v367
      %v670 = vunpack.c.h.b16 %v367
      %v671 = vunpack.c.l.b16 %v368
      %v672 = vunpack.c.h.b16 %v368
      %v673 = vunpack.c.l.b16 %v369
      %v674 = vunpack.c.h.b16 %v369
      %v675 = vunpack.c.l.b16 %v370
      %v676 = vunpack.c.h.b16 %v370
      %v677 = vunpack.c.l.b16 %v371
      %v678 = vunpack.c.h.b16 %v371
      %v679 = vunpack.c.l.b16 %v372
      %v680 = vunpack.c.h.b16 %v372
      %v681 = vunpack.c.l.b16 %v373
      %v682 = vunpack.c.h.b16 %v373
      %v683 = vunpack.c.l.b16 %v374
      %v684 = vunpack.c.h.b16 %v374
      %v685 = vunpack.c.l.b16 %v375
      %v686 = vunpack.c.h.b16 %v375
      %v687 = vunpack.c.l.b16 %v376
      %v688 = vunpack.c.h.b16 %v376
      %v689 = vunpack.c.l.b16 %v377
      %v690 = vunpack.c.h.b16 %v377
      %v691 = vunpack.c.l.b16 %v378
      %v692 = vunpack.c.h.b16 %v378
      %v693 = vunpack.c.l.b16 %v379
      %v694 = vunpack.c.h.b16 %v379
      %v695 = vunpack.c.l.b16 %v380
      %v696 = vunpack.c.h.b16 %v380
      %v697 = vunpack.c.l.b16 %v381
      %v698 = vunpack.c.h.b16 %v381
      %v699 = vunpack.c.l.b16 %v382
      %v700 = vunpack.c.h.b16 %v382
      %v701 = vunpack.c.l.b16 %v383
      %v702 = vunpack.c.h.b16 %v383
      %v703 = vunpack.c.l.b16 %v384
      %v704 = vunpack.c.h.b16 %v384
      %v705 = vunpack.c.l.b16 %v385
      %v706 = vunpack.c.h.b16 %v385
      %v707 = vunpack.c.l.b16 %v386
      %v708 = vunpack.c.h.b16 %v386
      %v709 = vunpack.c.l.b16 %v387
      %v710 = vunpack.c.h.b16 %v387
      %v711 = vunpack.c.l.b16 %v388
      %v712 = vunpack.c.h.b16 %v388
      %v713 = vunpack.c.l.b16 %v389
      %v714 = vunpack.c.h.b16 %v389
      %v715 = vunpack.c.l.b16 %v390
      %v716 = vunpack.c.h.b16 %v390
      %v717 = vunpack.c.l.b16 %v391
      %v718 = vunpack.c.h.b16 %v391
      %v719 = vunpack.c.l.b16 %v392
      %v720 = vunpack.c.h.b16 %v392
      %v721 = vunpack.c.l.b16 %v393
      %v722 = vunpack.c.h.b16 %v393
      %v723 = vunpack.c.l.b16 %v394
      %v724 = vunpack.c.h.b16 %v394
      %v725 = vunpack.c.l.b16 %v395
      %v726 = vunpack.c.h.b16 %v395
      %v727 = vunpack.c.l.b16 %v396
      %v728 = vunpack.c.h.b16 %v396
      %v729 = vunpack.c.l.b16 %v397
      %v730 = vunpack.c.h.b16 %v397
      %v731 = vunpack.c.l.b16 %v398
      %v732 = vunpack.c.h.b16 %v398
      %v733 = vunpack.c.l.b16 %v399
      %v734 = vunpack.c.h.b16 %v399
      %v735 = vunpack.c.l.b16 %v400
      %v736 = vunpack.c.h.b16 %v400
      %v737 = vunpack.c.l.b16 %v401
      %v738 = vunpack.c.h.b16 %v401
      %v739 = vunpack.c.l.b16 %v402
      %v740 = vunpack.c.h.b16 %v402
      %v741 = vunpack.c.l.b16 %v403
      %v742 = vunpack.c.h.b16 %v403
      %v743 = vunpack.c.l.b16 %v404
      %v744 = vunpack.c.h.b16 %v404
      %v745 = vunpack.c.l.b16 %v405
      %v746 = vunpack.c.h.b16 %v405
      %v747 = vunpack.c.l.b16 %v406
      %v748 = vunpack.c.h.b16 %v406
      %v749 = vunpack.c.l.b16 %v407
      %v750 = vunpack.c.h.b16 %v407
      %v751 = vunpack.c.l.b16 %v408
      %v752 = vunpack.c.h.b16 %v408
      %v753 = vunpack.c.l.b16 %v409
      %v754 = vunpack.c.h.b16 %v409
      %v755 = vunpack.c.l.b16 %v410
      %v756 = vunpack.c.h.b16 %v410
      %v757 = vunpack.c.l.b16 %v411
      %v758 = vunpack.c.h.b16 %v411
      %v759 = vunpack.c.l.b16 %v412
      %v760 = vunpack.c.h.b16 %v412
      %v761 = vunpack.c.l.b16 %v413
      %v762 = vunpack.c.h.b16 %v413
      %v763 = vunpack.c.l.b16 %v414
      %v764 = vunpack.c.h.b16 %v414
      %v765 = vunpack.c.l.b16 %v415
      %v766 = vunpack.c.h.b16 %v415
      %v767 = vunpack.c.l.b16 %v416
      %v768 = vunpack.c.h.b16 %v416
      %v769 = vunpack.c.l.b16 %v417
      %v770 = vunpack.c.h.b16 %v417
      %v771 = vunpack.c.l.b16 %v418
      %v772 = vunpack.c.h.b16 %v418
      %v773 = vunpack.c.l.b16 %v419
      %v774 = vunpack.c.h.b16 %v419
      %v775 = vunpack.c.l.b16 %v420
      %v776 = vunpack.c.h.b16 %v420
      %v777 = vunpack.c.l.b16 %v421
      %v778 = vunpack.c.h.b16 %v421
      %v779 = vunpack.c.l.b16 %v422
      %v780 = vunpack.c.h.b16 %v422
      %v781 = vunpack.c.l.b16 %v423
      %v782 = vunpack.c.h.b16 %v423
      %v783 = vunpack.c.l.b16 %v424
      %v784 = vunpack.c.h.b16 %v424
      %v785 = vpack.c.b16 %v601, %v593
      %v786 = vpack.c.b16 %v602, %v594
      %v787 = vpack.c.b16 %v603, %v595
      %v788 = vpack.c.b16 %v604, %v596
      %v789 = vpack.c.b16 %v605, %v597
      %v790 = vpack.c.b16 %v606, %v598
      %v791 = vpack.c.b16 %v607, %v599
      %v792 = vpack.c.b16 %v608, %v600
      %v793 = vpack.c.b16 %v617, %v609
      %v794 = vpack.c.b16 %v618, %v610
      %v795 = vpack.c.b16 %v619, %v611
      %v796 = vpack.c.b16 %v620, %v612
      %v797 = vpack.c.b16 %v621, %v613
      %v798 = vpack.c.b16 %v622, %v614
      %v799 = vpack.c.b16 %v623, %v615
      %v800 = vpack.c.b16 %v624, %v616
      %v801 = vpack.c.b16 %v633, %v625
      %v802 = vpack.c.b16 %v634, %v626
      %v803 = vpack.c.b16 %v635, %v627
      %v804 = vpack.c.b16 %v636, %v628
      %v805 = vpack.c.b16 %v637, %v629
      %v806 = vpack.c.b16 %v638, %v630
      %v807 = vpack.c.b16 %v639, %v631
      %v808 = vpack.c.b16 %v640, %v632
      %v809 = vpack.c.b16 %v649, %v641
      %v810 = vpack.c.b16 %v650, %v642
      %v811 = vpack.c.b16 %v651, %v643
      %v812 = vpack.c.b16 %v652, %v644
      %v813 = vpack.c.b16 %v653, %v645
      %v814 = vpack.c.b16 %v654, %v646
      %v815 = vpack.c.b16 %v655, %v647
      %v816 = vpack.c.b16 %v656, %v648
      %v817 = vpack.c.b16 %v665, %v657
      %v818 = vpack.c.b16 %v666, %v658
      %v819 = vpack.c.b16 %v667, %v659
      %v820 = vpack.c.b16 %v668, %v660
      %v821 = vpack.c.b16 %v669, %v661
      %v822 = vpack.c.b16 %v670, %v662
      %v823 = vpack.c.b16 %v671, %v663
      %v824 = vpack.c.b16 %v672, %v664
      %v825 = vpack.c.b16 %v681, %v673
      %v826 = vpack.c.b16 %v682, %v674
      %v827 = vpack.c.b16 %v683, %v675
      %v828 = vpack.c.b16 %v684, %v676
      %v829 = vpack.c.b16 %v685, %v677
      %v830 = vpack.c.b16 %v686, %v678
      %v831 = vpack.c.b16 %v687, %v679
      %v832 = vpack.c.b16 %v688, %v680
      %v833 = vpack.c.b16 %v697, %v689
      %v834 = vpack.c.b16 %v698, %v690
      %v835 = vpack.c.b16 %v699, %v691
      %v836 = vpack.c.b16 %v700, %v692
      %v837 = vpack.c.b16 %v701, %v693
      %v838 = vpack.c.b16 %v702, %v694
      %v839 = vpack.c.b16 %v703, %v695
      %v840 = vpack.c.b16 %v704, %v696
      %v841 = vpack.c.b16 %v713, %v705
      %v842 = vpack.c.b16 %v714, %v706
      %v843 = vpack.c.b16 %v715, %v707
      %v844 = vpack.c.b16 %v716, %v708
      %v845 = vpack.c.b16 %v717, %v709
      %v846 = vpack.c.b16 %v718, %v710
      %v847 = vpack.c.b16 %v719, %v711
      %v848 = vpack.c.b16 %v720, %v712
      %v849 = vpack.c.b16 %v729, %v721
      %v850 = vpack.c.b16 %v730, %v722
      %v851 = vpack.c.b16 %v731, %v723
      %v852 = vpack.c.b16 %v732, %v724
      %v853 = vpack.c.b16 %v733, %v725
      %v854 = vpack.c.b16 %v734, %v726
      %v855 = vpack.c.b16 %v735, %v727
      %v856 = vpack.c.b16 %v736, %v728
      %v857 = vpack.c.b16 %v745, %v737
      %v858 = vpack.c.b16 %v746, %v738
      %v859 = vpack.c.b16 %v747, %v739
      %v860 = vpack.c.b16 %v748, %v740
      %v861 = vpack.c.b16 %v749, %v741
      %v862 = vpack.c.b16 %v750, %v742
      %v863 = vpack.c.b16 %v751, %v743
      %v864 = vpack.c.b16 %v752, %v744
      %v865 = vpack.c.b16 %v761, %v753
      %v866 = vpack.c.b16 %v762, %v754
      %v867 = vpack.c.b16 %v763, %v755
      %v868 = vpack.c.b16 %v764, %v756
      %v869 = vpack.c.b16 %v765, %v757
      %v870 = vpack.c.b16 %v766, %v758
      %v871 = vpack.c.b16 %v767, %v759
      %v872 = vpack.c.b16 %v768, %v760
      %v873 = vpack.c.b16 %v777, %v769
      %v874 = vpack.c.b16 %v778, %v770
      %v875 = vpack.c.b16 %v779, %v771
      %v876 = vpack.c.b16 %v780, %v772
      %v877 = vpack.c.b16 %v781, %v773
      %v878 = vpack.c.b16 %v782, %v774
      %v879 = vpack.c.b16 %v783, %v775
      %v880 = vpack.c.b16 %v784, %v776
      %vm977 = vcmask 523264
      %v979 = vsel %vm977, %v474, 0
      %v982 = vsel %vm977, %v476, 0
      %v985 = vsel %vm977, %v478, 0
      %v988 = vsel %vm977, %v480, 0
      %v991 = vsel %vm977, %v482, 0
      %v994 = vsel %vm977, %v484, 0
      %v997 = vsel %vm977, %v486, 0
      %v1000 = vsel %vm977, %v488, 0
      %1002 = vmatprep.subr.bf16.mxu0 %v786
      %1003 = vmatpush1.bf16.msra.mxu0 %v785
      %1004 = vmatprep.subr.bf16.mxu0 %v794
      %1005 = vmatpush1.bf16.msra.mxu0 %v793
      %1006 = vmatprep.subr.bf16.mxu0 %v802
      %1007 = vmatpush1.bf16.msra.mxu0 %v801
      %1008 = vmatprep.subr.bf16.mxu0 %v810
      %1009 = vmatpush1.bf16.msra.mxu0 %v809
      %1010 = vmatprep.subr.bf16.mxu0 %v818
      %1011 = vmatpush1.bf16.msra.mxu0 %v817
      %1012 = vmatprep.subr.bf16.mxu0 %v826
      %1013 = vmatpush1.bf16.msra.mxu0 %v825
      %1014 = vmatprep.subr.bf16.mxu0 %v834
      %1015 = vmatpush1.bf16.msra.mxu0 %v833
      %1016 = vmatprep.subr.bf16.mxu0 %v842
      %1017 = vmatpush1.bf16.msra.mxu0 %v841
      %1018 = vmatprep.subr.bf16.mxu0 %v850
      %1019 = vmatpush1.bf16.msra.mxu0 %v849
      %1020 = vmatprep.subr.bf16.mxu0 %v858
      %1021 = vmatpush1.bf16.msra.mxu0 %v857
      %1022 = vmatprep.subr.bf16.mxu0 %v866
      %1023 = vmatpush1.bf16.msra.mxu0 %v865
      %1024 = vmatprep.subr.bf16.mxu0 %v874
      %1025 = vmatpush1.bf16.msra.mxu0 %v873
      %1026 = vmatprep.subr.bf16.mxu0 0
      %1027 = vmatpush1.bf16.msra.mxu0 0
      %1028 = vmatprep.subr.bf16.mxu0 0
      %1029 = vmatpush1.bf16.msra.mxu0 0
      %1030 = vmatprep.subr.bf16.mxu0 0
      %1031 = vmatpush1.bf16.msra.mxu0 0
      %1032 = vmatprep.subr.bf16.mxu0 0
      %1033 = vmatpush1.bf16.msra.mxu0 0
      %1034 = vmatprep.mubr.bf16.mxu0 %v979
      %1035 = vmatmul.mubr.bf16.gmra.mrb[0].mxu0 %v473
      %v1036 = vpop.f32.mrb[0].mxu0
      %v1037 = vadd.f32 0.0, %v1036
      %v1038 = vpop.f32.mrb[0].mxu0
      %v1039 = vadd.f32 0.0, %v1038
      %v1040 = vpop.f32.mrb[0].mxu0
      %v1041 = vadd.f32 0.0, %v1040
      %v1042 = vpop.f32.mrb[0].mxu0
      %v1043 = vadd.f32 0.0, %v1042
      %1044 = vmatprep.mubr.bf16.mxu0 %v982
      %1045 = vmatmul.mubr.bf16.gmra.mrb[0].mxu0 %v475
      %v1046 = vpop.f32.mrb[0].mxu0
      %v1047 = vadd.f32 0.0, %v1046
      %v1048 = vpop.f32.mrb[0].mxu0
      %v1049 = vadd.f32 0.0, %v1048
      %v1050 = vpop.f32.mrb[0].mxu0
      %v1051 = vadd.f32 0.0, %v1050
      %v1052 = vpop.f32.mrb[0].mxu0
      %v1053 = vadd.f32 0.0, %v1052
      %1054 = vmatprep.mubr.bf16.mxu0 %v985
      %1055 = vmatmul.mubr.bf16.gmra.mrb[0].mxu0 %v477
      %v1056 = vpop.f32.mrb[0].mxu0
      %v1057 = vadd.f32 0.0, %v1056
      %v1058 = vpop.f32.mrb[0].mxu0
      %v1059 = vadd.f32 0.0, %v1058
      %v1060 = vpop.f32.mrb[0].mxu0
      %v1061 = vadd.f32 0.0, %v1060
      %v1062 = vpop.f32.mrb[0].mxu0
      %v1063 = vadd.f32 0.0, %v1062
      %1064 = vmatprep.mubr.bf16.mxu0 %v988
      %1065 = vmatmul.mubr.bf16.gmra.mrb[0].mxu0 %v479
      %v1066 = vpop.f32.mrb[0].mxu0
      %v1067 = vadd.f32 0.0, %v1066
      %v1068 = vpop.f32.mrb[0].mxu0
      %v1069 = vadd.f32 0.0, %v1068
      %v1070 = vpop.f32.mrb[0].mxu0
      %v1071 = vadd.f32 0.0, %v1070
      %v1072 = vpop.f32.mrb[0].mxu0
      %v1073 = vadd.f32 0.0, %v1072
      %1074 = vmatprep.mubr.bf16.mxu0 %v991
      %1075 = vmatmul.mubr.bf16.gmra.mrb[0].mxu0 %v481
      %v1076 = vpop.f32.mrb[0].mxu0
      %v1077 = vadd.f32 0.0, %v1076
      %v1078 = vpop.f32.mrb[0].mxu0
      %v1079 = vadd.f32 0.0, %v1078
      %v1080 = vpop.f32.mrb[0].mxu0
      %v1081 = vadd.f32 0.0, %v1080
      %v1082 = vpop.f32.mrb[0].mxu0
      %v1083 = vadd.f32 0.0, %v1082
      %1084 = vmatprep.mubr.bf16.mxu0 %v994
      %1085 = vmatmul.mubr.bf16.gmra.mrb[0].mxu0 %v483
      %v1086 = vpop.f32.mrb[0].mxu0
      %v1087 = vadd.f32 0.0, %v1086
      %v1088 = vpop.f32.mrb[0].mxu0
      %v1089 = vadd.f32 0.0, %v1088
      %v1090 = vpop.f32.mrb[0].mxu0
      %v1091 = vadd.f32 0.0, %v1090
      %v1092 = vpop.f32.mrb[0].mxu0
      %v1093 = vadd.f32 0.0, %v1092
      %1094 = vmatprep.mubr.bf16.mxu0 %v997
      %1095 = vmatmul.mubr.bf16.gmra.mrb[0].mxu0 %v485
      %v1096 = vpop.f32.mrb[0].mxu0
      %v1097 = vadd.f32 0.0, %v1096
      %v1098 = vpop.f32.mrb[0].mxu0
      %v1099 = vadd.f32 0.0, %v1098
      %v1100 = vpop.f32.mrb[0].mxu0
      %v1101 = vadd.f32 0.0, %v1100
      %v1102 = vpop.f32.mrb[0].mxu0
      %v1103 = vadd.f32 0.0, %v1102
      %1104 = vmatprep.mubr.bf16.mxu0 %v1000
      %1105 = vmatmul.mubr.bf16.gmra.mrb[0].mxu0 %v487
      %v1106 = vpop.f32.mrb[0].mxu0
      %v1107 = vadd.f32 0.0, %v1106
      %v1108 = vpop.f32.mrb[0].mxu0
      %v1109 = vadd.f32 0.0, %v1108
      %v1110 = vpop.f32.mrb[0].mxu0
      %v1111 = vadd.f32 0.0, %v1110
      %v1112 = vpop.f32.mrb[0].mxu0
      %v1113 = vadd.f32 0.0, %v1112
      %1114 = vdwg.mxu0
      %1115 = vmatprep.subr.bf16.mxu0 %v788
      %1116 = vmatpush1.bf16.msra.mxu0 %v787
      %1117 = vmatprep.subr.bf16.mxu0 %v796
      %1118 = vmatpush1.bf16.msra.mxu0 %v795
      %1119 = vmatprep.subr.bf16.mxu0 %v804
      %1120 = vmatpush1.bf16.msra.mxu0 %v803
      %1121 = vmatprep.subr.bf16.mxu0 %v812
      %1122 = vmatpush1.bf16.msra.mxu0 %v811
      %1123 = vmatprep.subr.bf16.mxu0 %v820
      %1124 = vmatpush1.bf16.msra.mxu0 %v819
      %1125 = vmatprep.subr.bf16.mxu0 %v828
      %1126 = vmatpush1.bf16.msra.mxu0 %v827
      %1127 = vmatprep.subr.bf16.mxu0 %v836
      %1128 = vmatpush1.bf16.msra.mxu0 %v835
      %1129 = vmatprep.subr.bf16.mxu0 %v844
      %1130 = vmatpush1.bf16.msra.mxu0 %v843
      %1131 = vmatprep.subr.bf16.mxu0 %v852
      %1132 = vmatpush1.bf16.msra.mxu0 %v851
      %1133 = vmatprep.subr.bf16.mxu0 %v860
      %1134 = vmatpush1.bf16.msra.mxu0 %v859
      %1135 = vmatprep.subr.bf16.mxu0 %v868
      %1136 = vmatpush1.bf16.msra.mxu0 %v867
      %1137 = vmatprep.subr.bf16.mxu0 %v876
      %1138 = vmatpush1.bf16.msra.mxu0 %v875
      %1139 = vmatprep.subr.bf16.mxu0 0
      %1140 = vmatpush1.bf16.msra.mxu0 0
      %1141 = vmatprep.subr.bf16.mxu0 0
      %1142 = vmatpush1.bf16.msra.mxu0 0
      %1143 = vmatprep.subr.bf16.mxu0 0
      %1144 = vmatpush1.bf16.msra.mxu0 0
      %1145 = vmatprep.subr.bf16.mxu0 0
      %1146 = vmatpush1.bf16.msra.mxu0 0
      %1147 = vmatprep.mubr.bf16.mxu0 %v979
      %1148 = vmatmul.mubr.bf16.gmra.mrb[0].mxu0 %v473
      %v1149 = vpop.f32.mrb[0].mxu0
      %v1150 = vadd.f32 0.0, %v1149
      %v1151 = vpop.f32.mrb[0].mxu0
      %v1152 = vadd.f32 0.0, %v1151
      %v1153 = vpop.f32.mrb[0].mxu0
      %v1154 = vadd.f32 0.0, %v1153
      %v1155 = vpop.f32.mrb[0].mxu0
      %v1156 = vadd.f32 0.0, %v1155
      %1157 = vmatprep.mubr.bf16.mxu0 %v982
      %1158 = vmatmul.mubr.bf16.gmra.mrb[0].mxu0 %v475
      %v1159 = vpop.f32.mrb[0].mxu0
      %v1160 = vadd.f32 0.0, %v1159
      %v1161 = vpop.f32.mrb[0].mxu0
      %v1162 = vadd.f32 0.0, %v1161
      %v1163 = vpop.f32.mrb[0].mxu0
      %v1164 = vadd.f32 0.0, %v1163
      %v1165 = vpop.f32.mrb[0].mxu0
      %v1166 = vadd.f32 0.0, %v1165
      %1167 = vmatprep.mubr.bf16.mxu0 %v985
      %1168 = vmatmul.mubr.bf16.gmra.mrb[0].mxu0 %v477
      %v1169 = vpop.f32.mrb[0].mxu0
      %v1170 = vadd.f32 0.0, %v1169
      %v1171 = vpop.f32.mrb[0].mxu0
      %v1172 = vadd.f32 0.0, %v1171
      %v1173 = vpop.f32.mrb[0].mxu0
      %v1174 = vadd.f32 0.0, %v1173
      %v1175 = vpop.f32.mrb[0].mxu0
      %v1176 = vadd.f32 0.0, %v1175
      %1177 = vmatprep.mubr.bf16.mxu0 %v988
      %1178 = vmatmul.mubr.bf16.gmra.mrb[0].mxu0 %v479
      %v1179 = vpop.f32.mrb[0].mxu0
      %v1180 = vadd.f32 0.0, %v1179
      %v1181 = vpop.f32.mrb[0].mxu0
      %v1182 = vadd.f32 0.0, %v1181
      %v1183 = vpop.f32.mrb[0].mxu0
      %v1184 = vadd.f32 0.0, %v1183
      %v1185 = vpop.f32.mrb[0].mxu0
      %v1186 = vadd.f32 0.0, %v1185
      %1187 = vmatprep.mubr.bf16.mxu0 %v991
      %1188 = vmatmul.mubr.bf16.gmra.mrb[0].mxu0 %v481
      %v1189 = vpop.f32.mrb[0].mxu0
      %v1190 = vadd.f32 0.0, %v1189
      %v1191 = vpop.f32.mrb[0].mxu0
      %v1192 = vadd.f32 0.0, %v1191
      %v1193 = vpop.f32.mrb[0].mxu0
      %v1194 = vadd.f32 0.0, %v1193
      %v1195 = vpop.f32.mrb[0].mxu0
      %v1196 = vadd.f32 0.0, %v1195
      %1197 = vmatprep.mubr.bf16.mxu0 %v994
      %1198 = vmatmul.mubr.bf16.gmra.mrb[0].mxu0 %v483
      %v1199 = vpop.f32.mrb[0].mxu0
      %v1200 = vadd.f32 0.0, %v1199
      %v1201 = vpop.f32.mrb[0].mxu0
      %v1202 = vadd.f32 0.0, %v1201
      %v1203 = vpop.f32.mrb[0].mxu0
      %v1204 = vadd.f32 0.0, %v1203
      %v1205 = vpop.f32.mrb[0].mxu0
      %v1206 = vadd.f32 0.0, %v1205
      %1207 = vmatprep.mubr.bf16.mxu0 %v997
      %1208 = vmatmul.mubr.bf16.gmra.mrb[0].mxu0 %v485
      %v1209 = vpop.f32.mrb[0].mxu0
      %v1210 = vadd.f32 0.0, %v1209
      %v1211 = vpop.f32.mrb[0].mxu0
      %v1212 = vadd.f32 0.0, %v1211
      %v1213 = vpop.f32.mrb[0].mxu0
      %v1214 = vadd.f32 0.0, %v1213
      %v1215 = vpop.f32.mrb[0].mxu0
      %v1216 = vadd.f32 0.0, %v1215
      %1217 = vmatprep.mubr.bf16.mxu0 %v1000
      %1218 = vmatmul.mubr.bf16.gmra.mrb[0].mxu0 %v487
      %v1219 = vpop.f32.mrb[0].mxu0
      %v1220 = vadd.f32 0.0, %v1219
      %v1221 = vpop.f32.mrb[0].mxu0
      %v1222 = vadd.f32 0.0, %v1221
      %v1223 = vpop.f32.mrb[0].mxu0
      %v1224 = vadd.f32 0.0, %v1223
      %v1225 = vpop.f32.mrb[0].mxu0
      %v1226 = vadd.f32 0.0, %v1225
      %1227 = vdwg.mxu0
      %1228 = vmatprep.subr.bf16.mxu0 %v790
      %1229 = vmatpush1.bf16.msra.mxu0 %v789
      %1230 = vmatprep.subr.bf16.mxu0 %v798
      %1231 = vmatpush1.bf16.msra.mxu0 %v797
      %1232 = vmatprep.subr.bf16.mxu0 %v806
      %1233 = vmatpush1.bf16.msra.mxu0 %v805
      %1234 = vmatprep.subr.bf16.mxu0 %v814
      %1235 = vmatpush1.bf16.msra.mxu0 %v813
      %1236 = vmatprep.subr.bf16.mxu0 %v822
      %1237 = vmatpush1.bf16.msra.mxu0 %v821
      %1238 = vmatprep.subr.bf16.mxu0 %v830
      %1239 = vmatpush1.bf16.msra.mxu0 %v829
      %1240 = vmatprep.subr.bf16.mxu0 %v838
      %1241 = vmatpush1.bf16.msra.mxu0 %v837
      %1242 = vmatprep.subr.bf16.mxu0 %v846
      %1243 = vmatpush1.bf16.msra.mxu0 %v845
      %1244 = vmatprep.subr.bf16.mxu0 %v854
      %1245 = vmatpush1.bf16.msra.mxu0 %v853
      %1246 = vmatprep.subr.bf16.mxu0 %v862
      %1247 = vmatpush1.bf16.msra.mxu0 %v861
      %1248 = vmatprep.subr.bf16.mxu0 %v870
      %1249 = vmatpush1.bf16.msra.mxu0 %v869
      %1250 = vmatprep.subr.bf16.mxu0 %v878
      %1251 = vmatpush1.bf16.msra.mxu0 %v877
      %1252 = vmatprep.subr.bf16.mxu0 0
      %1253 = vmatpush1.bf16.msra.mxu0 0
      %1254 = vmatprep.subr.bf16.mxu0 0
      %1255 = vmatpush1.bf16.msra.mxu0 0
      %1256 = vmatprep.subr.bf16.mxu0 0
      %1257 = vmatpush1.bf16.msra.mxu0 0
      %1258 = vmatprep.subr.bf16.mxu0 0
      %1259 = vmatpush1.bf16.msra.mxu0 0
      %1260 = vmatprep.mubr.bf16.mxu0 %v979
      %1261 = vmatmul.mubr.bf16.gmra.mrb[0].mxu0 %v473
      %v1262 = vpop.f32.mrb[0].mxu0
      %v1263 = vadd.f32 0.0, %v1262
      %v1264 = vpop.f32.mrb[0].mxu0
      %v1265 = vadd.f32 0.0, %v1264
      %v1266 = vpop.f32.mrb[0].mxu0
      %v1267 = vadd.f32 0.0, %v1266
      %v1268 = vpop.f32.mrb[0].mxu0
      %v1269 = vadd.f32 0.0, %v1268
      %1270 = vmatprep.mubr.bf16.mxu0 %v982
      %1271 = vmatmul.mubr.bf16.gmra.mrb[0].mxu0 %v475
      %v1272 = vpop.f32.mrb[0].mxu0
      %v1273 = vadd.f32 0.0, %v1272
      %v1274 = vpop.f32.mrb[0].mxu0
      %v1275 = vadd.f32 0.0, %v1274
      %v1276 = vpop.f32.mrb[0].mxu0
      %v1277 = vadd.f32 0.0, %v1276
      %v1278 = vpop.f32.mrb[0].mxu0
      %v1279 = vadd.f32 0.0, %v1278
      %1280 = vmatprep.mubr.bf16.mxu0 %v985
      %1281 = vmatmul.mubr.bf16.gmra.mrb[0].mxu0 %v477
      %v1282 = vpop.f32.mrb[0].mxu0
      %v1283 = vadd.f32 0.0, %v1282
      %v1284 = vpop.f32.mrb[0].mxu0
      %v1285 = vadd.f32 0.0, %v1284
      %v1286 = vpop.f32.mrb[0].mxu0
      %v1287 = vadd.f32 0.0, %v1286
      %v1288 = vpop.f32.mrb[0].mxu0
      %v1289 = vadd.f32 0.0, %v1288
      %1290 = vmatprep.mubr.bf16.mxu0 %v988
      %1291 = vmatmul.mubr.bf16.gmra.mrb[0].mxu0 %v479
      %v1292 = vpop.f32.mrb[0].mxu0
      %v1293 = vadd.f32 0.0, %v1292
      %v1294 = vpop.f32.mrb[0].mxu0
      %v1295 = vadd.f32 0.0, %v1294
      %v1296 = vpop.f32.mrb[0].mxu0
      %v1297 = vadd.f32 0.0, %v1296
      %v1298 = vpop.f32.mrb[0].mxu0
      %v1299 = vadd.f32 0.0, %v1298
      %1300 = vmatprep.mubr.bf16.mxu0 %v991
      %1301 = vmatmul.mubr.bf16.gmra.mrb[0].mxu0 %v481
      %v1302 = vpop.f32.mrb[0].mxu0
      %v1303 = vadd.f32 0.0, %v1302
      %v1304 = vpop.f32.mrb[0].mxu0
      %v1305 = vadd.f32 0.0, %v1304
      %v1306 = vpop.f32.mrb[0].mxu0
      %v1307 = vadd.f32 0.0, %v1306
      %v1308 = vpop.f32.mrb[0].mxu0
      %v1309 = vadd.f32 0.0, %v1308
      %1310 = vmatprep.mubr.bf16.mxu0 %v994
      %1311 = vmatmul.mubr.bf16.gmra.mrb[0].mxu0 %v483
      %v1312 = vpop.f32.mrb[0].mxu0
      %v1313 = vadd.f32 0.0, %v1312
      %v1314 = vpop.f32.mrb[0].mxu0
      %v1315 = vadd.f32 0.0, %v1314
      %v1316 = vpop.f32.mrb[0].mxu0
      %v1317 = vadd.f32 0.0, %v1316
      %v1318 = vpop.f32.mrb[0].mxu0
      %v1319 = vadd.f32 0.0, %v1318
      %1320 = vmatprep.mubr.bf16.mxu0 %v997
      %1321 = vmatmul.mubr.bf16.gmra.mrb[0].mxu0 %v485
      %v1322 = vpop.f32.mrb[0].mxu0
      %v1323 = vadd.f32 0.0, %v1322
      %v1324 = vpop.f32.mrb[0].mxu0
      %v1325 = vadd.f32 0.0, %v1324
      %v1326 = vpop.f32.mrb[0].mxu0
      %v1327 = vadd.f32 0.0, %v1326
      %v1328 = vpop.f32.mrb[0].mxu0
      %v1329 = vadd.f32 0.0, %v1328
      %1330 = vmatprep.mubr.bf16.mxu0 %v1000
      %1331 = vmatmul.mubr.bf16.gmra.mrb[0].mxu0 %v487
      %v1332 = vpop.f32.mrb[0].mxu0
      %v1333 = vadd.f32 0.0, %v1332
      %v1334 = vpop.f32.mrb[0].mxu0
      %v1335 = vadd.f32 0.0, %v1334
      %v1336 = vpop.f32.mrb[0].mxu0
      %v1337 = vadd.f32 0.0, %v1336
      %v1338 = vpop.f32.mrb[0].mxu0
      %v1339 = vadd.f32 0.0, %v1338
      %1340 = vdwg.mxu0
      %1341 = vmatprep.subr.bf16.mxu0 %v792
      %1342 = vmatpush1.bf16.msra.mxu0 %v791
      %1343 = vmatprep.subr.bf16.mxu0 %v800
      %1344 = vmatpush1.bf16.msra.mxu0 %v799
      %1345 = vmatprep.subr.bf16.mxu0 %v808
      %1346 = vmatpush1.bf16.msra.mxu0 %v807
      %1347 = vmatprep.subr.bf16.mxu0 %v816
      %1348 = vmatpush1.bf16.msra.mxu0 %v815
      %1349 = vmatprep.subr.bf16.mxu0 %v824
      %1350 = vmatpush1.bf16.msra.mxu0 %v823
      %1351 = vmatprep.subr.bf16.mxu0 %v832
      %1352 = vmatpush1.bf16.msra.mxu0 %v831
      %1353 = vmatprep.subr.bf16.mxu0 %v840
      %1354 = vmatpush1.bf16.msra.mxu0 %v839
      %1355 = vmatprep.subr.bf16.mxu0 %v848
      %1356 = vmatpush1.bf16.msra.mxu0 %v847
      %1357 = vmatprep.subr.bf16.mxu0 %v856
      %1358 = vmatpush1.bf16.msra.mxu0 %v855
      %1359 = vmatprep.subr.bf16.mxu0 %v864
      %1360 = vmatpush1.bf16.msra.mxu0 %v863
      %1361 = vmatprep.subr.bf16.mxu0 %v872
      %1362 = vmatpush1.bf16.msra.mxu0 %v871
      %1363 = vmatprep.subr.bf16.mxu0 %v880
      %1364 = vmatpush1.bf16.msra.mxu0 %v879
      %1365 = vmatprep.subr.bf16.mxu0 0
      %1366 = vmatpush1.bf16.msra.mxu0 0
      %1367 = vmatprep.subr.bf16.mxu0 0
      %1368 = vmatpush1.bf16.msra.mxu0 0
      %1369 = vmatprep.subr.bf16.mxu0 0
      %1370 = vmatpush1.bf16.msra.mxu0 0
      %1371 = vmatprep.subr.bf16.mxu0 0
      %1372 = vmatpush1.bf16.msra.mxu0 0
      %1373 = vmatprep.mubr.bf16.mxu0 %v979
      %1374 = vmatmul.mubr.bf16.gmra.mrb[0].mxu0 %v473
      %v1375 = vpop.f32.mrb[0].mxu0
      %v1376 = vadd.f32 0.0, %v1375
      %v1377 = vpop.f32.mrb[0].mxu0
      %v1378 = vadd.f32 0.0, %v1377
      %v1379 = vpop.f32.mrb[0].mxu0
      %v1380 = vadd.f32 0.0, %v1379
      %v1381 = vpop.f32.mrb[0].mxu0
      %v1382 = vadd.f32 0.0, %v1381
      %1383 = vmatprep.mubr.bf16.mxu0 %v982
      %1384 = vmatmul.mubr.bf16.gmra.mrb[0].mxu0 %v475
      %v1385 = vpop.f32.mrb[0].mxu0
      %v1386 = vadd.f32 0.0, %v1385
      %v1387 = vpop.f32.mrb[0].mxu0
      %v1388 = vadd.f32 0.0, %v1387
      %v1389 = vpop.f32.mrb[0].mxu0
      %v1390 = vadd.f32 0.0, %v1389
      %v1391 = vpop.f32.mrb[0].mxu0
      %v1392 = vadd.f32 0.0, %v1391
      %1393 = vmatprep.mubr.bf16.mxu0 %v985
      %1394 = vmatmul.mubr.bf16.gmra.mrb[0].mxu0 %v477
      %v1395 = vpop.f32.mrb[0].mxu0
      %v1396 = vadd.f32 0.0, %v1395
      %v1397 = vpop.f32.mrb[0].mxu0
      %v1398 = vadd.f32 0.0, %v1397
      %v1399 = vpop.f32.mrb[0].mxu0
      %v1400 = vadd.f32 0.0, %v1399
      %v1401 = vpop.f32.mrb[0].mxu0
      %v1402 = vadd.f32 0.0, %v1401
      %1403 = vmatprep.mubr.bf16.mxu0 %v988
      %1404 = vmatmul.mubr.bf16.gmra.mrb[0].mxu0 %v479
      %v1405 = vpop.f32.mrb[0].mxu0
      %v1406 = vadd.f32 0.0, %v1405
      %v1407 = vpop.f32.mrb[0].mxu0
      %v1408 = vadd.f32 0.0, %v1407
      %v1409 = vpop.f32.mrb[0].mxu0
      %v1410 = vadd.f32 0.0, %v1409
      %v1411 = vpop.f32.mrb[0].mxu0
      %v1412 = vadd.f32 0.0, %v1411
      %1413 = vmatprep.mubr.bf16.mxu0 %v991
      %1414 = vmatmul.mubr.bf16.gmra.mrb[0].mxu0 %v481
      %v1415 = vpop.f32.mrb[0].mxu0
      %v1416 = vadd.f32 0.0, %v1415
      %v1417 = vpop.f32.mrb[0].mxu0
      %v1418 = vadd.f32 0.0, %v1417
      %v1419 = vpop.f32.mrb[0].mxu0
      %v1420 = vadd.f32 0.0, %v1419
      %v1421 = vpop.f32.mrb[0].mxu0
      %v1422 = vadd.f32 0.0, %v1421
      %1423 = vmatprep.mubr.bf16.mxu0 %v994
      %1424 = vmatmul.mubr.bf16.gmra.mrb[0].mxu0 %v483
      %v1425 = vpop.f32.mrb[0].mxu0
      %v1426 = vadd.f32 0.0, %v1425
      %v1427 = vpop.f32.mrb[0].mxu0
      %v1428 = vadd.f32 0.0, %v1427
      %v1429 = vpop.f32.mrb[0].mxu0
      %v1430 = vadd.f32 0.0, %v1429
      %v1431 = vpop.f32.mrb[0].mxu0
      %v1432 = vadd.f32 0.0, %v1431
      %1433 = vmatprep.mubr.bf16.mxu0 %v997
      %1434 = vmatmul.mubr.bf16.gmra.mrb[0].mxu0 %v485
      %v1435 = vpop.f32.mrb[0].mxu0
      %v1436 = vadd.f32 0.0, %v1435
      %v1437 = vpop.f32.mrb[0].mxu0
      %v1438 = vadd.f32 0.0, %v1437
      %v1439 = vpop.f32.mrb[0].mxu0
      %v1440 = vadd.f32 0.0, %v1439
      %v1441 = vpop.f32.mrb[0].mxu0
      %v1442 = vadd.f32 0.0, %v1441
      %1443 = vmatprep.mubr.bf16.mxu0 %v1000
      %1444 = vmatmul.mubr.bf16.gmra.mrb[0].mxu0 %v487
      %v1445 = vpop.f32.mrb[0].mxu0
      %v1446 = vadd.f32 0.0, %v1445
      %v1447 = vpop.f32.mrb[0].mxu0
      %v1448 = vadd.f32 0.0, %v1447
      %v1449 = vpop.f32.mrb[0].mxu0
      %v1450 = vadd.f32 0.0, %v1449
      %v1451 = vpop.f32.mrb[0].mxu0
      %v1452 = vadd.f32 0.0, %v1451
      %1453 = vdwg.mxu0
      %v1454 = vld [vmem:[%s2] sm:$0xf]
      %v1455 = vld [vmem:[%s2 + $0x4] sm:$0xf]
      %v1456 = vld [vmem:[%s2 + $0x8] sm:$0xf]
      %v1457 = vld [vmem:[%s2 + $0xc] sm:$0xf]
      %v1458 = vpack.c.bf16 %v1041, %v1037
      %v1459 = vpack.c.bf16 %v1051, %v1047
      %v1460 = vpack.c.bf16 %v1061, %v1057
      %v1461 = vpack.c.bf16 %v1071, %v1067
      %v1462 = vpack.c.bf16 %v1081, %v1077
      %v1463 = vpack.c.bf16 %v1091, %v1087
      %v1464 = vpack.c.bf16 %v1101, %v1097
      %v1465 = vpack.c.bf16 %v1111, %v1107
      %v1470 = vunpack.c.l.b16 %v1454
      %v1471 = vunpack.c.l.b16 %v1455
      %v1472 = vunpack.c.l.b16 %v1456
      %v1473 = vunpack.c.l.b16 %v1457
      %v1474 = vpack.c.b16 %v1471, %v1470
      %v1475 = vpack.c.b16 %v1473, %v1472
      %1478 = vmatprep.subr.bf16.mxu0 0
      %1479 = vmatpush1.bf16.msra.mxu0 %v1458
      %1480 = vmatprep.subr.bf16.mxu0 0
      %1481 = vmatpush1.bf16.msra.mxu0 %v1459
      %1482 = vmatprep.subr.bf16.mxu0 0
      %1483 = vmatpush1.bf16.msra.mxu0 %v1460
      %1484 = vmatprep.subr.bf16.mxu0 0
      %1485 = vmatpush1.bf16.msra.mxu0 %v1461
      %1486 = vmatprep.subr.bf16.mxu0 0
      %1487 = vmatpush1.bf16.msra.mxu0 %v1462
      %1488 = vmatprep.subr.bf16.mxu0 0
      %1489 = vmatpush1.bf16.msra.mxu0 %v1463
      %1490 = vmatprep.subr.bf16.mxu0 0
      %1491 = vmatpush1.bf16.msra.mxu0 %v1464
      %1492 = vmatprep.subr.bf16.mxu0 0
      %1493 = vmatpush1.bf16.msra.mxu0 %v1465
      %1494 = vmatprep.subr.bf16.mxu0 0
      %1495 = vmatpush1.bf16.msra.mxu0 0
      %1496 = vmatprep.subr.bf16.mxu0 0
      %1497 = vmatpush1.bf16.msra.mxu0 0
      %1498 = vmatprep.subr.bf16.mxu0 0
      %1499 = vmatpush1.bf16.msra.mxu0 0
      %1500 = vmatprep.subr.bf16.mxu0 0
      %1501 = vmatpush1.bf16.msra.mxu0 0
      %1502 = vmatprep.subr.bf16.mxu0 0
      %1503 = vmatpush1.bf16.msra.mxu0 0
      %1504 = vmatprep.subr.bf16.mxu0 0
      %1505 = vmatpush1.bf16.msra.mxu0 0
      %1506 = vmatprep.subr.bf16.mxu0 0
      %1507 = vmatpush1.bf16.msra.mxu0 0
      %1508 = vmatprep.subr.bf16.mxu0 0
      %1509 = vmatpush1.bf16.msra.mxu0 0
      %1510 = vmatprep.mubr.bf16.mxu0 0
      %1511 = vmatmul.mubr.bf16.gmra.mrb[0].mxu0 %v1474
      %v1512 = vpop.f32.mrb[0].mxu0
      %v1513 = vadd.f32 0.0, %v1512
      %v1514 = vpop.f32.mrb[0].mxu0
      %v1515 = vpop.f32.mrb[0].mxu0
      %v1516 = vadd.f32 0.0, %v1515
      %v1517 = vpop.f32.mrb[0].mxu0
      %1518 = vmatprep.mubr.bf16.mxu0 0
      %1519 = vmatmul.mubr.bf16.gmra.mrb[0].mxu0 %v1475
      %v1520 = vpop.f32.mrb[0].mxu0
      %v1521 = vadd.f32 0.0, %v1520
      %v1522 = vpop.f32.mrb[0].mxu0
      %v1523 = vpop.f32.mrb[0].mxu0
      %v1524 = vadd.f32 0.0, %v1523
      %v1525 = vpop.f32.mrb[0].mxu0
      %1526 = vdwg.mxu0
      %1527 = vst [vmem:[#allocation2] sm:$0xff] %v1513
      %1528 = vst [vmem:[#allocation2 + $0x8] sm:$0xff] %v1516
      %1529 = vst [vmem:[#allocation2 + $0x10] sm:$0xff] %v1521
      %1530 = vst [vmem:[#allocation2 + $0x18] sm:$0xff] %v1524
      %s1531 = scalar_lea.vmem %s2, 16
      %v1532 = vld [vmem:[%s1531] sm:$0xf]
      %v1533 = vld [vmem:[%s1531 + $0x4] sm:$0xf]
      %v1534 = vld [vmem:[%s1531 + $0x8] sm:$0xf]
      %v1535 = vld [vmem:[%s1531 + $0xc] sm:$0xf]
      %v1536 = vpack.c.bf16 %v1043, %v1039
      %v1537 = vpack.c.bf16 %v1053, %v1049
      %v1538 = vpack.c.bf16 %v1063, %v1059
      %v1539 = vpack.c.bf16 %v1073, %v1069
      %v1540 = vpack.c.bf16 %v1083, %v1079
      %v1541 = vpack.c.bf16 %v1093, %v1089
      %v1542 = vpack.c.bf16 %v1103, %v1099
      %v1543 = vpack.c.bf16 %v1113, %v1109
      %v1548 = vunpack.c.l.b16 %v1532
      %v1549 = vunpack.c.l.b16 %v1533
      %v1550 = vunpack.c.l.b16 %v1534
      %v1551 = vunpack.c.l.b16 %v1535
      %v1552 = vpack.c.b16 %v1549, %v1548
      %v1553 = vpack.c.b16 %v1551, %v1550
      %1556 = vmatprep.subr.bf16.mxu0 0
      %1557 = vmatpush1.bf16.msra.mxu0 %v1536
      %1558 = vmatprep.subr.bf16.mxu0 0
      %1559 = vmatpush1.bf16.msra.mxu0 %v1537
      %1560 = vmatprep.subr.bf16.mxu0 0
      %1561 = vmatpush1.bf16.msra.mxu0 %v1538
      %1562 = vmatprep.subr.bf16.mxu0 0
      %1563 = vmatpush1.bf16.msra.mxu0 %v1539
      %1564 = vmatprep.subr.bf16.mxu0 0
      %1565 = vmatpush1.bf16.msra.mxu0 %v1540
      %1566 = vmatprep.subr.bf16.mxu0 0
      %1567 = vmatpush1.bf16.msra.mxu0 %v1541
      %1568 = vmatprep.subr.bf16.mxu0 0
      %1569 = vmatpush1.bf16.msra.mxu0 %v1542
      %1570 = vmatprep.subr.bf16.mxu0 0
      %1571 = vmatpush1.bf16.msra.mxu0 %v1543
      %1572 = vmatprep.subr.bf16.mxu0 0
      %1573 = vmatpush1.bf16.msra.mxu0 0
      %1574 = vmatprep.subr.bf16.mxu0 0
      %1575 = vmatpush1.bf16.msra.mxu0 0
      %1576 = vmatprep.subr.bf16.mxu0 0
      %1577 = vmatpush1.bf16.msra.mxu0 0
      %1578 = vmatprep.subr.bf16.mxu0 0
      %1579 = vmatpush1.bf16.msra.mxu0 0
      %1580 = vmatprep.subr.bf16.mxu0 0
      %1581 = vmatpush1.bf16.msra.mxu0 0
      %1582 = vmatprep.subr.bf16.mxu0 0
      %1583 = vmatpush1.bf16.msra.mxu0 0
      %1584 = vmatprep.subr.bf16.mxu0 0
      %1585 = vmatpush1.bf16.msra.mxu0 0
      %1586 = vmatprep.subr.bf16.mxu0 0
      %1587 = vmatpush1.bf16.msra.mxu0 0
      %1588 = vmatprep.mubr.bf16.mxu0 0
      %1589 = vmatmul.mubr.bf16.gmra.mrb[0].mxu0 %v1552
      %v1590 = vpop.f32.mrb[0].mxu0
      %v1591 = vadd.f32 0.0, %v1590
      %v1592 = vpop.f32.mrb[0].mxu0
      %v1593 = vpop.f32.mrb[0].mxu0
      %v1594 = vadd.f32 0.0, %v1593
      %v1595 = vpop.f32.mrb[0].mxu0
      %1596 = vmatprep.mubr.bf16.mxu0 0
      %1597 = vmatmul.mubr.bf16.gmra.mrb[0].mxu0 %v1553
      %v1598 = vpop.f32.mrb[0].mxu0
      %v1599 = vadd.f32 0.0, %v1598
      %v1600 = vpop.f32.mrb[0].mxu0
      %v1601 = vpop.f32.mrb[0].mxu0
      %v1602 = vadd.f32 0.0, %v1601
      %v1603 = vpop.f32.mrb[0].mxu0
      %1604 = vdwg.mxu0
      %1605 = vst [vmem:[#allocation2 + $0x20] sm:$0xff] %v1591
      %1606 = vst [vmem:[#allocation2 + $0x28] sm:$0xff] %v1594
      %1607 = vst [vmem:[#allocation2 + $0x30] sm:$0xff] %v1599
      %1608 = vst [vmem:[#allocation2 + $0x38] sm:$0xff] %v1602
      %s1609 = scalar_lea.vmem %s2, 32
      %v1610 = vld [vmem:[%s1609] sm:$0xf]
      %v1611 = vld [vmem:[%s1609 + $0x4] sm:$0xf]
      %v1612 = vld [vmem:[%s1609 + $0x8] sm:$0xf]
      %v1613 = vld [vmem:[%s1609 + $0xc] sm:$0xf]
      %v1614 = vpack.c.bf16 %v1154, %v1150
      %v1615 = vpack.c.bf16 %v1164, %v1160
      %v1616 = vpack.c.bf16 %v1174, %v1170
      %v1617 = vpack.c.bf16 %v1184, %v1180
      %v1618 = vpack.c.bf16 %v1194, %v1190
      %v1619 = vpack.c.bf16 %v1204, %v1200
      %v1620 = vpack.c.bf16 %v1214, %v1210
      %v1621 = vpack.c.bf16 %v1224, %v1220
      %v1626 = vunpack.c.l.b16 %v1610
      %v1627 = vunpack.c.l.b16 %v1611
      %v1628 = vunpack.c.l.b16 %v1612
      %v1629 = vunpack.c.l.b16 %v1613
      %v1630 = vpack.c.b16 %v1627, %v1626
      %v1631 = vpack.c.b16 %v1629, %v1628
      %1634 = vmatprep.subr.bf16.mxu0 0
      %1635 = vmatpush1.bf16.msra.mxu0 %v1614
      %1636 = vmatprep.subr.bf16.mxu0 0
      %1637 = vmatpush1.bf16.msra.mxu0 %v1615
      %1638 = vmatprep.subr.bf16.mxu0 0
      %1639 = vmatpush1.bf16.msra.mxu0 %v1616
      %1640 = vmatprep.subr.bf16.mxu0 0
      %1641 = vmatpush1.bf16.msra.mxu0 %v1617
      %1642 = vmatprep.subr.bf16.mxu0 0
      %1643 = vmatpush1.bf16.msra.mxu0 %v1618
      %1644 = vmatprep.subr.bf16.mxu0 0
      %1645 = vmatpush1.bf16.msra.mxu0 %v1619
      %1646 = vmatprep.subr.bf16.mxu0 0
      %1647 = vmatpush1.bf16.msra.mxu0 %v1620
      %1648 = vmatprep.subr.bf16.mxu0 0
      %1649 = vmatpush1.bf16.msra.mxu0 %v1621
      %1650 = vmatprep.subr.bf16.mxu0 0
      %1651 = vmatpush1.bf16.msra.mxu0 0
      %1652 = vmatprep.subr.bf16.mxu0 0
      %1653 = vmatpush1.bf16.msra.mxu0 0
      %1654 = vmatprep.subr.bf16.mxu0 0
      %1655 = vmatpush1.bf16.msra.mxu0 0
      %1656 = vmatprep.subr.bf16.mxu0 0
      %1657 = vmatpush1.bf16.msra.mxu0 0
      %1658 = vmatprep.subr.bf16.mxu0 0
      %1659 = vmatpush1.bf16.msra.mxu0 0
      %1660 = vmatprep.subr.bf16.mxu0 0
      %1661 = vmatpush1.bf16.msra.mxu0 0
      %1662 = vmatprep.subr.bf16.mxu0 0
      %1663 = vmatpush1.bf16.msra.mxu0 0
      %1664 = vmatprep.subr.bf16.mxu0 0
      %1665 = vmatpush1.bf16.msra.mxu0 0
      %1666 = vmatprep.mubr.bf16.mxu0 0
      %1667 = vmatmul.mubr.bf16.gmra.mrb[0].mxu0 %v1630
      %v1668 = vpop.f32.mrb[0].mxu0
      %v1669 = vadd.f32 0.0, %v1668
      %v1670 = vpop.f32.mrb[0].mxu0
      %v1671 = vpop.f32.mrb[0].mxu0
      %v1672 = vadd.f32 0.0, %v1671
      %v1673 = vpop.f32.mrb[0].mxu0
      %1674 = vmatprep.mubr.bf16.mxu0 0
      %1675 = vmatmul.mubr.bf16.gmra.mrb[0].mxu0 %v1631
      %v1676 = vpop.f32.mrb[0].mxu0
      %v1677 = vadd.f32 0.0, %v1676
      %v1678 = vpop.f32.mrb[0].mxu0
      %v1679 = vpop.f32.mrb[0].mxu0
      %v1680 = vadd.f32 0.0, %v1679
      %v1681 = vpop.f32.mrb[0].mxu0
      %1682 = vdwg.mxu0
      %1683 = vst [vmem:[#allocation2 + $0x40] sm:$0xff] %v1669
      %1684 = vst [vmem:[#allocation2 + $0x48] sm:$0xff] %v1672
      %1685 = vst [vmem:[#allocation2 + $0x50] sm:$0xff] %v1677
      %1686 = vst [vmem:[#allocation2 + $0x58] sm:$0xff] %v1680
      %s1687 = scalar_lea.vmem %s2, 48
      %v1688 = vld [vmem:[%s1687] sm:$0xf]
      %v1689 = vld [vmem:[%s1687 + $0x4] sm:$0xf]
      %v1690 = vld [vmem:[%s1687 + $0x8] sm:$0xf]
      %v1691 = vld [vmem:[%s1687 + $0xc] sm:$0xf]
      %v1692 = vpack.c.bf16 %v1156, %v1152
      %v1693 = vpack.c.bf16 %v1166, %v1162
      %v1694 = vpack.c.bf16 %v1176, %v1172
      %v1695 = vpack.c.bf16 %v1186, %v1182
      %v1696 = vpack.c.bf16 %v1196, %v1192
      %v1697 = vpack.c.bf16 %v1206, %v1202
      %v1698 = vpack.c.bf16 %v1216, %v1212
      %v1699 = vpack.c.bf16 %v1226, %v1222
      %v1704 = vunpack.c.l.b16 %v1688
      %v1705 = vunpack.c.l.b16 %v1689
      %v1706 = vunpack.c.l.b16 %v1690
      %v1707 = vunpack.c.l.b16 %v1691
      %v1708 = vpack.c.b16 %v1705, %v1704
      %v1709 = vpack.c.b16 %v1707, %v1706
      %1712 = vmatprep.subr.bf16.mxu0 0
      %1713 = vmatpush1.bf16.msra.mxu0 %v1692
      %1714 = vmatprep.subr.bf16.mxu0 0
      %1715 = vmatpush1.bf16.msra.mxu0 %v1693
      %1716 = vmatprep.subr.bf16.mxu0 0
      %1717 = vmatpush1.bf16.msra.mxu0 %v1694
      %1718 = vmatprep.subr.bf16.mxu0 0
      %1719 = vmatpush1.bf16.msra.mxu0 %v1695
      %1720 = vmatprep.subr.bf16.mxu0 0
      %1721 = vmatpush1.bf16.msra.mxu0 %v1696
      %1722 = vmatprep.subr.bf16.mxu0 0
      %1723 = vmatpush1.bf16.msra.mxu0 %v1697
      %1724 = vmatprep.subr.bf16.mxu0 0
      %1725 = vmatpush1.bf16.msra.mxu0 %v1698
      %1726 = vmatprep.subr.bf16.mxu0 0
      %1727 = vmatpush1.bf16.msra.mxu0 %v1699
      %1728 = vmatprep.subr.bf16.mxu0 0
      %1729 = vmatpush1.bf16.msra.mxu0 0
      %1730 = vmatprep.subr.bf16.mxu0 0
      %1731 = vmatpush1.bf16.msra.mxu0 0
      %1732 = vmatprep.subr.bf16.mxu0 0
      %1733 = vmatpush1.bf16.msra.mxu0 0
      %1734 = vmatprep.subr.bf16.mxu0 0
      %1735 = vmatpush1.bf16.msra.mxu0 0
      %1736 = vmatprep.subr.bf16.mxu0 0
      %1737 = vmatpush1.bf16.msra.mxu0 0
      %1738 = vmatprep.subr.bf16.mxu0 0
      %1739 = vmatpush1.bf16.msra.mxu0 0
      %1740 = vmatprep.subr.bf16.mxu0 0
      %1741 = vmatpush1.bf16.msra.mxu0 0
      %1742 = vmatprep.subr.bf16.mxu0 0
      %1743 = vmatpush1.bf16.msra.mxu0 0
      %1744 = vmatprep.mubr.bf16.mxu0 0
      %1745 = vmatmul.mubr.bf16.gmra.mrb[0].mxu0 %v1708
      %v1746 = vpop.f32.mrb[0].mxu0
      %v1747 = vadd.f32 0.0, %v1746
      %v1748 = vpop.f32.mrb[0].mxu0
      %v1749 = vpop.f32.mrb[0].mxu0
      %v1750 = vadd.f32 0.0, %v1749
      %v1751 = vpop.f32.mrb[0].mxu0
      %1752 = vmatprep.mubr.bf16.mxu0 0
      %1753 = vmatmul.mubr.bf16.gmra.mrb[0].mxu0 %v1709
      %v1754 = vpop.f32.mrb[0].mxu0
      %v1755 = vadd.f32 0.0, %v1754
      %v1756 = vpop.f32.mrb[0].mxu0
      %v1757 = vpop.f32.mrb[0].mxu0
      %v1758 = vadd.f32 0.0, %v1757
      %v1759 = vpop.f32.mrb[0].mxu0
      %1760 = vdwg.mxu0
      %1761 = vst [vmem:[#allocation2 + $0x60] sm:$0xff] %v1747
      %1762 = vst [vmem:[#allocation2 + $0x68] sm:$0xff] %v1750
      %1763 = vst [vmem:[#allocation2 + $0x70] sm:$0xff] %v1755
      %1764 = vst [vmem:[#allocation2 + $0x78] sm:$0xff] %v1758
      %s1765 = scalar_lea.vmem %s2, 64
      %v1766 = vld [vmem:[%s1765] sm:$0xf]
      %v1767 = vld [vmem:[%s1765 + $0x4] sm:$0xf]
      %v1768 = vld [vmem:[%s1765 + $0x8] sm:$0xf]
      %v1769 = vld [vmem:[%s1765 + $0xc] sm:$0xf]
      %v1770 = vpack.c.bf16 %v1267, %v1263
      %v1771 = vpack.c.bf16 %v1277, %v1273
      %v1772 = vpack.c.bf16 %v1287, %v1283
      %v1773 = vpack.c.bf16 %v1297, %v1293
      %v1774 = vpack.c.bf16 %v1307, %v1303
      %v1775 = vpack.c.bf16 %v1317, %v1313
      %v1776 = vpack.c.bf16 %v1327, %v1323
      %v1777 = vpack.c.bf16 %v1337, %v1333
      %v1782 = vunpack.c.l.b16 %v1766
      %v1783 = vunpack.c.l.b16 %v1767
      %v1784 = vunpack.c.l.b16 %v1768
      %v1785 = vunpack.c.l.b16 %v1769
      %v1786 = vpack.c.b16 %v1783, %v1782
      %v1787 = vpack.c.b16 %v1785, %v1784
      %1790 = vmatprep.subr.bf16.mxu0 0
      %1791 = vmatpush1.bf16.msra.mxu0 %v1770
      %1792 = vmatprep.subr.bf16.mxu0 0
      %1793 = vmatpush1.bf16.msra.mxu0 %v1771
      %1794 = vmatprep.subr.bf16.mxu0 0
      %1795 = vmatpush1.bf16.msra.mxu0 %v1772
      %1796 = vmatprep.subr.bf16.mxu0 0
      %1797 = vmatpush1.bf16.msra.mxu0 %v1773
      %1798 = vmatprep.subr.bf16.mxu0 0
      %1799 = vmatpush1.bf16.msra.mxu0 %v1774
      %1800 = vmatprep.subr.bf16.mxu0 0
      %1801 = vmatpush1.bf16.msra.mxu0 %v1775
      %1802 = vmatprep.subr.bf16.mxu0 0
      %1803 = vmatpush1.bf16.msra.mxu0 %v1776
      %1804 = vmatprep.subr.bf16.mxu0 0
      %1805 = vmatpush1.bf16.msra.mxu0 %v1777
      %1806 = vmatprep.subr.bf16.mxu0 0
      %1807 = vmatpush1.bf16.msra.mxu0 0
      %1808 = vmatprep.subr.bf16.mxu0 0
      %1809 = vmatpush1.bf16.msra.mxu0 0
      %1810 = vmatprep.subr.bf16.mxu0 0
      %1811 = vmatpush1.bf16.msra.mxu0 0
      %1812 = vmatprep.subr.bf16.mxu0 0
      %1813 = vmatpush1.bf16.msra.mxu0 0
      %1814 = vmatprep.subr.bf16.mxu0 0
      %1815 = vmatpush1.bf16.msra.mxu0 0
      %1816 = vmatprep.subr.bf16.mxu0 0
      %1817 = vmatpush1.bf16.msra.mxu0 0
      %1818 = vmatprep.subr.bf16.mxu0 0
      %1819 = vmatpush1.bf16.msra.mxu0 0
      %1820 = vmatprep.subr.bf16.mxu0 0
      %1821 = vmatpush1.bf16.msra.mxu0 0
      %1822 = vmatprep.mubr.bf16.mxu0 0
      %1823 = vmatmul.mubr.bf16.gmra.mrb[0].mxu0 %v1786
      %v1824 = vpop.f32.mrb[0].mxu0
      %v1825 = vadd.f32 0.0, %v1824
      %v1826 = vpop.f32.mrb[0].mxu0
      %v1827 = vpop.f32.mrb[0].mxu0
      %v1828 = vadd.f32 0.0, %v1827
      %v1829 = vpop.f32.mrb[0].mxu0
      %1830 = vmatprep.mubr.bf16.mxu0 0
      %1831 = vmatmul.mubr.bf16.gmra.mrb[0].mxu0 %v1787
      %v1832 = vpop.f32.mrb[0].mxu0
      %v1833 = vadd.f32 0.0, %v1832
      %v1834 = vpop.f32.mrb[0].mxu0
      %v1835 = vpop.f32.mrb[0].mxu0
      %v1836 = vadd.f32 0.0, %v1835
      %v1837 = vpop.f32.mrb[0].mxu0
      %1838 = vdwg.mxu0
      %1839 = vst [vmem:[#allocation2 + $0x80] sm:$0xff] %v1825
      %1840 = vst [vmem:[#allocation2 + $0x88] sm:$0xff] %v1828
      %1841 = vst [vmem:[#allocation2 + $0x90] sm:$0xff] %v1833
      %1842 = vst [vmem:[#allocation2 + $0x98] sm:$0xff] %v1836
      %s1843 = scalar_lea.vmem %s2, 80
      %v1844 = vld [vmem:[%s1843] sm:$0xf]
      %v1845 = vld [vmem:[%s1843 + $0x4] sm:$0xf]
      %v1846 = vld [vmem:[%s1843 + $0x8] sm:$0xf]
      %v1847 = vld [vmem:[%s1843 + $0xc] sm:$0xf]
      %v1848 = vpack.c.bf16 %v1269, %v1265
      %v1849 = vpack.c.bf16 %v1279, %v1275
      %v1850 = vpack.c.bf16 %v1289, %v1285
      %v1851 = vpack.c.bf16 %v1299, %v1295
      %v1852 = vpack.c.bf16 %v1309, %v1305
      %v1853 = vpack.c.bf16 %v1319, %v1315
      %v1854 = vpack.c.bf16 %v1329, %v1325
      %v1855 = vpack.c.bf16 %v1339, %v1335
      %v1860 = vunpack.c.l.b16 %v1844
      %v1861 = vunpack.c.l.b16 %v1845
      %v1862 = vunpack.c.l.b16 %v1846
      %v1863 = vunpack.c.l.b16 %v1847
      %v1864 = vpack.c.b16 %v1861, %v1860
      %v1865 = vpack.c.b16 %v1863, %v1862
      %1868 = vmatprep.subr.bf16.mxu0 0
      %1869 = vmatpush1.bf16.msra.mxu0 %v1848
      %1870 = vmatprep.subr.bf16.mxu0 0
      %1871 = vmatpush1.bf16.msra.mxu0 %v1849
      %1872 = vmatprep.subr.bf16.mxu0 0
      %1873 = vmatpush1.bf16.msra.mxu0 %v1850
      %1874 = vmatprep.subr.bf16.mxu0 0
      %1875 = vmatpush1.bf16.msra.mxu0 %v1851
      %1876 = vmatprep.subr.bf16.mxu0 0
      %1877 = vmatpush1.bf16.msra.mxu0 %v1852
      %1878 = vmatprep.subr.bf16.mxu0 0
      %1879 = vmatpush1.bf16.msra.mxu0 %v1853
      %1880 = vmatprep.subr.bf16.mxu0 0
      %1881 = vmatpush1.bf16.msra.mxu0 %v1854
      %1882 = vmatprep.subr.bf16.mxu0 0
      %1883 = vmatpush1.bf16.msra.mxu0 %v1855
      %1884 = vmatprep.subr.bf16.mxu0 0
      %1885 = vmatpush1.bf16.msra.mxu0 0
      %1886 = vmatprep.subr.bf16.mxu0 0
      %1887 = vmatpush1.bf16.msra.mxu0 0
      %1888 = vmatprep.subr.bf16.mxu0 0
      %1889 = vmatpush1.bf16.msra.mxu0 0
      %1890 = vmatprep.subr.bf16.mxu0 0
      %1891 = vmatpush1.bf16.msra.mxu0 0
      %1892 = vmatprep.subr.bf16.mxu0 0
      %1893 = vmatpush1.bf16.msra.mxu0 0
      %1894 = vmatprep.subr.bf16.mxu0 0
      %1895 = vmatpush1.bf16.msra.mxu0 0
      %1896 = vmatprep.subr.bf16.mxu0 0
      %1897 = vmatpush1.bf16.msra.mxu0 0
      %1898 = vmatprep.subr.bf16.mxu0 0
      %1899 = vmatpush1.bf16.msra.mxu0 0
      %1900 = vmatprep.mubr.bf16.mxu0 0
      %1901 = vmatmul.mubr.bf16.gmra.mrb[0].mxu0 %v1864
      %v1902 = vpop.f32.mrb[0].mxu0
      %v1903 = vadd.f32 0.0, %v1902
      %v1904 = vpop.f32.mrb[0].mxu0
      %v1905 = vpop.f32.mrb[0].mxu0
      %v1906 = vadd.f32 0.0, %v1905
      %v1907 = vpop.f32.mrb[0].mxu0
      %1908 = vmatprep.mubr.bf16.mxu0 0
      %1909 = vmatmul.mubr.bf16.gmra.mrb[0].mxu0 %v1865
      %v1910 = vpop.f32.mrb[0].mxu0
      %v1911 = vadd.f32 0.0, %v1910
      %v1912 = vpop.f32.mrb[0].mxu0
      %v1913 = vpop.f32.mrb[0].mxu0
      %v1914 = vadd.f32 0.0, %v1913
      %v1915 = vpop.f32.mrb[0].mxu0
      %1916 = vdwg.mxu0
      %1917 = vst [vmem:[#allocation2 + $0xa0] sm:$0xff] %v1903
      %1918 = vst [vmem:[#allocation2 + $0xa8] sm:$0xff] %v1906
      %1919 = vst [vmem:[#allocation2 + $0xb0] sm:$0xff] %v1911
      %1920 = vst [vmem:[#allocation2 + $0xb8] sm:$0xff] %v1914
      %s1921 = scalar_lea.vmem %s2, 96
      %v1922 = vld [vmem:[%s1921] sm:$0xf]
      %v1923 = vld [vmem:[%s1921 + $0x4] sm:$0xf]
      %v1924 = vld [vmem:[%s1921 + $0x8] sm:$0xf]
      %v1925 = vld [vmem:[%s1921 + $0xc] sm:$0xf]
      %v1926 = vpack.c.bf16 %v1380, %v1376
      %v1927 = vpack.c.bf16 %v1390, %v1386
      %v1928 = vpack.c.bf16 %v1400, %v1396
      %v1929 = vpack.c.bf16 %v1410, %v1406
      %v1930 = vpack.c.bf16 %v1420, %v1416
      %v1931 = vpack.c.bf16 %v1430, %v1426
      %v1932 = vpack.c.bf16 %v1440, %v1436
      %v1933 = vpack.c.bf16 %v1450, %v1446
      %v1938 = vunpack.c.l.b16 %v1922
      %v1939 = vunpack.c.l.b16 %v1923
      %v1940 = vunpack.c.l.b16 %v1924
      %v1941 = vunpack.c.l.b16 %v1925
      %v1942 = vpack.c.b16 %v1939, %v1938
      %v1943 = vpack.c.b16 %v1941, %v1940
      %1946 = vmatprep.subr.bf16.mxu0 0
      %1947 = vmatpush1.bf16.msra.mxu0 %v1926
      %1948 = vmatprep.subr.bf16.mxu0 0
      %1949 = vmatpush1.bf16.msra.mxu0 %v1927
      %1950 = vmatprep.subr.bf16.mxu0 0
      %1951 = vmatpush1.bf16.msra.mxu0 %v1928
      %1952 = vmatprep.subr.bf16.mxu0 0
      %1953 = vmatpush1.bf16.msra.mxu0 %v1929
      %1954 = vmatprep.subr.bf16.mxu0 0
      %1955 = vmatpush1.bf16.msra.mxu0 %v1930
      %1956 = vmatprep.subr.bf16.mxu0 0
      %1957 = vmatpush1.bf16.msra.mxu0 %v1931
      %1958 = vmatprep.subr.bf16.mxu0 0
      %1959 = vmatpush1.bf16.msra.mxu0 %v1932
      %1960 = vmatprep.subr.bf16.mxu0 0
      %1961 = vmatpush1.bf16.msra.mxu0 %v1933
      %1962 = vmatprep.subr.bf16.mxu0 0
      %1963 = vmatpush1.bf16.msra.mxu0 0
      %1964 = vmatprep.subr.bf16.mxu0 0
      %1965 = vmatpush1.bf16.msra.mxu0 0
      %1966 = vmatprep.subr.bf16.mxu0 0
      %1967 = vmatpush1.bf16.msra.mxu0 0
      %1968 = vmatprep.subr.bf16.mxu0 0
      %1969 = vmatpush1.bf16.msra.mxu0 0
      %1970 = vmatprep.subr.bf16.mxu0 0
      %1971 = vmatpush1.bf16.msra.mxu0 0
      %1972 = vmatprep.subr.bf16.mxu0 0
      %1973 = vmatpush1.bf16.msra.mxu0 0
      %1974 = vmatprep.subr.bf16.mxu0 0
      %1975 = vmatpush1.bf16.msra.mxu0 0
      %1976 = vmatprep.subr.bf16.mxu0 0
      %1977 = vmatpush1.bf16.msra.mxu0 0
      %1978 = vmatprep.mubr.bf16.mxu0 0
      %1979 = vmatmul.mubr.bf16.gmra.mrb[0].mxu0 %v1942
      %v1980 = vpop.f32.mrb[0].mxu0
      %v1981 = vadd.f32 0.0, %v1980
      %v1982 = vpop.f32.mrb[0].mxu0
      %v1983 = vpop.f32.mrb[0].mxu0
      %v1984 = vadd.f32 0.0, %v1983
      %v1985 = vpop.f32.mrb[0].mxu0
      %1986 = vmatprep.mubr.bf16.mxu0 0
      %1987 = vmatmul.mubr.bf16.gmra.mrb[0].mxu0 %v1943
      %v1988 = vpop.f32.mrb[0].mxu0
      %v1989 = vadd.f32 0.0, %v1988
      %v1990 = vpop.f32.mrb[0].mxu0
      %v1991 = vpop.f32.mrb[0].mxu0
      %v1992 = vadd.f32 0.0, %v1991
      %v1993 = vpop.f32.mrb[0].mxu0
      %1994 = vdwg.mxu0
      %1995 = vst [vmem:[#allocation2 + $0xc0] sm:$0xff] %v1981
      %1996 = vst [vmem:[#allocation2 + $0xc8] sm:$0xff] %v1984
      %1997 = vst [vmem:[#allocation2 + $0xd0] sm:$0xff] %v1989
      %1998 = vst [vmem:[#allocation2 + $0xd8] sm:$0xff] %v1992
      %s1999 = scalar_lea.vmem %s2, 112
      %v2000 = vld [vmem:[%s1999] sm:$0xf]
      %v2001 = vld [vmem:[%s1999 + $0x4] sm:$0xf]
      %v2002 = vld [vmem:[%s1999 + $0x8] sm:$0xf]
      %v2003 = vld [vmem:[%s1999 + $0xc] sm:$0xf]
      %v2004 = vpack.c.bf16 %v1382, %v1378
      %v2005 = vpack.c.bf16 %v1392, %v1388
      %v2006 = vpack.c.bf16 %v1402, %v1398
      %v2007 = vpack.c.bf16 %v1412, %v1408
      %v2008 = vpack.c.bf16 %v1422, %v1418
      %v2009 = vpack.c.bf16 %v1432, %v1428
      %v2010 = vpack.c.bf16 %v1442, %v1438
      %v2011 = vpack.c.bf16 %v1452, %v1448
      %v2016 = vunpack.c.l.b16 %v2000
      %v2017 = vunpack.c.l.b16 %v2001
      %v2018 = vunpack.c.l.b16 %v2002
      %v2019 = vunpack.c.l.b16 %v2003
      %v2020 = vpack.c.b16 %v2017, %v2016
      %v2021 = vpack.c.b16 %v2019, %v2018
      %2024 = vmatprep.subr.bf16.mxu0 0
      %2025 = vmatpush1.bf16.msra.mxu0 %v2004
      %2026 = vmatprep.subr.bf16.mxu0 0
      %2027 = vmatpush1.bf16.msra.mxu0 %v2005
      %2028 = vmatprep.subr.bf16.mxu0 0
      %2029 = vmatpush1.bf16.msra.mxu0 %v2006
      %2030 = vmatprep.subr.bf16.mxu0 0
      %2031 = vmatpush1.bf16.msra.mxu0 %v2007
      %2032 = vmatprep.subr.bf16.mxu0 0
      %2033 = vmatpush1.bf16.msra.mxu0 %v2008
      %2034 = vmatprep.subr.bf16.mxu0 0
      %2035 = vmatpush1.bf16.msra.mxu0 %v2009
      %2036 = vmatprep.subr.bf16.mxu0 0
      %2037 = vmatpush1.bf16.msra.mxu0 %v2010
      %2038 = vmatprep.subr.bf16.mxu0 0
      %2039 = vmatpush1.bf16.msra.mxu0 %v2011
      %2040 = vmatprep.subr.bf16.mxu0 0
      %2041 = vmatpush1.bf16.msra.mxu0 0
      %2042 = vmatprep.subr.bf16.mxu0 0
      %2043 = vmatpush1.bf16.msra.mxu0 0
      %2044 = vmatprep.subr.bf16.mxu0 0
      %2045 = vmatpush1.bf16.msra.mxu0 0
      %2046 = vmatprep.subr.bf16.mxu0 0
      %2047 = vmatpush1.bf16.msra.mxu0 0
      %2048 = vmatprep.subr.bf16.mxu0 0
      %2049 = vmatpush1.bf16.msra.mxu0 0
      %2050 = vmatprep.subr.bf16.mxu0 0
      %2051 = vmatpush1.bf16.msra.mxu0 0
      %2052 = vmatprep.subr.bf16.mxu0 0
      %2053 = vmatpush1.bf16.msra.mxu0 0
      %2054 = vmatprep.subr.bf16.mxu0 0
      %2055 = vmatpush1.bf16.msra.mxu0 0
      %2056 = vmatprep.mubr.bf16.mxu0 0
      %2057 = vmatmul.mubr.bf16.gmra.mrb[0].mxu0 %v2020
      %v2058 = vpop.f32.mrb[0].mxu0
      %v2059 = vadd.f32 0.0, %v2058
      %v2060 = vpop.f32.mrb[0].mxu0
      %v2061 = vpop.f32.mrb[0].mxu0
      %v2062 = vadd.f32 0.0, %v2061
      %v2063 = vpop.f32.mrb[0].mxu0
      %2064 = vmatprep.mubr.bf16.mxu0 0
      %2065 = vmatmul.mubr.bf16.gmra.mrb[0].mxu0 %v2021
      %v2066 = vpop.f32.mrb[0].mxu0
      %v2067 = vadd.f32 0.0, %v2066
      %v2068 = vpop.f32.mrb[0].mxu0
      %v2069 = vpop.f32.mrb[0].mxu0
      %v2070 = vadd.f32 0.0, %v2069
      %v2071 = vpop.f32.mrb[0].mxu0
      %2072 = vdwg.mxu0
      %2073 = vst [vmem:[#allocation2 + $0xe0] sm:$0xff] %v2059
      %2074 = vst [vmem:[#allocation2 + $0xe8] sm:$0xff] %v2062
      %2075 = vst [vmem:[#allocation2 + $0xf0] sm:$0xff] %v2067
      %2076 = vst [vmem:[#allocation2 + $0xf8] sm:$0xff] %v2070
      %v2077 = vld [vmem:[#allocation2] sm:$0xff]
      %v2078 = vld [vmem:[#allocation2 + $0x8] sm:$0xff]
      %v2079 = vld [vmem:[#allocation2 + $0x10] sm:$0xff]
      %v2080 = vld [vmem:[#allocation2 + $0x18] sm:$0xff]
      %v2081 = vld [vmem:[#allocation2 + $0x20] sm:$0xff]
      %v2082 = vld [vmem:[#allocation2 + $0x28] sm:$0xff]
      %v2083 = vld [vmem:[#allocation2 + $0x30] sm:$0xff]
      %v2084 = vld [vmem:[#allocation2 + $0x38] sm:$0xff]
      %v2085 = vld [vmem:[#allocation2 + $0x40] sm:$0xff]
      %v2086 = vld [vmem:[#allocation2 + $0x48] sm:$0xff]
      %v2087 = vld [vmem:[#allocation2 + $0x50] sm:$0xff]
      %v2088 = vld [vmem:[#allocation2 + $0x58] sm:$0xff]
      %v2089 = vld [vmem:[#allocation2 + $0x60] sm:$0xff]
      %v2090 = vld [vmem:[#allocation2 + $0x68] sm:$0xff]
      %v2091 = vld [vmem:[#allocation2 + $0x70] sm:$0xff]
      %v2092 = vld [vmem:[#allocation2 + $0x78] sm:$0xff]
      %v2093 = vld [vmem:[#allocation2 + $0x80] sm:$0xff]
      %v2094 = vld [vmem:[#allocation2 + $0x88] sm:$0xff]
      %v2095 = vld [vmem:[#allocation2 + $0x90] sm:$0xff]
      %v2096 = vld [vmem:[#allocation2 + $0x98] sm:$0xff]
      %v2097 = vld [vmem:[#allocation2 + $0xa0] sm:$0xff]
      %v2098 = vld [vmem:[#allocation2 + $0xa8] sm:$0xff]
      %v2099 = vld [vmem:[#allocation2 + $0xb0] sm:$0xff]
      %v2100 = vld [vmem:[#allocation2 + $0xb8] sm:$0xff]
      %v2101 = vld [vmem:[#allocation2 + $0xc0] sm:$0xff]
      %v2102 = vld [vmem:[#allocation2 + $0xc8] sm:$0xff]
      %v2103 = vld [vmem:[#allocation2 + $0xd0] sm:$0xff]
      %v2104 = vld [vmem:[#allocation2 + $0xd8] sm:$0xff]
      %v2105 = vld [vmem:[#allocation2 + $0xe0] sm:$0xff]
      %v2106 = vld [vmem:[#allocation2 + $0xe8] sm:$0xff]
      %v2107 = vld [vmem:[#allocation2 + $0xf0] sm:$0xff]
      %v2108 = vld [vmem:[#allocation2 + $0xf8] sm:$0xff]
      %v2109 = vld [vmem:[%s4] sm:$0xff]
      %v2110 = vld [vmem:[%s4 + $0x8] sm:$0xff]
      %v2111 = vld [vmem:[%s4 + $0x10] sm:$0xff]
      %v2112 = vld [vmem:[%s4 + $0x18] sm:$0xff]
      %v2113 = vld [vmem:[%s4 + $0x20] sm:$0xff]
      %v2114 = vld [vmem:[%s4 + $0x28] sm:$0xff]
      %v2115 = vld [vmem:[%s4 + $0x30] sm:$0xff]
      %v2116 = vld [vmem:[%s4 + $0x38] sm:$0xff]
      %v2117 = vld [vmem:[%s4 + $0x40] sm:$0xff]
      %v2118 = vld [vmem:[%s4 + $0x48] sm:$0xff]
      %v2119 = vld [vmem:[%s4 + $0x50] sm:$0xff]
      %v2120 = vld [vmem:[%s4 + $0x58] sm:$0xff]
      %v2121 = vld [vmem:[%s4 + $0x60] sm:$0xff]
      %v2122 = vld [vmem:[%s4 + $0x68] sm:$0xff]
      %v2123 = vld [vmem:[%s4 + $0x70] sm:$0xff]
      %v2124 = vld [vmem:[%s4 + $0x78] sm:$0xff]
      %v2125 = vld [vmem:[%s4 + $0x80] sm:$0xff]
      %v2126 = vld [vmem:[%s4 + $0x88] sm:$0xff]
      %v2127 = vld [vmem:[%s4 + $0x90] sm:$0xff]
      %v2128 = vld [vmem:[%s4 + $0x98] sm:$0xff]
      %v2129 = vld [vmem:[%s4 + $0xa0] sm:$0xff]
      %v2130 = vld [vmem:[%s4 + $0xa8] sm:$0xff]
      %v2131 = vld [vmem:[%s4 + $0xb0] sm:$0xff]
      %v2132 = vld [vmem:[%s4 + $0xb8] sm:$0xff]
      %v2133 = vld [vmem:[%s4 + $0xc0] sm:$0xff]
      %v2134 = vld [vmem:[%s4 + $0xc8] sm:$0xff]
      %v2135 = vld [vmem:[%s4 + $0xd0] sm:$0xff]
      %v2136 = vld [vmem:[%s4 + $0xd8] sm:$0xff]
      %v2137 = vld [vmem:[%s4 + $0xe0] sm:$0xff]
      %v2138 = vld [vmem:[%s4 + $0xe8] sm:$0xff]
      %v2139 = vld [vmem:[%s4 + $0xf0] sm:$0xff]
      %v2140 = vld [vmem:[%s4 + $0xf8] sm:$0xff]
      %2142 = vset.pattern.permute.xlu0 0
      %2143 = vperm.xlu0 %2142, %v2109
      %v2144 = vpop.permute.xlu0 %2143
      %2147 = vset.pattern.permute.xlu0 0
      %2148 = vperm.xlu0 %2147, %v2110
      %v2149 = vpop.permute.xlu0 %2148
      %2152 = vset.pattern.permute.xlu0 0
      %2153 = vperm.xlu0 %2152, %v2111
      %v2154 = vpop.permute.xlu0 %2153
      %2157 = vset.pattern.permute.xlu0 0
      %2158 = vperm.xlu0 %2157, %v2112
      %v2159 = vpop.permute.xlu0 %2158
      %2162 = vset.pattern.permute.xlu0 0
      %2163 = vperm.xlu0 %2162, %v2113
      %v2164 = vpop.permute.xlu0 %2163
      %2167 = vset.pattern.permute.xlu0 0
      %2168 = vperm.xlu0 %2167, %v2114
      %v2169 = vpop.permute.xlu0 %2168
      %2172 = vset.pattern.permute.xlu0 0
      %2173 = vperm.xlu0 %2172, %v2115
      %v2174 = vpop.permute.xlu0 %2173
      %2177 = vset.pattern.permute.xlu0 0
      %2178 = vperm.xlu0 %2177, %v2116
      %v2179 = vpop.permute.xlu0 %2178
      %2182 = vset.pattern.permute.xlu0 0
      %2183 = vperm.xlu0 %2182, %v2117
      %v2184 = vpop.permute.xlu0 %2183
      %2187 = vset.pattern.permute.xlu0 0
      %2188 = vperm.xlu0 %2187, %v2118
      %v2189 = vpop.permute.xlu0 %2188
      %2192 = vset.pattern.permute.xlu0 0
      %2193 = vperm.xlu0 %2192, %v2119
      %v2194 = vpop.permute.xlu0 %2193
      %2197 = vset.pattern.permute.xlu0 0
      %2198 = vperm.xlu0 %2197, %v2120
      %v2199 = vpop.permute.xlu0 %2198
      %2202 = vset.pattern.permute.xlu0 0
      %2203 = vperm.xlu0 %2202, %v2121
      %v2204 = vpop.permute.xlu0 %2203
      %2207 = vset.pattern.permute.xlu0 0
      %2208 = vperm.xlu0 %2207, %v2122
      %v2209 = vpop.permute.xlu0 %2208
      %2212 = vset.pattern.permute.xlu0 0
      %2213 = vperm.xlu0 %2212, %v2123
      %v2214 = vpop.permute.xlu0 %2213
      %2217 = vset.pattern.permute.xlu0 0
      %2218 = vperm.xlu0 %2217, %v2124
      %v2219 = vpop.permute.xlu0 %2218
      %2222 = vset.pattern.permute.xlu0 0
      %2223 = vperm.xlu0 %2222, %v2125
      %v2224 = vpop.permute.xlu0 %2223
      %2227 = vset.pattern.permute.xlu0 0
      %2228 = vperm.xlu0 %2227, %v2126
      %v2229 = vpop.permute.xlu0 %2228
      %2232 = vset.pattern.permute.xlu0 0
      %2233 = vperm.xlu0 %2232, %v2127
      %v2234 = vpop.permute.xlu0 %2233
      %2237 = vset.pattern.permute.xlu0 0
      %2238 = vperm.xlu0 %2237, %v2128
      %v2239 = vpop.permute.xlu0 %2238
      %2242 = vset.pattern.permute.xlu0 0
      %2243 = vperm.xlu0 %2242, %v2129
      %v2244 = vpop.permute.xlu0 %2243
      %2247 = vset.pattern.permute.xlu0 0
      %2248 = vperm.xlu0 %2247, %v2130
      %v2249 = vpop.permute.xlu0 %2248
      %2252 = vset.pattern.permute.xlu0 0
      %2253 = vperm.xlu0 %2252, %v2131
      %v2254 = vpop.permute.xlu0 %2253
      %2257 = vset.pattern.permute.xlu0 0
      %2258 = vperm.xlu0 %2257, %v2132
      %v2259 = vpop.permute.xlu0 %2258
      %2262 = vset.pattern.permute.xlu0 0
      %2263 = vperm.xlu0 %2262, %v2133
      %v2264 = vpop.permute.xlu0 %2263
      %2267 = vset.pattern.permute.xlu0 0
      %2268 = vperm.xlu0 %2267, %v2134
      %v2269 = vpop.permute.xlu0 %2268
      %2272 = vset.pattern.permute.xlu0 0
      %2273 = vperm.xlu0 %2272, %v2135
      %v2274 = vpop.permute.xlu0 %2273
      %2277 = vset.pattern.permute.xlu0 0
      %2278 = vperm.xlu0 %2277, %v2136
      %v2279 = vpop.permute.xlu0 %2278
      %2282 = vset.pattern.permute.xlu0 0
      %2283 = vperm.xlu0 %2282, %v2137
      %v2284 = vpop.permute.xlu0 %2283
      %2287 = vset.pattern.permute.xlu0 0
      %2288 = vperm.xlu0 %2287, %v2138
      %v2289 = vpop.permute.xlu0 %2288
      %2292 = vset.pattern.permute.xlu0 0
      %2293 = vperm.xlu0 %2292, %v2139
      %v2294 = vpop.permute.xlu0 %2293
      %2297 = vset.pattern.permute.xlu0 0
      %2298 = vperm.xlu0 %2297, %v2140
      %v2299 = vpop.permute.xlu0 %2298
      %v2301 = vadd.f32 %v2077, %v2144
      %v2302 = vadd.f32 %v2078, %v2149
      %v2303 = vadd.f32 %v2079, %v2154
      %v2304 = vadd.f32 %v2080, %v2159
      %v2305 = vadd.f32 %v2081, %v2164
      %v2306 = vadd.f32 %v2082, %v2169
      %v2307 = vadd.f32 %v2083, %v2174
      %v2308 = vadd.f32 %v2084, %v2179
      %v2309 = vadd.f32 %v2085, %v2184
      %v2310 = vadd.f32 %v2086, %v2189
      %v2311 = vadd.f32 %v2087, %v2194
      %v2312 = vadd.f32 %v2088, %v2199
      %v2313 = vadd.f32 %v2089, %v2204
      %v2314 = vadd.f32 %v2090, %v2209
      %v2315 = vadd.f32 %v2091, %v2214
      %v2316 = vadd.f32 %v2092, %v2219
      %v2317 = vadd.f32 %v2093, %v2224
      %v2318 = vadd.f32 %v2094, %v2229
      %v2319 = vadd.f32 %v2095, %v2234
      %v2320 = vadd.f32 %v2096, %v2239
      %v2321 = vadd.f32 %v2097, %v2244
      %v2322 = vadd.f32 %v2098, %v2249
      %v2323 = vadd.f32 %v2099, %v2254
      %v2324 = vadd.f32 %v2100, %v2259
      %v2325 = vadd.f32 %v2101, %v2264
      %v2326 = vadd.f32 %v2102, %v2269
      %v2327 = vadd.f32 %v2103, %v2274
      %v2328 = vadd.f32 %v2104, %v2279
      %v2329 = vadd.f32 %v2105, %v2284
      %v2330 = vadd.f32 %v2106, %v2289
      %v2331 = vadd.f32 %v2107, %v2294
      %v2332 = vadd.f32 %v2108, %v2299
      %vm2333 = vcmp.gt.f32.partialorder %v2301, 0.0
      %vm2334 = vcmp.gt.f32.partialorder %v2302, 0.0
      %vm2335 = vcmp.gt.f32.partialorder %v2303, 0.0
      %vm2336 = vcmp.gt.f32.partialorder %v2304, 0.0
      %vm2337 = vcmp.gt.f32.partialorder %v2305, 0.0
      %vm2338 = vcmp.gt.f32.partialorder %v2306, 0.0
      %vm2339 = vcmp.gt.f32.partialorder %v2307, 0.0
      %vm2340 = vcmp.gt.f32.partialorder %v2308, 0.0
      %vm2341 = vcmp.gt.f32.partialorder %v2309, 0.0
      %vm2342 = vcmp.gt.f32.partialorder %v2310, 0.0
      %vm2343 = vcmp.gt.f32.partialorder %v2311, 0.0
      %vm2344 = vcmp.gt.f32.partialorder %v2312, 0.0
      %vm2345 = vcmp.gt.f32.partialorder %v2313, 0.0
      %vm2346 = vcmp.gt.f32.partialorder %v2314, 0.0
      %vm2347 = vcmp.gt.f32.partialorder %v2315, 0.0
      %vm2348 = vcmp.gt.f32.partialorder %v2316, 0.0
      %vm2349 = vcmp.gt.f32.partialorder %v2317, 0.0
      %vm2350 = vcmp.gt.f32.partialorder %v2318, 0.0
      %vm2351 = vcmp.gt.f32.partialorder %v2319, 0.0
      %vm2352 = vcmp.gt.f32.partialorder %v2320, 0.0
      %vm2353 = vcmp.gt.f32.partialorder %v2321, 0.0
      %vm2354 = vcmp.gt.f32.partialorder %v2322, 0.0
      %vm2355 = vcmp.gt.f32.partialorder %v2323, 0.0
      %vm2356 = vcmp.gt.f32.partialorder %v2324, 0.0
      %vm2357 = vcmp.gt.f32.partialorder %v2325, 0.0
      %vm2358 = vcmp.gt.f32.partialorder %v2326, 0.0
      %vm2359 = vcmp.gt.f32.partialorder %v2327, 0.0
      %vm2360 = vcmp.gt.f32.partialorder %v2328, 0.0
      %vm2361 = vcmp.gt.f32.partialorder %v2329, 0.0
      %vm2362 = vcmp.gt.f32.partialorder %v2330, 0.0
      %vm2363 = vcmp.gt.f32.partialorder %v2331, 0.0
      %vm2364 = vcmp.gt.f32.partialorder %v2332, 0.0
      %v2365 = vmin.f32 %v2301, 0.0
      %v2366 = vmin.f32 %v2302, 0.0
      %v2367 = vmin.f32 %v2303, 0.0
      %v2368 = vmin.f32 %v2304, 0.0
      %v2369 = vmin.f32 %v2305, 0.0
      %v2370 = vmin.f32 %v2306, 0.0
      %v2371 = vmin.f32 %v2307, 0.0
      %v2372 = vmin.f32 %v2308, 0.0
      %v2373 = vmin.f32 %v2309, 0.0
      %v2374 = vmin.f32 %v2310, 0.0
      %v2375 = vmin.f32 %v2311, 0.0
      %v2376 = vmin.f32 %v2312, 0.0
      %v2377 = vmin.f32 %v2313, 0.0
      %v2378 = vmin.f32 %v2314, 0.0
      %v2379 = vmin.f32 %v2315, 0.0
      %v2380 = vmin.f32 %v2316, 0.0
      %v2381 = vmin.f32 %v2317, 0.0
      %v2382 = vmin.f32 %v2318, 0.0
      %v2383 = vmin.f32 %v2319, 0.0
      %v2384 = vmin.f32 %v2320, 0.0
      %v2385 = vmin.f32 %v2321, 0.0
      %v2386 = vmin.f32 %v2322, 0.0
      %v2387 = vmin.f32 %v2323, 0.0
      %v2388 = vmin.f32 %v2324, 0.0
      %v2389 = vmin.f32 %v2325, 0.0
      %v2390 = vmin.f32 %v2326, 0.0
      %v2391 = vmin.f32 %v2327, 0.0
      %v2392 = vmin.f32 %v2328, 0.0
      %v2393 = vmin.f32 %v2329, 0.0
      %v2394 = vmin.f32 %v2330, 0.0
      %v2395 = vmin.f32 %v2331, 0.0
      %v2396 = vmin.f32 %v2332, 0.0
      %v2397 = vmul.f32 %v2365, 1.442695
      %v2398 = vpow.pop %v2397
      %v2399 = vmul.f32 %v2366, 1.442695
      %v2400 = vpow.pop %v2399
      %v2401 = vmul.f32 %v2367, 1.442695
      %v2402 = vpow.pop %v2401
      %v2403 = vmul.f32 %v2368, 1.442695
      %v2404 = vpow.pop %v2403
      %v2405 = vmul.f32 %v2369, 1.442695
      %v2406 = vpow.pop %v2405
      %v2407 = vmul.f32 %v2370, 1.442695
      %v2408 = vpow.pop %v2407
      %v2409 = vmul.f32 %v2371, 1.442695
      %v2410 = vpow.pop %v2409
      %v2411 = vmul.f32 %v2372, 1.442695
      %v2412 = vpow.pop %v2411
      %v2413 = vmul.f32 %v2373, 1.442695
      %v2414 = vpow.pop %v2413
      %v2415 = vmul.f32 %v2374, 1.442695
      %v2416 = vpow.pop %v2415
      %v2417 = vmul.f32 %v2375, 1.442695
      %v2418 = vpow.pop %v2417
      %v2419 = vmul.f32 %v2376, 1.442695
      %v2420 = vpow.pop %v2419
      %v2421 = vmul.f32 %v2377, 1.442695
      %v2422 = vpow.pop %v2421
      %v2423 = vmul.f32 %v2378, 1.442695
      %v2424 = vpow.pop %v2423
      %v2425 = vmul.f32 %v2379, 1.442695
      %v2426 = vpow.pop %v2425
      %v2427 = vmul.f32 %v2380, 1.442695
      %v2428 = vpow.pop %v2427
      %v2429 = vmul.f32 %v2381, 1.442695
      %v2430 = vpow.pop %v2429
      %v2431 = vmul.f32 %v2382, 1.442695
      %v2432 = vpow.pop %v2431
      %v2433 = vmul.f32 %v2383, 1.442695
      %v2434 = vpow.pop %v2433
      %v2435 = vmul.f32 %v2384, 1.442695
      %v2436 = vpow.pop %v2435
      %v2437 = vmul.f32 %v2385, 1.442695
      %v2438 = vpow.pop %v2437
      %v2439 = vmul.f32 %v2386, 1.442695
      %v2440 = vpow.pop %v2439
      %v2441 = vmul.f32 %v2387, 1.442695
      %v2442 = vpow.pop %v2441
      %v2443 = vmul.f32 %v2388, 1.442695
      %v2444 = vpow.pop %v2443
      %v2445 = vmul.f32 %v2389, 1.442695
      %v2446 = vpow.pop %v2445
      %v2447 = vmul.f32 %v2390, 1.442695
      %v2448 = vpow.pop %v2447
      %v2449 = vmul.f32 %v2391, 1.442695
      %v2450 = vpow.pop %v2449
      %v2451 = vmul.f32 %v2392, 1.442695
      %v2452 = vpow.pop %v2451
      %v2453 = vmul.f32 %v2393, 1.442695
      %v2454 = vpow.pop %v2453
      %v2455 = vmul.f32 %v2394, 1.442695
      %v2456 = vpow.pop %v2455
      %v2457 = vmul.f32 %v2395, 1.442695
      %v2458 = vpow.pop %v2457
      %v2459 = vmul.f32 %v2396, 1.442695
      %v2460 = vpow.pop %v2459
      %v2461 = vsub.f32 %v2398, 1.0
      %v2462 = vsub.f32 %v2400, 1.0
      %v2463 = vsub.f32 %v2402, 1.0
      %v2464 = vsub.f32 %v2404, 1.0
      %v2465 = vsub.f32 %v2406, 1.0
      %v2466 = vsub.f32 %v2408, 1.0
      %v2467 = vsub.f32 %v2410, 1.0
      %v2468 = vsub.f32 %v2412, 1.0
      %v2469 = vsub.f32 %v2414, 1.0
      %v2470 = vsub.f32 %v2416, 1.0
      %v2471 = vsub.f32 %v2418, 1.0
      %v2472 = vsub.f32 %v2420, 1.0
      %v2473 = vsub.f32 %v2422, 1.0
      %v2474 = vsub.f32 %v2424, 1.0
      %v2475 = vsub.f32 %v2426, 1.0
      %v2476 = vsub.f32 %v2428, 1.0
      %v2477 = vsub.f32 %v2430, 1.0
      %v2478 = vsub.f32 %v2432, 1.0
      %v2479 = vsub.f32 %v2434, 1.0
      %v2480 = vsub.f32 %v2436, 1.0
      %v2481 = vsub.f32 %v2438, 1.0
      %v2482 = vsub.f32 %v2440, 1.0
      %v2483 = vsub.f32 %v2442, 1.0
      %v2484 = vsub.f32 %v2444, 1.0
      %v2485 = vsub.f32 %v2446, 1.0
      %v2486 = vsub.f32 %v2448, 1.0
      %v2487 = vsub.f32 %v2450, 1.0
      %v2488 = vsub.f32 %v2452, 1.0
      %v2489 = vsub.f32 %v2454, 1.0
      %v2490 = vsub.f32 %v2456, 1.0
      %v2491 = vsub.f32 %v2458, 1.0
      %v2492 = vsub.f32 %v2460, 1.0
      %v2493 = vsel %vm2333, %v2301, %v2461
      %v2494 = vsel %vm2334, %v2302, %v2462
      %v2495 = vsel %vm2335, %v2303, %v2463
      %v2496 = vsel %vm2336, %v2304, %v2464
      %v2497 = vsel %vm2337, %v2305, %v2465
      %v2498 = vsel %vm2338, %v2306, %v2466
      %v2499 = vsel %vm2339, %v2307, %v2467
      %v2500 = vsel %vm2340, %v2308, %v2468
      %v2501 = vsel %vm2341, %v2309, %v2469
      %v2502 = vsel %vm2342, %v2310, %v2470
      %v2503 = vsel %vm2343, %v2311, %v2471
      %v2504 = vsel %vm2344, %v2312, %v2472
      %v2505 = vsel %vm2345, %v2313, %v2473
      %v2506 = vsel %vm2346, %v2314, %v2474
      %v2507 = vsel %vm2347, %v2315, %v2475
      %v2508 = vsel %vm2348, %v2316, %v2476
      %v2509 = vsel %vm2349, %v2317, %v2477
      %v2510 = vsel %vm2350, %v2318, %v2478
      %v2511 = vsel %vm2351, %v2319, %v2479
      %v2512 = vsel %vm2352, %v2320, %v2480
      %v2513 = vsel %vm2353, %v2321, %v2481
      %v2514 = vsel %vm2354, %v2322, %v2482
      %v2515 = vsel %vm2355, %v2323, %v2483
      %v2516 = vsel %vm2356, %v2324, %v2484
      %v2517 = vsel %vm2357, %v2325, %v2485
      %v2518 = vsel %vm2358, %v2326, %v2486
      %v2519 = vsel %vm2359, %v2327, %v2487
      %v2520 = vsel %vm2360, %v2328, %v2488
      %v2521 = vsel %vm2361, %v2329, %v2489
      %v2522 = vsel %vm2362, %v2330, %v2490
      %v2523 = vsel %vm2363, %v2331, %v2491
      %v2524 = vsel %vm2364, %v2332, %v2492
      %v2525 = vpack.c.bf16 %v2494, %v2493
      %v2526 = vpack.c.bf16 %v2496, %v2495
      %v2527 = vpack.c.bf16 %v2498, %v2497
      %v2528 = vpack.c.bf16 %v2500, %v2499
      %v2529 = vpack.c.bf16 %v2502, %v2501
      %v2530 = vpack.c.bf16 %v2504, %v2503
      %v2531 = vpack.c.bf16 %v2506, %v2505
      %v2532 = vpack.c.bf16 %v2508, %v2507
      %v2533 = vpack.c.bf16 %v2510, %v2509
      %v2534 = vpack.c.bf16 %v2512, %v2511
      %v2535 = vpack.c.bf16 %v2514, %v2513
      %v2536 = vpack.c.bf16 %v2516, %v2515
      %v2537 = vpack.c.bf16 %v2518, %v2517
      %v2538 = vpack.c.bf16 %v2520, %v2519
      %v2539 = vpack.c.bf16 %v2522, %v2521
      %v2540 = vpack.c.bf16 %v2524, %v2523
      %v2541 = vld [vmem:[%s3] sm:$0xff]
      %v2542 = vld [vmem:[%s3 + $0x8] sm:$0xff]
      %v2543 = vld [vmem:[%s3 + $0x10] sm:$0xff]
      %v2544 = vld [vmem:[%s3 + $0x18] sm:$0xff]
      %v2545 = vld [vmem:[%s3 + $0x20] sm:$0xff]
      %v2546 = vld [vmem:[%s3 + $0x28] sm:$0xff]
      %v2547 = vld [vmem:[%s3 + $0x30] sm:$0xff]
      %v2548 = vld [vmem:[%s3 + $0x38] sm:$0xff]
      %v2549 = vld [vmem:[%s3 + $0x40] sm:$0xff]
      %v2550 = vld [vmem:[%s3 + $0x48] sm:$0xff]
      %v2551 = vld [vmem:[%s3 + $0x50] sm:$0xff]
      %v2552 = vld [vmem:[%s3 + $0x58] sm:$0xff]
      %v2553 = vld [vmem:[%s3 + $0x60] sm:$0xff]
      %v2554 = vld [vmem:[%s3 + $0x68] sm:$0xff]
      %v2555 = vld [vmem:[%s3 + $0x70] sm:$0xff]
      %v2556 = vld [vmem:[%s3 + $0x78] sm:$0xff]
      %v2557 = vld [vmem:[%s3 + $0x80] sm:$0xff]
      %v2558 = vld [vmem:[%s3 + $0x88] sm:$0xff]
      %v2559 = vld [vmem:[%s3 + $0x90] sm:$0xff]
      %v2560 = vld [vmem:[%s3 + $0x98] sm:$0xff]
      %v2561 = vld [vmem:[%s3 + $0xa0] sm:$0xff]
      %v2562 = vld [vmem:[%s3 + $0xa8] sm:$0xff]
      %v2563 = vld [vmem:[%s3 + $0xb0] sm:$0xff]
      %v2564 = vld [vmem:[%s3 + $0xb8] sm:$0xff]
      %v2565 = vld [vmem:[%s3 + $0xc0] sm:$0xff]
      %v2566 = vld [vmem:[%s3 + $0xc8] sm:$0xff]
      %v2567 = vld [vmem:[%s3 + $0xd0] sm:$0xff]
      %v2568 = vld [vmem:[%s3 + $0xd8] sm:$0xff]
      %v2569 = vld [vmem:[%s3 + $0xe0] sm:$0xff]
      %v2570 = vld [vmem:[%s3 + $0xe8] sm:$0xff]
      %v2571 = vld [vmem:[%s3 + $0xf0] sm:$0xff]
      %v2572 = vld [vmem:[%s3 + $0xf8] sm:$0xff]
      %v2605 = vunpack.c.l.b16 %v2541
      %v2606 = vunpack.c.h.b16 %v2541
      %v2607 = vunpack.c.l.b16 %v2542
      %v2608 = vunpack.c.h.b16 %v2542
      %v2609 = vunpack.c.l.b16 %v2543
      %v2610 = vunpack.c.h.b16 %v2543
      %v2611 = vunpack.c.l.b16 %v2544
      %v2612 = vunpack.c.h.b16 %v2544
      %v2613 = vunpack.c.l.b16 %v2545
      %v2614 = vunpack.c.h.b16 %v2545
      %v2615 = vunpack.c.l.b16 %v2546
      %v2616 = vunpack.c.h.b16 %v2546
      %v2617 = vunpack.c.l.b16 %v2547
      %v2618 = vunpack.c.h.b16 %v2547
      %v2619 = vunpack.c.l.b16 %v2548
      %v2620 = vunpack.c.h.b16 %v2548
      %v2621 = vunpack.c.l.b16 %v2549
      %v2622 = vunpack.c.h.b16 %v2549
      %v2623 = vunpack.c.l.b16 %v2550
      %v2624 = vunpack.c.h.b16 %v2550
      %v2625 = vunpack.c.l.b16 %v2551
      %v2626 = vunpack.c.h.b16 %v2551
      %v2627 = vunpack.c.l.b16 %v2552
      %v2628 = vunpack.c.h.b16 %v2552
      %v2629 = vunpack.c.l.b16 %v2553
      %v2630 = vunpack.c.h.b16 %v2553
      %v2631 = vunpack.c.l.b16 %v2554
      %v2632 = vunpack.c.h.b16 %v2554
      %v2633 = vunpack.c.l.b16 %v2555
      %v2634 = vunpack.c.h.b16 %v2555
      %v2635 = vunpack.c.l.b16 %v2556
      %v2636 = vunpack.c.h.b16 %v2556
      %v2637 = vunpack.c.l.b16 %v2557
      %v2638 = vunpack.c.h.b16 %v2557
      %v2639 = vunpack.c.l.b16 %v2558
      %v2640 = vunpack.c.h.b16 %v2558
      %v2641 = vunpack.c.l.b16 %v2559
      %v2642 = vunpack.c.h.b16 %v2559
      %v2643 = vunpack.c.l.b16 %v2560
      %v2644 = vunpack.c.h.b16 %v2560
      %v2645 = vunpack.c.l.b16 %v2561
      %v2646 = vunpack.c.h.b16 %v2561
      %v2647 = vunpack.c.l.b16 %v2562
      %v2648 = vunpack.c.h.b16 %v2562
      %v2649 = vunpack.c.l.b16 %v2563
      %v2650 = vunpack.c.h.b16 %v2563
      %v2651 = vunpack.c.l.b16 %v2564
      %v2652 = vunpack.c.h.b16 %v2564
      %v2653 = vunpack.c.l.b16 %v2565
      %v2654 = vunpack.c.h.b16 %v2565
      %v2655 = vunpack.c.l.b16 %v2566
      %v2656 = vunpack.c.h.b16 %v2566
      %v2657 = vunpack.c.l.b16 %v2567
      %v2658 = vunpack.c.h.b16 %v2567
      %v2659 = vunpack.c.l.b16 %v2568
      %v2660 = vunpack.c.h.b16 %v2568
      %v2661 = vunpack.c.l.b16 %v2569
      %v2662 = vunpack.c.h.b16 %v2569
      %v2663 = vunpack.c.l.b16 %v2570
      %v2664 = vunpack.c.h.b16 %v2570
      %v2665 = vunpack.c.l.b16 %v2571
      %v2666 = vunpack.c.h.b16 %v2571
      %v2667 = vunpack.c.l.b16 %v2572
      %v2668 = vunpack.c.h.b16 %v2572
      %v2669 = vpack.c.b16 %v2609, %v2605
      %v2670 = vpack.c.b16 %v2610, %v2606
      %v2671 = vpack.c.b16 %v2611, %v2607
      %v2672 = vpack.c.b16 %v2612, %v2608
      %v2673 = vpack.c.b16 %v2617, %v2613
      %v2674 = vpack.c.b16 %v2618, %v2614
      %v2675 = vpack.c.b16 %v2619, %v2615
      %v2676 = vpack.c.b16 %v2620, %v2616
      %v2677 = vpack.c.b16 %v2625, %v2621
      %v2678 = vpack.c.b16 %v2626, %v2622
      %v2679 = vpack.c.b16 %v2627, %v2623
      %v2680 = vpack.c.b16 %v2628, %v2624
      %v2681 = vpack.c.b16 %v2633, %v2629
      %v2682 = vpack.c.b16 %v2634, %v2630
      %v2683 = vpack.c.b16 %v2635, %v2631
      %v2684 = vpack.c.b16 %v2636, %v2632
      %v2685 = vpack.c.b16 %v2641, %v2637
      %v2686 = vpack.c.b16 %v2642, %v2638
      %v2687 = vpack.c.b16 %v2643, %v2639
      %v2688 = vpack.c.b16 %v2644, %v2640
      %v2689 = vpack.c.b16 %v2649, %v2645
      %v2690 = vpack.c.b16 %v2650, %v2646
      %v2691 = vpack.c.b16 %v2651, %v2647
      %v2692 = vpack.c.b16 %v2652, %v2648
      %v2693 = vpack.c.b16 %v2657, %v2653
      %v2694 = vpack.c.b16 %v2658, %v2654
      %v2695 = vpack.c.b16 %v2659, %v2655
      %v2696 = vpack.c.b16 %v2660, %v2656
      %v2697 = vpack.c.b16 %v2665, %v2661
      %v2698 = vpack.c.b16 %v2666, %v2662
      %v2699 = vpack.c.b16 %v2667, %v2663
      %v2700 = vpack.c.b16 %v2668, %v2664
      %2733 = vmatprep.subr.bf16.mxu0 %v2670
      %2734 = vmatpush1.bf16.msra.mxu0 %v2669
      %2735 = vmatprep.subr.bf16.mxu0 %v2674
      %2736 = vmatpush1.bf16.msra.mxu0 %v2673
      %2737 = vmatprep.subr.bf16.mxu0 %v2678
      %2738 = vmatpush1.bf16.msra.mxu0 %v2677
      %2739 = vmatprep.subr.bf16.mxu0 %v2682
      %2740 = vmatpush1.bf16.msra.mxu0 %v2681
      %2741 = vmatprep.subr.bf16.mxu0 %v2686
      %2742 = vmatpush1.bf16.msra.mxu0 %v2685
      %2743 = vmatprep.subr.bf16.mxu0 %v2690
      %2744 = vmatpush1.bf16.msra.mxu0 %v2689
      %2745 = vmatprep.subr.bf16.mxu0 %v2694
      %2746 = vmatpush1.bf16.msra.mxu0 %v2693
      %2747 = vmatprep.subr.bf16.mxu0 %v2698
      %2748 = vmatpush1.bf16.msra.mxu0 %v2697
      %2749 = vmatprep.subr.bf16.mxu0 0
      %2750 = vmatpush1.bf16.msra.mxu0 0
      %2751 = vmatprep.subr.bf16.mxu0 0
      %2752 = vmatpush1.bf16.msra.mxu0 0
      %2753 = vmatprep.subr.bf16.mxu0 0
      %2754 = vmatpush1.bf16.msra.mxu0 0
      %2755 = vmatprep.subr.bf16.mxu0 0
      %2756 = vmatpush1.bf16.msra.mxu0 0
      %2757 = vmatprep.subr.bf16.mxu0 0
      %2758 = vmatpush1.bf16.msra.mxu0 0
      %2759 = vmatprep.subr.bf16.mxu0 0
      %2760 = vmatpush1.bf16.msra.mxu0 0
      %2761 = vmatprep.subr.bf16.mxu0 0
      %2762 = vmatpush1.bf16.msra.mxu0 0
      %2763 = vmatprep.subr.bf16.mxu0 0
      %2764 = vmatpush1.bf16.msra.mxu0 0
      %2765 = vmatprep.mubr.bf16.mxu0 0
      %2766 = vmatmul.mubr.bf16.gmra.mrb[0].mxu0 %v2525
      %v2767 = vpop.f32.mrb[0].mxu0
      %v2768 = vadd.f32 0.0, %v2767
      %v2769 = vpop.f32.mrb[0].mxu0
      %v2770 = vadd.f32 0.0, %v2769
      %v2771 = vpop.f32.mrb[0].mxu0
      %v2772 = vadd.f32 0.0, %v2771
      %v2773 = vpop.f32.mrb[0].mxu0
      %v2774 = vadd.f32 0.0, %v2773
      %2775 = vmatprep.mubr.bf16.mxu0 0
      %2776 = vmatmul.mubr.bf16.gmra.mrb[0].mxu0 %v2526
      %v2777 = vpop.f32.mrb[0].mxu0
      %v2778 = vadd.f32 0.0, %v2777
      %v2779 = vpop.f32.mrb[0].mxu0
      %v2780 = vadd.f32 0.0, %v2779
      %v2781 = vpop.f32.mrb[0].mxu0
      %v2782 = vadd.f32 0.0, %v2781
      %v2783 = vpop.f32.mrb[0].mxu0
      %v2784 = vadd.f32 0.0, %v2783
      %2785 = vmatprep.mubr.bf16.mxu0 0
      %2786 = vmatmul.mubr.bf16.gmra.mrb[0].mxu0 %v2527
      %v2787 = vpop.f32.mrb[0].mxu0
      %v2788 = vadd.f32 0.0, %v2787
      %v2789 = vpop.f32.mrb[0].mxu0
      %v2790 = vadd.f32 0.0, %v2789
      %v2791 = vpop.f32.mrb[0].mxu0
      %v2792 = vadd.f32 0.0, %v2791
      %v2793 = vpop.f32.mrb[0].mxu0
      %v2794 = vadd.f32 0.0, %v2793
      %2795 = vmatprep.mubr.bf16.mxu0 0
      %2796 = vmatmul.mubr.bf16.gmra.mrb[0].mxu0 %v2528
      %v2797 = vpop.f32.mrb[0].mxu0
      %v2798 = vadd.f32 0.0, %v2797
      %v2799 = vpop.f32.mrb[0].mxu0
      %v2800 = vadd.f32 0.0, %v2799
      %v2801 = vpop.f32.mrb[0].mxu0
      %v2802 = vadd.f32 0.0, %v2801
      %v2803 = vpop.f32.mrb[0].mxu0
      %v2804 = vadd.f32 0.0, %v2803
      %2805 = vmatprep.mubr.bf16.mxu0 0
      %2806 = vmatmul.mubr.bf16.gmra.mrb[0].mxu0 %v2529
      %v2807 = vpop.f32.mrb[0].mxu0
      %v2808 = vadd.f32 0.0, %v2807
      %v2809 = vpop.f32.mrb[0].mxu0
      %v2810 = vadd.f32 0.0, %v2809
      %v2811 = vpop.f32.mrb[0].mxu0
      %v2812 = vadd.f32 0.0, %v2811
      %v2813 = vpop.f32.mrb[0].mxu0
      %v2814 = vadd.f32 0.0, %v2813
      %2815 = vmatprep.mubr.bf16.mxu0 0
      %2816 = vmatmul.mubr.bf16.gmra.mrb[0].mxu0 %v2530
      %v2817 = vpop.f32.mrb[0].mxu0
      %v2818 = vadd.f32 0.0, %v2817
      %v2819 = vpop.f32.mrb[0].mxu0
      %v2820 = vadd.f32 0.0, %v2819
      %v2821 = vpop.f32.mrb[0].mxu0
      %v2822 = vadd.f32 0.0, %v2821
      %v2823 = vpop.f32.mrb[0].mxu0
      %v2824 = vadd.f32 0.0, %v2823
      %2825 = vmatprep.mubr.bf16.mxu0 0
      %2826 = vmatmul.mubr.bf16.gmra.mrb[0].mxu0 %v2531
      %v2827 = vpop.f32.mrb[0].mxu0
      %v2828 = vadd.f32 0.0, %v2827
      %v2829 = vpop.f32.mrb[0].mxu0
      %v2830 = vadd.f32 0.0, %v2829
      %v2831 = vpop.f32.mrb[0].mxu0
      %v2832 = vadd.f32 0.0, %v2831
      %v2833 = vpop.f32.mrb[0].mxu0
      %v2834 = vadd.f32 0.0, %v2833
      %2835 = vmatprep.mubr.bf16.mxu0 0
      %2836 = vmatmul.mubr.bf16.gmra.mrb[0].mxu0 %v2532
      %v2837 = vpop.f32.mrb[0].mxu0
      %v2838 = vadd.f32 0.0, %v2837
      %v2839 = vpop.f32.mrb[0].mxu0
      %v2840 = vadd.f32 0.0, %v2839
      %v2841 = vpop.f32.mrb[0].mxu0
      %v2842 = vadd.f32 0.0, %v2841
      %v2843 = vpop.f32.mrb[0].mxu0
      %v2844 = vadd.f32 0.0, %v2843
      %2845 = vmatprep.mubr.bf16.mxu0 0
      %2846 = vmatmul.mubr.bf16.gmra.mrb[0].mxu0 %v2533
      %v2847 = vpop.f32.mrb[0].mxu0
      %v2848 = vadd.f32 0.0, %v2847
      %v2849 = vpop.f32.mrb[0].mxu0
      %v2850 = vadd.f32 0.0, %v2849
      %v2851 = vpop.f32.mrb[0].mxu0
      %v2852 = vadd.f32 0.0, %v2851
      %v2853 = vpop.f32.mrb[0].mxu0
      %v2854 = vadd.f32 0.0, %v2853
      %2855 = vmatprep.mubr.bf16.mxu0 0
      %2856 = vmatmul.mubr.bf16.gmra.mrb[0].mxu0 %v2534
      %v2857 = vpop.f32.mrb[0].mxu0
      %v2858 = vadd.f32 0.0, %v2857
      %v2859 = vpop.f32.mrb[0].mxu0
      %v2860 = vadd.f32 0.0, %v2859
      %v2861 = vpop.f32.mrb[0].mxu0
      %v2862 = vadd.f32 0.0, %v2861
      %v2863 = vpop.f32.mrb[0].mxu0
      %v2864 = vadd.f32 0.0, %v2863
      %2865 = vmatprep.mubr.bf16.mxu0 0
      %2866 = vmatmul.mubr.bf16.gmra.mrb[0].mxu0 %v2535
      %v2867 = vpop.f32.mrb[0].mxu0
      %v2868 = vadd.f32 0.0, %v2867
      %v2869 = vpop.f32.mrb[0].mxu0
      %v2870 = vadd.f32 0.0, %v2869
      %v2871 = vpop.f32.mrb[0].mxu0
      %v2872 = vadd.f32 0.0, %v2871
      %v2873 = vpop.f32.mrb[0].mxu0
      %v2874 = vadd.f32 0.0, %v2873
      %2875 = vmatprep.mubr.bf16.mxu0 0
      %2876 = vmatmul.mubr.bf16.gmra.mrb[0].mxu0 %v2536
      %v2877 = vpop.f32.mrb[0].mxu0
      %v2878 = vadd.f32 0.0, %v2877
      %v2879 = vpop.f32.mrb[0].mxu0
      %v2880 = vadd.f32 0.0, %v2879
      %v2881 = vpop.f32.mrb[0].mxu0
      %v2882 = vadd.f32 0.0, %v2881
      %v2883 = vpop.f32.mrb[0].mxu0
      %v2884 = vadd.f32 0.0, %v2883
      %2885 = vmatprep.mubr.bf16.mxu0 0
      %2886 = vmatmul.mubr.bf16.gmra.mrb[0].mxu0 %v2537
      %v2887 = vpop.f32.mrb[0].mxu0
      %v2888 = vadd.f32 0.0, %v2887
      %v2889 = vpop.f32.mrb[0].mxu0
      %v2890 = vadd.f32 0.0, %v2889
      %v2891 = vpop.f32.mrb[0].mxu0
      %v2892 = vadd.f32 0.0, %v2891
      %v2893 = vpop.f32.mrb[0].mxu0
      %v2894 = vadd.f32 0.0, %v2893
      %2895 = vmatprep.mubr.bf16.mxu0 0
      %2896 = vmatmul.mubr.bf16.gmra.mrb[0].mxu0 %v2538
      %v2897 = vpop.f32.mrb[0].mxu0
      %v2898 = vadd.f32 0.0, %v2897
      %v2899 = vpop.f32.mrb[0].mxu0
      %v2900 = vadd.f32 0.0, %v2899
      %v2901 = vpop.f32.mrb[0].mxu0
      %v2902 = vadd.f32 0.0, %v2901
      %v2903 = vpop.f32.mrb[0].mxu0
      %v2904 = vadd.f32 0.0, %v2903
      %2905 = vmatprep.mubr.bf16.mxu0 0
      %2906 = vmatmul.mubr.bf16.gmra.mrb[0].mxu0 %v2539
      %v2907 = vpop.f32.mrb[0].mxu0
      %v2908 = vadd.f32 0.0, %v2907
      %v2909 = vpop.f32.mrb[0].mxu0
      %v2910 = vadd.f32 0.0, %v2909
      %v2911 = vpop.f32.mrb[0].mxu0
      %v2912 = vadd.f32 0.0, %v2911
      %v2913 = vpop.f32.mrb[0].mxu0
      %v2914 = vadd.f32 0.0, %v2913
      %2915 = vmatprep.mubr.bf16.mxu0 0
      %2916 = vmatmul.mubr.bf16.gmra.mrb[0].mxu0 %v2540
      %v2917 = vpop.f32.mrb[0].mxu0
      %v2918 = vadd.f32 0.0, %v2917
      %v2919 = vpop.f32.mrb[0].mxu0
      %v2920 = vadd.f32 0.0, %v2919
      %v2921 = vpop.f32.mrb[0].mxu0
      %v2922 = vadd.f32 0.0, %v2921
      %v2923 = vpop.f32.mrb[0].mxu0
      %v2924 = vadd.f32 0.0, %v2923
      %2925 = vdwg.mxu0
      %2926 = vmatprep.subr.bf16.mxu0 %v2672
      %2927 = vmatpush1.bf16.msra.mxu0 %v2671
      %2928 = vmatprep.subr.bf16.mxu0 %v2676
      %2929 = vmatpush1.bf16.msra.mxu0 %v2675
      %2930 = vmatprep.subr.bf16.mxu0 %v2680
      %2931 = vmatpush1.bf16.msra.mxu0 %v2679
      %2932 = vmatprep.subr.bf16.mxu0 %v2684
      %2933 = vmatpush1.bf16.msra.mxu0 %v2683
      %2934 = vmatprep.subr.bf16.mxu0 %v2688
      %2935 = vmatpush1.bf16.msra.mxu0 %v2687
      %2936 = vmatprep.subr.bf16.mxu0 %v2692
      %2937 = vmatpush1.bf16.msra.mxu0 %v2691
      %2938 = vmatprep.subr.bf16.mxu0 %v2696
      %2939 = vmatpush1.bf16.msra.mxu0 %v2695
      %2940 = vmatprep.subr.bf16.mxu0 %v2700
      %2941 = vmatpush1.bf16.msra.mxu0 %v2699
      %2942 = vmatprep.subr.bf16.mxu0 0
      %2943 = vmatpush1.bf16.msra.mxu0 0
      %2944 = vmatprep.subr.bf16.mxu0 0
      %2945 = vmatpush1.bf16.msra.mxu0 0
      %2946 = vmatprep.subr.bf16.mxu0 0
      %2947 = vmatpush1.bf16.msra.mxu0 0
      %2948 = vmatprep.subr.bf16.mxu0 0
      %2949 = vmatpush1.bf16.msra.mxu0 0
      %2950 = vmatprep.subr.bf16.mxu0 0
      %2951 = vmatpush1.bf16.msra.mxu0 0
      %2952 = vmatprep.subr.bf16.mxu0 0
      %2953 = vmatpush1.bf16.msra.mxu0 0
      %2954 = vmatprep.subr.bf16.mxu0 0
      %2955 = vmatpush1.bf16.msra.mxu0 0
      %2956 = vmatprep.subr.bf16.mxu0 0
      %2957 = vmatpush1.bf16.msra.mxu0 0
      %2958 = vmatprep.mubr.bf16.mxu0 0
      %2959 = vmatmul.mubr.bf16.gmra.mrb[0].mxu0 %v2525
      %v2960 = vpop.f32.mrb[0].mxu0
      %v2961 = vadd.f32 0.0, %v2960
      %v2962 = vpop.f32.mrb[0].mxu0
      %v2963 = vadd.f32 0.0, %v2962
      %v2964 = vpop.f32.mrb[0].mxu0
      %v2965 = vadd.f32 0.0, %v2964
      %v2966 = vpop.f32.mrb[0].mxu0
      %v2967 = vadd.f32 0.0, %v2966
      %2968 = vmatprep.mubr.bf16.mxu0 0
      %2969 = vmatmul.mubr.bf16.gmra.mrb[0].mxu0 %v2526
      %v2970 = vpop.f32.mrb[0].mxu0
      %v2971 = vadd.f32 0.0, %v2970
      %v2972 = vpop.f32.mrb[0].mxu0
      %v2973 = vadd.f32 0.0, %v2972
      %v2974 = vpop.f32.mrb[0].mxu0
      %v2975 = vadd.f32 0.0, %v2974
      %v2976 = vpop.f32.mrb[0].mxu0
      %v2977 = vadd.f32 0.0, %v2976
      %2978 = vmatprep.mubr.bf16.mxu0 0
      %2979 = vmatmul.mubr.bf16.gmra.mrb[0].mxu0 %v2527
      %v2980 = vpop.f32.mrb[0].mxu0
      %v2981 = vadd.f32 0.0, %v2980
      %v2982 = vpop.f32.mrb[0].mxu0
      %v2983 = vadd.f32 0.0, %v2982
      %v2984 = vpop.f32.mrb[0].mxu0
      %v2985 = vadd.f32 0.0, %v2984
      %v2986 = vpop.f32.mrb[0].mxu0
      %v2987 = vadd.f32 0.0, %v2986
      %2988 = vmatprep.mubr.bf16.mxu0 0
      %2989 = vmatmul.mubr.bf16.gmra.mrb[0].mxu0 %v2528
      %v2990 = vpop.f32.mrb[0].mxu0
      %v2991 = vadd.f32 0.0, %v2990
      %v2992 = vpop.f32.mrb[0].mxu0
      %v2993 = vadd.f32 0.0, %v2992
      %v2994 = vpop.f32.mrb[0].mxu0
      %v2995 = vadd.f32 0.0, %v2994
      %v2996 = vpop.f32.mrb[0].mxu0
      %v2997 = vadd.f32 0.0, %v2996
      %2998 = vmatprep.mubr.bf16.mxu0 0
      %2999 = vmatmul.mubr.bf16.gmra.mrb[0].mxu0 %v2529
      %v3000 = vpop.f32.mrb[0].mxu0
      %v3001 = vadd.f32 0.0, %v3000
      %v3002 = vpop.f32.mrb[0].mxu0
      %v3003 = vadd.f32 0.0, %v3002
      %v3004 = vpop.f32.mrb[0].mxu0
      %v3005 = vadd.f32 0.0, %v3004
      %v3006 = vpop.f32.mrb[0].mxu0
      %v3007 = vadd.f32 0.0, %v3006
      %3008 = vmatprep.mubr.bf16.mxu0 0
      %3009 = vmatmul.mubr.bf16.gmra.mrb[0].mxu0 %v2530
      %v3010 = vpop.f32.mrb[0].mxu0
      %v3011 = vadd.f32 0.0, %v3010
      %v3012 = vpop.f32.mrb[0].mxu0
      %v3013 = vadd.f32 0.0, %v3012
      %v3014 = vpop.f32.mrb[0].mxu0
      %v3015 = vadd.f32 0.0, %v3014
      %v3016 = vpop.f32.mrb[0].mxu0
      %v3017 = vadd.f32 0.0, %v3016
      %3018 = vmatprep.mubr.bf16.mxu0 0
      %3019 = vmatmul.mubr.bf16.gmra.mrb[0].mxu0 %v2531
      %v3020 = vpop.f32.mrb[0].mxu0
      %v3021 = vadd.f32 0.0, %v3020
      %v3022 = vpop.f32.mrb[0].mxu0
      %v3023 = vadd.f32 0.0, %v3022
      %v3024 = vpop.f32.mrb[0].mxu0
      %v3025 = vadd.f32 0.0, %v3024
      %v3026 = vpop.f32.mrb[0].mxu0
      %v3027 = vadd.f32 0.0, %v3026
      %3028 = vmatprep.mubr.bf16.mxu0 0
      %3029 = vmatmul.mubr.bf16.gmra.mrb[0].mxu0 %v2532
      %v3030 = vpop.f32.mrb[0].mxu0
      %v3031 = vadd.f32 0.0, %v3030
      %v3032 = vpop.f32.mrb[0].mxu0
      %v3033 = vadd.f32 0.0, %v3032
      %v3034 = vpop.f32.mrb[0].mxu0
      %v3035 = vadd.f32 0.0, %v3034
      %v3036 = vpop.f32.mrb[0].mxu0
      %v3037 = vadd.f32 0.0, %v3036
      %3038 = vmatprep.mubr.bf16.mxu0 0
      %3039 = vmatmul.mubr.bf16.gmra.mrb[0].mxu0 %v2533
      %v3040 = vpop.f32.mrb[0].mxu0
      %v3041 = vadd.f32 0.0, %v3040
      %v3042 = vpop.f32.mrb[0].mxu0
      %v3043 = vadd.f32 0.0, %v3042
      %v3044 = vpop.f32.mrb[0].mxu0
      %v3045 = vadd.f32 0.0, %v3044
      %v3046 = vpop.f32.mrb[0].mxu0
      %v3047 = vadd.f32 0.0, %v3046
      %3048 = vmatprep.mubr.bf16.mxu0 0
      %3049 = vmatmul.mubr.bf16.gmra.mrb[0].mxu0 %v2534
      %v3050 = vpop.f32.mrb[0].mxu0
      %v3051 = vadd.f32 0.0, %v3050
      %v3052 = vpop.f32.mrb[0].mxu0
      %v3053 = vadd.f32 0.0, %v3052
      %v3054 = vpop.f32.mrb[0].mxu0
      %v3055 = vadd.f32 0.0, %v3054
      %v3056 = vpop.f32.mrb[0].mxu0
      %v3057 = vadd.f32 0.0, %v3056
      %3058 = vmatprep.mubr.bf16.mxu0 0
      %3059 = vmatmul.mubr.bf16.gmra.mrb[0].mxu0 %v2535
      %v3060 = vpop.f32.mrb[0].mxu0
      %v3061 = vadd.f32 0.0, %v3060
      %v3062 = vpop.f32.mrb[0].mxu0
      %v3063 = vadd.f32 0.0, %v3062
      %v3064 = vpop.f32.mrb[0].mxu0
      %v3065 = vadd.f32 0.0, %v3064
      %v3066 = vpop.f32.mrb[0].mxu0
      %v3067 = vadd.f32 0.0, %v3066
      %3068 = vmatprep.mubr.bf16.mxu0 0
      %3069 = vmatmul.mubr.bf16.gmra.mrb[0].mxu0 %v2536
      %v3070 = vpop.f32.mrb[0].mxu0
      %v3071 = vadd.f32 0.0, %v3070
      %v3072 = vpop.f32.mrb[0].mxu0
      %v3073 = vadd.f32 0.0, %v3072
      %v3074 = vpop.f32.mrb[0].mxu0
      %v3075 = vadd.f32 0.0, %v3074
      %v3076 = vpop.f32.mrb[0].mxu0
      %v3077 = vadd.f32 0.0, %v3076
      %3078 = vmatprep.mubr.bf16.mxu0 0
      %3079 = vmatmul.mubr.bf16.gmra.mrb[0].mxu0 %v2537
      %v3080 = vpop.f32.mrb[0].mxu0
      %v3081 = vadd.f32 0.0, %v3080
      %v3082 = vpop.f32.mrb[0].mxu0
      %v3083 = vadd.f32 0.0, %v3082
      %v3084 = vpop.f32.mrb[0].mxu0
      %v3085 = vadd.f32 0.0, %v3084
      %v3086 = vpop.f32.mrb[0].mxu0
      %v3087 = vadd.f32 0.0, %v3086
      %3088 = vmatprep.mubr.bf16.mxu0 0
      %3089 = vmatmul.mubr.bf16.gmra.mrb[0].mxu0 %v2538
      %v3090 = vpop.f32.mrb[0].mxu0
      %v3091 = vadd.f32 0.0, %v3090
      %v3092 = vpop.f32.mrb[0].mxu0
      %v3093 = vadd.f32 0.0, %v3092
      %v3094 = vpop.f32.mrb[0].mxu0
      %v3095 = vadd.f32 0.0, %v3094
      %v3096 = vpop.f32.mrb[0].mxu0
      %v3097 = vadd.f32 0.0, %v3096
      %3098 = vmatprep.mubr.bf16.mxu0 0
      %3099 = vmatmul.mubr.bf16.gmra.mrb[0].mxu0 %v2539
      %v3100 = vpop.f32.mrb[0].mxu0
      %v3101 = vadd.f32 0.0, %v3100
      %v3102 = vpop.f32.mrb[0].mxu0
      %v3103 = vadd.f32 0.0, %v3102
      %v3104 = vpop.f32.mrb[0].mxu0
      %v3105 = vadd.f32 0.0, %v3104
      %v3106 = vpop.f32.mrb[0].mxu0
      %v3107 = vadd.f32 0.0, %v3106
      %3108 = vmatprep.mubr.bf16.mxu0 0
      %3109 = vmatmul.mubr.bf16.gmra.mrb[0].mxu0 %v2540
      %v3110 = vpop.f32.mrb[0].mxu0
      %v3111 = vadd.f32 0.0, %v3110
      %v3112 = vpop.f32.mrb[0].mxu0
      %v3113 = vadd.f32 0.0, %v3112
      %v3114 = vpop.f32.mrb[0].mxu0
      %v3115 = vadd.f32 0.0, %v3114
      %v3116 = vpop.f32.mrb[0].mxu0
      %v3117 = vadd.f32 0.0, %v3116
      %3118 = vdwg.mxu0
      %v3119 = vld [vmem:[%s5] sm:$0xff]
      %v3120 = vld [vmem:[%s5 + $0x8] sm:$0xff]
      %v3121 = vld [vmem:[%s5 + $0x10] sm:$0xff]
      %v3122 = vld [vmem:[%s5 + $0x18] sm:$0xff]
      %v3123 = vld [vmem:[%s5 + $0x20] sm:$0xff]
      %v3124 = vld [vmem:[%s5 + $0x28] sm:$0xff]
      %v3125 = vld [vmem:[%s5 + $0x30] sm:$0xff]
      %v3126 = vld [vmem:[%s5 + $0x38] sm:$0xff]
      %v3127 = vld [vmem:[%s5 + $0x40] sm:$0xff]
      %v3128 = vld [vmem:[%s5 + $0x48] sm:$0xff]
      %v3129 = vld [vmem:[%s5 + $0x50] sm:$0xff]
      %v3130 = vld [vmem:[%s5 + $0x58] sm:$0xff]
      %v3131 = vld [vmem:[%s5 + $0x60] sm:$0xff]
      %v3132 = vld [vmem:[%s5 + $0x68] sm:$0xff]
      %v3133 = vld [vmem:[%s5 + $0x70] sm:$0xff]
      %v3134 = vld [vmem:[%s5 + $0x78] sm:$0xff]
      %v3135 = vld [vmem:[%s5 + $0x80] sm:$0xff]
      %v3136 = vld [vmem:[%s5 + $0x88] sm:$0xff]
      %v3137 = vld [vmem:[%s5 + $0x90] sm:$0xff]
      %v3138 = vld [vmem:[%s5 + $0x98] sm:$0xff]
      %v3139 = vld [vmem:[%s5 + $0xa0] sm:$0xff]
      %v3140 = vld [vmem:[%s5 + $0xa8] sm:$0xff]
      %v3141 = vld [vmem:[%s5 + $0xb0] sm:$0xff]
      %v3142 = vld [vmem:[%s5 + $0xb8] sm:$0xff]
      %v3143 = vld [vmem:[%s5 + $0xc0] sm:$0xff]
      %v3144 = vld [vmem:[%s5 + $0xc8] sm:$0xff]
      %v3145 = vld [vmem:[%s5 + $0xd0] sm:$0xff]
      %v3146 = vld [vmem:[%s5 + $0xd8] sm:$0xff]
      %v3147 = vld [vmem:[%s5 + $0xe0] sm:$0xff]
      %v3148 = vld [vmem:[%s5 + $0xe8] sm:$0xff]
      %v3149 = vld [vmem:[%s5 + $0xf0] sm:$0xff]
      %v3150 = vld [vmem:[%s5 + $0xf8] sm:$0xff]
      %v3151 = vpack.c.bf16 %v2772, %v2768
      %v3152 = vpack.c.bf16 %v2782, %v2778
      %v3153 = vpack.c.bf16 %v2792, %v2788
      %v3154 = vpack.c.bf16 %v2802, %v2798
      %v3155 = vpack.c.bf16 %v2812, %v2808
      %v3156 = vpack.c.bf16 %v2822, %v2818
      %v3157 = vpack.c.bf16 %v2832, %v2828
      %v3158 = vpack.c.bf16 %v2842, %v2838
      %v3159 = vpack.c.bf16 %v2852, %v2848
      %v3160 = vpack.c.bf16 %v2862, %v2858
      %v3161 = vpack.c.bf16 %v2872, %v2868
      %v3162 = vpack.c.bf16 %v2882, %v2878
      %v3163 = vpack.c.bf16 %v2892, %v2888
      %v3164 = vpack.c.bf16 %v2902, %v2898
      %v3165 = vpack.c.bf16 %v2912, %v2908
      %v3166 = vpack.c.bf16 %v2922, %v2918
      %s3167 = scalar_lea.vmem %s5, 256
      %v3168 = vld [vmem:[%s3167] sm:$0xff]
      %v3169 = vld [vmem:[%s3167 + $0x8] sm:$0xff]
      %v3170 = vld [vmem:[%s3167 + $0x10] sm:$0xff]
      %v3171 = vld [vmem:[%s3167 + $0x18] sm:$0xff]
      %v3172 = vld [vmem:[%s3167 + $0x20] sm:$0xff]
      %v3173 = vld [vmem:[%s3167 + $0x28] sm:$0xff]
      %v3174 = vld [vmem:[%s3167 + $0x30] sm:$0xff]
      %v3175 = vld [vmem:[%s3167 + $0x38] sm:$0xff]
      %v3176 = vld [vmem:[%s3167 + $0x40] sm:$0xff]
      %v3177 = vld [vmem:[%s3167 + $0x48] sm:$0xff]
      %v3178 = vld [vmem:[%s3167 + $0x50] sm:$0xff]
      %v3179 = vld [vmem:[%s3167 + $0x58] sm:$0xff]
      %v3180 = vld [vmem:[%s3167 + $0x60] sm:$0xff]
      %v3181 = vld [vmem:[%s3167 + $0x68] sm:$0xff]
      %v3182 = vld [vmem:[%s3167 + $0x70] sm:$0xff]
      %v3183 = vld [vmem:[%s3167 + $0x78] sm:$0xff]
      %v3184 = vld [vmem:[%s3167 + $0x80] sm:$0xff]
      %v3185 = vld [vmem:[%s3167 + $0x88] sm:$0xff]
      %v3186 = vld [vmem:[%s3167 + $0x90] sm:$0xff]
      %v3187 = vld [vmem:[%s3167 + $0x98] sm:$0xff]
      %v3188 = vld [vmem:[%s3167 + $0xa0] sm:$0xff]
      %v3189 = vld [vmem:[%s3167 + $0xa8] sm:$0xff]
      %v3190 = vld [vmem:[%s3167 + $0xb0] sm:$0xff]
      %v3191 = vld [vmem:[%s3167 + $0xb8] sm:$0xff]
      %v3192 = vld [vmem:[%s3167 + $0xc0] sm:$0xff]
      %v3193 = vld [vmem:[%s3167 + $0xc8] sm:$0xff]
      %v3194 = vld [vmem:[%s3167 + $0xd0] sm:$0xff]
      %v3195 = vld [vmem:[%s3167 + $0xd8] sm:$0xff]
      %v3196 = vld [vmem:[%s3167 + $0xe0] sm:$0xff]
      %v3197 = vld [vmem:[%s3167 + $0xe8] sm:$0xff]
      %v3198 = vld [vmem:[%s3167 + $0xf0] sm:$0xff]
      %v3199 = vld [vmem:[%s3167 + $0xf8] sm:$0xff]
      %v3232 = vunpack.c.l.b16 %v3168
      %v3233 = vunpack.c.h.b16 %v3168
      %v3234 = vunpack.c.l.b16 %v3169
      %v3235 = vunpack.c.h.b16 %v3169
      %v3236 = vunpack.c.l.b16 %v3170
      %v3237 = vunpack.c.h.b16 %v3170
      %v3238 = vunpack.c.l.b16 %v3171
      %v3239 = vunpack.c.h.b16 %v3171
      %v3240 = vunpack.c.l.b16 %v3172
      %v3241 = vunpack.c.h.b16 %v3172
      %v3242 = vunpack.c.l.b16 %v3173
      %v3243 = vunpack.c.h.b16 %v3173
      %v3244 = vunpack.c.l.b16 %v3174
      %v3245 = vunpack.c.h.b16 %v3174
      %v3246 = vunpack.c.l.b16 %v3175
      %v3247 = vunpack.c.h.b16 %v3175
      %v3248 = vunpack.c.l.b16 %v3176
      %v3249 = vunpack.c.h.b16 %v3176
      %v3250 = vunpack.c.l.b16 %v3177
      %v3251 = vunpack.c.h.b16 %v3177
      %v3252 = vunpack.c.l.b16 %v3178
      %v3253 = vunpack.c.h.b16 %v3178
      %v3254 = vunpack.c.l.b16 %v3179
      %v3255 = vunpack.c.h.b16 %v3179
      %v3256 = vunpack.c.l.b16 %v3180
      %v3257 = vunpack.c.h.b16 %v3180
      %v3258 = vunpack.c.l.b16 %v3181
      %v3259 = vunpack.c.h.b16 %v3181
      %v3260 = vunpack.c.l.b16 %v3182
      %v3261 = vunpack.c.h.b16 %v3182
      %v3262 = vunpack.c.l.b16 %v3183
      %v3263 = vunpack.c.h.b16 %v3183
      %v3264 = vunpack.c.l.b16 %v3184
      %v3265 = vunpack.c.h.b16 %v3184
      %v3266 = vunpack.c.l.b16 %v3185
      %v3267 = vunpack.c.h.b16 %v3185
      %v3268 = vunpack.c.l.b16 %v3186
      %v3269 = vunpack.c.h.b16 %v3186
      %v3270 = vunpack.c.l.b16 %v3187
      %v3271 = vunpack.c.h.b16 %v3187
      %v3272 = vunpack.c.l.b16 %v3188
      %v3273 = vunpack.c.h.b16 %v3188
      %v3274 = vunpack.c.l.b16 %v3189
      %v3275 = vunpack.c.h.b16 %v3189
      %v3276 = vunpack.c.l.b16 %v3190
      %v3277 = vunpack.c.h.b16 %v3190
      %v3278 = vunpack.c.l.b16 %v3191
      %v3279 = vunpack.c.h.b16 %v3191
      %v3280 = vunpack.c.l.b16 %v3192
      %v3281 = vunpack.c.h.b16 %v3192
      %v3282 = vunpack.c.l.b16 %v3193
      %v3283 = vunpack.c.h.b16 %v3193
      %v3284 = vunpack.c.l.b16 %v3194
      %v3285 = vunpack.c.h.b16 %v3194
      %v3286 = vunpack.c.l.b16 %v3195
      %v3287 = vunpack.c.h.b16 %v3195
      %v3288 = vunpack.c.l.b16 %v3196
      %v3289 = vunpack.c.h.b16 %v3196
      %v3290 = vunpack.c.l.b16 %v3197
      %v3291 = vunpack.c.h.b16 %v3197
      %v3292 = vunpack.c.l.b16 %v3198
      %v3293 = vunpack.c.h.b16 %v3198
      %v3294 = vunpack.c.l.b16 %v3199
      %v3295 = vunpack.c.h.b16 %v3199
      %v3296 = vpack.c.b16 %v3234, %v3232
      %v3297 = vpack.c.b16 %v3235, %v3233
      %v3298 = vpack.c.b16 %v3238, %v3236
      %v3299 = vpack.c.b16 %v3239, %v3237
      %v3300 = vpack.c.b16 %v3242, %v3240
      %v3301 = vpack.c.b16 %v3243, %v3241
      %v3302 = vpack.c.b16 %v3246, %v3244
      %v3303 = vpack.c.b16 %v3247, %v3245
      %v3304 = vpack.c.b16 %v3250, %v3248
      %v3305 = vpack.c.b16 %v3251, %v3249
      %v3306 = vpack.c.b16 %v3254, %v3252
      %v3307 = vpack.c.b16 %v3255, %v3253
      %v3308 = vpack.c.b16 %v3258, %v3256
      %v3309 = vpack.c.b16 %v3259, %v3257
      %v3310 = vpack.c.b16 %v3262, %v3260
      %v3311 = vpack.c.b16 %v3263, %v3261
      %v3312 = vpack.c.b16 %v3266, %v3264
      %v3313 = vpack.c.b16 %v3267, %v3265
      %v3314 = vpack.c.b16 %v3270, %v3268
      %v3315 = vpack.c.b16 %v3271, %v3269
      %v3316 = vpack.c.b16 %v3274, %v3272
      %v3317 = vpack.c.b16 %v3275, %v3273
      %v3318 = vpack.c.b16 %v3278, %v3276
      %v3319 = vpack.c.b16 %v3279, %v3277
      %v3320 = vpack.c.b16 %v3282, %v3280
      %v3321 = vpack.c.b16 %v3283, %v3281
      %v3322 = vpack.c.b16 %v3286, %v3284
      %v3323 = vpack.c.b16 %v3287, %v3285
      %v3324 = vpack.c.b16 %v3290, %v3288
      %v3325 = vpack.c.b16 %v3291, %v3289
      %v3326 = vpack.c.b16 %v3294, %v3292
      %v3327 = vpack.c.b16 %v3295, %v3293
      %3376 = vrot.lane.b32.xlu0 %v3151, 96
      %v3377 = vpop.permute.xlu0 %3376
      %3378 = vrot.lane.b32.xlu0 %v3152, 96
      %v3379 = vpop.permute.xlu0 %3378
      %3380 = vrot.lane.b32.xlu0 %v3153, 96
      %v3381 = vpop.permute.xlu0 %3380
      %3382 = vrot.lane.b32.xlu0 %v3154, 96
      %v3383 = vpop.permute.xlu0 %3382
      %3384 = vrot.lane.b32.xlu0 %v3155, 96
      %v3385 = vpop.permute.xlu0 %3384
      %3386 = vrot.lane.b32.xlu0 %v3156, 96
      %v3387 = vpop.permute.xlu0 %3386
      %3388 = vrot.lane.b32.xlu0 %v3157, 96
      %v3389 = vpop.permute.xlu0 %3388
      %3390 = vrot.lane.b32.xlu0 %v3158, 96
      %v3391 = vpop.permute.xlu0 %3390
      %3392 = vrot.lane.b32.xlu0 %v3159, 96
      %v3393 = vpop.permute.xlu0 %3392
      %3394 = vrot.lane.b32.xlu0 %v3160, 96
      %v3395 = vpop.permute.xlu0 %3394
      %3396 = vrot.lane.b32.xlu0 %v3161, 96
      %v3397 = vpop.permute.xlu0 %3396
      %3398 = vrot.lane.b32.xlu0 %v3162, 96
      %v3399 = vpop.permute.xlu0 %3398
      %3400 = vrot.lane.b32.xlu0 %v3163, 96
      %v3401 = vpop.permute.xlu0 %3400
      %3402 = vrot.lane.b32.xlu0 %v3164, 96
      %v3403 = vpop.permute.xlu0 %3402
      %3404 = vrot.lane.b32.xlu0 %v3165, 96
      %v3405 = vpop.permute.xlu0 %3404
      %3406 = vrot.lane.b32.xlu0 %v3166, 96
      %v3407 = vpop.permute.xlu0 %3406
      %3424 = vmatprep.subr.bf16.mxu0 0
      %3425 = vmatpush1.bf16.msra.mxu0 %v3377
      %3426 = vmatprep.subr.bf16.mxu0 0
      %3427 = vmatpush1.bf16.msra.mxu0 %v3379
      %3428 = vmatprep.subr.bf16.mxu0 0
      %3429 = vmatpush1.bf16.msra.mxu0 %v3381
      %3430 = vmatprep.subr.bf16.mxu0 0
      %3431 = vmatpush1.bf16.msra.mxu0 %v3383
      %3432 = vmatprep.subr.bf16.mxu0 0
      %3433 = vmatpush1.bf16.msra.mxu0 %v3385
      %3434 = vmatprep.subr.bf16.mxu0 0
      %3435 = vmatpush1.bf16.msra.mxu0 %v3387
      %3436 = vmatprep.subr.bf16.mxu0 0
      %3437 = vmatpush1.bf16.msra.mxu0 %v3389
      %3438 = vmatprep.subr.bf16.mxu0 0
      %3439 = vmatpush1.bf16.msra.mxu0 %v3391
      %3440 = vmatprep.subr.bf16.mxu0 0
      %3441 = vmatpush1.bf16.msra.mxu0 %v3393
      %3442 = vmatprep.subr.bf16.mxu0 0
      %3443 = vmatpush1.bf16.msra.mxu0 %v3395
      %3444 = vmatprep.subr.bf16.mxu0 0
      %3445 = vmatpush1.bf16.msra.mxu0 %v3397
      %3446 = vmatprep.subr.bf16.mxu0 0
      %3447 = vmatpush1.bf16.msra.mxu0 %v3399
      %3448 = vmatprep.subr.bf16.mxu0 0
      %3449 = vmatpush1.bf16.msra.mxu0 %v3401
      %3450 = vmatprep.subr.bf16.mxu0 0
      %3451 = vmatpush1.bf16.msra.mxu0 %v3403
      %3452 = vmatprep.subr.bf16.mxu0 0
      %3453 = vmatpush1.bf16.msra.mxu0 %v3405
      %3454 = vmatprep.subr.bf16.mxu0 0
      %3455 = vmatpush1.bf16.msra.mxu0 %v3407
      %3456 = vmatprep.mubr.bf16.mxu0 %v3297
      %3457 = vmatmul.mubr.bf16.gmra.mrb[0].mxu0 %v3296
      %v3458 = vpop.f32.mrb[0].mxu0
      %v3459 = vadd.f32 0.0, %v3458
      %v3460 = vpop.f32.mrb[0].mxu0
      %v3461 = vpop.f32.mrb[0].mxu0
      %v3462 = vadd.f32 0.0, %v3461
      %v3463 = vpop.f32.mrb[0].mxu0
      %3464 = vmatprep.mubr.bf16.mxu0 %v3299
      %3465 = vmatmul.mubr.bf16.gmra.mrb[0].mxu0 %v3298
      %v3466 = vpop.f32.mrb[0].mxu0
      %v3467 = vadd.f32 0.0, %v3466
      %v3468 = vpop.f32.mrb[0].mxu0
      %v3469 = vpop.f32.mrb[0].mxu0
      %v3470 = vadd.f32 0.0, %v3469
      %v3471 = vpop.f32.mrb[0].mxu0
      %3472 = vmatprep.mubr.bf16.mxu0 %v3301
      %3473 = vmatmul.mubr.bf16.gmra.mrb[0].mxu0 %v3300
      %v3474 = vpop.f32.mrb[0].mxu0
      %v3475 = vadd.f32 0.0, %v3474
      %v3476 = vpop.f32.mrb[0].mxu0
      %v3477 = vpop.f32.mrb[0].mxu0
      %v3478 = vadd.f32 0.0, %v3477
      %v3479 = vpop.f32.mrb[0].mxu0
      %3480 = vmatprep.mubr.bf16.mxu0 %v3303
      %3481 = vmatmul.mubr.bf16.gmra.mrb[0].mxu0 %v3302
      %v3482 = vpop.f32.mrb[0].mxu0
      %v3483 = vadd.f32 0.0, %v3482
      %v3484 = vpop.f32.mrb[0].mxu0
      %v3485 = vpop.f32.mrb[0].mxu0
      %v3486 = vadd.f32 0.0, %v3485
      %v3487 = vpop.f32.mrb[0].mxu0
      %3488 = vmatprep.mubr.bf16.mxu0 %v3305
      %3489 = vmatmul.mubr.bf16.gmra.mrb[0].mxu0 %v3304
      %v3490 = vpop.f32.mrb[0].mxu0
      %v3491 = vadd.f32 0.0, %v3490
      %v3492 = vpop.f32.mrb[0].mxu0
      %v3493 = vpop.f32.mrb[0].mxu0
      %v3494 = vadd.f32 0.0, %v3493
      %v3495 = vpop.f32.mrb[0].mxu0
      %3496 = vmatprep.mubr.bf16.mxu0 %v3307
      %3497 = vmatmul.mubr.bf16.gmra.mrb[0].mxu0 %v3306
      %v3498 = vpop.f32.mrb[0].mxu0
      %v3499 = vadd.f32 0.0, %v3498
      %v3500 = vpop.f32.mrb[0].mxu0
      %v3501 = vpop.f32.mrb[0].mxu0
      %v3502 = vadd.f32 0.0, %v3501
      %v3503 = vpop.f32.mrb[0].mxu0
      %3504 = vmatprep.mubr.bf16.mxu0 %v3309
      %3505 = vmatmul.mubr.bf16.gmra.mrb[0].mxu0 %v3308
      %v3506 = vpop.f32.mrb[0].mxu0
      %v3507 = vadd.f32 0.0, %v3506
      %v3508 = vpop.f32.mrb[0].mxu0
      %v3509 = vpop.f32.mrb[0].mxu0
      %v3510 = vadd.f32 0.0, %v3509
      %v3511 = vpop.f32.mrb[0].mxu0
      %3512 = vmatprep.mubr.bf16.mxu0 %v3311
      %3513 = vmatmul.mubr.bf16.gmra.mrb[0].mxu0 %v3310
      %v3514 = vpop.f32.mrb[0].mxu0
      %v3515 = vadd.f32 0.0, %v3514
      %v3516 = vpop.f32.mrb[0].mxu0
      %v3517 = vpop.f32.mrb[0].mxu0
      %v3518 = vadd.f32 0.0, %v3517
      %v3519 = vpop.f32.mrb[0].mxu0
      %3520 = vmatprep.mubr.bf16.mxu0 %v3313
      %3521 = vmatmul.mubr.bf16.gmra.mrb[0].mxu0 %v3312
      %v3522 = vpop.f32.mrb[0].mxu0
      %v3523 = vadd.f32 0.0, %v3522
      %v3524 = vpop.f32.mrb[0].mxu0
      %v3525 = vpop.f32.mrb[0].mxu0
      %v3526 = vadd.f32 0.0, %v3525
      %v3527 = vpop.f32.mrb[0].mxu0
      %3528 = vmatprep.mubr.bf16.mxu0 %v3315
      %3529 = vmatmul.mubr.bf16.gmra.mrb[0].mxu0 %v3314
      %v3530 = vpop.f32.mrb[0].mxu0
      %v3531 = vadd.f32 0.0, %v3530
      %v3532 = vpop.f32.mrb[0].mxu0
      %v3533 = vpop.f32.mrb[0].mxu0
      %v3534 = vadd.f32 0.0, %v3533
      %v3535 = vpop.f32.mrb[0].mxu0
      %3536 = vmatprep.mubr.bf16.mxu0 %v3317
      %3537 = vmatmul.mubr.bf16.gmra.mrb[0].mxu0 %v3316
      %v3538 = vpop.f32.mrb[0].mxu0
      %v3539 = vadd.f32 0.0, %v3538
      %v3540 = vpop.f32.mrb[0].mxu0
      %v3541 = vpop.f32.mrb[0].mxu0
      %v3542 = vadd.f32 0.0, %v3541
      %v3543 = vpop.f32.mrb[0].mxu0
      %3544 = vmatprep.mubr.bf16.mxu0 %v3319
      %3545 = vmatmul.mubr.bf16.gmra.mrb[0].mxu0 %v3318
      %v3546 = vpop.f32.mrb[0].mxu0
      %v3547 = vadd.f32 0.0, %v3546
      %v3548 = vpop.f32.mrb[0].mxu0
      %v3549 = vpop.f32.mrb[0].mxu0
      %v3550 = vadd.f32 0.0, %v3549
      %v3551 = vpop.f32.mrb[0].mxu0
      %3552 = vmatprep.mubr.bf16.mxu0 %v3321
      %3553 = vmatmul.mubr.bf16.gmra.mrb[0].mxu0 %v3320
      %v3554 = vpop.f32.mrb[0].mxu0
      %v3555 = vadd.f32 0.0, %v3554
      %v3556 = vpop.f32.mrb[0].mxu0
      %v3557 = vpop.f32.mrb[0].mxu0
      %v3558 = vadd.f32 0.0, %v3557
      %v3559 = vpop.f32.mrb[0].mxu0
      %3560 = vmatprep.mubr.bf16.mxu0 %v3323
      %3561 = vmatmul.mubr.bf16.gmra.mrb[0].mxu0 %v3322
      %v3562 = vpop.f32.mrb[0].mxu0
      %v3563 = vadd.f32 0.0, %v3562
      %v3564 = vpop.f32.mrb[0].mxu0
      %v3565 = vpop.f32.mrb[0].mxu0
      %v3566 = vadd.f32 0.0, %v3565
      %v3567 = vpop.f32.mrb[0].mxu0
      %3568 = vmatprep.mubr.bf16.mxu0 %v3325
      %3569 = vmatmul.mubr.bf16.gmra.mrb[0].mxu0 %v3324
      %v3570 = vpop.f32.mrb[0].mxu0
      %v3571 = vadd.f32 0.0, %v3570
      %v3572 = vpop.f32.mrb[0].mxu0
      %v3573 = vpop.f32.mrb[0].mxu0
      %v3574 = vadd.f32 0.0, %v3573
      %v3575 = vpop.f32.mrb[0].mxu0
      %3576 = vmatprep.mubr.bf16.mxu0 %v3327
      %3577 = vmatmul.mubr.bf16.gmra.mrb[0].mxu0 %v3326
      %v3578 = vpop.f32.mrb[0].mxu0
      %v3579 = vadd.f32 0.0, %v3578
      %v3580 = vpop.f32.mrb[0].mxu0
      %v3581 = vpop.f32.mrb[0].mxu0
      %v3582 = vadd.f32 0.0, %v3581
      %v3583 = vpop.f32.mrb[0].mxu0
      %3584 = vdwg.mxu0
      %v3617 = vunpack.c.l.b16 %v3119
      %v3618 = vunpack.c.h.b16 %v3119
      %v3619 = vunpack.c.l.b16 %v3120
      %v3620 = vunpack.c.h.b16 %v3120
      %v3621 = vunpack.c.l.b16 %v3121
      %v3622 = vunpack.c.h.b16 %v3121
      %v3623 = vunpack.c.l.b16 %v3122
      %v3624 = vunpack.c.h.b16 %v3122
      %v3625 = vunpack.c.l.b16 %v3123
      %v3626 = vunpack.c.h.b16 %v3123
      %v3627 = vunpack.c.l.b16 %v3124
      %v3628 = vunpack.c.h.b16 %v3124
      %v3629 = vunpack.c.l.b16 %v3125
      %v3630 = vunpack.c.h.b16 %v3125
      %v3631 = vunpack.c.l.b16 %v3126
      %v3632 = vunpack.c.h.b16 %v3126
      %v3633 = vunpack.c.l.b16 %v3127
      %v3634 = vunpack.c.h.b16 %v3127
      %v3635 = vunpack.c.l.b16 %v3128
      %v3636 = vunpack.c.h.b16 %v3128
      %v3637 = vunpack.c.l.b16 %v3129
      %v3638 = vunpack.c.h.b16 %v3129
      %v3639 = vunpack.c.l.b16 %v3130
      %v3640 = vunpack.c.h.b16 %v3130
      %v3641 = vunpack.c.l.b16 %v3131
      %v3642 = vunpack.c.h.b16 %v3131
      %v3643 = vunpack.c.l.b16 %v3132
      %v3644 = vunpack.c.h.b16 %v3132
      %v3645 = vunpack.c.l.b16 %v3133
      %v3646 = vunpack.c.h.b16 %v3133
      %v3647 = vunpack.c.l.b16 %v3134
      %v3648 = vunpack.c.h.b16 %v3134
      %v3649 = vunpack.c.l.b16 %v3135
      %v3650 = vunpack.c.h.b16 %v3135
      %v3651 = vunpack.c.l.b16 %v3136
      %v3652 = vunpack.c.h.b16 %v3136
      %v3653 = vunpack.c.l.b16 %v3137
      %v3654 = vunpack.c.h.b16 %v3137
      %v3655 = vunpack.c.l.b16 %v3138
      %v3656 = vunpack.c.h.b16 %v3138
      %v3657 = vunpack.c.l.b16 %v3139
      %v3658 = vunpack.c.h.b16 %v3139
      %v3659 = vunpack.c.l.b16 %v3140
      %v3660 = vunpack.c.h.b16 %v3140
      %v3661 = vunpack.c.l.b16 %v3141
      %v3662 = vunpack.c.h.b16 %v3141
      %v3663 = vunpack.c.l.b16 %v3142
      %v3664 = vunpack.c.h.b16 %v3142
      %v3665 = vunpack.c.l.b16 %v3143
      %v3666 = vunpack.c.h.b16 %v3143
      %v3667 = vunpack.c.l.b16 %v3144
      %v3668 = vunpack.c.h.b16 %v3144
      %v3669 = vunpack.c.l.b16 %v3145
      %v3670 = vunpack.c.h.b16 %v3145
      %v3671 = vunpack.c.l.b16 %v3146
      %v3672 = vunpack.c.h.b16 %v3146
      %v3673 = vunpack.c.l.b16 %v3147
      %v3674 = vunpack.c.h.b16 %v3147
      %v3675 = vunpack.c.l.b16 %v3148
      %v3676 = vunpack.c.h.b16 %v3148
      %v3677 = vunpack.c.l.b16 %v3149
      %v3678 = vunpack.c.h.b16 %v3149
      %v3679 = vunpack.c.l.b16 %v3150
      %v3680 = vunpack.c.h.b16 %v3150
      %v3681 = vpack.c.b16 %v3619, %v3617
      %v3682 = vpack.c.b16 %v3620, %v3618
      %v3683 = vpack.c.b16 %v3623, %v3621
      %v3684 = vpack.c.b16 %v3624, %v3622
      %v3685 = vpack.c.b16 %v3627, %v3625
      %v3686 = vpack.c.b16 %v3628, %v3626
      %v3687 = vpack.c.b16 %v3631, %v3629
      %v3688 = vpack.c.b16 %v3632, %v3630
      %v3689 = vpack.c.b16 %v3635, %v3633
      %v3690 = vpack.c.b16 %v3636, %v3634
      %v3691 = vpack.c.b16 %v3639, %v3637
      %v3692 = vpack.c.b16 %v3640, %v3638
      %v3693 = vpack.c.b16 %v3643, %v3641
      %v3694 = vpack.c.b16 %v3644, %v3642
      %v3695 = vpack.c.b16 %v3647, %v3645
      %v3696 = vpack.c.b16 %v3648, %v3646
      %v3697 = vpack.c.b16 %v3651, %v3649
      %v3698 = vpack.c.b16 %v3652, %v3650
      %v3699 = vpack.c.b16 %v3655, %v3653
      %v3700 = vpack.c.b16 %v3656, %v3654
      %v3701 = vpack.c.b16 %v3659, %v3657
      %v3702 = vpack.c.b16 %v3660, %v3658
      %v3703 = vpack.c.b16 %v3663, %v3661
      %v3704 = vpack.c.b16 %v3664, %v3662
      %v3705 = vpack.c.b16 %v3667, %v3665
      %v3706 = vpack.c.b16 %v3668, %v3666
      %v3707 = vpack.c.b16 %v3671, %v3669
      %v3708 = vpack.c.b16 %v3672, %v3670
      %v3709 = vpack.c.b16 %v3675, %v3673
      %v3710 = vpack.c.b16 %v3676, %v3674
      %v3711 = vpack.c.b16 %v3679, %v3677
      %v3712 = vpack.c.b16 %v3680, %v3678
      %3745 = vmatprep.subr.bf16.mxu0 0
      %3746 = vmatpush1.bf16.msra.mxu0 %v3151
      %3747 = vmatprep.subr.bf16.mxu0 0
      %3748 = vmatpush1.bf16.msra.mxu0 %v3152
      %3749 = vmatprep.subr.bf16.mxu0 0
      %3750 = vmatpush1.bf16.msra.mxu0 %v3153
      %3751 = vmatprep.subr.bf16.mxu0 0
      %3752 = vmatpush1.bf16.msra.mxu0 %v3154
      %3753 = vmatprep.subr.bf16.mxu0 0
      %3754 = vmatpush1.bf16.msra.mxu0 %v3155
      %3755 = vmatprep.subr.bf16.mxu0 0
      %3756 = vmatpush1.bf16.msra.mxu0 %v3156
      %3757 = vmatprep.subr.bf16.mxu0 0
      %3758 = vmatpush1.bf16.msra.mxu0 %v3157
      %3759 = vmatprep.subr.bf16.mxu0 0
      %3760 = vmatpush1.bf16.msra.mxu0 %v3158
      %3761 = vmatprep.subr.bf16.mxu0 0
      %3762 = vmatpush1.bf16.msra.mxu0 %v3159
      %3763 = vmatprep.subr.bf16.mxu0 0
      %3764 = vmatpush1.bf16.msra.mxu0 %v3160
      %3765 = vmatprep.subr.bf16.mxu0 0
      %3766 = vmatpush1.bf16.msra.mxu0 %v3161
      %3767 = vmatprep.subr.bf16.mxu0 0
      %3768 = vmatpush1.bf16.msra.mxu0 %v3162
      %3769 = vmatprep.subr.bf16.mxu0 0
      %3770 = vmatpush1.bf16.msra.mxu0 %v3163
      %3771 = vmatprep.subr.bf16.mxu0 0
      %3772 = vmatpush1.bf16.msra.mxu0 %v3164
      %3773 = vmatprep.subr.bf16.mxu0 0
      %3774 = vmatpush1.bf16.msra.mxu0 %v3165
      %3775 = vmatprep.subr.bf16.mxu0 0
      %3776 = vmatpush1.bf16.msra.mxu0 %v3166
      %3777 = vmatprep.mubr.bf16.mxu0 %v3682
      %3778 = vmatmul.mubr.bf16.gmra.mrb[0].mxu0 %v3681
      %v3779 = vpop.f32.mrb[0].mxu0
      %v3780 = vadd.f32 %v3459, %v3779
      %v3781 = vpop.f32.mrb[0].mxu0
      %v3782 = vpop.f32.mrb[0].mxu0
      %v3783 = vadd.f32 %v3462, %v3782
      %v3784 = vpop.f32.mrb[0].mxu0
      %3785 = vmatprep.mubr.bf16.mxu0 %v3684
      %3786 = vmatmul.mubr.bf16.gmra.mrb[0].mxu0 %v3683
      %v3787 = vpop.f32.mrb[0].mxu0
      %v3788 = vadd.f32 %v3467, %v3787
      %v3789 = vpop.f32.mrb[0].mxu0
      %v3790 = vpop.f32.mrb[0].mxu0
      %v3791 = vadd.f32 %v3470, %v3790
      %v3792 = vpop.f32.mrb[0].mxu0
      %3793 = vmatprep.mubr.bf16.mxu0 %v3686
      %3794 = vmatmul.mubr.bf16.gmra.mrb[0].mxu0 %v3685
      %v3795 = vpop.f32.mrb[0].mxu0
      %v3796 = vadd.f32 %v3475, %v3795
      %v3797 = vpop.f32.mrb[0].mxu0
      %v3798 = vpop.f32.mrb[0].mxu0
      %v3799 = vadd.f32 %v3478, %v3798
      %v3800 = vpop.f32.mrb[0].mxu0
      %3801 = vmatprep.mubr.bf16.mxu0 %v3688
      %3802 = vmatmul.mubr.bf16.gmra.mrb[0].mxu0 %v3687
      %v3803 = vpop.f32.mrb[0].mxu0
      %v3804 = vadd.f32 %v3483, %v3803
      %v3805 = vpop.f32.mrb[0].mxu0
      %v3806 = vpop.f32.mrb[0].mxu0
      %v3807 = vadd.f32 %v3486, %v3806
      %v3808 = vpop.f32.mrb[0].mxu0
      %3809 = vmatprep.mubr.bf16.mxu0 %v3690
      %3810 = vmatmul.mubr.bf16.gmra.mrb[0].mxu0 %v3689
      %v3811 = vpop.f32.mrb[0].mxu0
      %v3812 = vadd.f32 %v3491, %v3811
      %v3813 = vpop.f32.mrb[0].mxu0
      %v3814 = vpop.f32.mrb[0].mxu0
      %v3815 = vadd.f32 %v3494, %v3814
      %v3816 = vpop.f32.mrb[0].mxu0
      %3817 = vmatprep.mubr.bf16.mxu0 %v3692
      %3818 = vmatmul.mubr.bf16.gmra.mrb[0].mxu0 %v3691
      %v3819 = vpop.f32.mrb[0].mxu0
      %v3820 = vadd.f32 %v3499, %v3819
      %v3821 = vpop.f32.mrb[0].mxu0
      %v3822 = vpop.f32.mrb[0].mxu0
      %v3823 = vadd.f32 %v3502, %v3822
      %v3824 = vpop.f32.mrb[0].mxu0
      %3825 = vmatprep.mubr.bf16.mxu0 %v3694
      %3826 = vmatmul.mubr.bf16.gmra.mrb[0].mxu0 %v3693
      %v3827 = vpop.f32.mrb[0].mxu0
      %v3828 = vadd.f32 %v3507, %v3827
      %v3829 = vpop.f32.mrb[0].mxu0
      %v3830 = vpop.f32.mrb[0].mxu0
      %v3831 = vadd.f32 %v3510, %v3830
      %v3832 = vpop.f32.mrb[0].mxu0
      %3833 = vmatprep.mubr.bf16.mxu0 %v3696
      %3834 = vmatmul.mubr.bf16.gmra.mrb[0].mxu0 %v3695
      %v3835 = vpop.f32.mrb[0].mxu0
      %v3836 = vadd.f32 %v3515, %v3835
      %v3837 = vpop.f32.mrb[0].mxu0
      %v3838 = vpop.f32.mrb[0].mxu0
      %v3839 = vadd.f32 %v3518, %v3838
      %v3840 = vpop.f32.mrb[0].mxu0
      %3841 = vmatprep.mubr.bf16.mxu0 %v3698
      %3842 = vmatmul.mubr.bf16.gmra.mrb[0].mxu0 %v3697
      %v3843 = vpop.f32.mrb[0].mxu0
      %v3844 = vadd.f32 %v3523, %v3843
      %v3845 = vpop.f32.mrb[0].mxu0
      %v3846 = vpop.f32.mrb[0].mxu0
      %v3847 = vadd.f32 %v3526, %v3846
      %v3848 = vpop.f32.mrb[0].mxu0
      %3849 = vmatprep.mubr.bf16.mxu0 %v3700
      %3850 = vmatmul.mubr.bf16.gmra.mrb[0].mxu0 %v3699
      %v3851 = vpop.f32.mrb[0].mxu0
      %v3852 = vadd.f32 %v3531, %v3851
      %v3853 = vpop.f32.mrb[0].mxu0
      %v3854 = vpop.f32.mrb[0].mxu0
      %v3855 = vadd.f32 %v3534, %v3854
      %v3856 = vpop.f32.mrb[0].mxu0
      %3857 = vmatprep.mubr.bf16.mxu0 %v3702
      %3858 = vmatmul.mubr.bf16.gmra.mrb[0].mxu0 %v3701
      %v3859 = vpop.f32.mrb[0].mxu0
      %v3860 = vadd.f32 %v3539, %v3859
      %v3861 = vpop.f32.mrb[0].mxu0
      %v3862 = vpop.f32.mrb[0].mxu0
      %v3863 = vadd.f32 %v3542, %v3862
      %v3864 = vpop.f32.mrb[0].mxu0
      %3865 = vmatprep.mubr.bf16.mxu0 %v3704
      %3866 = vmatmul.mubr.bf16.gmra.mrb[0].mxu0 %v3703
      %v3867 = vpop.f32.mrb[0].mxu0
      %v3868 = vadd.f32 %v3547, %v3867
      %v3869 = vpop.f32.mrb[0].mxu0
      %v3870 = vpop.f32.mrb[0].mxu0
      %v3871 = vadd.f32 %v3550, %v3870
      %v3872 = vpop.f32.mrb[0].mxu0
      %3873 = vmatprep.mubr.bf16.mxu0 %v3706
      %3874 = vmatmul.mubr.bf16.gmra.mrb[0].mxu0 %v3705
      %v3875 = vpop.f32.mrb[0].mxu0
      %v3876 = vadd.f32 %v3555, %v3875
      %v3877 = vpop.f32.mrb[0].mxu0
      %v3878 = vpop.f32.mrb[0].mxu0
      %v3879 = vadd.f32 %v3558, %v3878
      %v3880 = vpop.f32.mrb[0].mxu0
      %3881 = vmatprep.mubr.bf16.mxu0 %v3708
      %3882 = vmatmul.mubr.bf16.gmra.mrb[0].mxu0 %v3707
      %v3883 = vpop.f32.mrb[0].mxu0
      %v3884 = vadd.f32 %v3563, %v3883
      %v3885 = vpop.f32.mrb[0].mxu0
      %v3886 = vpop.f32.mrb[0].mxu0
      %v3887 = vadd.f32 %v3566, %v3886
      %v3888 = vpop.f32.mrb[0].mxu0
      %3889 = vmatprep.mubr.bf16.mxu0 %v3710
      %3890 = vmatmul.mubr.bf16.gmra.mrb[0].mxu0 %v3709
      %v3891 = vpop.f32.mrb[0].mxu0
      %v3892 = vadd.f32 %v3571, %v3891
      %v3893 = vpop.f32.mrb[0].mxu0
      %v3894 = vpop.f32.mrb[0].mxu0
      %v3895 = vadd.f32 %v3574, %v3894
      %v3896 = vpop.f32.mrb[0].mxu0
      %3897 = vmatprep.mubr.bf16.mxu0 %v3712
      %3898 = vmatmul.mubr.bf16.gmra.mrb[0].mxu0 %v3711
      %v3899 = vpop.f32.mrb[0].mxu0
      %v3900 = vadd.f32 %v3579, %v3899
      %v3901 = vpop.f32.mrb[0].mxu0
      %v3902 = vpop.f32.mrb[0].mxu0
      %v3903 = vadd.f32 %v3582, %v3902
      %v3904 = vpop.f32.mrb[0].mxu0
      %3905 = vdwg.mxu0
      %s3906 = scalar_lea.vmem %s5, 512
      %v3907 = vld [vmem:[%s3906] sm:$0xff]
      %v3908 = vld [vmem:[%s3906 + $0x8] sm:$0xff]
      %v3909 = vld [vmem:[%s3906 + $0x10] sm:$0xff]
      %v3910 = vld [vmem:[%s3906 + $0x18] sm:$0xff]
      %v3911 = vld [vmem:[%s3906 + $0x20] sm:$0xff]
      %v3912 = vld [vmem:[%s3906 + $0x28] sm:$0xff]
      %v3913 = vld [vmem:[%s3906 + $0x30] sm:$0xff]
      %v3914 = vld [vmem:[%s3906 + $0x38] sm:$0xff]
      %v3915 = vld [vmem:[%s3906 + $0x40] sm:$0xff]
      %v3916 = vld [vmem:[%s3906 + $0x48] sm:$0xff]
      %v3917 = vld [vmem:[%s3906 + $0x50] sm:$0xff]
      %v3918 = vld [vmem:[%s3906 + $0x58] sm:$0xff]
      %v3919 = vld [vmem:[%s3906 + $0x60] sm:$0xff]
      %v3920 = vld [vmem:[%s3906 + $0x68] sm:$0xff]
      %v3921 = vld [vmem:[%s3906 + $0x70] sm:$0xff]
      %v3922 = vld [vmem:[%s3906 + $0x78] sm:$0xff]
      %v3923 = vld [vmem:[%s3906 + $0x80] sm:$0xff]
      %v3924 = vld [vmem:[%s3906 + $0x88] sm:$0xff]
      %v3925 = vld [vmem:[%s3906 + $0x90] sm:$0xff]
      %v3926 = vld [vmem:[%s3906 + $0x98] sm:$0xff]
      %v3927 = vld [vmem:[%s3906 + $0xa0] sm:$0xff]
      %v3928 = vld [vmem:[%s3906 + $0xa8] sm:$0xff]
      %v3929 = vld [vmem:[%s3906 + $0xb0] sm:$0xff]
      %v3930 = vld [vmem:[%s3906 + $0xb8] sm:$0xff]
      %v3931 = vld [vmem:[%s3906 + $0xc0] sm:$0xff]
      %v3932 = vld [vmem:[%s3906 + $0xc8] sm:$0xff]
      %v3933 = vld [vmem:[%s3906 + $0xd0] sm:$0xff]
      %v3934 = vld [vmem:[%s3906 + $0xd8] sm:$0xff]
      %v3935 = vld [vmem:[%s3906 + $0xe0] sm:$0xff]
      %v3936 = vld [vmem:[%s3906 + $0xe8] sm:$0xff]
      %v3937 = vld [vmem:[%s3906 + $0xf0] sm:$0xff]
      %v3938 = vld [vmem:[%s3906 + $0xf8] sm:$0xff]
      %v3971 = vunpack.c.l.b16 %v3907
      %v3972 = vunpack.c.h.b16 %v3907
      %v3973 = vunpack.c.l.b16 %v3908
      %v3974 = vunpack.c.h.b16 %v3908
      %v3975 = vunpack.c.l.b16 %v3909
      %v3976 = vunpack.c.h.b16 %v3909
      %v3977 = vunpack.c.l.b16 %v3910
      %v3978 = vunpack.c.h.b16 %v3910
      %v3979 = vunpack.c.l.b16 %v3911
      %v3980 = vunpack.c.h.b16 %v3911
      %v3981 = vunpack.c.l.b16 %v3912
      %v3982 = vunpack.c.h.b16 %v3912
      %v3983 = vunpack.c.l.b16 %v3913
      %v3984 = vunpack.c.h.b16 %v3913
      %v3985 = vunpack.c.l.b16 %v3914
      %v3986 = vunpack.c.h.b16 %v3914
      %v3987 = vunpack.c.l.b16 %v3915
      %v3988 = vunpack.c.h.b16 %v3915
      %v3989 = vunpack.c.l.b16 %v3916
      %v3990 = vunpack.c.h.b16 %v3916
      %v3991 = vunpack.c.l.b16 %v3917
      %v3992 = vunpack.c.h.b16 %v3917
      %v3993 = vunpack.c.l.b16 %v3918
      %v3994 = vunpack.c.h.b16 %v3918
      %v3995 = vunpack.c.l.b16 %v3919
      %v3996 = vunpack.c.h.b16 %v3919
      %v3997 = vunpack.c.l.b16 %v3920
      %v3998 = vunpack.c.h.b16 %v3920
      %v3999 = vunpack.c.l.b16 %v3921
      %v4000 = vunpack.c.h.b16 %v3921
      %v4001 = vunpack.c.l.b16 %v3922
      %v4002 = vunpack.c.h.b16 %v3922
      %v4003 = vunpack.c.l.b16 %v3923
      %v4004 = vunpack.c.h.b16 %v3923
      %v4005 = vunpack.c.l.b16 %v3924
      %v4006 = vunpack.c.h.b16 %v3924
      %v4007 = vunpack.c.l.b16 %v3925
      %v4008 = vunpack.c.h.b16 %v3925
      %v4009 = vunpack.c.l.b16 %v3926
      %v4010 = vunpack.c.h.b16 %v3926
      %v4011 = vunpack.c.l.b16 %v3927
      %v4012 = vunpack.c.h.b16 %v3927
      %v4013 = vunpack.c.l.b16 %v3928
      %v4014 = vunpack.c.h.b16 %v3928
      %v4015 = vunpack.c.l.b16 %v3929
      %v4016 = vunpack.c.h.b16 %v3929
      %v4017 = vunpack.c.l.b16 %v3930
      %v4018 = vunpack.c.h.b16 %v3930
      %v4019 = vunpack.c.l.b16 %v3931
      %v4020 = vunpack.c.h.b16 %v3931
      %v4021 = vunpack.c.l.b16 %v3932
      %v4022 = vunpack.c.h.b16 %v3932
      %v4023 = vunpack.c.l.b16 %v3933
      %v4024 = vunpack.c.h.b16 %v3933
      %v4025 = vunpack.c.l.b16 %v3934
      %v4026 = vunpack.c.h.b16 %v3934
      %v4027 = vunpack.c.l.b16 %v3935
      %v4028 = vunpack.c.h.b16 %v3935
      %v4029 = vunpack.c.l.b16 %v3936
      %v4030 = vunpack.c.h.b16 %v3936
      %v4031 = vunpack.c.l.b16 %v3937
      %v4032 = vunpack.c.h.b16 %v3937
      %v4033 = vunpack.c.l.b16 %v3938
      %v4034 = vunpack.c.h.b16 %v3938
      %v4035 = vpack.c.b16 %v3973, %v3971
      %v4036 = vpack.c.b16 %v3974, %v3972
      %v4037 = vpack.c.b16 %v3977, %v3975
      %v4038 = vpack.c.b16 %v3978, %v3976
      %v4039 = vpack.c.b16 %v3981, %v3979
      %v4040 = vpack.c.b16 %v3982, %v3980
      %v4041 = vpack.c.b16 %v3985, %v3983
      %v4042 = vpack.c.b16 %v3986, %v3984
      %v4043 = vpack.c.b16 %v3989, %v3987
      %v4044 = vpack.c.b16 %v3990, %v3988
      %v4045 = vpack.c.b16 %v3993, %v3991
      %v4046 = vpack.c.b16 %v3994, %v3992
      %v4047 = vpack.c.b16 %v3997, %v3995
      %v4048 = vpack.c.b16 %v3998, %v3996
      %v4049 = vpack.c.b16 %v4001, %v3999
      %v4050 = vpack.c.b16 %v4002, %v4000
      %v4051 = vpack.c.b16 %v4005, %v4003
      %v4052 = vpack.c.b16 %v4006, %v4004
      %v4053 = vpack.c.b16 %v4009, %v4007
      %v4054 = vpack.c.b16 %v4010, %v4008
      %v4055 = vpack.c.b16 %v4013, %v4011
      %v4056 = vpack.c.b16 %v4014, %v4012
      %v4057 = vpack.c.b16 %v4017, %v4015
      %v4058 = vpack.c.b16 %v4018, %v4016
      %v4059 = vpack.c.b16 %v4021, %v4019
      %v4060 = vpack.c.b16 %v4022, %v4020
      %v4061 = vpack.c.b16 %v4025, %v4023
      %v4062 = vpack.c.b16 %v4026, %v4024
      %v4063 = vpack.c.b16 %v4029, %v4027
      %v4064 = vpack.c.b16 %v4030, %v4028
      %v4065 = vpack.c.b16 %v4033, %v4031
      %v4066 = vpack.c.b16 %v4034, %v4032
      %4099 = vrot.lane.b32.xlu0 %v3151, 64
      %v4100 = vpop.permute.xlu0 %4099
      %4101 = vrot.lane.b32.xlu0 %v3152, 64
      %v4102 = vpop.permute.xlu0 %4101
      %4103 = vrot.lane.b32.xlu0 %v3153, 64
      %v4104 = vpop.permute.xlu0 %4103
      %4105 = vrot.lane.b32.xlu0 %v3154, 64
      %v4106 = vpop.permute.xlu0 %4105
      %4107 = vrot.lane.b32.xlu0 %v3155, 64
      %v4108 = vpop.permute.xlu0 %4107
      %4109 = vrot.lane.b32.xlu0 %v3156, 64
      %v4110 = vpop.permute.xlu0 %4109
      %4111 = vrot.lane.b32.xlu0 %v3157, 64
      %v4112 = vpop.permute.xlu0 %4111
      %4113 = vrot.lane.b32.xlu0 %v3158, 64
      %v4114 = vpop.permute.xlu0 %4113
      %4115 = vrot.lane.b32.xlu0 %v3159, 64
      %v4116 = vpop.permute.xlu0 %4115
      %4117 = vrot.lane.b32.xlu0 %v3160, 64
      %v4118 = vpop.permute.xlu0 %4117
      %4119 = vrot.lane.b32.xlu0 %v3161, 64
      %v4120 = vpop.permute.xlu0 %4119
      %4121 = vrot.lane.b32.xlu0 %v3162, 64
      %v4122 = vpop.permute.xlu0 %4121
      %4123 = vrot.lane.b32.xlu0 %v3163, 64
      %v4124 = vpop.permute.xlu0 %4123
      %4125 = vrot.lane.b32.xlu0 %v3164, 64
      %v4126 = vpop.permute.xlu0 %4125
      %4127 = vrot.lane.b32.xlu0 %v3165, 64
      %v4128 = vpop.permute.xlu0 %4127
      %4129 = vrot.lane.b32.xlu0 %v3166, 64
      %v4130 = vpop.permute.xlu0 %4129
      %4147 = vmatprep.subr.bf16.mxu0 0
      %4148 = vmatpush1.bf16.msra.mxu0 %v4100
      %4149 = vmatprep.subr.bf16.mxu0 0
      %4150 = vmatpush1.bf16.msra.mxu0 %v4102
      %4151 = vmatprep.subr.bf16.mxu0 0
      %4152 = vmatpush1.bf16.msra.mxu0 %v4104
      %4153 = vmatprep.subr.bf16.mxu0 0
      %4154 = vmatpush1.bf16.msra.mxu0 %v4106
      %4155 = vmatprep.subr.bf16.mxu0 0
      %4156 = vmatpush1.bf16.msra.mxu0 %v4108
      %4157 = vmatprep.subr.bf16.mxu0 0
      %4158 = vmatpush1.bf16.msra.mxu0 %v4110
      %4159 = vmatprep.subr.bf16.mxu0 0
      %4160 = vmatpush1.bf16.msra.mxu0 %v4112
      %4161 = vmatprep.subr.bf16.mxu0 0
      %4162 = vmatpush1.bf16.msra.mxu0 %v4114
      %4163 = vmatprep.subr.bf16.mxu0 0
      %4164 = vmatpush1.bf16.msra.mxu0 %v4116
      %4165 = vmatprep.subr.bf16.mxu0 0
      %4166 = vmatpush1.bf16.msra.mxu0 %v4118
      %4167 = vmatprep.subr.bf16.mxu0 0
      %4168 = vmatpush1.bf16.msra.mxu0 %v4120
      %4169 = vmatprep.subr.bf16.mxu0 0
      %4170 = vmatpush1.bf16.msra.mxu0 %v4122
      %4171 = vmatprep.subr.bf16.mxu0 0
      %4172 = vmatpush1.bf16.msra.mxu0 %v4124
      %4173 = vmatprep.subr.bf16.mxu0 0
      %4174 = vmatpush1.bf16.msra.mxu0 %v4126
      %4175 = vmatprep.subr.bf16.mxu0 0
      %4176 = vmatpush1.bf16.msra.mxu0 %v4128
      %4177 = vmatprep.subr.bf16.mxu0 0
      %4178 = vmatpush1.bf16.msra.mxu0 %v4130
      %4179 = vmatprep.mubr.bf16.mxu0 %v4036
      %4180 = vmatmul.mubr.bf16.gmra.mrb[0].mxu0 %v4035
      %v4181 = vpop.f32.mrb[0].mxu0
      %v4182 = vadd.f32 0.0, %v4181
      %v4183 = vpop.f32.mrb[0].mxu0
      %v4184 = vpop.f32.mrb[0].mxu0
      %v4185 = vadd.f32 0.0, %v4184
      %v4186 = vpop.f32.mrb[0].mxu0
      %4187 = vmatprep.mubr.bf16.mxu0 %v4038
      %4188 = vmatmul.mubr.bf16.gmra.mrb[0].mxu0 %v4037
      %v4189 = vpop.f32.mrb[0].mxu0
      %v4190 = vadd.f32 0.0, %v4189
      %v4191 = vpop.f32.mrb[0].mxu0
      %v4192 = vpop.f32.mrb[0].mxu0
      %v4193 = vadd.f32 0.0, %v4192
      %v4194 = vpop.f32.mrb[0].mxu0
      %4195 = vmatprep.mubr.bf16.mxu0 %v4040
      %4196 = vmatmul.mubr.bf16.gmra.mrb[0].mxu0 %v4039
      %v4197 = vpop.f32.mrb[0].mxu0
      %v4198 = vadd.f32 0.0, %v4197
      %v4199 = vpop.f32.mrb[0].mxu0
      %v4200 = vpop.f32.mrb[0].mxu0
      %v4201 = vadd.f32 0.0, %v4200
      %v4202 = vpop.f32.mrb[0].mxu0
      %4203 = vmatprep.mubr.bf16.mxu0 %v4042
      %4204 = vmatmul.mubr.bf16.gmra.mrb[0].mxu0 %v4041
      %v4205 = vpop.f32.mrb[0].mxu0
      %v4206 = vadd.f32 0.0, %v4205
      %v4207 = vpop.f32.mrb[0].mxu0
      %v4208 = vpop.f32.mrb[0].mxu0
      %v4209 = vadd.f32 0.0, %v4208
      %v4210 = vpop.f32.mrb[0].mxu0
      %4211 = vmatprep.mubr.bf16.mxu0 %v4044
      %4212 = vmatmul.mubr.bf16.gmra.mrb[0].mxu0 %v4043
      %v4213 = vpop.f32.mrb[0].mxu0
      %v4214 = vadd.f32 0.0, %v4213
      %v4215 = vpop.f32.mrb[0].mxu0
      %v4216 = vpop.f32.mrb[0].mxu0
      %v4217 = vadd.f32 0.0, %v4216
      %v4218 = vpop.f32.mrb[0].mxu0
      %4219 = vmatprep.mubr.bf16.mxu0 %v4046
      %4220 = vmatmul.mubr.bf16.gmra.mrb[0].mxu0 %v4045
      %v4221 = vpop.f32.mrb[0].mxu0
      %v4222 = vadd.f32 0.0, %v4221
      %v4223 = vpop.f32.mrb[0].mxu0
      %v4224 = vpop.f32.mrb[0].mxu0
      %v4225 = vadd.f32 0.0, %v4224
      %v4226 = vpop.f32.mrb[0].mxu0
      %4227 = vmatprep.mubr.bf16.mxu0 %v4048
      %4228 = vmatmul.mubr.bf16.gmra.mrb[0].mxu0 %v4047
      %v4229 = vpop.f32.mrb[0].mxu0
      %v4230 = vadd.f32 0.0, %v4229
      %v4231 = vpop.f32.mrb[0].mxu0
      %v4232 = vpop.f32.mrb[0].mxu0
      %v4233 = vadd.f32 0.0, %v4232
      %v4234 = vpop.f32.mrb[0].mxu0
      %4235 = vmatprep.mubr.bf16.mxu0 %v4050
      %4236 = vmatmul.mubr.bf16.gmra.mrb[0].mxu0 %v4049
      %v4237 = vpop.f32.mrb[0].mxu0
      %v4238 = vadd.f32 0.0, %v4237
      %v4239 = vpop.f32.mrb[0].mxu0
      %v4240 = vpop.f32.mrb[0].mxu0
      %v4241 = vadd.f32 0.0, %v4240
      %v4242 = vpop.f32.mrb[0].mxu0
      %4243 = vmatprep.mubr.bf16.mxu0 %v4052
      %4244 = vmatmul.mubr.bf16.gmra.mrb[0].mxu0 %v4051
      %v4245 = vpop.f32.mrb[0].mxu0
      %v4246 = vadd.f32 0.0, %v4245
      %v4247 = vpop.f32.mrb[0].mxu0
      %v4248 = vpop.f32.mrb[0].mxu0
      %v4249 = vadd.f32 0.0, %v4248
      %v4250 = vpop.f32.mrb[0].mxu0
      %4251 = vmatprep.mubr.bf16.mxu0 %v4054
      %4252 = vmatmul.mubr.bf16.gmra.mrb[0].mxu0 %v4053
      %v4253 = vpop.f32.mrb[0].mxu0
      %v4254 = vadd.f32 0.0, %v4253
      %v4255 = vpop.f32.mrb[0].mxu0
      %v4256 = vpop.f32.mrb[0].mxu0
      %v4257 = vadd.f32 0.0, %v4256
      %v4258 = vpop.f32.mrb[0].mxu0
      %4259 = vmatprep.mubr.bf16.mxu0 %v4056
      %4260 = vmatmul.mubr.bf16.gmra.mrb[0].mxu0 %v4055
      %v4261 = vpop.f32.mrb[0].mxu0
      %v4262 = vadd.f32 0.0, %v4261
      %v4263 = vpop.f32.mrb[0].mxu0
      %v4264 = vpop.f32.mrb[0].mxu0
      %v4265 = vadd.f32 0.0, %v4264
      %v4266 = vpop.f32.mrb[0].mxu0
      %4267 = vmatprep.mubr.bf16.mxu0 %v4058
      %4268 = vmatmul.mubr.bf16.gmra.mrb[0].mxu0 %v4057
      %v4269 = vpop.f32.mrb[0].mxu0
      %v4270 = vadd.f32 0.0, %v4269
      %v4271 = vpop.f32.mrb[0].mxu0
      %v4272 = vpop.f32.mrb[0].mxu0
      %v4273 = vadd.f32 0.0, %v4272
      %v4274 = vpop.f32.mrb[0].mxu0
      %4275 = vmatprep.mubr.bf16.mxu0 %v4060
      %4276 = vmatmul.mubr.bf16.gmra.mrb[0].mxu0 %v4059
      %v4277 = vpop.f32.mrb[0].mxu0
      %v4278 = vadd.f32 0.0, %v4277
      %v4279 = vpop.f32.mrb[0].mxu0
      %v4280 = vpop.f32.mrb[0].mxu0
      %v4281 = vadd.f32 0.0, %v4280
      %v4282 = vpop.f32.mrb[0].mxu0
      %4283 = vmatprep.mubr.bf16.mxu0 %v4062
      %4284 = vmatmul.mubr.bf16.gmra.mrb[0].mxu0 %v4061
      %v4285 = vpop.f32.mrb[0].mxu0
      %v4286 = vadd.f32 0.0, %v4285
      %v4287 = vpop.f32.mrb[0].mxu0
      %v4288 = vpop.f32.mrb[0].mxu0
      %v4289 = vadd.f32 0.0, %v4288
      %v4290 = vpop.f32.mrb[0].mxu0
      %4291 = vmatprep.mubr.bf16.mxu0 %v4064
      %4292 = vmatmul.mubr.bf16.gmra.mrb[0].mxu0 %v4063
      %v4293 = vpop.f32.mrb[0].mxu0
      %v4294 = vadd.f32 0.0, %v4293
      %v4295 = vpop.f32.mrb[0].mxu0
      %v4296 = vpop.f32.mrb[0].mxu0
      %v4297 = vadd.f32 0.0, %v4296
      %v4298 = vpop.f32.mrb[0].mxu0
      %4299 = vmatprep.mubr.bf16.mxu0 %v4066
      %4300 = vmatmul.mubr.bf16.gmra.mrb[0].mxu0 %v4065
      %v4301 = vpop.f32.mrb[0].mxu0
      %v4302 = vadd.f32 0.0, %v4301
      %v4303 = vpop.f32.mrb[0].mxu0
      %v4304 = vpop.f32.mrb[0].mxu0
      %v4305 = vadd.f32 0.0, %v4304
      %v4306 = vpop.f32.mrb[0].mxu0
      %4307 = vdwg.mxu0
      %v4308 = vadd.f32 %v3780, %v4182
      %v4309 = vadd.f32 %v3783, %v4185
      %v4310 = vadd.f32 %v3788, %v4190
      %v4311 = vadd.f32 %v3791, %v4193
      %v4312 = vadd.f32 %v3796, %v4198
      %v4313 = vadd.f32 %v3799, %v4201
      %v4314 = vadd.f32 %v3804, %v4206
      %v4315 = vadd.f32 %v3807, %v4209
      %v4316 = vadd.f32 %v3812, %v4214
      %v4317 = vadd.f32 %v3815, %v4217
      %v4318 = vadd.f32 %v3820, %v4222
      %v4319 = vadd.f32 %v3823, %v4225
      %v4320 = vadd.f32 %v3828, %v4230
      %v4321 = vadd.f32 %v3831, %v4233
      %v4322 = vadd.f32 %v3836, %v4238
      %v4323 = vadd.f32 %v3839, %v4241
      %v4324 = vadd.f32 %v3844, %v4246
      %v4325 = vadd.f32 %v3847, %v4249
      %v4326 = vadd.f32 %v3852, %v4254
      %v4327 = vadd.f32 %v3855, %v4257
      %v4328 = vadd.f32 %v3860, %v4262
      %v4329 = vadd.f32 %v3863, %v4265
      %v4330 = vadd.f32 %v3868, %v4270
      %v4331 = vadd.f32 %v3871, %v4273
      %v4332 = vadd.f32 %v3876, %v4278
      %v4333 = vadd.f32 %v3879, %v4281
      %v4334 = vadd.f32 %v3884, %v4286
      %v4335 = vadd.f32 %v3887, %v4289
      %v4336 = vadd.f32 %v3892, %v4294
      %v4337 = vadd.f32 %v3895, %v4297
      %v4338 = vadd.f32 %v3900, %v4302
      %v4339 = vadd.f32 %v3903, %v4305
      %s4340 = scalar_lea.vmem %s5, 768
      %v4341 = vld [vmem:[%s4340] sm:$0xff]
      %v4342 = vld [vmem:[%s4340 + $0x8] sm:$0xff]
      %v4343 = vld [vmem:[%s4340 + $0x10] sm:$0xff]
      %v4344 = vld [vmem:[%s4340 + $0x18] sm:$0xff]
      %v4345 = vld [vmem:[%s4340 + $0x20] sm:$0xff]
      %v4346 = vld [vmem:[%s4340 + $0x28] sm:$0xff]
      %v4347 = vld [vmem:[%s4340 + $0x30] sm:$0xff]
      %v4348 = vld [vmem:[%s4340 + $0x38] sm:$0xff]
      %v4349 = vld [vmem:[%s4340 + $0x40] sm:$0xff]
      %v4350 = vld [vmem:[%s4340 + $0x48] sm:$0xff]
      %v4351 = vld [vmem:[%s4340 + $0x50] sm:$0xff]
      %v4352 = vld [vmem:[%s4340 + $0x58] sm:$0xff]
      %v4353 = vld [vmem:[%s4340 + $0x60] sm:$0xff]
      %v4354 = vld [vmem:[%s4340 + $0x68] sm:$0xff]
      %v4355 = vld [vmem:[%s4340 + $0x70] sm:$0xff]
      %v4356 = vld [vmem:[%s4340 + $0x78] sm:$0xff]
      %v4357 = vld [vmem:[%s4340 + $0x80] sm:$0xff]
      %v4358 = vld [vmem:[%s4340 + $0x88] sm:$0xff]
      %v4359 = vld [vmem:[%s4340 + $0x90] sm:$0xff]
      %v4360 = vld [vmem:[%s4340 + $0x98] sm:$0xff]
      %v4361 = vld [vmem:[%s4340 + $0xa0] sm:$0xff]
      %v4362 = vld [vmem:[%s4340 + $0xa8] sm:$0xff]
      %v4363 = vld [vmem:[%s4340 + $0xb0] sm:$0xff]
      %v4364 = vld [vmem:[%s4340 + $0xb8] sm:$0xff]
      %v4365 = vld [vmem:[%s4340 + $0xc0] sm:$0xff]
      %v4366 = vld [vmem:[%s4340 + $0xc8] sm:$0xff]
      %v4367 = vld [vmem:[%s4340 + $0xd0] sm:$0xff]
      %v4368 = vld [vmem:[%s4340 + $0xd8] sm:$0xff]
      %v4369 = vld [vmem:[%s4340 + $0xe0] sm:$0xff]
      %v4370 = vld [vmem:[%s4340 + $0xe8] sm:$0xff]
      %v4371 = vld [vmem:[%s4340 + $0xf0] sm:$0xff]
      %v4372 = vld [vmem:[%s4340 + $0xf8] sm:$0xff]
      %v4405 = vunpack.c.l.b16 %v4341
      %v4406 = vunpack.c.h.b16 %v4341
      %v4407 = vunpack.c.l.b16 %v4342
      %v4408 = vunpack.c.h.b16 %v4342
      %v4409 = vunpack.c.l.b16 %v4343
      %v4410 = vunpack.c.h.b16 %v4343
      %v4411 = vunpack.c.l.b16 %v4344
      %v4412 = vunpack.c.h.b16 %v4344
      %v4413 = vunpack.c.l.b16 %v4345
      %v4414 = vunpack.c.h.b16 %v4345
      %v4415 = vunpack.c.l.b16 %v4346
      %v4416 = vunpack.c.h.b16 %v4346
      %v4417 = vunpack.c.l.b16 %v4347
      %v4418 = vunpack.c.h.b16 %v4347
      %v4419 = vunpack.c.l.b16 %v4348
      %v4420 = vunpack.c.h.b16 %v4348
      %v4421 = vunpack.c.l.b16 %v4349
      %v4422 = vunpack.c.h.b16 %v4349
      %v4423 = vunpack.c.l.b16 %v4350
      %v4424 = vunpack.c.h.b16 %v4350
      %v4425 = vunpack.c.l.b16 %v4351
      %v4426 = vunpack.c.h.b16 %v4351
      %v4427 = vunpack.c.l.b16 %v4352
      %v4428 = vunpack.c.h.b16 %v4352
      %v4429 = vunpack.c.l.b16 %v4353
      %v4430 = vunpack.c.h.b16 %v4353
      %v4431 = vunpack.c.l.b16 %v4354
      %v4432 = vunpack.c.h.b16 %v4354
      %v4433 = vunpack.c.l.b16 %v4355
      %v4434 = vunpack.c.h.b16 %v4355
      %v4435 = vunpack.c.l.b16 %v4356
      %v4436 = vunpack.c.h.b16 %v4356
      %v4437 = vunpack.c.l.b16 %v4357
      %v4438 = vunpack.c.h.b16 %v4357
      %v4439 = vunpack.c.l.b16 %v4358
      %v4440 = vunpack.c.h.b16 %v4358
      %v4441 = vunpack.c.l.b16 %v4359
      %v4442 = vunpack.c.h.b16 %v4359
      %v4443 = vunpack.c.l.b16 %v4360
      %v4444 = vunpack.c.h.b16 %v4360
      %v4445 = vunpack.c.l.b16 %v4361
      %v4446 = vunpack.c.h.b16 %v4361
      %v4447 = vunpack.c.l.b16 %v4362
      %v4448 = vunpack.c.h.b16 %v4362
      %v4449 = vunpack.c.l.b16 %v4363
      %v4450 = vunpack.c.h.b16 %v4363
      %v4451 = vunpack.c.l.b16 %v4364
      %v4452 = vunpack.c.h.b16 %v4364
      %v4453 = vunpack.c.l.b16 %v4365
      %v4454 = vunpack.c.h.b16 %v4365
      %v4455 = vunpack.c.l.b16 %v4366
      %v4456 = vunpack.c.h.b16 %v4366
      %v4457 = vunpack.c.l.b16 %v4367
      %v4458 = vunpack.c.h.b16 %v4367
      %v4459 = vunpack.c.l.b16 %v4368
      %v4460 = vunpack.c.h.b16 %v4368
      %v4461 = vunpack.c.l.b16 %v4369
      %v4462 = vunpack.c.h.b16 %v4369
      %v4463 = vunpack.c.l.b16 %v4370
      %v4464 = vunpack.c.h.b16 %v4370
      %v4465 = vunpack.c.l.b16 %v4371
      %v4466 = vunpack.c.h.b16 %v4371
      %v4467 = vunpack.c.l.b16 %v4372
      %v4468 = vunpack.c.h.b16 %v4372
      %v4469 = vpack.c.b16 %v4407, %v4405
      %v4470 = vpack.c.b16 %v4408, %v4406
      %v4471 = vpack.c.b16 %v4411, %v4409
      %v4472 = vpack.c.b16 %v4412, %v4410
      %v4473 = vpack.c.b16 %v4415, %v4413
      %v4474 = vpack.c.b16 %v4416, %v4414
      %v4475 = vpack.c.b16 %v4419, %v4417
      %v4476 = vpack.c.b16 %v4420, %v4418
      %v4477 = vpack.c.b16 %v4423, %v4421
      %v4478 = vpack.c.b16 %v4424, %v4422
      %v4479 = vpack.c.b16 %v4427, %v4425
      %v4480 = vpack.c.b16 %v4428, %v4426
      %v4481 = vpack.c.b16 %v4431, %v4429
      %v4482 = vpack.c.b16 %v4432, %v4430
      %v4483 = vpack.c.b16 %v4435, %v4433
      %v4484 = vpack.c.b16 %v4436, %v4434
      %v4485 = vpack.c.b16 %v4439, %v4437
      %v4486 = vpack.c.b16 %v4440, %v4438
      %v4487 = vpack.c.b16 %v4443, %v4441
      %v4488 = vpack.c.b16 %v4444, %v4442
      %v4489 = vpack.c.b16 %v4447, %v4445
      %v4490 = vpack.c.b16 %v4448, %v4446
      %v4491 = vpack.c.b16 %v4451, %v4449
      %v4492 = vpack.c.b16 %v4452, %v4450
      %v4493 = vpack.c.b16 %v4455, %v4453
      %v4494 = vpack.c.b16 %v4456, %v4454
      %v4495 = vpack.c.b16 %v4459, %v4457
      %v4496 = vpack.c.b16 %v4460, %v4458
      %v4497 = vpack.c.b16 %v4463, %v4461
      %v4498 = vpack.c.b16 %v4464, %v4462
      %v4499 = vpack.c.b16 %v4467, %v4465
      %v4500 = vpack.c.b16 %v4468, %v4466
      %4533 = vrot.lane.b32.xlu0 %v3151, 32
      %v4534 = vpop.permute.xlu0 %4533
      %4535 = vrot.lane.b32.xlu0 %v3152, 32
      %v4536 = vpop.permute.xlu0 %4535
      %4537 = vrot.lane.b32.xlu0 %v3153, 32
      %v4538 = vpop.permute.xlu0 %4537
      %4539 = vrot.lane.b32.xlu0 %v3154, 32
      %v4540 = vpop.permute.xlu0 %4539
      %4541 = vrot.lane.b32.xlu0 %v3155, 32
      %v4542 = vpop.permute.xlu0 %4541
      %4543 = vrot.lane.b32.xlu0 %v3156, 32
      %v4544 = vpop.permute.xlu0 %4543
      %4545 = vrot.lane.b32.xlu0 %v3157, 32
      %v4546 = vpop.permute.xlu0 %4545
      %4547 = vrot.lane.b32.xlu0 %v3158, 32
      %v4548 = vpop.permute.xlu0 %4547
      %4549 = vrot.lane.b32.xlu0 %v3159, 32
      %v4550 = vpop.permute.xlu0 %4549
      %4551 = vrot.lane.b32.xlu0 %v3160, 32
      %v4552 = vpop.permute.xlu0 %4551
      %4553 = vrot.lane.b32.xlu0 %v3161, 32
      %v4554 = vpop.permute.xlu0 %4553
      %4555 = vrot.lane.b32.xlu0 %v3162, 32
      %v4556 = vpop.permute.xlu0 %4555
      %4557 = vrot.lane.b32.xlu0 %v3163, 32
      %v4558 = vpop.permute.xlu0 %4557
      %4559 = vrot.lane.b32.xlu0 %v3164, 32
      %v4560 = vpop.permute.xlu0 %4559
      %4561 = vrot.lane.b32.xlu0 %v3165, 32
      %v4562 = vpop.permute.xlu0 %4561
      %4563 = vrot.lane.b32.xlu0 %v3166, 32
      %v4564 = vpop.permute.xlu0 %4563
      %4581 = vmatprep.subr.bf16.mxu0 0
      %4582 = vmatpush1.bf16.msra.mxu0 %v4534
      %4583 = vmatprep.subr.bf16.mxu0 0
      %4584 = vmatpush1.bf16.msra.mxu0 %v4536
      %4585 = vmatprep.subr.bf16.mxu0 0
      %4586 = vmatpush1.bf16.msra.mxu0 %v4538
      %4587 = vmatprep.subr.bf16.mxu0 0
      %4588 = vmatpush1.bf16.msra.mxu0 %v4540
      %4589 = vmatprep.subr.bf16.mxu0 0
      %4590 = vmatpush1.bf16.msra.mxu0 %v4542
      %4591 = vmatprep.subr.bf16.mxu0 0
      %4592 = vmatpush1.bf16.msra.mxu0 %v4544
      %4593 = vmatprep.subr.bf16.mxu0 0
      %4594 = vmatpush1.bf16.msra.mxu0 %v4546
      %4595 = vmatprep.subr.bf16.mxu0 0
      %4596 = vmatpush1.bf16.msra.mxu0 %v4548
      %4597 = vmatprep.subr.bf16.mxu0 0
      %4598 = vmatpush1.bf16.msra.mxu0 %v4550
      %4599 = vmatprep.subr.bf16.mxu0 0
      %4600 = vmatpush1.bf16.msra.mxu0 %v4552
      %4601 = vmatprep.subr.bf16.mxu0 0
      %4602 = vmatpush1.bf16.msra.mxu0 %v4554
      %4603 = vmatprep.subr.bf16.mxu0 0
      %4604 = vmatpush1.bf16.msra.mxu0 %v4556
      %4605 = vmatprep.subr.bf16.mxu0 0
      %4606 = vmatpush1.bf16.msra.mxu0 %v4558
      %4607 = vmatprep.subr.bf16.mxu0 0
      %4608 = vmatpush1.bf16.msra.mxu0 %v4560
      %4609 = vmatprep.subr.bf16.mxu0 0
      %4610 = vmatpush1.bf16.msra.mxu0 %v4562
      %4611 = vmatprep.subr.bf16.mxu0 0
      %4612 = vmatpush1.bf16.msra.mxu0 %v4564
      %4613 = vmatprep.mubr.bf16.mxu0 %v4470
      %4614 = vmatmul.mubr.bf16.gmra.mrb[0].mxu0 %v4469
      %v4615 = vpop.f32.mrb[0].mxu0
      %v4616 = vadd.f32 0.0, %v4615
      %v4617 = vpop.f32.mrb[0].mxu0
      %v4618 = vpop.f32.mrb[0].mxu0
      %v4619 = vadd.f32 0.0, %v4618
      %v4620 = vpop.f32.mrb[0].mxu0
      %4621 = vmatprep.mubr.bf16.mxu0 %v4472
      %4622 = vmatmul.mubr.bf16.gmra.mrb[0].mxu0 %v4471
      %v4623 = vpop.f32.mrb[0].mxu0
      %v4624 = vadd.f32 0.0, %v4623
      %v4625 = vpop.f32.mrb[0].mxu0
      %v4626 = vpop.f32.mrb[0].mxu0
      %v4627 = vadd.f32 0.0, %v4626
      %v4628 = vpop.f32.mrb[0].mxu0
      %4629 = vmatprep.mubr.bf16.mxu0 %v4474
      %4630 = vmatmul.mubr.bf16.gmra.mrb[0].mxu0 %v4473
      %v4631 = vpop.f32.mrb[0].mxu0
      %v4632 = vadd.f32 0.0, %v4631
      %v4633 = vpop.f32.mrb[0].mxu0
      %v4634 = vpop.f32.mrb[0].mxu0
      %v4635 = vadd.f32 0.0, %v4634
      %v4636 = vpop.f32.mrb[0].mxu0
      %4637 = vmatprep.mubr.bf16.mxu0 %v4476
      %4638 = vmatmul.mubr.bf16.gmra.mrb[0].mxu0 %v4475
      %v4639 = vpop.f32.mrb[0].mxu0
      %v4640 = vadd.f32 0.0, %v4639
      %v4641 = vpop.f32.mrb[0].mxu0
      %v4642 = vpop.f32.mrb[0].mxu0
      %v4643 = vadd.f32 0.0, %v4642
      %v4644 = vpop.f32.mrb[0].mxu0
      %4645 = vmatprep.mubr.bf16.mxu0 %v4478
      %4646 = vmatmul.mubr.bf16.gmra.mrb[0].mxu0 %v4477
      %v4647 = vpop.f32.mrb[0].mxu0
      %v4648 = vadd.f32 0.0, %v4647
      %v4649 = vpop.f32.mrb[0].mxu0
      %v4650 = vpop.f32.mrb[0].mxu0
      %v4651 = vadd.f32 0.0, %v4650
      %v4652 = vpop.f32.mrb[0].mxu0
      %4653 = vmatprep.mubr.bf16.mxu0 %v4480
      %4654 = vmatmul.mubr.bf16.gmra.mrb[0].mxu0 %v4479
      %v4655 = vpop.f32.mrb[0].mxu0
      %v4656 = vadd.f32 0.0, %v4655
      %v4657 = vpop.f32.mrb[0].mxu0
      %v4658 = vpop.f32.mrb[0].mxu0
      %v4659 = vadd.f32 0.0, %v4658
      %v4660 = vpop.f32.mrb[0].mxu0
      %4661 = vmatprep.mubr.bf16.mxu0 %v4482
      %4662 = vmatmul.mubr.bf16.gmra.mrb[0].mxu0 %v4481
      %v4663 = vpop.f32.mrb[0].mxu0
      %v4664 = vadd.f32 0.0, %v4663
      %v4665 = vpop.f32.mrb[0].mxu0
      %v4666 = vpop.f32.mrb[0].mxu0
      %v4667 = vadd.f32 0.0, %v4666
      %v4668 = vpop.f32.mrb[0].mxu0
      %4669 = vmatprep.mubr.bf16.mxu0 %v4484
      %4670 = vmatmul.mubr.bf16.gmra.mrb[0].mxu0 %v4483
      %v4671 = vpop.f32.mrb[0].mxu0
      %v4672 = vadd.f32 0.0, %v4671
      %v4673 = vpop.f32.mrb[0].mxu0
      %v4674 = vpop.f32.mrb[0].mxu0
      %v4675 = vadd.f32 0.0, %v4674
      %v4676 = vpop.f32.mrb[0].mxu0
      %4677 = vmatprep.mubr.bf16.mxu0 %v4486
      %4678 = vmatmul.mubr.bf16.gmra.mrb[0].mxu0 %v4485
      %v4679 = vpop.f32.mrb[0].mxu0
      %v4680 = vadd.f32 0.0, %v4679
      %v4681 = vpop.f32.mrb[0].mxu0
      %v4682 = vpop.f32.mrb[0].mxu0
      %v4683 = vadd.f32 0.0, %v4682
      %v4684 = vpop.f32.mrb[0].mxu0
      %4685 = vmatprep.mubr.bf16.mxu0 %v4488
      %4686 = vmatmul.mubr.bf16.gmra.mrb[0].mxu0 %v4487
      %v4687 = vpop.f32.mrb[0].mxu0
      %v4688 = vadd.f32 0.0, %v4687
      %v4689 = vpop.f32.mrb[0].mxu0
      %v4690 = vpop.f32.mrb[0].mxu0
      %v4691 = vadd.f32 0.0, %v4690
      %v4692 = vpop.f32.mrb[0].mxu0
      %4693 = vmatprep.mubr.bf16.mxu0 %v4490
      %4694 = vmatmul.mubr.bf16.gmra.mrb[0].mxu0 %v4489
      %v4695 = vpop.f32.mrb[0].mxu0
      %v4696 = vadd.f32 0.0, %v4695
      %v4697 = vpop.f32.mrb[0].mxu0
      %v4698 = vpop.f32.mrb[0].mxu0
      %v4699 = vadd.f32 0.0, %v4698
      %v4700 = vpop.f32.mrb[0].mxu0
      %4701 = vmatprep.mubr.bf16.mxu0 %v4492
      %4702 = vmatmul.mubr.bf16.gmra.mrb[0].mxu0 %v4491
      %v4703 = vpop.f32.mrb[0].mxu0
      %v4704 = vadd.f32 0.0, %v4703
      %v4705 = vpop.f32.mrb[0].mxu0
      %v4706 = vpop.f32.mrb[0].mxu0
      %v4707 = vadd.f32 0.0, %v4706
      %v4708 = vpop.f32.mrb[0].mxu0
      %4709 = vmatprep.mubr.bf16.mxu0 %v4494
      %4710 = vmatmul.mubr.bf16.gmra.mrb[0].mxu0 %v4493
      %v4711 = vpop.f32.mrb[0].mxu0
      %v4712 = vadd.f32 0.0, %v4711
      %v4713 = vpop.f32.mrb[0].mxu0
      %v4714 = vpop.f32.mrb[0].mxu0
      %v4715 = vadd.f32 0.0, %v4714
      %v4716 = vpop.f32.mrb[0].mxu0
      %4717 = vmatprep.mubr.bf16.mxu0 %v4496
      %4718 = vmatmul.mubr.bf16.gmra.mrb[0].mxu0 %v4495
      %v4719 = vpop.f32.mrb[0].mxu0
      %v4720 = vadd.f32 0.0, %v4719
      %v4721 = vpop.f32.mrb[0].mxu0
      %v4722 = vpop.f32.mrb[0].mxu0
      %v4723 = vadd.f32 0.0, %v4722
      %v4724 = vpop.f32.mrb[0].mxu0
      %4725 = vmatprep.mubr.bf16.mxu0 %v4498
      %4726 = vmatmul.mubr.bf16.gmra.mrb[0].mxu0 %v4497
      %v4727 = vpop.f32.mrb[0].mxu0
      %v4728 = vadd.f32 0.0, %v4727
      %v4729 = vpop.f32.mrb[0].mxu0
      %v4730 = vpop.f32.mrb[0].mxu0
      %v4731 = vadd.f32 0.0, %v4730
      %v4732 = vpop.f32.mrb[0].mxu0
      %4733 = vmatprep.mubr.bf16.mxu0 %v4500
      %4734 = vmatmul.mubr.bf16.gmra.mrb[0].mxu0 %v4499
      %v4735 = vpop.f32.mrb[0].mxu0
      %v4736 = vadd.f32 0.0, %v4735
      %v4737 = vpop.f32.mrb[0].mxu0
      %v4738 = vpop.f32.mrb[0].mxu0
      %v4739 = vadd.f32 0.0, %v4738
      %v4740 = vpop.f32.mrb[0].mxu0
      %4741 = vdwg.mxu0
      %v4742 = vadd.f32 %v4308, %v4616
      %v4743 = vadd.f32 %v4309, %v4619
      %v4744 = vadd.f32 %v4310, %v4624
      %v4745 = vadd.f32 %v4311, %v4627
      %v4746 = vadd.f32 %v4312, %v4632
      %v4747 = vadd.f32 %v4313, %v4635
      %v4748 = vadd.f32 %v4314, %v4640
      %v4749 = vadd.f32 %v4315, %v4643
      %v4750 = vadd.f32 %v4316, %v4648
      %v4751 = vadd.f32 %v4317, %v4651
      %v4752 = vadd.f32 %v4318, %v4656
      %v4753 = vadd.f32 %v4319, %v4659
      %v4754 = vadd.f32 %v4320, %v4664
      %v4755 = vadd.f32 %v4321, %v4667
      %v4756 = vadd.f32 %v4322, %v4672
      %v4757 = vadd.f32 %v4323, %v4675
      %v4758 = vadd.f32 %v4324, %v4680
      %v4759 = vadd.f32 %v4325, %v4683
      %v4760 = vadd.f32 %v4326, %v4688
      %v4761 = vadd.f32 %v4327, %v4691
      %v4762 = vadd.f32 %v4328, %v4696
      %v4763 = vadd.f32 %v4329, %v4699
      %v4764 = vadd.f32 %v4330, %v4704
      %v4765 = vadd.f32 %v4331, %v4707
      %v4766 = vadd.f32 %v4332, %v4712
      %v4767 = vadd.f32 %v4333, %v4715
      %v4768 = vadd.f32 %v4334, %v4720
      %v4769 = vadd.f32 %v4335, %v4723
      %v4770 = vadd.f32 %v4336, %v4728
      %v4771 = vadd.f32 %v4337, %v4731
      %v4772 = vadd.f32 %v4338, %v4736
      %v4773 = vadd.f32 %v4339, %v4739
      %s4774 = scalar_lea.vmem %s5, 1024
      %v4775 = vld [vmem:[%s4774] sm:$0xff]
      %v4776 = vld [vmem:[%s4774 + $0x8] sm:$0xff]
      %v4777 = vld [vmem:[%s4774 + $0x10] sm:$0xff]
      %v4778 = vld [vmem:[%s4774 + $0x18] sm:$0xff]
      %v4779 = vld [vmem:[%s4774 + $0x20] sm:$0xff]
      %v4780 = vld [vmem:[%s4774 + $0x28] sm:$0xff]
      %v4781 = vld [vmem:[%s4774 + $0x30] sm:$0xff]
      %v4782 = vld [vmem:[%s4774 + $0x38] sm:$0xff]
      %v4783 = vld [vmem:[%s4774 + $0x40] sm:$0xff]
      %v4784 = vld [vmem:[%s4774 + $0x48] sm:$0xff]
      %v4785 = vld [vmem:[%s4774 + $0x50] sm:$0xff]
      %v4786 = vld [vmem:[%s4774 + $0x58] sm:$0xff]
      %v4787 = vld [vmem:[%s4774 + $0x60] sm:$0xff]
      %v4788 = vld [vmem:[%s4774 + $0x68] sm:$0xff]
      %v4789 = vld [vmem:[%s4774 + $0x70] sm:$0xff]
      %v4790 = vld [vmem:[%s4774 + $0x78] sm:$0xff]
      %v4791 = vld [vmem:[%s4774 + $0x80] sm:$0xff]
      %v4792 = vld [vmem:[%s4774 + $0x88] sm:$0xff]
      %v4793 = vld [vmem:[%s4774 + $0x90] sm:$0xff]
      %v4794 = vld [vmem:[%s4774 + $0x98] sm:$0xff]
      %v4795 = vld [vmem:[%s4774 + $0xa0] sm:$0xff]
      %v4796 = vld [vmem:[%s4774 + $0xa8] sm:$0xff]
      %v4797 = vld [vmem:[%s4774 + $0xb0] sm:$0xff]
      %v4798 = vld [vmem:[%s4774 + $0xb8] sm:$0xff]
      %v4799 = vld [vmem:[%s4774 + $0xc0] sm:$0xff]
      %v4800 = vld [vmem:[%s4774 + $0xc8] sm:$0xff]
      %v4801 = vld [vmem:[%s4774 + $0xd0] sm:$0xff]
      %v4802 = vld [vmem:[%s4774 + $0xd8] sm:$0xff]
      %v4803 = vld [vmem:[%s4774 + $0xe0] sm:$0xff]
      %v4804 = vld [vmem:[%s4774 + $0xe8] sm:$0xff]
      %v4805 = vld [vmem:[%s4774 + $0xf0] sm:$0xff]
      %v4806 = vld [vmem:[%s4774 + $0xf8] sm:$0xff]
      %v4807 = vpack.c.bf16 %v2774, %v2770
      %v4808 = vpack.c.bf16 %v2784, %v2780
      %v4809 = vpack.c.bf16 %v2794, %v2790
      %v4810 = vpack.c.bf16 %v2804, %v2800
      %v4811 = vpack.c.bf16 %v2814, %v2810
      %v4812 = vpack.c.bf16 %v2824, %v2820
      %v4813 = vpack.c.bf16 %v2834, %v2830
      %v4814 = vpack.c.bf16 %v2844, %v2840
      %v4815 = vpack.c.bf16 %v2854, %v2850
      %v4816 = vpack.c.bf16 %v2864, %v2860
      %v4817 = vpack.c.bf16 %v2874, %v2870
      %v4818 = vpack.c.bf16 %v2884, %v2880
      %v4819 = vpack.c.bf16 %v2894, %v2890
      %v4820 = vpack.c.bf16 %v2904, %v2900
      %v4821 = vpack.c.bf16 %v2914, %v2910
      %v4822 = vpack.c.bf16 %v2924, %v2920
      %v4855 = vunpack.c.l.b16 %v4775
      %v4856 = vunpack.c.h.b16 %v4775
      %v4857 = vunpack.c.l.b16 %v4776
      %v4858 = vunpack.c.h.b16 %v4776
      %v4859 = vunpack.c.l.b16 %v4777
      %v4860 = vunpack.c.h.b16 %v4777
      %v4861 = vunpack.c.l.b16 %v4778
      %v4862 = vunpack.c.h.b16 %v4778
      %v4863 = vunpack.c.l.b16 %v4779
      %v4864 = vunpack.c.h.b16 %v4779
      %v4865 = vunpack.c.l.b16 %v4780
      %v4866 = vunpack.c.h.b16 %v4780
      %v4867 = vunpack.c.l.b16 %v4781
      %v4868 = vunpack.c.h.b16 %v4781
      %v4869 = vunpack.c.l.b16 %v4782
      %v4870 = vunpack.c.h.b16 %v4782
      %v4871 = vunpack.c.l.b16 %v4783
      %v4872 = vunpack.c.h.b16 %v4783
      %v4873 = vunpack.c.l.b16 %v4784
      %v4874 = vunpack.c.h.b16 %v4784
      %v4875 = vunpack.c.l.b16 %v4785
      %v4876 = vunpack.c.h.b16 %v4785
      %v4877 = vunpack.c.l.b16 %v4786
      %v4878 = vunpack.c.h.b16 %v4786
      %v4879 = vunpack.c.l.b16 %v4787
      %v4880 = vunpack.c.h.b16 %v4787
      %v4881 = vunpack.c.l.b16 %v4788
      %v4882 = vunpack.c.h.b16 %v4788
      %v4883 = vunpack.c.l.b16 %v4789
      %v4884 = vunpack.c.h.b16 %v4789
      %v4885 = vunpack.c.l.b16 %v4790
      %v4886 = vunpack.c.h.b16 %v4790
      %v4887 = vunpack.c.l.b16 %v4791
      %v4888 = vunpack.c.h.b16 %v4791
      %v4889 = vunpack.c.l.b16 %v4792
      %v4890 = vunpack.c.h.b16 %v4792
      %v4891 = vunpack.c.l.b16 %v4793
      %v4892 = vunpack.c.h.b16 %v4793
      %v4893 = vunpack.c.l.b16 %v4794
      %v4894 = vunpack.c.h.b16 %v4794
      %v4895 = vunpack.c.l.b16 %v4795
      %v4896 = vunpack.c.h.b16 %v4795
      %v4897 = vunpack.c.l.b16 %v4796
      %v4898 = vunpack.c.h.b16 %v4796
      %v4899 = vunpack.c.l.b16 %v4797
      %v4900 = vunpack.c.h.b16 %v4797
      %v4901 = vunpack.c.l.b16 %v4798
      %v4902 = vunpack.c.h.b16 %v4798
      %v4903 = vunpack.c.l.b16 %v4799
      %v4904 = vunpack.c.h.b16 %v4799
      %v4905 = vunpack.c.l.b16 %v4800
      %v4906 = vunpack.c.h.b16 %v4800
      %v4907 = vunpack.c.l.b16 %v4801
      %v4908 = vunpack.c.h.b16 %v4801
      %v4909 = vunpack.c.l.b16 %v4802
      %v4910 = vunpack.c.h.b16 %v4802
      %v4911 = vunpack.c.l.b16 %v4803
      %v4912 = vunpack.c.h.b16 %v4803
      %v4913 = vunpack.c.l.b16 %v4804
      %v4914 = vunpack.c.h.b16 %v4804
      %v4915 = vunpack.c.l.b16 %v4805
      %v4916 = vunpack.c.h.b16 %v4805
      %v4917 = vunpack.c.l.b16 %v4806
      %v4918 = vunpack.c.h.b16 %v4806
      %v4919 = vpack.c.b16 %v4857, %v4855
      %v4920 = vpack.c.b16 %v4858, %v4856
      %v4921 = vpack.c.b16 %v4861, %v4859
      %v4922 = vpack.c.b16 %v4862, %v4860
      %v4923 = vpack.c.b16 %v4865, %v4863
      %v4924 = vpack.c.b16 %v4866, %v4864
      %v4925 = vpack.c.b16 %v4869, %v4867
      %v4926 = vpack.c.b16 %v4870, %v4868
      %v4927 = vpack.c.b16 %v4873, %v4871
      %v4928 = vpack.c.b16 %v4874, %v4872
      %v4929 = vpack.c.b16 %v4877, %v4875
      %v4930 = vpack.c.b16 %v4878, %v4876
      %v4931 = vpack.c.b16 %v4881, %v4879
      %v4932 = vpack.c.b16 %v4882, %v4880
      %v4933 = vpack.c.b16 %v4885, %v4883
      %v4934 = vpack.c.b16 %v4886, %v4884
      %v4935 = vpack.c.b16 %v4889, %v4887
      %v4936 = vpack.c.b16 %v4890, %v4888
      %v4937 = vpack.c.b16 %v4893, %v4891
      %v4938 = vpack.c.b16 %v4894, %v4892
      %v4939 = vpack.c.b16 %v4897, %v4895
      %v4940 = vpack.c.b16 %v4898, %v4896
      %v4941 = vpack.c.b16 %v4901, %v4899
      %v4942 = vpack.c.b16 %v4902, %v4900
      %v4943 = vpack.c.b16 %v4905, %v4903
      %v4944 = vpack.c.b16 %v4906, %v4904
      %v4945 = vpack.c.b16 %v4909, %v4907
      %v4946 = vpack.c.b16 %v4910, %v4908
      %v4947 = vpack.c.b16 %v4913, %v4911
      %v4948 = vpack.c.b16 %v4914, %v4912
      %v4949 = vpack.c.b16 %v4917, %v4915
      %v4950 = vpack.c.b16 %v4918, %v4916
      %4983 = vmatprep.subr.bf16.mxu0 0
      %4984 = vmatpush1.bf16.msra.mxu0 %v4807
      %4985 = vmatprep.subr.bf16.mxu0 0
      %4986 = vmatpush1.bf16.msra.mxu0 %v4808
      %4987 = vmatprep.subr.bf16.mxu0 0
      %4988 = vmatpush1.bf16.msra.mxu0 %v4809
      %4989 = vmatprep.subr.bf16.mxu0 0
      %4990 = vmatpush1.bf16.msra.mxu0 %v4810
      %4991 = vmatprep.subr.bf16.mxu0 0
      %4992 = vmatpush1.bf16.msra.mxu0 %v4811
      %4993 = vmatprep.subr.bf16.mxu0 0
      %4994 = vmatpush1.bf16.msra.mxu0 %v4812
      %4995 = vmatprep.subr.bf16.mxu0 0
      %4996 = vmatpush1.bf16.msra.mxu0 %v4813
      %4997 = vmatprep.subr.bf16.mxu0 0
      %4998 = vmatpush1.bf16.msra.mxu0 %v4814
      %4999 = vmatprep.subr.bf16.mxu0 0
      %5000 = vmatpush1.bf16.msra.mxu0 %v4815
      %5001 = vmatprep.subr.bf16.mxu0 0
      %5002 = vmatpush1.bf16.msra.mxu0 %v4816
      %5003 = vmatprep.subr.bf16.mxu0 0
      %5004 = vmatpush1.bf16.msra.mxu0 %v4817
      %5005 = vmatprep.subr.bf16.mxu0 0
      %5006 = vmatpush1.bf16.msra.mxu0 %v4818
      %5007 = vmatprep.subr.bf16.mxu0 0
      %5008 = vmatpush1.bf16.msra.mxu0 %v4819
      %5009 = vmatprep.subr.bf16.mxu0 0
      %5010 = vmatpush1.bf16.msra.mxu0 %v4820
      %5011 = vmatprep.subr.bf16.mxu0 0
      %5012 = vmatpush1.bf16.msra.mxu0 %v4821
      %5013 = vmatprep.subr.bf16.mxu0 0
      %5014 = vmatpush1.bf16.msra.mxu0 %v4822
      %5015 = vmatprep.mubr.bf16.mxu0 %v4920
      %5016 = vmatmul.mubr.bf16.gmra.mrb[0].mxu0 %v4919
      %v5017 = vpop.f32.mrb[0].mxu0
      %v5018 = vadd.f32 0.0, %v5017
      %v5019 = vpop.f32.mrb[0].mxu0
      %v5020 = vpop.f32.mrb[0].mxu0
      %v5021 = vadd.f32 0.0, %v5020
      %v5022 = vpop.f32.mrb[0].mxu0
      %5023 = vmatprep.mubr.bf16.mxu0 %v4922
      %5024 = vmatmul.mubr.bf16.gmra.mrb[0].mxu0 %v4921
      %v5025 = vpop.f32.mrb[0].mxu0
      %v5026 = vadd.f32 0.0, %v5025
      %v5027 = vpop.f32.mrb[0].mxu0
      %v5028 = vpop.f32.mrb[0].mxu0
      %v5029 = vadd.f32 0.0, %v5028
      %v5030 = vpop.f32.mrb[0].mxu0
      %5031 = vmatprep.mubr.bf16.mxu0 %v4924
      %5032 = vmatmul.mubr.bf16.gmra.mrb[0].mxu0 %v4923
      %v5033 = vpop.f32.mrb[0].mxu0
      %v5034 = vadd.f32 0.0, %v5033
      %v5035 = vpop.f32.mrb[0].mxu0
      %v5036 = vpop.f32.mrb[0].mxu0
      %v5037 = vadd.f32 0.0, %v5036
      %v5038 = vpop.f32.mrb[0].mxu0
      %5039 = vmatprep.mubr.bf16.mxu0 %v4926
      %5040 = vmatmul.mubr.bf16.gmra.mrb[0].mxu0 %v4925
      %v5041 = vpop.f32.mrb[0].mxu0
      %v5042 = vadd.f32 0.0, %v5041
      %v5043 = vpop.f32.mrb[0].mxu0
      %v5044 = vpop.f32.mrb[0].mxu0
      %v5045 = vadd.f32 0.0, %v5044
      %v5046 = vpop.f32.mrb[0].mxu0
      %5047 = vmatprep.mubr.bf16.mxu0 %v4928
      %5048 = vmatmul.mubr.bf16.gmra.mrb[0].mxu0 %v4927
      %v5049 = vpop.f32.mrb[0].mxu0
      %v5050 = vadd.f32 0.0, %v5049
      %v5051 = vpop.f32.mrb[0].mxu0
      %v5052 = vpop.f32.mrb[0].mxu0
      %v5053 = vadd.f32 0.0, %v5052
      %v5054 = vpop.f32.mrb[0].mxu0
      %5055 = vmatprep.mubr.bf16.mxu0 %v4930
      %5056 = vmatmul.mubr.bf16.gmra.mrb[0].mxu0 %v4929
      %v5057 = vpop.f32.mrb[0].mxu0
      %v5058 = vadd.f32 0.0, %v5057
      %v5059 = vpop.f32.mrb[0].mxu0
      %v5060 = vpop.f32.mrb[0].mxu0
      %v5061 = vadd.f32 0.0, %v5060
      %v5062 = vpop.f32.mrb[0].mxu0
      %5063 = vmatprep.mubr.bf16.mxu0 %v4932
      %5064 = vmatmul.mubr.bf16.gmra.mrb[0].mxu0 %v4931
      %v5065 = vpop.f32.mrb[0].mxu0
      %v5066 = vadd.f32 0.0, %v5065
      %v5067 = vpop.f32.mrb[0].mxu0
      %v5068 = vpop.f32.mrb[0].mxu0
      %v5069 = vadd.f32 0.0, %v5068
      %v5070 = vpop.f32.mrb[0].mxu0
      %5071 = vmatprep.mubr.bf16.mxu0 %v4934
      %5072 = vmatmul.mubr.bf16.gmra.mrb[0].mxu0 %v4933
      %v5073 = vpop.f32.mrb[0].mxu0
      %v5074 = vadd.f32 0.0, %v5073
      %v5075 = vpop.f32.mrb[0].mxu0
      %v5076 = vpop.f32.mrb[0].mxu0
      %v5077 = vadd.f32 0.0, %v5076
      %v5078 = vpop.f32.mrb[0].mxu0
      %5079 = vmatprep.mubr.bf16.mxu0 %v4936
      %5080 = vmatmul.mubr.bf16.gmra.mrb[0].mxu0 %v4935
      %v5081 = vpop.f32.mrb[0].mxu0
      %v5082 = vadd.f32 0.0, %v5081
      %v5083 = vpop.f32.mrb[0].mxu0
      %v5084 = vpop.f32.mrb[0].mxu0
      %v5085 = vadd.f32 0.0, %v5084
      %v5086 = vpop.f32.mrb[0].mxu0
      %5087 = vmatprep.mubr.bf16.mxu0 %v4938
      %5088 = vmatmul.mubr.bf16.gmra.mrb[0].mxu0 %v4937
      %v5089 = vpop.f32.mrb[0].mxu0
      %v5090 = vadd.f32 0.0, %v5089
      %v5091 = vpop.f32.mrb[0].mxu0
      %v5092 = vpop.f32.mrb[0].mxu0
      %v5093 = vadd.f32 0.0, %v5092
      %v5094 = vpop.f32.mrb[0].mxu0
      %5095 = vmatprep.mubr.bf16.mxu0 %v4940
      %5096 = vmatmul.mubr.bf16.gmra.mrb[0].mxu0 %v4939
      %v5097 = vpop.f32.mrb[0].mxu0
      %v5098 = vadd.f32 0.0, %v5097
      %v5099 = vpop.f32.mrb[0].mxu0
      %v5100 = vpop.f32.mrb[0].mxu0
      %v5101 = vadd.f32 0.0, %v5100
      %v5102 = vpop.f32.mrb[0].mxu0
      %5103 = vmatprep.mubr.bf16.mxu0 %v4942
      %5104 = vmatmul.mubr.bf16.gmra.mrb[0].mxu0 %v4941
      %v5105 = vpop.f32.mrb[0].mxu0
      %v5106 = vadd.f32 0.0, %v5105
      %v5107 = vpop.f32.mrb[0].mxu0
      %v5108 = vpop.f32.mrb[0].mxu0
      %v5109 = vadd.f32 0.0, %v5108
      %v5110 = vpop.f32.mrb[0].mxu0
      %5111 = vmatprep.mubr.bf16.mxu0 %v4944
      %5112 = vmatmul.mubr.bf16.gmra.mrb[0].mxu0 %v4943
      %v5113 = vpop.f32.mrb[0].mxu0
      %v5114 = vadd.f32 0.0, %v5113
      %v5115 = vpop.f32.mrb[0].mxu0
      %v5116 = vpop.f32.mrb[0].mxu0
      %v5117 = vadd.f32 0.0, %v5116
      %v5118 = vpop.f32.mrb[0].mxu0
      %5119 = vmatprep.mubr.bf16.mxu0 %v4946
      %5120 = vmatmul.mubr.bf16.gmra.mrb[0].mxu0 %v4945
      %v5121 = vpop.f32.mrb[0].mxu0
      %v5122 = vadd.f32 0.0, %v5121
      %v5123 = vpop.f32.mrb[0].mxu0
      %v5124 = vpop.f32.mrb[0].mxu0
      %v5125 = vadd.f32 0.0, %v5124
      %v5126 = vpop.f32.mrb[0].mxu0
      %5127 = vmatprep.mubr.bf16.mxu0 %v4948
      %5128 = vmatmul.mubr.bf16.gmra.mrb[0].mxu0 %v4947
      %v5129 = vpop.f32.mrb[0].mxu0
      %v5130 = vadd.f32 0.0, %v5129
      %v5131 = vpop.f32.mrb[0].mxu0
      %v5132 = vpop.f32.mrb[0].mxu0
      %v5133 = vadd.f32 0.0, %v5132
      %v5134 = vpop.f32.mrb[0].mxu0
      %5135 = vmatprep.mubr.bf16.mxu0 %v4950
      %5136 = vmatmul.mubr.bf16.gmra.mrb[0].mxu0 %v4949
      %v5137 = vpop.f32.mrb[0].mxu0
      %v5138 = vadd.f32 0.0, %v5137
      %v5139 = vpop.f32.mrb[0].mxu0
      %v5140 = vpop.f32.mrb[0].mxu0
      %v5141 = vadd.f32 0.0, %v5140
      %v5142 = vpop.f32.mrb[0].mxu0
      %5143 = vdwg.mxu0
      %v5144 = vadd.f32 %v4742, %v5018
      %v5145 = vadd.f32 %v4743, %v5021
      %v5146 = vadd.f32 %v4744, %v5026
      %v5147 = vadd.f32 %v4745, %v5029
      %v5148 = vadd.f32 %v4746, %v5034
      %v5149 = vadd.f32 %v4747, %v5037
      %v5150 = vadd.f32 %v4748, %v5042
      %v5151 = vadd.f32 %v4749, %v5045
      %v5152 = vadd.f32 %v4750, %v5050
      %v5153 = vadd.f32 %v4751, %v5053
      %v5154 = vadd.f32 %v4752, %v5058
      %v5155 = vadd.f32 %v4753, %v5061
      %v5156 = vadd.f32 %v4754, %v5066
      %v5157 = vadd.f32 %v4755, %v5069
      %v5158 = vadd.f32 %v4756, %v5074
      %v5159 = vadd.f32 %v4757, %v5077
      %v5160 = vadd.f32 %v4758, %v5082
      %v5161 = vadd.f32 %v4759, %v5085
      %v5162 = vadd.f32 %v4760, %v5090
      %v5163 = vadd.f32 %v4761, %v5093
      %v5164 = vadd.f32 %v4762, %v5098
      %v5165 = vadd.f32 %v4763, %v5101
      %v5166 = vadd.f32 %v4764, %v5106
      %v5167 = vadd.f32 %v4765, %v5109
      %v5168 = vadd.f32 %v4766, %v5114
      %v5169 = vadd.f32 %v4767, %v5117
      %v5170 = vadd.f32 %v4768, %v5122
      %v5171 = vadd.f32 %v4769, %v5125
      %v5172 = vadd.f32 %v4770, %v5130
      %v5173 = vadd.f32 %v4771, %v5133
      %v5174 = vadd.f32 %v4772, %v5138
      %v5175 = vadd.f32 %v4773, %v5141
      %s5176 = scalar_lea.vmem %s5, 1280
      %v5177 = vld [vmem:[%s5176] sm:$0xff]
      %v5178 = vld [vmem:[%s5176 + $0x8] sm:$0xff]
      %v5179 = vld [vmem:[%s5176 + $0x10] sm:$0xff]
      %v5180 = vld [vmem:[%s5176 + $0x18] sm:$0xff]
      %v5181 = vld [vmem:[%s5176 + $0x20] sm:$0xff]
      %v5182 = vld [vmem:[%s5176 + $0x28] sm:$0xff]
      %v5183 = vld [vmem:[%s5176 + $0x30] sm:$0xff]
      %v5184 = vld [vmem:[%s5176 + $0x38] sm:$0xff]
      %v5185 = vld [vmem:[%s5176 + $0x40] sm:$0xff]
      %v5186 = vld [vmem:[%s5176 + $0x48] sm:$0xff]
      %v5187 = vld [vmem:[%s5176 + $0x50] sm:$0xff]
      %v5188 = vld [vmem:[%s5176 + $0x58] sm:$0xff]
      %v5189 = vld [vmem:[%s5176 + $0x60] sm:$0xff]
      %v5190 = vld [vmem:[%s5176 + $0x68] sm:$0xff]
      %v5191 = vld [vmem:[%s5176 + $0x70] sm:$0xff]
      %v5192 = vld [vmem:[%s5176 + $0x78] sm:$0xff]
      %v5193 = vld [vmem:[%s5176 + $0x80] sm:$0xff]
      %v5194 = vld [vmem:[%s5176 + $0x88] sm:$0xff]
      %v5195 = vld [vmem:[%s5176 + $0x90] sm:$0xff]
      %v5196 = vld [vmem:[%s5176 + $0x98] sm:$0xff]
      %v5197 = vld [vmem:[%s5176 + $0xa0] sm:$0xff]
      %v5198 = vld [vmem:[%s5176 + $0xa8] sm:$0xff]
      %v5199 = vld [vmem:[%s5176 + $0xb0] sm:$0xff]
      %v5200 = vld [vmem:[%s5176 + $0xb8] sm:$0xff]
      %v5201 = vld [vmem:[%s5176 + $0xc0] sm:$0xff]
      %v5202 = vld [vmem:[%s5176 + $0xc8] sm:$0xff]
      %v5203 = vld [vmem:[%s5176 + $0xd0] sm:$0xff]
      %v5204 = vld [vmem:[%s5176 + $0xd8] sm:$0xff]
      %v5205 = vld [vmem:[%s5176 + $0xe0] sm:$0xff]
      %v5206 = vld [vmem:[%s5176 + $0xe8] sm:$0xff]
      %v5207 = vld [vmem:[%s5176 + $0xf0] sm:$0xff]
      %v5208 = vld [vmem:[%s5176 + $0xf8] sm:$0xff]
      %v5241 = vunpack.c.l.b16 %v5177
      %v5242 = vunpack.c.h.b16 %v5177
      %v5243 = vunpack.c.l.b16 %v5178
      %v5244 = vunpack.c.h.b16 %v5178
      %v5245 = vunpack.c.l.b16 %v5179
      %v5246 = vunpack.c.h.b16 %v5179
      %v5247 = vunpack.c.l.b16 %v5180
      %v5248 = vunpack.c.h.b16 %v5180
      %v5249 = vunpack.c.l.b16 %v5181
      %v5250 = vunpack.c.h.b16 %v5181
      %v5251 = vunpack.c.l.b16 %v5182
      %v5252 = vunpack.c.h.b16 %v5182
      %v5253 = vunpack.c.l.b16 %v5183
      %v5254 = vunpack.c.h.b16 %v5183
      %v5255 = vunpack.c.l.b16 %v5184
      %v5256 = vunpack.c.h.b16 %v5184
      %v5257 = vunpack.c.l.b16 %v5185
      %v5258 = vunpack.c.h.b16 %v5185
      %v5259 = vunpack.c.l.b16 %v5186
      %v5260 = vunpack.c.h.b16 %v5186
      %v5261 = vunpack.c.l.b16 %v5187
      %v5262 = vunpack.c.h.b16 %v5187
      %v5263 = vunpack.c.l.b16 %v5188
      %v5264 = vunpack.c.h.b16 %v5188
      %v5265 = vunpack.c.l.b16 %v5189
      %v5266 = vunpack.c.h.b16 %v5189
      %v5267 = vunpack.c.l.b16 %v5190
      %v5268 = vunpack.c.h.b16 %v5190
      %v5269 = vunpack.c.l.b16 %v5191
      %v5270 = vunpack.c.h.b16 %v5191
      %v5271 = vunpack.c.l.b16 %v5192
      %v5272 = vunpack.c.h.b16 %v5192
      %v5273 = vunpack.c.l.b16 %v5193
      %v5274 = vunpack.c.h.b16 %v5193
      %v5275 = vunpack.c.l.b16 %v5194
      %v5276 = vunpack.c.h.b16 %v5194
      %v5277 = vunpack.c.l.b16 %v5195
      %v5278 = vunpack.c.h.b16 %v5195
      %v5279 = vunpack.c.l.b16 %v5196
      %v5280 = vunpack.c.h.b16 %v5196
      %v5281 = vunpack.c.l.b16 %v5197
      %v5282 = vunpack.c.h.b16 %v5197
      %v5283 = vunpack.c.l.b16 %v5198
      %v5284 = vunpack.c.h.b16 %v5198
      %v5285 = vunpack.c.l.b16 %v5199
      %v5286 = vunpack.c.h.b16 %v5199
      %v5287 = vunpack.c.l.b16 %v5200
      %v5288 = vunpack.c.h.b16 %v5200
      %v5289 = vunpack.c.l.b16 %v5201
      %v5290 = vunpack.c.h.b16 %v5201
      %v5291 = vunpack.c.l.b16 %v5202
      %v5292 = vunpack.c.h.b16 %v5202
      %v5293 = vunpack.c.l.b16 %v5203
      %v5294 = vunpack.c.h.b16 %v5203
      %v5295 = vunpack.c.l.b16 %v5204
      %v5296 = vunpack.c.h.b16 %v5204
      %v5297 = vunpack.c.l.b16 %v5205
      %v5298 = vunpack.c.h.b16 %v5205
      %v5299 = vunpack.c.l.b16 %v5206
      %v5300 = vunpack.c.h.b16 %v5206
      %v5301 = vunpack.c.l.b16 %v5207
      %v5302 = vunpack.c.h.b16 %v5207
      %v5303 = vunpack.c.l.b16 %v5208
      %v5304 = vunpack.c.h.b16 %v5208
      %v5305 = vpack.c.b16 %v5243, %v5241
      %v5306 = vpack.c.b16 %v5244, %v5242
      %v5307 = vpack.c.b16 %v5247, %v5245
      %v5308 = vpack.c.b16 %v5248, %v5246
      %v5309 = vpack.c.b16 %v5251, %v5249
      %v5310 = vpack.c.b16 %v5252, %v5250
      %v5311 = vpack.c.b16 %v5255, %v5253
      %v5312 = vpack.c.b16 %v5256, %v5254
      %v5313 = vpack.c.b16 %v5259, %v5257
      %v5314 = vpack.c.b16 %v5260, %v5258
      %v5315 = vpack.c.b16 %v5263, %v5261
      %v5316 = vpack.c.b16 %v5264, %v5262
      %v5317 = vpack.c.b16 %v5267, %v5265
      %v5318 = vpack.c.b16 %v5268, %v5266
      %v5319 = vpack.c.b16 %v5271, %v5269
      %v5320 = vpack.c.b16 %v5272, %v5270
      %v5321 = vpack.c.b16 %v5275, %v5273
      %v5322 = vpack.c.b16 %v5276, %v5274
      %v5323 = vpack.c.b16 %v5279, %v5277
      %v5324 = vpack.c.b16 %v5280, %v5278
      %v5325 = vpack.c.b16 %v5283, %v5281
      %v5326 = vpack.c.b16 %v5284, %v5282
      %v5327 = vpack.c.b16 %v5287, %v5285
      %v5328 = vpack.c.b16 %v5288, %v5286
      %v5329 = vpack.c.b16 %v5291, %v5289
      %v5330 = vpack.c.b16 %v5292, %v5290
      %v5331 = vpack.c.b16 %v5295, %v5293
      %v5332 = vpack.c.b16 %v5296, %v5294
      %v5333 = vpack.c.b16 %v5299, %v5297
      %v5334 = vpack.c.b16 %v5300, %v5298
      %v5335 = vpack.c.b16 %v5303, %v5301
      %v5336 = vpack.c.b16 %v5304, %v5302
      %5385 = vrot.lane.b32.xlu0 %v4807, 96
      %v5386 = vpop.permute.xlu0 %5385
      %5387 = vrot.lane.b32.xlu0 %v4808, 96
      %v5388 = vpop.permute.xlu0 %5387
      %5389 = vrot.lane.b32.xlu0 %v4809, 96
      %v5390 = vpop.permute.xlu0 %5389
      %5391 = vrot.lane.b32.xlu0 %v4810, 96
      %v5392 = vpop.permute.xlu0 %5391
      %5393 = vrot.lane.b32.xlu0 %v4811, 96
      %v5394 = vpop.permute.xlu0 %5393
      %5395 = vrot.lane.b32.xlu0 %v4812, 96
      %v5396 = vpop.permute.xlu0 %5395
      %5397 = vrot.lane.b32.xlu0 %v4813, 96
      %v5398 = vpop.permute.xlu0 %5397
      %5399 = vrot.lane.b32.xlu0 %v4814, 96
      %v5400 = vpop.permute.xlu0 %5399
      %5401 = vrot.lane.b32.xlu0 %v4815, 96
      %v5402 = vpop.permute.xlu0 %5401
      %5403 = vrot.lane.b32.xlu0 %v4816, 96
      %v5404 = vpop.permute.xlu0 %5403
      %5405 = vrot.lane.b32.xlu0 %v4817, 96
      %v5406 = vpop.permute.xlu0 %5405
      %5407 = vrot.lane.b32.xlu0 %v4818, 96
      %v5408 = vpop.permute.xlu0 %5407
      %5409 = vrot.lane.b32.xlu0 %v4819, 96
      %v5410 = vpop.permute.xlu0 %5409
      %5411 = vrot.lane.b32.xlu0 %v4820, 96
      %v5412 = vpop.permute.xlu0 %5411
      %5413 = vrot.lane.b32.xlu0 %v4821, 96
      %v5414 = vpop.permute.xlu0 %5413
      %5415 = vrot.lane.b32.xlu0 %v4822, 96
      %v5416 = vpop.permute.xlu0 %5415
      %5433 = vmatprep.subr.bf16.mxu0 0
      %5434 = vmatpush1.bf16.msra.mxu0 %v5386
      %5435 = vmatprep.subr.bf16.mxu0 0
      %5436 = vmatpush1.bf16.msra.mxu0 %v5388
      %5437 = vmatprep.subr.bf16.mxu0 0
      %5438 = vmatpush1.bf16.msra.mxu0 %v5390
      %5439 = vmatprep.subr.bf16.mxu0 0
      %5440 = vmatpush1.bf16.msra.mxu0 %v5392
      %5441 = vmatprep.subr.bf16.mxu0 0
      %5442 = vmatpush1.bf16.msra.mxu0 %v5394
      %5443 = vmatprep.subr.bf16.mxu0 0
      %5444 = vmatpush1.bf16.msra.mxu0 %v5396
      %5445 = vmatprep.subr.bf16.mxu0 0
      %5446 = vmatpush1.bf16.msra.mxu0 %v5398
      %5447 = vmatprep.subr.bf16.mxu0 0
      %5448 = vmatpush1.bf16.msra.mxu0 %v5400
      %5449 = vmatprep.subr.bf16.mxu0 0
      %5450 = vmatpush1.bf16.msra.mxu0 %v5402
      %5451 = vmatprep.subr.bf16.mxu0 0
      %5452 = vmatpush1.bf16.msra.mxu0 %v5404
      %5453 = vmatprep.subr.bf16.mxu0 0
      %5454 = vmatpush1.bf16.msra.mxu0 %v5406
      %5455 = vmatprep.subr.bf16.mxu0 0
      %5456 = vmatpush1.bf16.msra.mxu0 %v5408
      %5457 = vmatprep.subr.bf16.mxu0 0
      %5458 = vmatpush1.bf16.msra.mxu0 %v5410
      %5459 = vmatprep.subr.bf16.mxu0 0
      %5460 = vmatpush1.bf16.msra.mxu0 %v5412
      %5461 = vmatprep.subr.bf16.mxu0 0
      %5462 = vmatpush1.bf16.msra.mxu0 %v5414
      %5463 = vmatprep.subr.bf16.mxu0 0
      %5464 = vmatpush1.bf16.msra.mxu0 %v5416
      %5465 = vmatprep.mubr.bf16.mxu0 %v5306
      %5466 = vmatmul.mubr.bf16.gmra.mrb[0].mxu0 %v5305
      %v5467 = vpop.f32.mrb[0].mxu0
      %v5468 = vadd.f32 0.0, %v5467
      %v5469 = vpop.f32.mrb[0].mxu0
      %v5470 = vpop.f32.mrb[0].mxu0
      %v5471 = vadd.f32 0.0, %v5470
      %v5472 = vpop.f32.mrb[0].mxu0
      %5473 = vmatprep.mubr.bf16.mxu0 %v5308
      %5474 = vmatmul.mubr.bf16.gmra.mrb[0].mxu0 %v5307
      %v5475 = vpop.f32.mrb[0].mxu0
      %v5476 = vadd.f32 0.0, %v5475
      %v5477 = vpop.f32.mrb[0].mxu0
      %v5478 = vpop.f32.mrb[0].mxu0
      %v5479 = vadd.f32 0.0, %v5478
      %v5480 = vpop.f32.mrb[0].mxu0
      %5481 = vmatprep.mubr.bf16.mxu0 %v5310
      %5482 = vmatmul.mubr.bf16.gmra.mrb[0].mxu0 %v5309
      %v5483 = vpop.f32.mrb[0].mxu0
      %v5484 = vadd.f32 0.0, %v5483
      %v5485 = vpop.f32.mrb[0].mxu0
      %v5486 = vpop.f32.mrb[0].mxu0
      %v5487 = vadd.f32 0.0, %v5486
      %v5488 = vpop.f32.mrb[0].mxu0
      %5489 = vmatprep.mubr.bf16.mxu0 %v5312
      %5490 = vmatmul.mubr.bf16.gmra.mrb[0].mxu0 %v5311
      %v5491 = vpop.f32.mrb[0].mxu0
      %v5492 = vadd.f32 0.0, %v5491
      %v5493 = vpop.f32.mrb[0].mxu0
      %v5494 = vpop.f32.mrb[0].mxu0
      %v5495 = vadd.f32 0.0, %v5494
      %v5496 = vpop.f32.mrb[0].mxu0
      %5497 = vmatprep.mubr.bf16.mxu0 %v5314
      %5498 = vmatmul.mubr.bf16.gmra.mrb[0].mxu0 %v5313
      %v5499 = vpop.f32.mrb[0].mxu0
      %v5500 = vadd.f32 0.0, %v5499
      %v5501 = vpop.f32.mrb[0].mxu0
      %v5502 = vpop.f32.mrb[0].mxu0
      %v5503 = vadd.f32 0.0, %v5502
      %v5504 = vpop.f32.mrb[0].mxu0
      %5505 = vmatprep.mubr.bf16.mxu0 %v5316
      %5506 = vmatmul.mubr.bf16.gmra.mrb[0].mxu0 %v5315
      %v5507 = vpop.f32.mrb[0].mxu0
      %v5508 = vadd.f32 0.0, %v5507
      %v5509 = vpop.f32.mrb[0].mxu0
      %v5510 = vpop.f32.mrb[0].mxu0
      %v5511 = vadd.f32 0.0, %v5510
      %v5512 = vpop.f32.mrb[0].mxu0
      %5513 = vmatprep.mubr.bf16.mxu0 %v5318
      %5514 = vmatmul.mubr.bf16.gmra.mrb[0].mxu0 %v5317
      %v5515 = vpop.f32.mrb[0].mxu0
      %v5516 = vadd.f32 0.0, %v5515
      %v5517 = vpop.f32.mrb[0].mxu0
      %v5518 = vpop.f32.mrb[0].mxu0
      %v5519 = vadd.f32 0.0, %v5518
      %v5520 = vpop.f32.mrb[0].mxu0
      %5521 = vmatprep.mubr.bf16.mxu0 %v5320
      %5522 = vmatmul.mubr.bf16.gmra.mrb[0].mxu0 %v5319
      %v5523 = vpop.f32.mrb[0].mxu0
      %v5524 = vadd.f32 0.0, %v5523
      %v5525 = vpop.f32.mrb[0].mxu0
      %v5526 = vpop.f32.mrb[0].mxu0
      %v5527 = vadd.f32 0.0, %v5526
      %v5528 = vpop.f32.mrb[0].mxu0
      %5529 = vmatprep.mubr.bf16.mxu0 %v5322
      %5530 = vmatmul.mubr.bf16.gmra.mrb[0].mxu0 %v5321
      %v5531 = vpop.f32.mrb[0].mxu0
      %v5532 = vadd.f32 0.0, %v5531
      %v5533 = vpop.f32.mrb[0].mxu0
      %v5534 = vpop.f32.mrb[0].mxu0
      %v5535 = vadd.f32 0.0, %v5534
      %v5536 = vpop.f32.mrb[0].mxu0
      %5537 = vmatprep.mubr.bf16.mxu0 %v5324
      %5538 = vmatmul.mubr.bf16.gmra.mrb[0].mxu0 %v5323
      %v5539 = vpop.f32.mrb[0].mxu0
      %v5540 = vadd.f32 0.0, %v5539
      %v5541 = vpop.f32.mrb[0].mxu0
      %v5542 = vpop.f32.mrb[0].mxu0
      %v5543 = vadd.f32 0.0, %v5542
      %v5544 = vpop.f32.mrb[0].mxu0
      %5545 = vmatprep.mubr.bf16.mxu0 %v5326
      %5546 = vmatmul.mubr.bf16.gmra.mrb[0].mxu0 %v5325
      %v5547 = vpop.f32.mrb[0].mxu0
      %v5548 = vadd.f32 0.0, %v5547
      %v5549 = vpop.f32.mrb[0].mxu0
      %v5550 = vpop.f32.mrb[0].mxu0
      %v5551 = vadd.f32 0.0, %v5550
      %v5552 = vpop.f32.mrb[0].mxu0
      %5553 = vmatprep.mubr.bf16.mxu0 %v5328
      %5554 = vmatmul.mubr.bf16.gmra.mrb[0].mxu0 %v5327
      %v5555 = vpop.f32.mrb[0].mxu0
      %v5556 = vadd.f32 0.0, %v5555
      %v5557 = vpop.f32.mrb[0].mxu0
      %v5558 = vpop.f32.mrb[0].mxu0
      %v5559 = vadd.f32 0.0, %v5558
      %v5560 = vpop.f32.mrb[0].mxu0
      %5561 = vmatprep.mubr.bf16.mxu0 %v5330
      %5562 = vmatmul.mubr.bf16.gmra.mrb[0].mxu0 %v5329
      %v5563 = vpop.f32.mrb[0].mxu0
      %v5564 = vadd.f32 0.0, %v5563
      %v5565 = vpop.f32.mrb[0].mxu0
      %v5566 = vpop.f32.mrb[0].mxu0
      %v5567 = vadd.f32 0.0, %v5566
      %v5568 = vpop.f32.mrb[0].mxu0
      %5569 = vmatprep.mubr.bf16.mxu0 %v5332
      %5570 = vmatmul.mubr.bf16.gmra.mrb[0].mxu0 %v5331
      %v5571 = vpop.f32.mrb[0].mxu0
      %v5572 = vadd.f32 0.0, %v5571
      %v5573 = vpop.f32.mrb[0].mxu0
      %v5574 = vpop.f32.mrb[0].mxu0
      %v5575 = vadd.f32 0.0, %v5574
      %v5576 = vpop.f32.mrb[0].mxu0
      %5577 = vmatprep.mubr.bf16.mxu0 %v5334
      %5578 = vmatmul.mubr.bf16.gmra.mrb[0].mxu0 %v5333
      %v5579 = vpop.f32.mrb[0].mxu0
      %v5580 = vadd.f32 0.0, %v5579
      %v5581 = vpop.f32.mrb[0].mxu0
      %v5582 = vpop.f32.mrb[0].mxu0
      %v5583 = vadd.f32 0.0, %v5582
      %v5584 = vpop.f32.mrb[0].mxu0
      %5585 = vmatprep.mubr.bf16.mxu0 %v5336
      %5586 = vmatmul.mubr.bf16.gmra.mrb[0].mxu0 %v5335
      %v5587 = vpop.f32.mrb[0].mxu0
      %v5588 = vadd.f32 0.0, %v5587
      %v5589 = vpop.f32.mrb[0].mxu0
      %v5590 = vpop.f32.mrb[0].mxu0
      %v5591 = vadd.f32 0.0, %v5590
      %v5592 = vpop.f32.mrb[0].mxu0
      %5593 = vdwg.mxu0
      %v5594 = vadd.f32 %v5144, %v5468
      %v5595 = vadd.f32 %v5145, %v5471
      %v5596 = vadd.f32 %v5146, %v5476
      %v5597 = vadd.f32 %v5147, %v5479
      %v5598 = vadd.f32 %v5148, %v5484
      %v5599 = vadd.f32 %v5149, %v5487
      %v5600 = vadd.f32 %v5150, %v5492
      %v5601 = vadd.f32 %v5151, %v5495
      %v5602 = vadd.f32 %v5152, %v5500
      %v5603 = vadd.f32 %v5153, %v5503
      %v5604 = vadd.f32 %v5154, %v5508
      %v5605 = vadd.f32 %v5155, %v5511
      %v5606 = vadd.f32 %v5156, %v5516
      %v5607 = vadd.f32 %v5157, %v5519
      %v5608 = vadd.f32 %v5158, %v5524
      %v5609 = vadd.f32 %v5159, %v5527
      %v5610 = vadd.f32 %v5160, %v5532
      %v5611 = vadd.f32 %v5161, %v5535
      %v5612 = vadd.f32 %v5162, %v5540
      %v5613 = vadd.f32 %v5163, %v5543
      %v5614 = vadd.f32 %v5164, %v5548
      %v5615 = vadd.f32 %v5165, %v5551
      %v5616 = vadd.f32 %v5166, %v5556
      %v5617 = vadd.f32 %v5167, %v5559
      %v5618 = vadd.f32 %v5168, %v5564
      %v5619 = vadd.f32 %v5169, %v5567
      %v5620 = vadd.f32 %v5170, %v5572
      %v5621 = vadd.f32 %v5171, %v5575
      %v5622 = vadd.f32 %v5172, %v5580
      %v5623 = vadd.f32 %v5173, %v5583
      %v5624 = vadd.f32 %v5174, %v5588
      %v5625 = vadd.f32 %v5175, %v5591
      %s5626 = scalar_lea.vmem %s5, 1536
      %v5627 = vld [vmem:[%s5626] sm:$0xff]
      %v5628 = vld [vmem:[%s5626 + $0x8] sm:$0xff]
      %v5629 = vld [vmem:[%s5626 + $0x10] sm:$0xff]
      %v5630 = vld [vmem:[%s5626 + $0x18] sm:$0xff]
      %v5631 = vld [vmem:[%s5626 + $0x20] sm:$0xff]
      %v5632 = vld [vmem:[%s5626 + $0x28] sm:$0xff]
      %v5633 = vld [vmem:[%s5626 + $0x30] sm:$0xff]
      %v5634 = vld [vmem:[%s5626 + $0x38] sm:$0xff]
      %v5635 = vld [vmem:[%s5626 + $0x40] sm:$0xff]
      %v5636 = vld [vmem:[%s5626 + $0x48] sm:$0xff]
      %v5637 = vld [vmem:[%s5626 + $0x50] sm:$0xff]
      %v5638 = vld [vmem:[%s5626 + $0x58] sm:$0xff]
      %v5639 = vld [vmem:[%s5626 + $0x60] sm:$0xff]
      %v5640 = vld [vmem:[%s5626 + $0x68] sm:$0xff]
      %v5641 = vld [vmem:[%s5626 + $0x70] sm:$0xff]
      %v5642 = vld [vmem:[%s5626 + $0x78] sm:$0xff]
      %v5643 = vld [vmem:[%s5626 + $0x80] sm:$0xff]
      %v5644 = vld [vmem:[%s5626 + $0x88] sm:$0xff]
      %v5645 = vld [vmem:[%s5626 + $0x90] sm:$0xff]
      %v5646 = vld [vmem:[%s5626 + $0x98] sm:$0xff]
      %v5647 = vld [vmem:[%s5626 + $0xa0] sm:$0xff]
      %v5648 = vld [vmem:[%s5626 + $0xa8] sm:$0xff]
      %v5649 = vld [vmem:[%s5626 + $0xb0] sm:$0xff]
      %v5650 = vld [vmem:[%s5626 + $0xb8] sm:$0xff]
      %v5651 = vld [vmem:[%s5626 + $0xc0] sm:$0xff]
      %v5652 = vld [vmem:[%s5626 + $0xc8] sm:$0xff]
      %v5653 = vld [vmem:[%s5626 + $0xd0] sm:$0xff]
      %v5654 = vld [vmem:[%s5626 + $0xd8] sm:$0xff]
      %v5655 = vld [vmem:[%s5626 + $0xe0] sm:$0xff]
      %v5656 = vld [vmem:[%s5626 + $0xe8] sm:$0xff]
      %v5657 = vld [vmem:[%s5626 + $0xf0] sm:$0xff]
      %v5658 = vld [vmem:[%s5626 + $0xf8] sm:$0xff]
      %v5691 = vunpack.c.l.b16 %v5627
      %v5692 = vunpack.c.h.b16 %v5627
      %v5693 = vunpack.c.l.b16 %v5628
      %v5694 = vunpack.c.h.b16 %v5628
      %v5695 = vunpack.c.l.b16 %v5629
      %v5696 = vunpack.c.h.b16 %v5629
      %v5697 = vunpack.c.l.b16 %v5630
      %v5698 = vunpack.c.h.b16 %v5630
      %v5699 = vunpack.c.l.b16 %v5631
      %v5700 = vunpack.c.h.b16 %v5631
      %v5701 = vunpack.c.l.b16 %v5632
      %v5702 = vunpack.c.h.b16 %v5632
      %v5703 = vunpack.c.l.b16 %v5633
      %v5704 = vunpack.c.h.b16 %v5633
      %v5705 = vunpack.c.l.b16 %v5634
      %v5706 = vunpack.c.h.b16 %v5634
      %v5707 = vunpack.c.l.b16 %v5635
      %v5708 = vunpack.c.h.b16 %v5635
      %v5709 = vunpack.c.l.b16 %v5636
      %v5710 = vunpack.c.h.b16 %v5636
      %v5711 = vunpack.c.l.b16 %v5637
      %v5712 = vunpack.c.h.b16 %v5637
      %v5713 = vunpack.c.l.b16 %v5638
      %v5714 = vunpack.c.h.b16 %v5638
      %v5715 = vunpack.c.l.b16 %v5639
      %v5716 = vunpack.c.h.b16 %v5639
      %v5717 = vunpack.c.l.b16 %v5640
      %v5718 = vunpack.c.h.b16 %v5640
      %v5719 = vunpack.c.l.b16 %v5641
      %v5720 = vunpack.c.h.b16 %v5641
      %v5721 = vunpack.c.l.b16 %v5642
      %v5722 = vunpack.c.h.b16 %v5642
      %v5723 = vunpack.c.l.b16 %v5643
      %v5724 = vunpack.c.h.b16 %v5643
      %v5725 = vunpack.c.l.b16 %v5644
      %v5726 = vunpack.c.h.b16 %v5644
      %v5727 = vunpack.c.l.b16 %v5645
      %v5728 = vunpack.c.h.b16 %v5645
      %v5729 = vunpack.c.l.b16 %v5646
      %v5730 = vunpack.c.h.b16 %v5646
      %v5731 = vunpack.c.l.b16 %v5647
      %v5732 = vunpack.c.h.b16 %v5647
      %v5733 = vunpack.c.l.b16 %v5648
      %v5734 = vunpack.c.h.b16 %v5648
      %v5735 = vunpack.c.l.b16 %v5649
      %v5736 = vunpack.c.h.b16 %v5649
      %v5737 = vunpack.c.l.b16 %v5650
      %v5738 = vunpack.c.h.b16 %v5650
      %v5739 = vunpack.c.l.b16 %v5651
      %v5740 = vunpack.c.h.b16 %v5651
      %v5741 = vunpack.c.l.b16 %v5652
      %v5742 = vunpack.c.h.b16 %v5652
      %v5743 = vunpack.c.l.b16 %v5653
      %v5744 = vunpack.c.h.b16 %v5653
      %v5745 = vunpack.c.l.b16 %v5654
      %v5746 = vunpack.c.h.b16 %v5654
      %v5747 = vunpack.c.l.b16 %v5655
      %v5748 = vunpack.c.h.b16 %v5655
      %v5749 = vunpack.c.l.b16 %v5656
      %v5750 = vunpack.c.h.b16 %v5656
      %v5751 = vunpack.c.l.b16 %v5657
      %v5752 = vunpack.c.h.b16 %v5657
      %v5753 = vunpack.c.l.b16 %v5658
      %v5754 = vunpack.c.h.b16 %v5658
      %v5755 = vpack.c.b16 %v5693, %v5691
      %v5756 = vpack.c.b16 %v5694, %v5692
      %v5757 = vpack.c.b16 %v5697, %v5695
      %v5758 = vpack.c.b16 %v5698, %v5696
      %v5759 = vpack.c.b16 %v5701, %v5699
      %v5760 = vpack.c.b16 %v5702, %v5700
      %v5761 = vpack.c.b16 %v5705, %v5703
      %v5762 = vpack.c.b16 %v5706, %v5704
      %v5763 = vpack.c.b16 %v5709, %v5707
      %v5764 = vpack.c.b16 %v5710, %v5708
      %v5765 = vpack.c.b16 %v5713, %v5711
      %v5766 = vpack.c.b16 %v5714, %v5712
      %v5767 = vpack.c.b16 %v5717, %v5715
      %v5768 = vpack.c.b16 %v5718, %v5716
      %v5769 = vpack.c.b16 %v5721, %v5719
      %v5770 = vpack.c.b16 %v5722, %v5720
      %v5771 = vpack.c.b16 %v5725, %v5723
      %v5772 = vpack.c.b16 %v5726, %v5724
      %v5773 = vpack.c.b16 %v5729, %v5727
      %v5774 = vpack.c.b16 %v5730, %v5728
      %v5775 = vpack.c.b16 %v5733, %v5731
      %v5776 = vpack.c.b16 %v5734, %v5732
      %v5777 = vpack.c.b16 %v5737, %v5735
      %v5778 = vpack.c.b16 %v5738, %v5736
      %v5779 = vpack.c.b16 %v5741, %v5739
      %v5780 = vpack.c.b16 %v5742, %v5740
      %v5781 = vpack.c.b16 %v5745, %v5743
      %v5782 = vpack.c.b16 %v5746, %v5744
      %v5783 = vpack.c.b16 %v5749, %v5747
      %v5784 = vpack.c.b16 %v5750, %v5748
      %v5785 = vpack.c.b16 %v5753, %v5751
      %v5786 = vpack.c.b16 %v5754, %v5752
      %5819 = vrot.lane.b32.xlu0 %v4807, 64
      %v5820 = vpop.permute.xlu0 %5819
      %5821 = vrot.lane.b32.xlu0 %v4808, 64
      %v5822 = vpop.permute.xlu0 %5821
      %5823 = vrot.lane.b32.xlu0 %v4809, 64
      %v5824 = vpop.permute.xlu0 %5823
      %5825 = vrot.lane.b32.xlu0 %v4810, 64
      %v5826 = vpop.permute.xlu0 %5825
      %5827 = vrot.lane.b32.xlu0 %v4811, 64
      %v5828 = vpop.permute.xlu0 %5827
      %5829 = vrot.lane.b32.xlu0 %v4812, 64
      %v5830 = vpop.permute.xlu0 %5829
      %5831 = vrot.lane.b32.xlu0 %v4813, 64
      %v5832 = vpop.permute.xlu0 %5831
      %5833 = vrot.lane.b32.xlu0 %v4814, 64
      %v5834 = vpop.permute.xlu0 %5833
      %5835 = vrot.lane.b32.xlu0 %v4815, 64
      %v5836 = vpop.permute.xlu0 %5835
      %5837 = vrot.lane.b32.xlu0 %v4816, 64
      %v5838 = vpop.permute.xlu0 %5837
      %5839 = vrot.lane.b32.xlu0 %v4817, 64
      %v5840 = vpop.permute.xlu0 %5839
      %5841 = vrot.lane.b32.xlu0 %v4818, 64
      %v5842 = vpop.permute.xlu0 %5841
      %5843 = vrot.lane.b32.xlu0 %v4819, 64
      %v5844 = vpop.permute.xlu0 %5843
      %5845 = vrot.lane.b32.xlu0 %v4820, 64
      %v5846 = vpop.permute.xlu0 %5845
      %5847 = vrot.lane.b32.xlu0 %v4821, 64
      %v5848 = vpop.permute.xlu0 %5847
      %5849 = vrot.lane.b32.xlu0 %v4822, 64
      %v5850 = vpop.permute.xlu0 %5849
      %5867 = vmatprep.subr.bf16.mxu0 0
      %5868 = vmatpush1.bf16.msra.mxu0 %v5820
      %5869 = vmatprep.subr.bf16.mxu0 0
      %5870 = vmatpush1.bf16.msra.mxu0 %v5822
      %5871 = vmatprep.subr.bf16.mxu0 0
      %5872 = vmatpush1.bf16.msra.mxu0 %v5824
      %5873 = vmatprep.subr.bf16.mxu0 0
      %5874 = vmatpush1.bf16.msra.mxu0 %v5826
      %5875 = vmatprep.subr.bf16.mxu0 0
      %5876 = vmatpush1.bf16.msra.mxu0 %v5828
      %5877 = vmatprep.subr.bf16.mxu0 0
      %5878 = vmatpush1.bf16.msra.mxu0 %v5830
      %5879 = vmatprep.subr.bf16.mxu0 0
      %5880 = vmatpush1.bf16.msra.mxu0 %v5832
      %5881 = vmatprep.subr.bf16.mxu0 0
      %5882 = vmatpush1.bf16.msra.mxu0 %v5834
      %5883 = vmatprep.subr.bf16.mxu0 0
      %5884 = vmatpush1.bf16.msra.mxu0 %v5836
      %5885 = vmatprep.subr.bf16.mxu0 0
      %5886 = vmatpush1.bf16.msra.mxu0 %v5838
      %5887 = vmatprep.subr.bf16.mxu0 0
      %5888 = vmatpush1.bf16.msra.mxu0 %v5840
      %5889 = vmatprep.subr.bf16.mxu0 0
      %5890 = vmatpush1.bf16.msra.mxu0 %v5842
      %5891 = vmatprep.subr.bf16.mxu0 0
      %5892 = vmatpush1.bf16.msra.mxu0 %v5844
      %5893 = vmatprep.subr.bf16.mxu0 0
      %5894 = vmatpush1.bf16.msra.mxu0 %v5846
      %5895 = vmatprep.subr.bf16.mxu0 0
      %5896 = vmatpush1.bf16.msra.mxu0 %v5848
      %5897 = vmatprep.subr.bf16.mxu0 0
      %5898 = vmatpush1.bf16.msra.mxu0 %v5850
      %5899 = vmatprep.mubr.bf16.mxu0 %v5756
      %5900 = vmatmul.mubr.bf16.gmra.mrb[0].mxu0 %v5755
      %v5901 = vpop.f32.mrb[0].mxu0
      %v5902 = vadd.f32 0.0, %v5901
      %v5903 = vpop.f32.mrb[0].mxu0
      %v5904 = vpop.f32.mrb[0].mxu0
      %v5905 = vadd.f32 0.0, %v5904
      %v5906 = vpop.f32.mrb[0].mxu0
      %5907 = vmatprep.mubr.bf16.mxu0 %v5758
      %5908 = vmatmul.mubr.bf16.gmra.mrb[0].mxu0 %v5757
      %v5909 = vpop.f32.mrb[0].mxu0
      %v5910 = vadd.f32 0.0, %v5909
      %v5911 = vpop.f32.mrb[0].mxu0
      %v5912 = vpop.f32.mrb[0].mxu0
      %v5913 = vadd.f32 0.0, %v5912
      %v5914 = vpop.f32.mrb[0].mxu0
      %5915 = vmatprep.mubr.bf16.mxu0 %v5760
      %5916 = vmatmul.mubr.bf16.gmra.mrb[0].mxu0 %v5759
      %v5917 = vpop.f32.mrb[0].mxu0
      %v5918 = vadd.f32 0.0, %v5917
      %v5919 = vpop.f32.mrb[0].mxu0
      %v5920 = vpop.f32.mrb[0].mxu0
      %v5921 = vadd.f32 0.0, %v5920
      %v5922 = vpop.f32.mrb[0].mxu0
      %5923 = vmatprep.mubr.bf16.mxu0 %v5762
      %5924 = vmatmul.mubr.bf16.gmra.mrb[0].mxu0 %v5761
      %v5925 = vpop.f32.mrb[0].mxu0
      %v5926 = vadd.f32 0.0, %v5925
      %v5927 = vpop.f32.mrb[0].mxu0
      %v5928 = vpop.f32.mrb[0].mxu0
      %v5929 = vadd.f32 0.0, %v5928
      %v5930 = vpop.f32.mrb[0].mxu0
      %5931 = vmatprep.mubr.bf16.mxu0 %v5764
      %5932 = vmatmul.mubr.bf16.gmra.mrb[0].mxu0 %v5763
      %v5933 = vpop.f32.mrb[0].mxu0
      %v5934 = vadd.f32 0.0, %v5933
      %v5935 = vpop.f32.mrb[0].mxu0
      %v5936 = vpop.f32.mrb[0].mxu0
      %v5937 = vadd.f32 0.0, %v5936
      %v5938 = vpop.f32.mrb[0].mxu0
      %5939 = vmatprep.mubr.bf16.mxu0 %v5766
      %5940 = vmatmul.mubr.bf16.gmra.mrb[0].mxu0 %v5765
      %v5941 = vpop.f32.mrb[0].mxu0
      %v5942 = vadd.f32 0.0, %v5941
      %v5943 = vpop.f32.mrb[0].mxu0
      %v5944 = vpop.f32.mrb[0].mxu0
      %v5945 = vadd.f32 0.0, %v5944
      %v5946 = vpop.f32.mrb[0].mxu0
      %5947 = vmatprep.mubr.bf16.mxu0 %v5768
      %5948 = vmatmul.mubr.bf16.gmra.mrb[0].mxu0 %v5767
      %v5949 = vpop.f32.mrb[0].mxu0
      %v5950 = vadd.f32 0.0, %v5949
      %v5951 = vpop.f32.mrb[0].mxu0
      %v5952 = vpop.f32.mrb[0].mxu0
      %v5953 = vadd.f32 0.0, %v5952
      %v5954 = vpop.f32.mrb[0].mxu0
      %5955 = vmatprep.mubr.bf16.mxu0 %v5770
      %5956 = vmatmul.mubr.bf16.gmra.mrb[0].mxu0 %v5769
      %v5957 = vpop.f32.mrb[0].mxu0
      %v5958 = vadd.f32 0.0, %v5957
      %v5959 = vpop.f32.mrb[0].mxu0
      %v5960 = vpop.f32.mrb[0].mxu0
      %v5961 = vadd.f32 0.0, %v5960
      %v5962 = vpop.f32.mrb[0].mxu0
      %5963 = vmatprep.mubr.bf16.mxu0 %v5772
      %5964 = vmatmul.mubr.bf16.gmra.mrb[0].mxu0 %v5771
      %v5965 = vpop.f32.mrb[0].mxu0
      %v5966 = vadd.f32 0.0, %v5965
      %v5967 = vpop.f32.mrb[0].mxu0
      %v5968 = vpop.f32.mrb[0].mxu0
      %v5969 = vadd.f32 0.0, %v5968
      %v5970 = vpop.f32.mrb[0].mxu0
      %5971 = vmatprep.mubr.bf16.mxu0 %v5774
      %5972 = vmatmul.mubr.bf16.gmra.mrb[0].mxu0 %v5773
      %v5973 = vpop.f32.mrb[0].mxu0
      %v5974 = vadd.f32 0.0, %v5973
      %v5975 = vpop.f32.mrb[0].mxu0
      %v5976 = vpop.f32.mrb[0].mxu0
      %v5977 = vadd.f32 0.0, %v5976
      %v5978 = vpop.f32.mrb[0].mxu0
      %5979 = vmatprep.mubr.bf16.mxu0 %v5776
      %5980 = vmatmul.mubr.bf16.gmra.mrb[0].mxu0 %v5775
      %v5981 = vpop.f32.mrb[0].mxu0
      %v5982 = vadd.f32 0.0, %v5981
      %v5983 = vpop.f32.mrb[0].mxu0
      %v5984 = vpop.f32.mrb[0].mxu0
      %v5985 = vadd.f32 0.0, %v5984
      %v5986 = vpop.f32.mrb[0].mxu0
      %5987 = vmatprep.mubr.bf16.mxu0 %v5778
      %5988 = vmatmul.mubr.bf16.gmra.mrb[0].mxu0 %v5777
      %v5989 = vpop.f32.mrb[0].mxu0
      %v5990 = vadd.f32 0.0, %v5989
      %v5991 = vpop.f32.mrb[0].mxu0
      %v5992 = vpop.f32.mrb[0].mxu0
      %v5993 = vadd.f32 0.0, %v5992
      %v5994 = vpop.f32.mrb[0].mxu0
      %5995 = vmatprep.mubr.bf16.mxu0 %v5780
      %5996 = vmatmul.mubr.bf16.gmra.mrb[0].mxu0 %v5779
      %v5997 = vpop.f32.mrb[0].mxu0
      %v5998 = vadd.f32 0.0, %v5997
      %v5999 = vpop.f32.mrb[0].mxu0
      %v6000 = vpop.f32.mrb[0].mxu0
      %v6001 = vadd.f32 0.0, %v6000
      %v6002 = vpop.f32.mrb[0].mxu0
      %6003 = vmatprep.mubr.bf16.mxu0 %v5782
      %6004 = vmatmul.mubr.bf16.gmra.mrb[0].mxu0 %v5781
      %v6005 = vpop.f32.mrb[0].mxu0
      %v6006 = vadd.f32 0.0, %v6005
      %v6007 = vpop.f32.mrb[0].mxu0
      %v6008 = vpop.f32.mrb[0].mxu0
      %v6009 = vadd.f32 0.0, %v6008
      %v6010 = vpop.f32.mrb[0].mxu0
      %6011 = vmatprep.mubr.bf16.mxu0 %v5784
      %6012 = vmatmul.mubr.bf16.gmra.mrb[0].mxu0 %v5783
      %v6013 = vpop.f32.mrb[0].mxu0
      %v6014 = vadd.f32 0.0, %v6013
      %v6015 = vpop.f32.mrb[0].mxu0
      %v6016 = vpop.f32.mrb[0].mxu0
      %v6017 = vadd.f32 0.0, %v6016
      %v6018 = vpop.f32.mrb[0].mxu0
      %6019 = vmatprep.mubr.bf16.mxu0 %v5786
      %6020 = vmatmul.mubr.bf16.gmra.mrb[0].mxu0 %v5785
      %v6021 = vpop.f32.mrb[0].mxu0
      %v6022 = vadd.f32 0.0, %v6021
      %v6023 = vpop.f32.mrb[0].mxu0
      %v6024 = vpop.f32.mrb[0].mxu0
      %v6025 = vadd.f32 0.0, %v6024
      %v6026 = vpop.f32.mrb[0].mxu0
      %6027 = vdwg.mxu0
      %v6028 = vadd.f32 %v5594, %v5902
      %v6029 = vadd.f32 %v5595, %v5905
      %v6030 = vadd.f32 %v5596, %v5910
      %v6031 = vadd.f32 %v5597, %v5913
      %v6032 = vadd.f32 %v5598, %v5918
      %v6033 = vadd.f32 %v5599, %v5921
      %v6034 = vadd.f32 %v5600, %v5926
      %v6035 = vadd.f32 %v5601, %v5929
      %v6036 = vadd.f32 %v5602, %v5934
      %v6037 = vadd.f32 %v5603, %v5937
      %v6038 = vadd.f32 %v5604, %v5942
      %v6039 = vadd.f32 %v5605, %v5945
      %v6040 = vadd.f32 %v5606, %v5950
      %v6041 = vadd.f32 %v5607, %v5953
      %v6042 = vadd.f32 %v5608, %v5958
      %v6043 = vadd.f32 %v5609, %v5961
      %v6044 = vadd.f32 %v5610, %v5966
      %v6045 = vadd.f32 %v5611, %v5969
      %v6046 = vadd.f32 %v5612, %v5974
      %v6047 = vadd.f32 %v5613, %v5977
      %v6048 = vadd.f32 %v5614, %v5982
      %v6049 = vadd.f32 %v5615, %v5985
      %v6050 = vadd.f32 %v5616, %v5990
      %v6051 = vadd.f32 %v5617, %v5993
      %v6052 = vadd.f32 %v5618, %v5998
      %v6053 = vadd.f32 %v5619, %v6001
      %v6054 = vadd.f32 %v5620, %v6006
      %v6055 = vadd.f32 %v5621, %v6009
      %v6056 = vadd.f32 %v5622, %v6014
      %v6057 = vadd.f32 %v5623, %v6017
      %v6058 = vadd.f32 %v5624, %v6022
      %v6059 = vadd.f32 %v5625, %v6025
      %s6060 = scalar_lea.vmem %s5, 1792
      %v6061 = vld [vmem:[%s6060] sm:$0xff]
      %v6062 = vld [vmem:[%s6060 + $0x8] sm:$0xff]
      %v6063 = vld [vmem:[%s6060 + $0x10] sm:$0xff]
      %v6064 = vld [vmem:[%s6060 + $0x18] sm:$0xff]
      %v6065 = vld [vmem:[%s6060 + $0x20] sm:$0xff]
      %v6066 = vld [vmem:[%s6060 + $0x28] sm:$0xff]
      %v6067 = vld [vmem:[%s6060 + $0x30] sm:$0xff]
      %v6068 = vld [vmem:[%s6060 + $0x38] sm:$0xff]
      %v6069 = vld [vmem:[%s6060 + $0x40] sm:$0xff]
      %v6070 = vld [vmem:[%s6060 + $0x48] sm:$0xff]
      %v6071 = vld [vmem:[%s6060 + $0x50] sm:$0xff]
      %v6072 = vld [vmem:[%s6060 + $0x58] sm:$0xff]
      %v6073 = vld [vmem:[%s6060 + $0x60] sm:$0xff]
      %v6074 = vld [vmem:[%s6060 + $0x68] sm:$0xff]
      %v6075 = vld [vmem:[%s6060 + $0x70] sm:$0xff]
      %v6076 = vld [vmem:[%s6060 + $0x78] sm:$0xff]
      %v6077 = vld [vmem:[%s6060 + $0x80] sm:$0xff]
      %v6078 = vld [vmem:[%s6060 + $0x88] sm:$0xff]
      %v6079 = vld [vmem:[%s6060 + $0x90] sm:$0xff]
      %v6080 = vld [vmem:[%s6060 + $0x98] sm:$0xff]
      %v6081 = vld [vmem:[%s6060 + $0xa0] sm:$0xff]
      %v6082 = vld [vmem:[%s6060 + $0xa8] sm:$0xff]
      %v6083 = vld [vmem:[%s6060 + $0xb0] sm:$0xff]
      %v6084 = vld [vmem:[%s6060 + $0xb8] sm:$0xff]
      %v6085 = vld [vmem:[%s6060 + $0xc0] sm:$0xff]
      %v6086 = vld [vmem:[%s6060 + $0xc8] sm:$0xff]
      %v6087 = vld [vmem:[%s6060 + $0xd0] sm:$0xff]
      %v6088 = vld [vmem:[%s6060 + $0xd8] sm:$0xff]
      %v6089 = vld [vmem:[%s6060 + $0xe0] sm:$0xff]
      %v6090 = vld [vmem:[%s6060 + $0xe8] sm:$0xff]
      %v6091 = vld [vmem:[%s6060 + $0xf0] sm:$0xff]
      %v6092 = vld [vmem:[%s6060 + $0xf8] sm:$0xff]
      %v6125 = vunpack.c.l.b16 %v6061
      %v6126 = vunpack.c.h.b16 %v6061
      %v6127 = vunpack.c.l.b16 %v6062
      %v6128 = vunpack.c.h.b16 %v6062
      %v6129 = vunpack.c.l.b16 %v6063
      %v6130 = vunpack.c.h.b16 %v6063
      %v6131 = vunpack.c.l.b16 %v6064
      %v6132 = vunpack.c.h.b16 %v6064
      %v6133 = vunpack.c.l.b16 %v6065
      %v6134 = vunpack.c.h.b16 %v6065
      %v6135 = vunpack.c.l.b16 %v6066
      %v6136 = vunpack.c.h.b16 %v6066
      %v6137 = vunpack.c.l.b16 %v6067
      %v6138 = vunpack.c.h.b16 %v6067
      %v6139 = vunpack.c.l.b16 %v6068
      %v6140 = vunpack.c.h.b16 %v6068
      %v6141 = vunpack.c.l.b16 %v6069
      %v6142 = vunpack.c.h.b16 %v6069
      %v6143 = vunpack.c.l.b16 %v6070
      %v6144 = vunpack.c.h.b16 %v6070
      %v6145 = vunpack.c.l.b16 %v6071
      %v6146 = vunpack.c.h.b16 %v6071
      %v6147 = vunpack.c.l.b16 %v6072
      %v6148 = vunpack.c.h.b16 %v6072
      %v6149 = vunpack.c.l.b16 %v6073
      %v6150 = vunpack.c.h.b16 %v6073
      %v6151 = vunpack.c.l.b16 %v6074
      %v6152 = vunpack.c.h.b16 %v6074
      %v6153 = vunpack.c.l.b16 %v6075
      %v6154 = vunpack.c.h.b16 %v6075
      %v6155 = vunpack.c.l.b16 %v6076
      %v6156 = vunpack.c.h.b16 %v6076
      %v6157 = vunpack.c.l.b16 %v6077
      %v6158 = vunpack.c.h.b16 %v6077
      %v6159 = vunpack.c.l.b16 %v6078
      %v6160 = vunpack.c.h.b16 %v6078
      %v6161 = vunpack.c.l.b16 %v6079
      %v6162 = vunpack.c.h.b16 %v6079
      %v6163 = vunpack.c.l.b16 %v6080
      %v6164 = vunpack.c.h.b16 %v6080
      %v6165 = vunpack.c.l.b16 %v6081
      %v6166 = vunpack.c.h.b16 %v6081
      %v6167 = vunpack.c.l.b16 %v6082
      %v6168 = vunpack.c.h.b16 %v6082
      %v6169 = vunpack.c.l.b16 %v6083
      %v6170 = vunpack.c.h.b16 %v6083
      %v6171 = vunpack.c.l.b16 %v6084
      %v6172 = vunpack.c.h.b16 %v6084
      %v6173 = vunpack.c.l.b16 %v6085
      %v6174 = vunpack.c.h.b16 %v6085
      %v6175 = vunpack.c.l.b16 %v6086
      %v6176 = vunpack.c.h.b16 %v6086
      %v6177 = vunpack.c.l.b16 %v6087
      %v6178 = vunpack.c.h.b16 %v6087
      %v6179 = vunpack.c.l.b16 %v6088
      %v6180 = vunpack.c.h.b16 %v6088
      %v6181 = vunpack.c.l.b16 %v6089
      %v6182 = vunpack.c.h.b16 %v6089
      %v6183 = vunpack.c.l.b16 %v6090
      %v6184 = vunpack.c.h.b16 %v6090
      %v6185 = vunpack.c.l.b16 %v6091
      %v6186 = vunpack.c.h.b16 %v6091
      %v6187 = vunpack.c.l.b16 %v6092
      %v6188 = vunpack.c.h.b16 %v6092
      %v6189 = vpack.c.b16 %v6127, %v6125
      %v6190 = vpack.c.b16 %v6128, %v6126
      %v6191 = vpack.c.b16 %v6131, %v6129
      %v6192 = vpack.c.b16 %v6132, %v6130
      %v6193 = vpack.c.b16 %v6135, %v6133
      %v6194 = vpack.c.b16 %v6136, %v6134
      %v6195 = vpack.c.b16 %v6139, %v6137
      %v6196 = vpack.c.b16 %v6140, %v6138
      %v6197 = vpack.c.b16 %v6143, %v6141
      %v6198 = vpack.c.b16 %v6144, %v6142
      %v6199 = vpack.c.b16 %v6147, %v6145
      %v6200 = vpack.c.b16 %v6148, %v6146
      %v6201 = vpack.c.b16 %v6151, %v6149
      %v6202 = vpack.c.b16 %v6152, %v6150
      %v6203 = vpack.c.b16 %v6155, %v6153
      %v6204 = vpack.c.b16 %v6156, %v6154
      %v6205 = vpack.c.b16 %v6159, %v6157
      %v6206 = vpack.c.b16 %v6160, %v6158
      %v6207 = vpack.c.b16 %v6163, %v6161
      %v6208 = vpack.c.b16 %v6164, %v6162
      %v6209 = vpack.c.b16 %v6167, %v6165
      %v6210 = vpack.c.b16 %v6168, %v6166
      %v6211 = vpack.c.b16 %v6171, %v6169
      %v6212 = vpack.c.b16 %v6172, %v6170
      %v6213 = vpack.c.b16 %v6175, %v6173
      %v6214 = vpack.c.b16 %v6176, %v6174
      %v6215 = vpack.c.b16 %v6179, %v6177
      %v6216 = vpack.c.b16 %v6180, %v6178
      %v6217 = vpack.c.b16 %v6183, %v6181
      %v6218 = vpack.c.b16 %v6184, %v6182
      %v6219 = vpack.c.b16 %v6187, %v6185
      %v6220 = vpack.c.b16 %v6188, %v6186
      %6253 = vrot.lane.b32.xlu0 %v4807, 32
      %v6254 = vpop.permute.xlu0 %6253
      %6255 = vrot.lane.b32.xlu0 %v4808, 32
      %v6256 = vpop.permute.xlu0 %6255
      %6257 = vrot.lane.b32.xlu0 %v4809, 32
      %v6258 = vpop.permute.xlu0 %6257
      %6259 = vrot.lane.b32.xlu0 %v4810, 32
      %v6260 = vpop.permute.xlu0 %6259
      %6261 = vrot.lane.b32.xlu0 %v4811, 32
      %v6262 = vpop.permute.xlu0 %6261
      %6263 = vrot.lane.b32.xlu0 %v4812, 32
      %v6264 = vpop.permute.xlu0 %6263
      %6265 = vrot.lane.b32.xlu0 %v4813, 32
      %v6266 = vpop.permute.xlu0 %6265
      %6267 = vrot.lane.b32.xlu0 %v4814, 32
      %v6268 = vpop.permute.xlu0 %6267
      %6269 = vrot.lane.b32.xlu0 %v4815, 32
      %v6270 = vpop.permute.xlu0 %6269
      %6271 = vrot.lane.b32.xlu0 %v4816, 32
      %v6272 = vpop.permute.xlu0 %6271
      %6273 = vrot.lane.b32.xlu0 %v4817, 32
      %v6274 = vpop.permute.xlu0 %6273
      %6275 = vrot.lane.b32.xlu0 %v4818, 32
      %v6276 = vpop.permute.xlu0 %6275
      %6277 = vrot.lane.b32.xlu0 %v4819, 32
      %v6278 = vpop.permute.xlu0 %6277
      %6279 = vrot.lane.b32.xlu0 %v4820, 32
      %v6280 = vpop.permute.xlu0 %6279
      %6281 = vrot.lane.b32.xlu0 %v4821, 32
      %v6282 = vpop.permute.xlu0 %6281
      %6283 = vrot.lane.b32.xlu0 %v4822, 32
      %v6284 = vpop.permute.xlu0 %6283
      %6301 = vmatprep.subr.bf16.mxu0 0
      %6302 = vmatpush1.bf16.msra.mxu0 %v6254
      %6303 = vmatprep.subr.bf16.mxu0 0
      %6304 = vmatpush1.bf16.msra.mxu0 %v6256
      %6305 = vmatprep.subr.bf16.mxu0 0
      %6306 = vmatpush1.bf16.msra.mxu0 %v6258
      %6307 = vmatprep.subr.bf16.mxu0 0
      %6308 = vmatpush1.bf16.msra.mxu0 %v6260
      %6309 = vmatprep.subr.bf16.mxu0 0
      %6310 = vmatpush1.bf16.msra.mxu0 %v6262
      %6311 = vmatprep.subr.bf16.mxu0 0
      %6312 = vmatpush1.bf16.msra.mxu0 %v6264
      %6313 = vmatprep.subr.bf16.mxu0 0
      %6314 = vmatpush1.bf16.msra.mxu0 %v6266
      %6315 = vmatprep.subr.bf16.mxu0 0
      %6316 = vmatpush1.bf16.msra.mxu0 %v6268
      %6317 = vmatprep.subr.bf16.mxu0 0
      %6318 = vmatpush1.bf16.msra.mxu0 %v6270
      %6319 = vmatprep.subr.bf16.mxu0 0
      %6320 = vmatpush1.bf16.msra.mxu0 %v6272
      %6321 = vmatprep.subr.bf16.mxu0 0
      %6322 = vmatpush1.bf16.msra.mxu0 %v6274
      %6323 = vmatprep.subr.bf16.mxu0 0
      %6324 = vmatpush1.bf16.msra.mxu0 %v6276
      %6325 = vmatprep.subr.bf16.mxu0 0
      %6326 = vmatpush1.bf16.msra.mxu0 %v6278
      %6327 = vmatprep.subr.bf16.mxu0 0
      %6328 = vmatpush1.bf16.msra.mxu0 %v6280
      %6329 = vmatprep.subr.bf16.mxu0 0
      %6330 = vmatpush1.bf16.msra.mxu0 %v6282
      %6331 = vmatprep.subr.bf16.mxu0 0
      %6332 = vmatpush1.bf16.msra.mxu0 %v6284
      %6333 = vmatprep.mubr.bf16.mxu0 %v6190
      %6334 = vmatmul.mubr.bf16.gmra.mrb[0].mxu0 %v6189
      %v6335 = vpop.f32.mrb[0].mxu0
      %v6336 = vadd.f32 0.0, %v6335
      %v6337 = vpop.f32.mrb[0].mxu0
      %v6338 = vpop.f32.mrb[0].mxu0
      %v6339 = vadd.f32 0.0, %v6338
      %v6340 = vpop.f32.mrb[0].mxu0
      %6341 = vmatprep.mubr.bf16.mxu0 %v6192
      %6342 = vmatmul.mubr.bf16.gmra.mrb[0].mxu0 %v6191
      %v6343 = vpop.f32.mrb[0].mxu0
      %v6344 = vadd.f32 0.0, %v6343
      %v6345 = vpop.f32.mrb[0].mxu0
      %v6346 = vpop.f32.mrb[0].mxu0
      %v6347 = vadd.f32 0.0, %v6346
      %v6348 = vpop.f32.mrb[0].mxu0
      %6349 = vmatprep.mubr.bf16.mxu0 %v6194
      %6350 = vmatmul.mubr.bf16.gmra.mrb[0].mxu0 %v6193
      %v6351 = vpop.f32.mrb[0].mxu0
      %v6352 = vadd.f32 0.0, %v6351
      %v6353 = vpop.f32.mrb[0].mxu0
      %v6354 = vpop.f32.mrb[0].mxu0
      %v6355 = vadd.f32 0.0, %v6354
      %v6356 = vpop.f32.mrb[0].mxu0
      %6357 = vmatprep.mubr.bf16.mxu0 %v6196
      %6358 = vmatmul.mubr.bf16.gmra.mrb[0].mxu0 %v6195
      %v6359 = vpop.f32.mrb[0].mxu0
      %v6360 = vadd.f32 0.0, %v6359
      %v6361 = vpop.f32.mrb[0].mxu0
      %v6362 = vpop.f32.mrb[0].mxu0
      %v6363 = vadd.f32 0.0, %v6362
      %v6364 = vpop.f32.mrb[0].mxu0
      %6365 = vmatprep.mubr.bf16.mxu0 %v6198
      %6366 = vmatmul.mubr.bf16.gmra.mrb[0].mxu0 %v6197
      %v6367 = vpop.f32.mrb[0].mxu0
      %v6368 = vadd.f32 0.0, %v6367
      %v6369 = vpop.f32.mrb[0].mxu0
      %v6370 = vpop.f32.mrb[0].mxu0
      %v6371 = vadd.f32 0.0, %v6370
      %v6372 = vpop.f32.mrb[0].mxu0
      %6373 = vmatprep.mubr.bf16.mxu0 %v6200
      %6374 = vmatmul.mubr.bf16.gmra.mrb[0].mxu0 %v6199
      %v6375 = vpop.f32.mrb[0].mxu0
      %v6376 = vadd.f32 0.0, %v6375
      %v6377 = vpop.f32.mrb[0].mxu0
      %v6378 = vpop.f32.mrb[0].mxu0
      %v6379 = vadd.f32 0.0, %v6378
      %v6380 = vpop.f32.mrb[0].mxu0
      %6381 = vmatprep.mubr.bf16.mxu0 %v6202
      %6382 = vmatmul.mubr.bf16.gmra.mrb[0].mxu0 %v6201
      %v6383 = vpop.f32.mrb[0].mxu0
      %v6384 = vadd.f32 0.0, %v6383
      %v6385 = vpop.f32.mrb[0].mxu0
      %v6386 = vpop.f32.mrb[0].mxu0
      %v6387 = vadd.f32 0.0, %v6386
      %v6388 = vpop.f32.mrb[0].mxu0
      %6389 = vmatprep.mubr.bf16.mxu0 %v6204
      %6390 = vmatmul.mubr.bf16.gmra.mrb[0].mxu0 %v6203
      %v6391 = vpop.f32.mrb[0].mxu0
      %v6392 = vadd.f32 0.0, %v6391
      %v6393 = vpop.f32.mrb[0].mxu0
      %v6394 = vpop.f32.mrb[0].mxu0
      %v6395 = vadd.f32 0.0, %v6394
      %v6396 = vpop.f32.mrb[0].mxu0
      %6397 = vmatprep.mubr.bf16.mxu0 %v6206
      %6398 = vmatmul.mubr.bf16.gmra.mrb[0].mxu0 %v6205
      %v6399 = vpop.f32.mrb[0].mxu0
      %v6400 = vadd.f32 0.0, %v6399
      %v6401 = vpop.f32.mrb[0].mxu0
      %v6402 = vpop.f32.mrb[0].mxu0
      %v6403 = vadd.f32 0.0, %v6402
      %v6404 = vpop.f32.mrb[0].mxu0
      %6405 = vmatprep.mubr.bf16.mxu0 %v6208
      %6406 = vmatmul.mubr.bf16.gmra.mrb[0].mxu0 %v6207
      %v6407 = vpop.f32.mrb[0].mxu0
      %v6408 = vadd.f32 0.0, %v6407
      %v6409 = vpop.f32.mrb[0].mxu0
      %v6410 = vpop.f32.mrb[0].mxu0
      %v6411 = vadd.f32 0.0, %v6410
      %v6412 = vpop.f32.mrb[0].mxu0
      %6413 = vmatprep.mubr.bf16.mxu0 %v6210
      %6414 = vmatmul.mubr.bf16.gmra.mrb[0].mxu0 %v6209
      %v6415 = vpop.f32.mrb[0].mxu0
      %v6416 = vadd.f32 0.0, %v6415
      %v6417 = vpop.f32.mrb[0].mxu0
      %v6418 = vpop.f32.mrb[0].mxu0
      %v6419 = vadd.f32 0.0, %v6418
      %v6420 = vpop.f32.mrb[0].mxu0
      %6421 = vmatprep.mubr.bf16.mxu0 %v6212
      %6422 = vmatmul.mubr.bf16.gmra.mrb[0].mxu0 %v6211
      %v6423 = vpop.f32.mrb[0].mxu0
      %v6424 = vadd.f32 0.0, %v6423
      %v6425 = vpop.f32.mrb[0].mxu0
      %v6426 = vpop.f32.mrb[0].mxu0
      %v6427 = vadd.f32 0.0, %v6426
      %v6428 = vpop.f32.mrb[0].mxu0
      %6429 = vmatprep.mubr.bf16.mxu0 %v6214
      %6430 = vmatmul.mubr.bf16.gmra.mrb[0].mxu0 %v6213
      %v6431 = vpop.f32.mrb[0].mxu0
      %v6432 = vadd.f32 0.0, %v6431
      %v6433 = vpop.f32.mrb[0].mxu0
      %v6434 = vpop.f32.mrb[0].mxu0
      %v6435 = vadd.f32 0.0, %v6434
      %v6436 = vpop.f32.mrb[0].mxu0
      %6437 = vmatprep.mubr.bf16.mxu0 %v6216
      %6438 = vmatmul.mubr.bf16.gmra.mrb[0].mxu0 %v6215
      %v6439 = vpop.f32.mrb[0].mxu0
      %v6440 = vadd.f32 0.0, %v6439
      %v6441 = vpop.f32.mrb[0].mxu0
      %v6442 = vpop.f32.mrb[0].mxu0
      %v6443 = vadd.f32 0.0, %v6442
      %v6444 = vpop.f32.mrb[0].mxu0
      %6445 = vmatprep.mubr.bf16.mxu0 %v6218
      %6446 = vmatmul.mubr.bf16.gmra.mrb[0].mxu0 %v6217
      %v6447 = vpop.f32.mrb[0].mxu0
      %v6448 = vadd.f32 0.0, %v6447
      %v6449 = vpop.f32.mrb[0].mxu0
      %v6450 = vpop.f32.mrb[0].mxu0
      %v6451 = vadd.f32 0.0, %v6450
      %v6452 = vpop.f32.mrb[0].mxu0
      %6453 = vmatprep.mubr.bf16.mxu0 %v6220
      %6454 = vmatmul.mubr.bf16.gmra.mrb[0].mxu0 %v6219
      %v6455 = vpop.f32.mrb[0].mxu0
      %v6456 = vadd.f32 0.0, %v6455
      %v6457 = vpop.f32.mrb[0].mxu0
      %v6458 = vpop.f32.mrb[0].mxu0
      %v6459 = vadd.f32 0.0, %v6458
      %v6460 = vpop.f32.mrb[0].mxu0
      %6461 = vdwg.mxu0
      %v6462 = vadd.f32 %v6028, %v6336
      %v6463 = vadd.f32 %v6029, %v6339
      %v6464 = vadd.f32 %v6030, %v6344
      %v6465 = vadd.f32 %v6031, %v6347
      %v6466 = vadd.f32 %v6032, %v6352
      %v6467 = vadd.f32 %v6033, %v6355
      %v6468 = vadd.f32 %v6034, %v6360
      %v6469 = vadd.f32 %v6035, %v6363
      %v6470 = vadd.f32 %v6036, %v6368
      %v6471 = vadd.f32 %v6037, %v6371
      %v6472 = vadd.f32 %v6038, %v6376
      %v6473 = vadd.f32 %v6039, %v6379
      %v6474 = vadd.f32 %v6040, %v6384
      %v6475 = vadd.f32 %v6041, %v6387
      %v6476 = vadd.f32 %v6042, %v6392
      %v6477 = vadd.f32 %v6043, %v6395
      %v6478 = vadd.f32 %v6044, %v6400
      %v6479 = vadd.f32 %v6045, %v6403
      %v6480 = vadd.f32 %v6046, %v6408
      %v6481 = vadd.f32 %v6047, %v6411
      %v6482 = vadd.f32 %v6048, %v6416
      %v6483 = vadd.f32 %v6049, %v6419
      %v6484 = vadd.f32 %v6050, %v6424
      %v6485 = vadd.f32 %v6051, %v6427
      %v6486 = vadd.f32 %v6052, %v6432
      %v6487 = vadd.f32 %v6053, %v6435
      %v6488 = vadd.f32 %v6054, %v6440
      %v6489 = vadd.f32 %v6055, %v6443
      %v6490 = vadd.f32 %v6056, %v6448
      %v6491 = vadd.f32 %v6057, %v6451
      %v6492 = vadd.f32 %v6058, %v6456
      %v6493 = vadd.f32 %v6059, %v6459
      %s6494 = scalar_lea.vmem %s5, 2048
      %v6495 = vld [vmem:[%s6494] sm:$0xff]
      %v6496 = vld [vmem:[%s6494 + $0x8] sm:$0xff]
      %v6497 = vld [vmem:[%s6494 + $0x10] sm:$0xff]
      %v6498 = vld [vmem:[%s6494 + $0x18] sm:$0xff]
      %v6499 = vld [vmem:[%s6494 + $0x20] sm:$0xff]
      %v6500 = vld [vmem:[%s6494 + $0x28] sm:$0xff]
      %v6501 = vld [vmem:[%s6494 + $0x30] sm:$0xff]
      %v6502 = vld [vmem:[%s6494 + $0x38] sm:$0xff]
      %v6503 = vld [vmem:[%s6494 + $0x40] sm:$0xff]
      %v6504 = vld [vmem:[%s6494 + $0x48] sm:$0xff]
      %v6505 = vld [vmem:[%s6494 + $0x50] sm:$0xff]
      %v6506 = vld [vmem:[%s6494 + $0x58] sm:$0xff]
      %v6507 = vld [vmem:[%s6494 + $0x60] sm:$0xff]
      %v6508 = vld [vmem:[%s6494 + $0x68] sm:$0xff]
      %v6509 = vld [vmem:[%s6494 + $0x70] sm:$0xff]
      %v6510 = vld [vmem:[%s6494 + $0x78] sm:$0xff]
      %v6511 = vld [vmem:[%s6494 + $0x80] sm:$0xff]
      %v6512 = vld [vmem:[%s6494 + $0x88] sm:$0xff]
      %v6513 = vld [vmem:[%s6494 + $0x90] sm:$0xff]
      %v6514 = vld [vmem:[%s6494 + $0x98] sm:$0xff]
      %v6515 = vld [vmem:[%s6494 + $0xa0] sm:$0xff]
      %v6516 = vld [vmem:[%s6494 + $0xa8] sm:$0xff]
      %v6517 = vld [vmem:[%s6494 + $0xb0] sm:$0xff]
      %v6518 = vld [vmem:[%s6494 + $0xb8] sm:$0xff]
      %v6519 = vld [vmem:[%s6494 + $0xc0] sm:$0xff]
      %v6520 = vld [vmem:[%s6494 + $0xc8] sm:$0xff]
      %v6521 = vld [vmem:[%s6494 + $0xd0] sm:$0xff]
      %v6522 = vld [vmem:[%s6494 + $0xd8] sm:$0xff]
      %v6523 = vld [vmem:[%s6494 + $0xe0] sm:$0xff]
      %v6524 = vld [vmem:[%s6494 + $0xe8] sm:$0xff]
      %v6525 = vld [vmem:[%s6494 + $0xf0] sm:$0xff]
      %v6526 = vld [vmem:[%s6494 + $0xf8] sm:$0xff]
      %v6527 = vpack.c.bf16 %v2965, %v2961
      %v6528 = vpack.c.bf16 %v2975, %v2971
      %v6529 = vpack.c.bf16 %v2985, %v2981
      %v6530 = vpack.c.bf16 %v2995, %v2991
      %v6531 = vpack.c.bf16 %v3005, %v3001
      %v6532 = vpack.c.bf16 %v3015, %v3011
      %v6533 = vpack.c.bf16 %v3025, %v3021
      %v6534 = vpack.c.bf16 %v3035, %v3031
      %v6535 = vpack.c.bf16 %v3045, %v3041
      %v6536 = vpack.c.bf16 %v3055, %v3051
      %v6537 = vpack.c.bf16 %v3065, %v3061
      %v6538 = vpack.c.bf16 %v3075, %v3071
      %v6539 = vpack.c.bf16 %v3085, %v3081
      %v6540 = vpack.c.bf16 %v3095, %v3091
      %v6541 = vpack.c.bf16 %v3105, %v3101
      %v6542 = vpack.c.bf16 %v3115, %v3111
      %v6575 = vunpack.c.l.b16 %v6495
      %v6576 = vunpack.c.h.b16 %v6495
      %v6577 = vunpack.c.l.b16 %v6496
      %v6578 = vunpack.c.h.b16 %v6496
      %v6579 = vunpack.c.l.b16 %v6497
      %v6580 = vunpack.c.h.b16 %v6497
      %v6581 = vunpack.c.l.b16 %v6498
      %v6582 = vunpack.c.h.b16 %v6498
      %v6583 = vunpack.c.l.b16 %v6499
      %v6584 = vunpack.c.h.b16 %v6499
      %v6585 = vunpack.c.l.b16 %v6500
      %v6586 = vunpack.c.h.b16 %v6500
      %v6587 = vunpack.c.l.b16 %v6501
      %v6588 = vunpack.c.h.b16 %v6501
      %v6589 = vunpack.c.l.b16 %v6502
      %v6590 = vunpack.c.h.b16 %v6502
      %v6591 = vunpack.c.l.b16 %v6503
      %v6592 = vunpack.c.h.b16 %v6503
      %v6593 = vunpack.c.l.b16 %v6504
      %v6594 = vunpack.c.h.b16 %v6504
      %v6595 = vunpack.c.l.b16 %v6505
      %v6596 = vunpack.c.h.b16 %v6505
      %v6597 = vunpack.c.l.b16 %v6506
      %v6598 = vunpack.c.h.b16 %v6506
      %v6599 = vunpack.c.l.b16 %v6507
      %v6600 = vunpack.c.h.b16 %v6507
      %v6601 = vunpack.c.l.b16 %v6508
      %v6602 = vunpack.c.h.b16 %v6508
      %v6603 = vunpack.c.l.b16 %v6509
      %v6604 = vunpack.c.h.b16 %v6509
      %v6605 = vunpack.c.l.b16 %v6510
      %v6606 = vunpack.c.h.b16 %v6510
      %v6607 = vunpack.c.l.b16 %v6511
      %v6608 = vunpack.c.h.b16 %v6511
      %v6609 = vunpack.c.l.b16 %v6512
      %v6610 = vunpack.c.h.b16 %v6512
      %v6611 = vunpack.c.l.b16 %v6513
      %v6612 = vunpack.c.h.b16 %v6513
      %v6613 = vunpack.c.l.b16 %v6514
      %v6614 = vunpack.c.h.b16 %v6514
      %v6615 = vunpack.c.l.b16 %v6515
      %v6616 = vunpack.c.h.b16 %v6515
      %v6617 = vunpack.c.l.b16 %v6516
      %v6618 = vunpack.c.h.b16 %v6516
      %v6619 = vunpack.c.l.b16 %v6517
      %v6620 = vunpack.c.h.b16 %v6517
      %v6621 = vunpack.c.l.b16 %v6518
      %v6622 = vunpack.c.h.b16 %v6518
      %v6623 = vunpack.c.l.b16 %v6519
      %v6624 = vunpack.c.h.b16 %v6519
      %v6625 = vunpack.c.l.b16 %v6520
      %v6626 = vunpack.c.h.b16 %v6520
      %v6627 = vunpack.c.l.b16 %v6521
      %v6628 = vunpack.c.h.b16 %v6521
      %v6629 = vunpack.c.l.b16 %v6522
      %v6630 = vunpack.c.h.b16 %v6522
      %v6631 = vunpack.c.l.b16 %v6523
      %v6632 = vunpack.c.h.b16 %v6523
      %v6633 = vunpack.c.l.b16 %v6524
      %v6634 = vunpack.c.h.b16 %v6524
      %v6635 = vunpack.c.l.b16 %v6525
      %v6636 = vunpack.c.h.b16 %v6525
      %v6637 = vunpack.c.l.b16 %v6526
      %v6638 = vunpack.c.h.b16 %v6526
      %v6639 = vpack.c.b16 %v6577, %v6575
      %v6640 = vpack.c.b16 %v6578, %v6576
      %v6641 = vpack.c.b16 %v6581, %v6579
      %v6642 = vpack.c.b16 %v6582, %v6580
      %v6643 = vpack.c.b16 %v6585, %v6583
      %v6644 = vpack.c.b16 %v6586, %v6584
      %v6645 = vpack.c.b16 %v6589, %v6587
      %v6646 = vpack.c.b16 %v6590, %v6588
      %v6647 = vpack.c.b16 %v6593, %v6591
      %v6648 = vpack.c.b16 %v6594, %v6592
      %v6649 = vpack.c.b16 %v6597, %v6595
      %v6650 = vpack.c.b16 %v6598, %v6596
      %v6651 = vpack.c.b16 %v6601, %v6599
      %v6652 = vpack.c.b16 %v6602, %v6600
      %v6653 = vpack.c.b16 %v6605, %v6603
      %v6654 = vpack.c.b16 %v6606, %v6604
      %v6655 = vpack.c.b16 %v6609, %v6607
      %v6656 = vpack.c.b16 %v6610, %v6608
      %v6657 = vpack.c.b16 %v6613, %v6611
      %v6658 = vpack.c.b16 %v6614, %v6612
      %v6659 = vpack.c.b16 %v6617, %v6615
      %v6660 = vpack.c.b16 %v6618, %v6616
      %v6661 = vpack.c.b16 %v6621, %v6619
      %v6662 = vpack.c.b16 %v6622, %v6620
      %v6663 = vpack.c.b16 %v6625, %v6623
      %v6664 = vpack.c.b16 %v6626, %v6624
      %v6665 = vpack.c.b16 %v6629, %v6627
      %v6666 = vpack.c.b16 %v6630, %v6628
      %v6667 = vpack.c.b16 %v6633, %v6631
      %v6668 = vpack.c.b16 %v6634, %v6632
      %v6669 = vpack.c.b16 %v6637, %v6635
      %v6670 = vpack.c.b16 %v6638, %v6636
      %6703 = vmatprep.subr.bf16.mxu0 0
      %6704 = vmatpush1.bf16.msra.mxu0 %v6527
      %6705 = vmatprep.subr.bf16.mxu0 0
      %6706 = vmatpush1.bf16.msra.mxu0 %v6528
      %6707 = vmatprep.subr.bf16.mxu0 0
      %6708 = vmatpush1.bf16.msra.mxu0 %v6529
      %6709 = vmatprep.subr.bf16.mxu0 0
      %6710 = vmatpush1.bf16.msra.mxu0 %v6530
      %6711 = vmatprep.subr.bf16.mxu0 0
      %6712 = vmatpush1.bf16.msra.mxu0 %v6531
      %6713 = vmatprep.subr.bf16.mxu0 0
      %6714 = vmatpush1.bf16.msra.mxu0 %v6532
      %6715 = vmatprep.subr.bf16.mxu0 0
      %6716 = vmatpush1.bf16.msra.mxu0 %v6533
      %6717 = vmatprep.subr.bf16.mxu0 0
      %6718 = vmatpush1.bf16.msra.mxu0 %v6534
      %6719 = vmatprep.subr.bf16.mxu0 0
      %6720 = vmatpush1.bf16.msra.mxu0 %v6535
      %6721 = vmatprep.subr.bf16.mxu0 0
      %6722 = vmatpush1.bf16.msra.mxu0 %v6536
      %6723 = vmatprep.subr.bf16.mxu0 0
      %6724 = vmatpush1.bf16.msra.mxu0 %v6537
      %6725 = vmatprep.subr.bf16.mxu0 0
      %6726 = vmatpush1.bf16.msra.mxu0 %v6538
      %6727 = vmatprep.subr.bf16.mxu0 0
      %6728 = vmatpush1.bf16.msra.mxu0 %v6539
      %6729 = vmatprep.subr.bf16.mxu0 0
      %6730 = vmatpush1.bf16.msra.mxu0 %v6540
      %6731 = vmatprep.subr.bf16.mxu0 0
      %6732 = vmatpush1.bf16.msra.mxu0 %v6541
      %6733 = vmatprep.subr.bf16.mxu0 0
      %6734 = vmatpush1.bf16.msra.mxu0 %v6542
      %6735 = vmatprep.mubr.bf16.mxu0 %v6640
      %6736 = vmatmul.mubr.bf16.gmra.mrb[0].mxu0 %v6639
      %v6737 = vpop.f32.mrb[0].mxu0
      %v6738 = vadd.f32 0.0, %v6737
      %v6739 = vpop.f32.mrb[0].mxu0
      %v6740 = vpop.f32.mrb[0].mxu0
      %v6741 = vadd.f32 0.0, %v6740
      %v6742 = vpop.f32.mrb[0].mxu0
      %6743 = vmatprep.mubr.bf16.mxu0 %v6642
      %6744 = vmatmul.mubr.bf16.gmra.mrb[0].mxu0 %v6641
      %v6745 = vpop.f32.mrb[0].mxu0
      %v6746 = vadd.f32 0.0, %v6745
      %v6747 = vpop.f32.mrb[0].mxu0
      %v6748 = vpop.f32.mrb[0].mxu0
      %v6749 = vadd.f32 0.0, %v6748
      %v6750 = vpop.f32.mrb[0].mxu0
      %6751 = vmatprep.mubr.bf16.mxu0 %v6644
      %6752 = vmatmul.mubr.bf16.gmra.mrb[0].mxu0 %v6643
      %v6753 = vpop.f32.mrb[0].mxu0
      %v6754 = vadd.f32 0.0, %v6753
      %v6755 = vpop.f32.mrb[0].mxu0
      %v6756 = vpop.f32.mrb[0].mxu0
      %v6757 = vadd.f32 0.0, %v6756
      %v6758 = vpop.f32.mrb[0].mxu0
      %6759 = vmatprep.mubr.bf16.mxu0 %v6646
      %6760 = vmatmul.mubr.bf16.gmra.mrb[0].mxu0 %v6645
      %v6761 = vpop.f32.mrb[0].mxu0
      %v6762 = vadd.f32 0.0, %v6761
      %v6763 = vpop.f32.mrb[0].mxu0
      %v6764 = vpop.f32.mrb[0].mxu0
      %v6765 = vadd.f32 0.0, %v6764
      %v6766 = vpop.f32.mrb[0].mxu0
      %6767 = vmatprep.mubr.bf16.mxu0 %v6648
      %6768 = vmatmul.mubr.bf16.gmra.mrb[0].mxu0 %v6647
      %v6769 = vpop.f32.mrb[0].mxu0
      %v6770 = vadd.f32 0.0, %v6769
      %v6771 = vpop.f32.mrb[0].mxu0
      %v6772 = vpop.f32.mrb[0].mxu0
      %v6773 = vadd.f32 0.0, %v6772
      %v6774 = vpop.f32.mrb[0].mxu0
      %6775 = vmatprep.mubr.bf16.mxu0 %v6650
      %6776 = vmatmul.mubr.bf16.gmra.mrb[0].mxu0 %v6649
      %v6777 = vpop.f32.mrb[0].mxu0
      %v6778 = vadd.f32 0.0, %v6777
      %v6779 = vpop.f32.mrb[0].mxu0
      %v6780 = vpop.f32.mrb[0].mxu0
      %v6781 = vadd.f32 0.0, %v6780
      %v6782 = vpop.f32.mrb[0].mxu0
      %6783 = vmatprep.mubr.bf16.mxu0 %v6652
      %6784 = vmatmul.mubr.bf16.gmra.mrb[0].mxu0 %v6651
      %v6785 = vpop.f32.mrb[0].mxu0
      %v6786 = vadd.f32 0.0, %v6785
      %v6787 = vpop.f32.mrb[0].mxu0
      %v6788 = vpop.f32.mrb[0].mxu0
      %v6789 = vadd.f32 0.0, %v6788
      %v6790 = vpop.f32.mrb[0].mxu0
      %6791 = vmatprep.mubr.bf16.mxu0 %v6654
      %6792 = vmatmul.mubr.bf16.gmra.mrb[0].mxu0 %v6653
      %v6793 = vpop.f32.mrb[0].mxu0
      %v6794 = vadd.f32 0.0, %v6793
      %v6795 = vpop.f32.mrb[0].mxu0
      %v6796 = vpop.f32.mrb[0].mxu0
      %v6797 = vadd.f32 0.0, %v6796
      %v6798 = vpop.f32.mrb[0].mxu0
      %6799 = vmatprep.mubr.bf16.mxu0 %v6656
      %6800 = vmatmul.mubr.bf16.gmra.mrb[0].mxu0 %v6655
      %v6801 = vpop.f32.mrb[0].mxu0
      %v6802 = vadd.f32 0.0, %v6801
      %v6803 = vpop.f32.mrb[0].mxu0
      %v6804 = vpop.f32.mrb[0].mxu0
      %v6805 = vadd.f32 0.0, %v6804
      %v6806 = vpop.f32.mrb[0].mxu0
      %6807 = vmatprep.mubr.bf16.mxu0 %v6658
      %6808 = vmatmul.mubr.bf16.gmra.mrb[0].mxu0 %v6657
      %v6809 = vpop.f32.mrb[0].mxu0
      %v6810 = vadd.f32 0.0, %v6809
      %v6811 = vpop.f32.mrb[0].mxu0
      %v6812 = vpop.f32.mrb[0].mxu0
      %v6813 = vadd.f32 0.0, %v6812
      %v6814 = vpop.f32.mrb[0].mxu0
      %6815 = vmatprep.mubr.bf16.mxu0 %v6660
      %6816 = vmatmul.mubr.bf16.gmra.mrb[0].mxu0 %v6659
      %v6817 = vpop.f32.mrb[0].mxu0
      %v6818 = vadd.f32 0.0, %v6817
      %v6819 = vpop.f32.mrb[0].mxu0
      %v6820 = vpop.f32.mrb[0].mxu0
      %v6821 = vadd.f32 0.0, %v6820
      %v6822 = vpop.f32.mrb[0].mxu0
      %6823 = vmatprep.mubr.bf16.mxu0 %v6662
      %6824 = vmatmul.mubr.bf16.gmra.mrb[0].mxu0 %v6661
      %v6825 = vpop.f32.mrb[0].mxu0
      %v6826 = vadd.f32 0.0, %v6825
      %v6827 = vpop.f32.mrb[0].mxu0
      %v6828 = vpop.f32.mrb[0].mxu0
      %v6829 = vadd.f32 0.0, %v6828
      %v6830 = vpop.f32.mrb[0].mxu0
      %6831 = vmatprep.mubr.bf16.mxu0 %v6664
      %6832 = vmatmul.mubr.bf16.gmra.mrb[0].mxu0 %v6663
      %v6833 = vpop.f32.mrb[0].mxu0
      %v6834 = vadd.f32 0.0, %v6833
      %v6835 = vpop.f32.mrb[0].mxu0
      %v6836 = vpop.f32.mrb[0].mxu0
      %v6837 = vadd.f32 0.0, %v6836
      %v6838 = vpop.f32.mrb[0].mxu0
      %6839 = vmatprep.mubr.bf16.mxu0 %v6666
      %6840 = vmatmul.mubr.bf16.gmra.mrb[0].mxu0 %v6665
      %v6841 = vpop.f32.mrb[0].mxu0
      %v6842 = vadd.f32 0.0, %v6841
      %v6843 = vpop.f32.mrb[0].mxu0
      %v6844 = vpop.f32.mrb[0].mxu0
      %v6845 = vadd.f32 0.0, %v6844
      %v6846 = vpop.f32.mrb[0].mxu0
      %6847 = vmatprep.mubr.bf16.mxu0 %v6668
      %6848 = vmatmul.mubr.bf16.gmra.mrb[0].mxu0 %v6667
      %v6849 = vpop.f32.mrb[0].mxu0
      %v6850 = vadd.f32 0.0, %v6849
      %v6851 = vpop.f32.mrb[0].mxu0
      %v6852 = vpop.f32.mrb[0].mxu0
      %v6853 = vadd.f32 0.0, %v6852
      %v6854 = vpop.f32.mrb[0].mxu0
      %6855 = vmatprep.mubr.bf16.mxu0 %v6670
      %6856 = vmatmul.mubr.bf16.gmra.mrb[0].mxu0 %v6669
      %v6857 = vpop.f32.mrb[0].mxu0
      %v6858 = vadd.f32 0.0, %v6857
      %v6859 = vpop.f32.mrb[0].mxu0
      %v6860 = vpop.f32.mrb[0].mxu0
      %v6861 = vadd.f32 0.0, %v6860
      %v6862 = vpop.f32.mrb[0].mxu0
      %6863 = vdwg.mxu0
      %v6864 = vadd.f32 %v6462, %v6738
      %v6865 = vadd.f32 %v6463, %v6741
      %v6866 = vadd.f32 %v6464, %v6746
      %v6867 = vadd.f32 %v6465, %v6749
      %v6868 = vadd.f32 %v6466, %v6754
      %v6869 = vadd.f32 %v6467, %v6757
      %v6870 = vadd.f32 %v6468, %v6762
      %v6871 = vadd.f32 %v6469, %v6765
      %v6872 = vadd.f32 %v6470, %v6770
      %v6873 = vadd.f32 %v6471, %v6773
      %v6874 = vadd.f32 %v6472, %v6778
      %v6875 = vadd.f32 %v6473, %v6781
      %v6876 = vadd.f32 %v6474, %v6786
      %v6877 = vadd.f32 %v6475, %v6789
      %v6878 = vadd.f32 %v6476, %v6794
      %v6879 = vadd.f32 %v6477, %v6797
      %v6880 = vadd.f32 %v6478, %v6802
      %v6881 = vadd.f32 %v6479, %v6805
      %v6882 = vadd.f32 %v6480, %v6810
      %v6883 = vadd.f32 %v6481, %v6813
      %v6884 = vadd.f32 %v6482, %v6818
      %v6885 = vadd.f32 %v6483, %v6821
      %v6886 = vadd.f32 %v6484, %v6826
      %v6887 = vadd.f32 %v6485, %v6829
      %v6888 = vadd.f32 %v6486, %v6834
      %v6889 = vadd.f32 %v6487, %v6837
      %v6890 = vadd.f32 %v6488, %v6842
      %v6891 = vadd.f32 %v6489, %v6845
      %v6892 = vadd.f32 %v6490, %v6850
      %v6893 = vadd.f32 %v6491, %v6853
      %v6894 = vadd.f32 %v6492, %v6858
      %v6895 = vadd.f32 %v6493, %v6861
      %s6896 = scalar_lea.vmem %s5, 2304
      %v6897 = vld [vmem:[%s6896] sm:$0xff]
      %v6898 = vld [vmem:[%s6896 + $0x8] sm:$0xff]
      %v6899 = vld [vmem:[%s6896 + $0x10] sm:$0xff]
      %v6900 = vld [vmem:[%s6896 + $0x18] sm:$0xff]
      %v6901 = vld [vmem:[%s6896 + $0x20] sm:$0xff]
      %v6902 = vld [vmem:[%s6896 + $0x28] sm:$0xff]
      %v6903 = vld [vmem:[%s6896 + $0x30] sm:$0xff]
      %v6904 = vld [vmem:[%s6896 + $0x38] sm:$0xff]
      %v6905 = vld [vmem:[%s6896 + $0x40] sm:$0xff]
      %v6906 = vld [vmem:[%s6896 + $0x48] sm:$0xff]
      %v6907 = vld [vmem:[%s6896 + $0x50] sm:$0xff]
      %v6908 = vld [vmem:[%s6896 + $0x58] sm:$0xff]
      %v6909 = vld [vmem:[%s6896 + $0x60] sm:$0xff]
      %v6910 = vld [vmem:[%s6896 + $0x68] sm:$0xff]
      %v6911 = vld [vmem:[%s6896 + $0x70] sm:$0xff]
      %v6912 = vld [vmem:[%s6896 + $0x78] sm:$0xff]
      %v6913 = vld [vmem:[%s6896 + $0x80] sm:$0xff]
      %v6914 = vld [vmem:[%s6896 + $0x88] sm:$0xff]
      %v6915 = vld [vmem:[%s6896 + $0x90] sm:$0xff]
      %v6916 = vld [vmem:[%s6896 + $0x98] sm:$0xff]
      %v6917 = vld [vmem:[%s6896 + $0xa0] sm:$0xff]
      %v6918 = vld [vmem:[%s6896 + $0xa8] sm:$0xff]
      %v6919 = vld [vmem:[%s6896 + $0xb0] sm:$0xff]
      %v6920 = vld [vmem:[%s6896 + $0xb8] sm:$0xff]
      %v6921 = vld [vmem:[%s6896 + $0xc0] sm:$0xff]
      %v6922 = vld [vmem:[%s6896 + $0xc8] sm:$0xff]
      %v6923 = vld [vmem:[%s6896 + $0xd0] sm:$0xff]
      %v6924 = vld [vmem:[%s6896 + $0xd8] sm:$0xff]
      %v6925 = vld [vmem:[%s6896 + $0xe0] sm:$0xff]
      %v6926 = vld [vmem:[%s6896 + $0xe8] sm:$0xff]
      %v6927 = vld [vmem:[%s6896 + $0xf0] sm:$0xff]
      %v6928 = vld [vmem:[%s6896 + $0xf8] sm:$0xff]
      %v6961 = vunpack.c.l.b16 %v6897
      %v6962 = vunpack.c.h.b16 %v6897
      %v6963 = vunpack.c.l.b16 %v6898
      %v6964 = vunpack.c.h.b16 %v6898
      %v6965 = vunpack.c.l.b16 %v6899
      %v6966 = vunpack.c.h.b16 %v6899
      %v6967 = vunpack.c.l.b16 %v6900
      %v6968 = vunpack.c.h.b16 %v6900
      %v6969 = vunpack.c.l.b16 %v6901
      %v6970 = vunpack.c.h.b16 %v6901
      %v6971 = vunpack.c.l.b16 %v6902
      %v6972 = vunpack.c.h.b16 %v6902
      %v6973 = vunpack.c.l.b16 %v6903
      %v6974 = vunpack.c.h.b16 %v6903
      %v6975 = vunpack.c.l.b16 %v6904
      %v6976 = vunpack.c.h.b16 %v6904
      %v6977 = vunpack.c.l.b16 %v6905
      %v6978 = vunpack.c.h.b16 %v6905
      %v6979 = vunpack.c.l.b16 %v6906
      %v6980 = vunpack.c.h.b16 %v6906
      %v6981 = vunpack.c.l.b16 %v6907
      %v6982 = vunpack.c.h.b16 %v6907
      %v6983 = vunpack.c.l.b16 %v6908
      %v6984 = vunpack.c.h.b16 %v6908
      %v6985 = vunpack.c.l.b16 %v6909
      %v6986 = vunpack.c.h.b16 %v6909
      %v6987 = vunpack.c.l.b16 %v6910
      %v6988 = vunpack.c.h.b16 %v6910
      %v6989 = vunpack.c.l.b16 %v6911
      %v6990 = vunpack.c.h.b16 %v6911
      %v6991 = vunpack.c.l.b16 %v6912
      %v6992 = vunpack.c.h.b16 %v6912
      %v6993 = vunpack.c.l.b16 %v6913
      %v6994 = vunpack.c.h.b16 %v6913
      %v6995 = vunpack.c.l.b16 %v6914
      %v6996 = vunpack.c.h.b16 %v6914
      %v6997 = vunpack.c.l.b16 %v6915
      %v6998 = vunpack.c.h.b16 %v6915
      %v6999 = vunpack.c.l.b16 %v6916
      %v7000 = vunpack.c.h.b16 %v6916
      %v7001 = vunpack.c.l.b16 %v6917
      %v7002 = vunpack.c.h.b16 %v6917
      %v7003 = vunpack.c.l.b16 %v6918
      %v7004 = vunpack.c.h.b16 %v6918
      %v7005 = vunpack.c.l.b16 %v6919
      %v7006 = vunpack.c.h.b16 %v6919
      %v7007 = vunpack.c.l.b16 %v6920
      %v7008 = vunpack.c.h.b16 %v6920
      %v7009 = vunpack.c.l.b16 %v6921
      %v7010 = vunpack.c.h.b16 %v6921
      %v7011 = vunpack.c.l.b16 %v6922
      %v7012 = vunpack.c.h.b16 %v6922
      %v7013 = vunpack.c.l.b16 %v6923
      %v7014 = vunpack.c.h.b16 %v6923
      %v7015 = vunpack.c.l.b16 %v6924
      %v7016 = vunpack.c.h.b16 %v6924
      %v7017 = vunpack.c.l.b16 %v6925
      %v7018 = vunpack.c.h.b16 %v6925
      %v7019 = vunpack.c.l.b16 %v6926
      %v7020 = vunpack.c.h.b16 %v6926
      %v7021 = vunpack.c.l.b16 %v6927
      %v7022 = vunpack.c.h.b16 %v6927
      %v7023 = vunpack.c.l.b16 %v6928
      %v7024 = vunpack.c.h.b16 %v6928
      %v7025 = vpack.c.b16 %v6963, %v6961
      %v7026 = vpack.c.b16 %v6964, %v6962
      %v7027 = vpack.c.b16 %v6967, %v6965
      %v7028 = vpack.c.b16 %v6968, %v6966
      %v7029 = vpack.c.b16 %v6971, %v6969
      %v7030 = vpack.c.b16 %v6972, %v6970
      %v7031 = vpack.c.b16 %v6975, %v6973
      %v7032 = vpack.c.b16 %v6976, %v6974
      %v7033 = vpack.c.b16 %v6979, %v6977
      %v7034 = vpack.c.b16 %v6980, %v6978
      %v7035 = vpack.c.b16 %v6983, %v6981
      %v7036 = vpack.c.b16 %v6984, %v6982
      %v7037 = vpack.c.b16 %v6987, %v6985
      %v7038 = vpack.c.b16 %v6988, %v6986
      %v7039 = vpack.c.b16 %v6991, %v6989
      %v7040 = vpack.c.b16 %v6992, %v6990
      %v7041 = vpack.c.b16 %v6995, %v6993
      %v7042 = vpack.c.b16 %v6996, %v6994
      %v7043 = vpack.c.b16 %v6999, %v6997
      %v7044 = vpack.c.b16 %v7000, %v6998
      %v7045 = vpack.c.b16 %v7003, %v7001
      %v7046 = vpack.c.b16 %v7004, %v7002
      %v7047 = vpack.c.b16 %v7007, %v7005
      %v7048 = vpack.c.b16 %v7008, %v7006
      %v7049 = vpack.c.b16 %v7011, %v7009
      %v7050 = vpack.c.b16 %v7012, %v7010
      %v7051 = vpack.c.b16 %v7015, %v7013
      %v7052 = vpack.c.b16 %v7016, %v7014
      %v7053 = vpack.c.b16 %v7019, %v7017
      %v7054 = vpack.c.b16 %v7020, %v7018
      %v7055 = vpack.c.b16 %v7023, %v7021
      %v7056 = vpack.c.b16 %v7024, %v7022
      %7105 = vrot.lane.b32.xlu0 %v6527, 96
      %v7106 = vpop.permute.xlu0 %7105
      %7107 = vrot.lane.b32.xlu0 %v6528, 96
      %v7108 = vpop.permute.xlu0 %7107
      %7109 = vrot.lane.b32.xlu0 %v6529, 96
      %v7110 = vpop.permute.xlu0 %7109
      %7111 = vrot.lane.b32.xlu0 %v6530, 96
      %v7112 = vpop.permute.xlu0 %7111
      %7113 = vrot.lane.b32.xlu0 %v6531, 96
      %v7114 = vpop.permute.xlu0 %7113
      %7115 = vrot.lane.b32.xlu0 %v6532, 96
      %v7116 = vpop.permute.xlu0 %7115
      %7117 = vrot.lane.b32.xlu0 %v6533, 96
      %v7118 = vpop.permute.xlu0 %7117
      %7119 = vrot.lane.b32.xlu0 %v6534, 96
      %v7120 = vpop.permute.xlu0 %7119
      %7121 = vrot.lane.b32.xlu0 %v6535, 96
      %v7122 = vpop.permute.xlu0 %7121
      %7123 = vrot.lane.b32.xlu0 %v6536, 96
      %v7124 = vpop.permute.xlu0 %7123
      %7125 = vrot.lane.b32.xlu0 %v6537, 96
      %v7126 = vpop.permute.xlu0 %7125
      %7127 = vrot.lane.b32.xlu0 %v6538, 96
      %v7128 = vpop.permute.xlu0 %7127
      %7129 = vrot.lane.b32.xlu0 %v6539, 96
      %v7130 = vpop.permute.xlu0 %7129
      %7131 = vrot.lane.b32.xlu0 %v6540, 96
      %v7132 = vpop.permute.xlu0 %7131
      %7133 = vrot.lane.b32.xlu0 %v6541, 96
      %v7134 = vpop.permute.xlu0 %7133
      %7135 = vrot.lane.b32.xlu0 %v6542, 96
      %v7136 = vpop.permute.xlu0 %7135
      %7153 = vmatprep.subr.bf16.mxu0 0
      %7154 = vmatpush1.bf16.msra.mxu0 %v7106
      %7155 = vmatprep.subr.bf16.mxu0 0
      %7156 = vmatpush1.bf16.msra.mxu0 %v7108
      %7157 = vmatprep.subr.bf16.mxu0 0
      %7158 = vmatpush1.bf16.msra.mxu0 %v7110
      %7159 = vmatprep.subr.bf16.mxu0 0
      %7160 = vmatpush1.bf16.msra.mxu0 %v7112
      %7161 = vmatprep.subr.bf16.mxu0 0
      %7162 = vmatpush1.bf16.msra.mxu0 %v7114
      %7163 = vmatprep.subr.bf16.mxu0 0
      %7164 = vmatpush1.bf16.msra.mxu0 %v7116
      %7165 = vmatprep.subr.bf16.mxu0 0
      %7166 = vmatpush1.bf16.msra.mxu0 %v7118
      %7167 = vmatprep.subr.bf16.mxu0 0
      %7168 = vmatpush1.bf16.msra.mxu0 %v7120
      %7169 = vmatprep.subr.bf16.mxu0 0
      %7170 = vmatpush1.bf16.msra.mxu0 %v7122
      %7171 = vmatprep.subr.bf16.mxu0 0
      %7172 = vmatpush1.bf16.msra.mxu0 %v7124
      %7173 = vmatprep.subr.bf16.mxu0 0
      %7174 = vmatpush1.bf16.msra.mxu0 %v7126
      %7175 = vmatprep.subr.bf16.mxu0 0
      %7176 = vmatpush1.bf16.msra.mxu0 %v7128
      %7177 = vmatprep.subr.bf16.mxu0 0
      %7178 = vmatpush1.bf16.msra.mxu0 %v7130
      %7179 = vmatprep.subr.bf16.mxu0 0
      %7180 = vmatpush1.bf16.msra.mxu0 %v7132
      %7181 = vmatprep.subr.bf16.mxu0 0
      %7182 = vmatpush1.bf16.msra.mxu0 %v7134
      %7183 = vmatprep.subr.bf16.mxu0 0
      %7184 = vmatpush1.bf16.msra.mxu0 %v7136
      %7185 = vmatprep.mubr.bf16.mxu0 %v7026
      %7186 = vmatmul.mubr.bf16.gmra.mrb[0].mxu0 %v7025
      %v7187 = vpop.f32.mrb[0].mxu0
      %v7188 = vadd.f32 0.0, %v7187
      %v7189 = vpop.f32.mrb[0].mxu0
      %v7190 = vpop.f32.mrb[0].mxu0
      %v7191 = vadd.f32 0.0, %v7190
      %v7192 = vpop.f32.mrb[0].mxu0
      %7193 = vmatprep.mubr.bf16.mxu0 %v7028
      %7194 = vmatmul.mubr.bf16.gmra.mrb[0].mxu0 %v7027
      %v7195 = vpop.f32.mrb[0].mxu0
      %v7196 = vadd.f32 0.0, %v7195
      %v7197 = vpop.f32.mrb[0].mxu0
      %v7198 = vpop.f32.mrb[0].mxu0
      %v7199 = vadd.f32 0.0, %v7198
      %v7200 = vpop.f32.mrb[0].mxu0
      %7201 = vmatprep.mubr.bf16.mxu0 %v7030
      %7202 = vmatmul.mubr.bf16.gmra.mrb[0].mxu0 %v7029
      %v7203 = vpop.f32.mrb[0].mxu0
      %v7204 = vadd.f32 0.0, %v7203
      %v7205 = vpop.f32.mrb[0].mxu0
      %v7206 = vpop.f32.mrb[0].mxu0
      %v7207 = vadd.f32 0.0, %v7206
      %v7208 = vpop.f32.mrb[0].mxu0
      %7209 = vmatprep.mubr.bf16.mxu0 %v7032
      %7210 = vmatmul.mubr.bf16.gmra.mrb[0].mxu0 %v7031
      %v7211 = vpop.f32.mrb[0].mxu0
      %v7212 = vadd.f32 0.0, %v7211
      %v7213 = vpop.f32.mrb[0].mxu0
      %v7214 = vpop.f32.mrb[0].mxu0
      %v7215 = vadd.f32 0.0, %v7214
      %v7216 = vpop.f32.mrb[0].mxu0
      %7217 = vmatprep.mubr.bf16.mxu0 %v7034
      %7218 = vmatmul.mubr.bf16.gmra.mrb[0].mxu0 %v7033
      %v7219 = vpop.f32.mrb[0].mxu0
      %v7220 = vadd.f32 0.0, %v7219
      %v7221 = vpop.f32.mrb[0].mxu0
      %v7222 = vpop.f32.mrb[0].mxu0
      %v7223 = vadd.f32 0.0, %v7222
      %v7224 = vpop.f32.mrb[0].mxu0
      %7225 = vmatprep.mubr.bf16.mxu0 %v7036
      %7226 = vmatmul.mubr.bf16.gmra.mrb[0].mxu0 %v7035
      %v7227 = vpop.f32.mrb[0].mxu0
      %v7228 = vadd.f32 0.0, %v7227
      %v7229 = vpop.f32.mrb[0].mxu0
      %v7230 = vpop.f32.mrb[0].mxu0
      %v7231 = vadd.f32 0.0, %v7230
      %v7232 = vpop.f32.mrb[0].mxu0
      %7233 = vmatprep.mubr.bf16.mxu0 %v7038
      %7234 = vmatmul.mubr.bf16.gmra.mrb[0].mxu0 %v7037
      %v7235 = vpop.f32.mrb[0].mxu0
      %v7236 = vadd.f32 0.0, %v7235
      %v7237 = vpop.f32.mrb[0].mxu0
      %v7238 = vpop.f32.mrb[0].mxu0
      %v7239 = vadd.f32 0.0, %v7238
      %v7240 = vpop.f32.mrb[0].mxu0
      %7241 = vmatprep.mubr.bf16.mxu0 %v7040
      %7242 = vmatmul.mubr.bf16.gmra.mrb[0].mxu0 %v7039
      %v7243 = vpop.f32.mrb[0].mxu0
      %v7244 = vadd.f32 0.0, %v7243
      %v7245 = vpop.f32.mrb[0].mxu0
      %v7246 = vpop.f32.mrb[0].mxu0
      %v7247 = vadd.f32 0.0, %v7246
      %v7248 = vpop.f32.mrb[0].mxu0
      %7249 = vmatprep.mubr.bf16.mxu0 %v7042
      %7250 = vmatmul.mubr.bf16.gmra.mrb[0].mxu0 %v7041
      %v7251 = vpop.f32.mrb[0].mxu0
      %v7252 = vadd.f32 0.0, %v7251
      %v7253 = vpop.f32.mrb[0].mxu0
      %v7254 = vpop.f32.mrb[0].mxu0
      %v7255 = vadd.f32 0.0, %v7254
      %v7256 = vpop.f32.mrb[0].mxu0
      %7257 = vmatprep.mubr.bf16.mxu0 %v7044
      %7258 = vmatmul.mubr.bf16.gmra.mrb[0].mxu0 %v7043
      %v7259 = vpop.f32.mrb[0].mxu0
      %v7260 = vadd.f32 0.0, %v7259
      %v7261 = vpop.f32.mrb[0].mxu0
      %v7262 = vpop.f32.mrb[0].mxu0
      %v7263 = vadd.f32 0.0, %v7262
      %v7264 = vpop.f32.mrb[0].mxu0
      %7265 = vmatprep.mubr.bf16.mxu0 %v7046
      %7266 = vmatmul.mubr.bf16.gmra.mrb[0].mxu0 %v7045
      %v7267 = vpop.f32.mrb[0].mxu0
      %v7268 = vadd.f32 0.0, %v7267
      %v7269 = vpop.f32.mrb[0].mxu0
      %v7270 = vpop.f32.mrb[0].mxu0
      %v7271 = vadd.f32 0.0, %v7270
      %v7272 = vpop.f32.mrb[0].mxu0
      %7273 = vmatprep.mubr.bf16.mxu0 %v7048
      %7274 = vmatmul.mubr.bf16.gmra.mrb[0].mxu0 %v7047
      %v7275 = vpop.f32.mrb[0].mxu0
      %v7276 = vadd.f32 0.0, %v7275
      %v7277 = vpop.f32.mrb[0].mxu0
      %v7278 = vpop.f32.mrb[0].mxu0
      %v7279 = vadd.f32 0.0, %v7278
      %v7280 = vpop.f32.mrb[0].mxu0
      %7281 = vmatprep.mubr.bf16.mxu0 %v7050
      %7282 = vmatmul.mubr.bf16.gmra.mrb[0].mxu0 %v7049
      %v7283 = vpop.f32.mrb[0].mxu0
      %v7284 = vadd.f32 0.0, %v7283
      %v7285 = vpop.f32.mrb[0].mxu0
      %v7286 = vpop.f32.mrb[0].mxu0
      %v7287 = vadd.f32 0.0, %v7286
      %v7288 = vpop.f32.mrb[0].mxu0
      %7289 = vmatprep.mubr.bf16.mxu0 %v7052
      %7290 = vmatmul.mubr.bf16.gmra.mrb[0].mxu0 %v7051
      %v7291 = vpop.f32.mrb[0].mxu0
      %v7292 = vadd.f32 0.0, %v7291
      %v7293 = vpop.f32.mrb[0].mxu0
      %v7294 = vpop.f32.mrb[0].mxu0
      %v7295 = vadd.f32 0.0, %v7294
      %v7296 = vpop.f32.mrb[0].mxu0
      %7297 = vmatprep.mubr.bf16.mxu0 %v7054
      %7298 = vmatmul.mubr.bf16.gmra.mrb[0].mxu0 %v7053
      %v7299 = vpop.f32.mrb[0].mxu0
      %v7300 = vadd.f32 0.0, %v7299
      %v7301 = vpop.f32.mrb[0].mxu0
      %v7302 = vpop.f32.mrb[0].mxu0
      %v7303 = vadd.f32 0.0, %v7302
      %v7304 = vpop.f32.mrb[0].mxu0
      %7305 = vmatprep.mubr.bf16.mxu0 %v7056
      %7306 = vmatmul.mubr.bf16.gmra.mrb[0].mxu0 %v7055
      %v7307 = vpop.f32.mrb[0].mxu0
      %v7308 = vadd.f32 0.0, %v7307
      %v7309 = vpop.f32.mrb[0].mxu0
      %v7310 = vpop.f32.mrb[0].mxu0
      %v7311 = vadd.f32 0.0, %v7310
      %v7312 = vpop.f32.mrb[0].mxu0
      %7313 = vdwg.mxu0
      %v7314 = vadd.f32 %v6864, %v7188
      %v7315 = vadd.f32 %v6865, %v7191
      %v7316 = vadd.f32 %v6866, %v7196
      %v7317 = vadd.f32 %v6867, %v7199
      %v7318 = vadd.f32 %v6868, %v7204
      %v7319 = vadd.f32 %v6869, %v7207
      %v7320 = vadd.f32 %v6870, %v7212
      %v7321 = vadd.f32 %v6871, %v7215
      %v7322 = vadd.f32 %v6872, %v7220
      %v7323 = vadd.f32 %v6873, %v7223
      %v7324 = vadd.f32 %v6874, %v7228
      %v7325 = vadd.f32 %v6875, %v7231
      %v7326 = vadd.f32 %v6876, %v7236
      %v7327 = vadd.f32 %v6877, %v7239
      %v7328 = vadd.f32 %v6878, %v7244
      %v7329 = vadd.f32 %v6879, %v7247
      %v7330 = vadd.f32 %v6880, %v7252
      %v7331 = vadd.f32 %v6881, %v7255
      %v7332 = vadd.f32 %v6882, %v7260
      %v7333 = vadd.f32 %v6883, %v7263
      %v7334 = vadd.f32 %v6884, %v7268
      %v7335 = vadd.f32 %v6885, %v7271
      %v7336 = vadd.f32 %v6886, %v7276
      %v7337 = vadd.f32 %v6887, %v7279
      %v7338 = vadd.f32 %v6888, %v7284
      %v7339 = vadd.f32 %v6889, %v7287
      %v7340 = vadd.f32 %v6890, %v7292
      %v7341 = vadd.f32 %v6891, %v7295
      %v7342 = vadd.f32 %v6892, %v7300
      %v7343 = vadd.f32 %v6893, %v7303
      %v7344 = vadd.f32 %v6894, %v7308
      %v7345 = vadd.f32 %v6895, %v7311
      %s7346 = scalar_lea.vmem %s5, 2560
      %v7347 = vld [vmem:[%s7346] sm:$0xff]
      %v7348 = vld [vmem:[%s7346 + $0x8] sm:$0xff]
      %v7349 = vld [vmem:[%s7346 + $0x10] sm:$0xff]
      %v7350 = vld [vmem:[%s7346 + $0x18] sm:$0xff]
      %v7351 = vld [vmem:[%s7346 + $0x20] sm:$0xff]
      %v7352 = vld [vmem:[%s7346 + $0x28] sm:$0xff]
      %v7353 = vld [vmem:[%s7346 + $0x30] sm:$0xff]
      %v7354 = vld [vmem:[%s7346 + $0x38] sm:$0xff]
      %v7355 = vld [vmem:[%s7346 + $0x40] sm:$0xff]
      %v7356 = vld [vmem:[%s7346 + $0x48] sm:$0xff]
      %v7357 = vld [vmem:[%s7346 + $0x50] sm:$0xff]
      %v7358 = vld [vmem:[%s7346 + $0x58] sm:$0xff]
      %v7359 = vld [vmem:[%s7346 + $0x60] sm:$0xff]
      %v7360 = vld [vmem:[%s7346 + $0x68] sm:$0xff]
      %v7361 = vld [vmem:[%s7346 + $0x70] sm:$0xff]
      %v7362 = vld [vmem:[%s7346 + $0x78] sm:$0xff]
      %v7363 = vld [vmem:[%s7346 + $0x80] sm:$0xff]
      %v7364 = vld [vmem:[%s7346 + $0x88] sm:$0xff]
      %v7365 = vld [vmem:[%s7346 + $0x90] sm:$0xff]
      %v7366 = vld [vmem:[%s7346 + $0x98] sm:$0xff]
      %v7367 = vld [vmem:[%s7346 + $0xa0] sm:$0xff]
      %v7368 = vld [vmem:[%s7346 + $0xa8] sm:$0xff]
      %v7369 = vld [vmem:[%s7346 + $0xb0] sm:$0xff]
      %v7370 = vld [vmem:[%s7346 + $0xb8] sm:$0xff]
      %v7371 = vld [vmem:[%s7346 + $0xc0] sm:$0xff]
      %v7372 = vld [vmem:[%s7346 + $0xc8] sm:$0xff]
      %v7373 = vld [vmem:[%s7346 + $0xd0] sm:$0xff]
      %v7374 = vld [vmem:[%s7346 + $0xd8] sm:$0xff]
      %v7375 = vld [vmem:[%s7346 + $0xe0] sm:$0xff]
      %v7376 = vld [vmem:[%s7346 + $0xe8] sm:$0xff]
      %v7377 = vld [vmem:[%s7346 + $0xf0] sm:$0xff]
      %v7378 = vld [vmem:[%s7346 + $0xf8] sm:$0xff]
      %v7411 = vunpack.c.l.b16 %v7347
      %v7412 = vunpack.c.h.b16 %v7347
      %v7413 = vunpack.c.l.b16 %v7348
      %v7414 = vunpack.c.h.b16 %v7348
      %v7415 = vunpack.c.l.b16 %v7349
      %v7416 = vunpack.c.h.b16 %v7349
      %v7417 = vunpack.c.l.b16 %v7350
      %v7418 = vunpack.c.h.b16 %v7350
      %v7419 = vunpack.c.l.b16 %v7351
      %v7420 = vunpack.c.h.b16 %v7351
      %v7421 = vunpack.c.l.b16 %v7352
      %v7422 = vunpack.c.h.b16 %v7352
      %v7423 = vunpack.c.l.b16 %v7353
      %v7424 = vunpack.c.h.b16 %v7353
      %v7425 = vunpack.c.l.b16 %v7354
      %v7426 = vunpack.c.h.b16 %v7354
      %v7427 = vunpack.c.l.b16 %v7355
      %v7428 = vunpack.c.h.b16 %v7355
      %v7429 = vunpack.c.l.b16 %v7356
      %v7430 = vunpack.c.h.b16 %v7356
      %v7431 = vunpack.c.l.b16 %v7357
      %v7432 = vunpack.c.h.b16 %v7357
      %v7433 = vunpack.c.l.b16 %v7358
      %v7434 = vunpack.c.h.b16 %v7358
      %v7435 = vunpack.c.l.b16 %v7359
      %v7436 = vunpack.c.h.b16 %v7359
      %v7437 = vunpack.c.l.b16 %v7360
      %v7438 = vunpack.c.h.b16 %v7360
      %v7439 = vunpack.c.l.b16 %v7361
      %v7440 = vunpack.c.h.b16 %v7361
      %v7441 = vunpack.c.l.b16 %v7362
      %v7442 = vunpack.c.h.b16 %v7362
      %v7443 = vunpack.c.l.b16 %v7363
      %v7444 = vunpack.c.h.b16 %v7363
      %v7445 = vunpack.c.l.b16 %v7364
      %v7446 = vunpack.c.h.b16 %v7364
      %v7447 = vunpack.c.l.b16 %v7365
      %v7448 = vunpack.c.h.b16 %v7365
      %v7449 = vunpack.c.l.b16 %v7366
      %v7450 = vunpack.c.h.b16 %v7366
      %v7451 = vunpack.c.l.b16 %v7367
      %v7452 = vunpack.c.h.b16 %v7367
      %v7453 = vunpack.c.l.b16 %v7368
      %v7454 = vunpack.c.h.b16 %v7368
      %v7455 = vunpack.c.l.b16 %v7369
      %v7456 = vunpack.c.h.b16 %v7369
      %v7457 = vunpack.c.l.b16 %v7370
      %v7458 = vunpack.c.h.b16 %v7370
      %v7459 = vunpack.c.l.b16 %v7371
      %v7460 = vunpack.c.h.b16 %v7371
      %v7461 = vunpack.c.l.b16 %v7372
      %v7462 = vunpack.c.h.b16 %v7372
      %v7463 = vunpack.c.l.b16 %v7373
      %v7464 = vunpack.c.h.b16 %v7373
      %v7465 = vunpack.c.l.b16 %v7374
      %v7466 = vunpack.c.h.b16 %v7374
      %v7467 = vunpack.c.l.b16 %v7375
      %v7468 = vunpack.c.h.b16 %v7375
      %v7469 = vunpack.c.l.b16 %v7376
      %v7470 = vunpack.c.h.b16 %v7376
      %v7471 = vunpack.c.l.b16 %v7377
      %v7472 = vunpack.c.h.b16 %v7377
      %v7473 = vunpack.c.l.b16 %v7378
      %v7474 = vunpack.c.h.b16 %v7378
      %v7475 = vpack.c.b16 %v7413, %v7411
      %v7476 = vpack.c.b16 %v7414, %v7412
      %v7477 = vpack.c.b16 %v7417, %v7415
      %v7478 = vpack.c.b16 %v7418, %v7416
      %v7479 = vpack.c.b16 %v7421, %v7419
      %v7480 = vpack.c.b16 %v7422, %v7420
      %v7481 = vpack.c.b16 %v7425, %v7423
      %v7482 = vpack.c.b16 %v7426, %v7424
      %v7483 = vpack.c.b16 %v7429, %v7427
      %v7484 = vpack.c.b16 %v7430, %v7428
      %v7485 = vpack.c.b16 %v7433, %v7431
      %v7486 = vpack.c.b16 %v7434, %v7432
      %v7487 = vpack.c.b16 %v7437, %v7435
      %v7488 = vpack.c.b16 %v7438, %v7436
      %v7489 = vpack.c.b16 %v7441, %v7439
      %v7490 = vpack.c.b16 %v7442, %v7440
      %v7491 = vpack.c.b16 %v7445, %v7443
      %v7492 = vpack.c.b16 %v7446, %v7444
      %v7493 = vpack.c.b16 %v7449, %v7447
      %v7494 = vpack.c.b16 %v7450, %v7448
      %v7495 = vpack.c.b16 %v7453, %v7451
      %v7496 = vpack.c.b16 %v7454, %v7452
      %v7497 = vpack.c.b16 %v7457, %v7455
      %v7498 = vpack.c.b16 %v7458, %v7456
      %v7499 = vpack.c.b16 %v7461, %v7459
      %v7500 = vpack.c.b16 %v7462, %v7460
      %v7501 = vpack.c.b16 %v7465, %v7463
      %v7502 = vpack.c.b16 %v7466, %v7464
      %v7503 = vpack.c.b16 %v7469, %v7467
      %v7504 = vpack.c.b16 %v7470, %v7468
      %v7505 = vpack.c.b16 %v7473, %v7471
      %v7506 = vpack.c.b16 %v7474, %v7472
      %7539 = vrot.lane.b32.xlu0 %v6527, 64
      %v7540 = vpop.permute.xlu0 %7539
      %7541 = vrot.lane.b32.xlu0 %v6528, 64
      %v7542 = vpop.permute.xlu0 %7541
      %7543 = vrot.lane.b32.xlu0 %v6529, 64
      %v7544 = vpop.permute.xlu0 %7543
      %7545 = vrot.lane.b32.xlu0 %v6530, 64
      %v7546 = vpop.permute.xlu0 %7545
      %7547 = vrot.lane.b32.xlu0 %v6531, 64
      %v7548 = vpop.permute.xlu0 %7547
      %7549 = vrot.lane.b32.xlu0 %v6532, 64
      %v7550 = vpop.permute.xlu0 %7549
      %7551 = vrot.lane.b32.xlu0 %v6533, 64
      %v7552 = vpop.permute.xlu0 %7551
      %7553 = vrot.lane.b32.xlu0 %v6534, 64
      %v7554 = vpop.permute.xlu0 %7553
      %7555 = vrot.lane.b32.xlu0 %v6535, 64
      %v7556 = vpop.permute.xlu0 %7555
      %7557 = vrot.lane.b32.xlu0 %v6536, 64
      %v7558 = vpop.permute.xlu0 %7557
      %7559 = vrot.lane.b32.xlu0 %v6537, 64
      %v7560 = vpop.permute.xlu0 %7559
      %7561 = vrot.lane.b32.xlu0 %v6538, 64
      %v7562 = vpop.permute.xlu0 %7561
      %7563 = vrot.lane.b32.xlu0 %v6539, 64
      %v7564 = vpop.permute.xlu0 %7563
      %7565 = vrot.lane.b32.xlu0 %v6540, 64
      %v7566 = vpop.permute.xlu0 %7565
      %7567 = vrot.lane.b32.xlu0 %v6541, 64
      %v7568 = vpop.permute.xlu0 %7567
      %7569 = vrot.lane.b32.xlu0 %v6542, 64
      %v7570 = vpop.permute.xlu0 %7569
      %7587 = vmatprep.subr.bf16.mxu0 0
      %7588 = vmatpush1.bf16.msra.mxu0 %v7540
      %7589 = vmatprep.subr.bf16.mxu0 0
      %7590 = vmatpush1.bf16.msra.mxu0 %v7542
      %7591 = vmatprep.subr.bf16.mxu0 0
      %7592 = vmatpush1.bf16.msra.mxu0 %v7544
      %7593 = vmatprep.subr.bf16.mxu0 0
      %7594 = vmatpush1.bf16.msra.mxu0 %v7546
      %7595 = vmatprep.subr.bf16.mxu0 0
      %7596 = vmatpush1.bf16.msra.mxu0 %v7548
      %7597 = vmatprep.subr.bf16.mxu0 0
      %7598 = vmatpush1.bf16.msra.mxu0 %v7550
      %7599 = vmatprep.subr.bf16.mxu0 0
      %7600 = vmatpush1.bf16.msra.mxu0 %v7552
      %7601 = vmatprep.subr.bf16.mxu0 0
      %7602 = vmatpush1.bf16.msra.mxu0 %v7554
      %7603 = vmatprep.subr.bf16.mxu0 0
      %7604 = vmatpush1.bf16.msra.mxu0 %v7556
      %7605 = vmatprep.subr.bf16.mxu0 0
      %7606 = vmatpush1.bf16.msra.mxu0 %v7558
      %7607 = vmatprep.subr.bf16.mxu0 0
      %7608 = vmatpush1.bf16.msra.mxu0 %v7560
      %7609 = vmatprep.subr.bf16.mxu0 0
      %7610 = vmatpush1.bf16.msra.mxu0 %v7562
      %7611 = vmatprep.subr.bf16.mxu0 0
      %7612 = vmatpush1.bf16.msra.mxu0 %v7564
      %7613 = vmatprep.subr.bf16.mxu0 0
      %7614 = vmatpush1.bf16.msra.mxu0 %v7566
      %7615 = vmatprep.subr.bf16.mxu0 0
      %7616 = vmatpush1.bf16.msra.mxu0 %v7568
      %7617 = vmatprep.subr.bf16.mxu0 0
      %7618 = vmatpush1.bf16.msra.mxu0 %v7570
      %7619 = vmatprep.mubr.bf16.mxu0 %v7476
      %7620 = vmatmul.mubr.bf16.gmra.mrb[0].mxu0 %v7475
      %v7621 = vpop.f32.mrb[0].mxu0
      %v7622 = vadd.f32 0.0, %v7621
      %v7623 = vpop.f32.mrb[0].mxu0
      %v7624 = vpop.f32.mrb[0].mxu0
      %v7625 = vadd.f32 0.0, %v7624
      %v7626 = vpop.f32.mrb[0].mxu0
      %7627 = vmatprep.mubr.bf16.mxu0 %v7478
      %7628 = vmatmul.mubr.bf16.gmra.mrb[0].mxu0 %v7477
      %v7629 = vpop.f32.mrb[0].mxu0
      %v7630 = vadd.f32 0.0, %v7629
      %v7631 = vpop.f32.mrb[0].mxu0
      %v7632 = vpop.f32.mrb[0].mxu0
      %v7633 = vadd.f32 0.0, %v7632
      %v7634 = vpop.f32.mrb[0].mxu0
      %7635 = vmatprep.mubr.bf16.mxu0 %v7480
      %7636 = vmatmul.mubr.bf16.gmra.mrb[0].mxu0 %v7479
      %v7637 = vpop.f32.mrb[0].mxu0
      %v7638 = vadd.f32 0.0, %v7637
      %v7639 = vpop.f32.mrb[0].mxu0
      %v7640 = vpop.f32.mrb[0].mxu0
      %v7641 = vadd.f32 0.0, %v7640
      %v7642 = vpop.f32.mrb[0].mxu0
      %7643 = vmatprep.mubr.bf16.mxu0 %v7482
      %7644 = vmatmul.mubr.bf16.gmra.mrb[0].mxu0 %v7481
      %v7645 = vpop.f32.mrb[0].mxu0
      %v7646 = vadd.f32 0.0, %v7645
      %v7647 = vpop.f32.mrb[0].mxu0
      %v7648 = vpop.f32.mrb[0].mxu0
      %v7649 = vadd.f32 0.0, %v7648
      %v7650 = vpop.f32.mrb[0].mxu0
      %7651 = vmatprep.mubr.bf16.mxu0 %v7484
      %7652 = vmatmul.mubr.bf16.gmra.mrb[0].mxu0 %v7483
      %v7653 = vpop.f32.mrb[0].mxu0
      %v7654 = vadd.f32 0.0, %v7653
      %v7655 = vpop.f32.mrb[0].mxu0
      %v7656 = vpop.f32.mrb[0].mxu0
      %v7657 = vadd.f32 0.0, %v7656
      %v7658 = vpop.f32.mrb[0].mxu0
      %7659 = vmatprep.mubr.bf16.mxu0 %v7486
      %7660 = vmatmul.mubr.bf16.gmra.mrb[0].mxu0 %v7485
      %v7661 = vpop.f32.mrb[0].mxu0
      %v7662 = vadd.f32 0.0, %v7661
      %v7663 = vpop.f32.mrb[0].mxu0
      %v7664 = vpop.f32.mrb[0].mxu0
      %v7665 = vadd.f32 0.0, %v7664
      %v7666 = vpop.f32.mrb[0].mxu0
      %7667 = vmatprep.mubr.bf16.mxu0 %v7488
      %7668 = vmatmul.mubr.bf16.gmra.mrb[0].mxu0 %v7487
      %v7669 = vpop.f32.mrb[0].mxu0
      %v7670 = vadd.f32 0.0, %v7669
      %v7671 = vpop.f32.mrb[0].mxu0
      %v7672 = vpop.f32.mrb[0].mxu0
      %v7673 = vadd.f32 0.0, %v7672
      %v7674 = vpop.f32.mrb[0].mxu0
      %7675 = vmatprep.mubr.bf16.mxu0 %v7490
      %7676 = vmatmul.mubr.bf16.gmra.mrb[0].mxu0 %v7489
      %v7677 = vpop.f32.mrb[0].mxu0
      %v7678 = vadd.f32 0.0, %v7677
      %v7679 = vpop.f32.mrb[0].mxu0
      %v7680 = vpop.f32.mrb[0].mxu0
      %v7681 = vadd.f32 0.0, %v7680
      %v7682 = vpop.f32.mrb[0].mxu0
      %7683 = vmatprep.mubr.bf16.mxu0 %v7492
      %7684 = vmatmul.mubr.bf16.gmra.mrb[0].mxu0 %v7491
      %v7685 = vpop.f32.mrb[0].mxu0
      %v7686 = vadd.f32 0.0, %v7685
      %v7687 = vpop.f32.mrb[0].mxu0
      %v7688 = vpop.f32.mrb[0].mxu0
      %v7689 = vadd.f32 0.0, %v7688
      %v7690 = vpop.f32.mrb[0].mxu0
      %7691 = vmatprep.mubr.bf16.mxu0 %v7494
      %7692 = vmatmul.mubr.bf16.gmra.mrb[0].mxu0 %v7493
      %v7693 = vpop.f32.mrb[0].mxu0
      %v7694 = vadd.f32 0.0, %v7693
      %v7695 = vpop.f32.mrb[0].mxu0
      %v7696 = vpop.f32.mrb[0].mxu0
      %v7697 = vadd.f32 0.0, %v7696
      %v7698 = vpop.f32.mrb[0].mxu0
      %7699 = vmatprep.mubr.bf16.mxu0 %v7496
      %7700 = vmatmul.mubr.bf16.gmra.mrb[0].mxu0 %v7495
      %v7701 = vpop.f32.mrb[0].mxu0
      %v7702 = vadd.f32 0.0, %v7701
      %v7703 = vpop.f32.mrb[0].mxu0
      %v7704 = vpop.f32.mrb[0].mxu0
      %v7705 = vadd.f32 0.0, %v7704
      %v7706 = vpop.f32.mrb[0].mxu0
      %7707 = vmatprep.mubr.bf16.mxu0 %v7498
      %7708 = vmatmul.mubr.bf16.gmra.mrb[0].mxu0 %v7497
      %v7709 = vpop.f32.mrb[0].mxu0
      %v7710 = vadd.f32 0.0, %v7709
      %v7711 = vpop.f32.mrb[0].mxu0
      %v7712 = vpop.f32.mrb[0].mxu0
      %v7713 = vadd.f32 0.0, %v7712
      %v7714 = vpop.f32.mrb[0].mxu0
      %7715 = vmatprep.mubr.bf16.mxu0 %v7500
      %7716 = vmatmul.mubr.bf16.gmra.mrb[0].mxu0 %v7499
      %v7717 = vpop.f32.mrb[0].mxu0
      %v7718 = vadd.f32 0.0, %v7717
      %v7719 = vpop.f32.mrb[0].mxu0
      %v7720 = vpop.f32.mrb[0].mxu0
      %v7721 = vadd.f32 0.0, %v7720
      %v7722 = vpop.f32.mrb[0].mxu0
      %7723 = vmatprep.mubr.bf16.mxu0 %v7502
      %7724 = vmatmul.mubr.bf16.gmra.mrb[0].mxu0 %v7501
      %v7725 = vpop.f32.mrb[0].mxu0
      %v7726 = vadd.f32 0.0, %v7725
      %v7727 = vpop.f32.mrb[0].mxu0
      %v7728 = vpop.f32.mrb[0].mxu0
      %v7729 = vadd.f32 0.0, %v7728
      %v7730 = vpop.f32.mrb[0].mxu0
      %7731 = vmatprep.mubr.bf16.mxu0 %v7504
      %7732 = vmatmul.mubr.bf16.gmra.mrb[0].mxu0 %v7503
      %v7733 = vpop.f32.mrb[0].mxu0
      %v7734 = vadd.f32 0.0, %v7733
      %v7735 = vpop.f32.mrb[0].mxu0
      %v7736 = vpop.f32.mrb[0].mxu0
      %v7737 = vadd.f32 0.0, %v7736
      %v7738 = vpop.f32.mrb[0].mxu0
      %7739 = vmatprep.mubr.bf16.mxu0 %v7506
      %7740 = vmatmul.mubr.bf16.gmra.mrb[0].mxu0 %v7505
      %v7741 = vpop.f32.mrb[0].mxu0
      %v7742 = vadd.f32 0.0, %v7741
      %v7743 = vpop.f32.mrb[0].mxu0
      %v7744 = vpop.f32.mrb[0].mxu0
      %v7745 = vadd.f32 0.0, %v7744
      %v7746 = vpop.f32.mrb[0].mxu0
      %7747 = vdwg.mxu0
      %v7748 = vadd.f32 %v7314, %v7622
      %v7749 = vadd.f32 %v7315, %v7625
      %v7750 = vadd.f32 %v7316, %v7630
      %v7751 = vadd.f32 %v7317, %v7633
      %v7752 = vadd.f32 %v7318, %v7638
      %v7753 = vadd.f32 %v7319, %v7641
      %v7754 = vadd.f32 %v7320, %v7646
      %v7755 = vadd.f32 %v7321, %v7649
      %v7756 = vadd.f32 %v7322, %v7654
      %v7757 = vadd.f32 %v7323, %v7657
      %v7758 = vadd.f32 %v7324, %v7662
      %v7759 = vadd.f32 %v7325, %v7665
      %v7760 = vadd.f32 %v7326, %v7670
      %v7761 = vadd.f32 %v7327, %v7673
      %v7762 = vadd.f32 %v7328, %v7678
      %v7763 = vadd.f32 %v7329, %v7681
      %v7764 = vadd.f32 %v7330, %v7686
      %v7765 = vadd.f32 %v7331, %v7689
      %v7766 = vadd.f32 %v7332, %v7694
      %v7767 = vadd.f32 %v7333, %v7697
      %v7768 = vadd.f32 %v7334, %v7702
      %v7769 = vadd.f32 %v7335, %v7705
      %v7770 = vadd.f32 %v7336, %v7710
      %v7771 = vadd.f32 %v7337, %v7713
      %v7772 = vadd.f32 %v7338, %v7718
      %v7773 = vadd.f32 %v7339, %v7721
      %v7774 = vadd.f32 %v7340, %v7726
      %v7775 = vadd.f32 %v7341, %v7729
      %v7776 = vadd.f32 %v7342, %v7734
      %v7777 = vadd.f32 %v7343, %v7737
      %v7778 = vadd.f32 %v7344, %v7742
      %v7779 = vadd.f32 %v7345, %v7745
      %s7780 = scalar_lea.vmem %s5, 2816
      %v7781 = vld [vmem:[%s7780] sm:$0xff]
      %v7782 = vld [vmem:[%s7780 + $0x8] sm:$0xff]
      %v7783 = vld [vmem:[%s7780 + $0x10] sm:$0xff]
      %v7784 = vld [vmem:[%s7780 + $0x18] sm:$0xff]
      %v7785 = vld [vmem:[%s7780 + $0x20] sm:$0xff]
      %v7786 = vld [vmem:[%s7780 + $0x28] sm:$0xff]
      %v7787 = vld [vmem:[%s7780 + $0x30] sm:$0xff]
      %v7788 = vld [vmem:[%s7780 + $0x38] sm:$0xff]
      %v7789 = vld [vmem:[%s7780 + $0x40] sm:$0xff]
      %v7790 = vld [vmem:[%s7780 + $0x48] sm:$0xff]
      %v7791 = vld [vmem:[%s7780 + $0x50] sm:$0xff]
      %v7792 = vld [vmem:[%s7780 + $0x58] sm:$0xff]
      %v7793 = vld [vmem:[%s7780 + $0x60] sm:$0xff]
      %v7794 = vld [vmem:[%s7780 + $0x68] sm:$0xff]
      %v7795 = vld [vmem:[%s7780 + $0x70] sm:$0xff]
      %v7796 = vld [vmem:[%s7780 + $0x78] sm:$0xff]
      %v7797 = vld [vmem:[%s7780 + $0x80] sm:$0xff]
      %v7798 = vld [vmem:[%s7780 + $0x88] sm:$0xff]
      %v7799 = vld [vmem:[%s7780 + $0x90] sm:$0xff]
      %v7800 = vld [vmem:[%s7780 + $0x98] sm:$0xff]
      %v7801 = vld [vmem:[%s7780 + $0xa0] sm:$0xff]
      %v7802 = vld [vmem:[%s7780 + $0xa8] sm:$0xff]
      %v7803 = vld [vmem:[%s7780 + $0xb0] sm:$0xff]
      %v7804 = vld [vmem:[%s7780 + $0xb8] sm:$0xff]
      %v7805 = vld [vmem:[%s7780 + $0xc0] sm:$0xff]
      %v7806 = vld [vmem:[%s7780 + $0xc8] sm:$0xff]
      %v7807 = vld [vmem:[%s7780 + $0xd0] sm:$0xff]
      %v7808 = vld [vmem:[%s7780 + $0xd8] sm:$0xff]
      %v7809 = vld [vmem:[%s7780 + $0xe0] sm:$0xff]
      %v7810 = vld [vmem:[%s7780 + $0xe8] sm:$0xff]
      %v7811 = vld [vmem:[%s7780 + $0xf0] sm:$0xff]
      %v7812 = vld [vmem:[%s7780 + $0xf8] sm:$0xff]
      %v7845 = vunpack.c.l.b16 %v7781
      %v7846 = vunpack.c.h.b16 %v7781
      %v7847 = vunpack.c.l.b16 %v7782
      %v7848 = vunpack.c.h.b16 %v7782
      %v7849 = vunpack.c.l.b16 %v7783
      %v7850 = vunpack.c.h.b16 %v7783
      %v7851 = vunpack.c.l.b16 %v7784
      %v7852 = vunpack.c.h.b16 %v7784
      %v7853 = vunpack.c.l.b16 %v7785
      %v7854 = vunpack.c.h.b16 %v7785
      %v7855 = vunpack.c.l.b16 %v7786
      %v7856 = vunpack.c.h.b16 %v7786
      %v7857 = vunpack.c.l.b16 %v7787
      %v7858 = vunpack.c.h.b16 %v7787
      %v7859 = vunpack.c.l.b16 %v7788
      %v7860 = vunpack.c.h.b16 %v7788
      %v7861 = vunpack.c.l.b16 %v7789
      %v7862 = vunpack.c.h.b16 %v7789
      %v7863 = vunpack.c.l.b16 %v7790
      %v7864 = vunpack.c.h.b16 %v7790
      %v7865 = vunpack.c.l.b16 %v7791
      %v7866 = vunpack.c.h.b16 %v7791
      %v7867 = vunpack.c.l.b16 %v7792
      %v7868 = vunpack.c.h.b16 %v7792
      %v7869 = vunpack.c.l.b16 %v7793
      %v7870 = vunpack.c.h.b16 %v7793
      %v7871 = vunpack.c.l.b16 %v7794
      %v7872 = vunpack.c.h.b16 %v7794
      %v7873 = vunpack.c.l.b16 %v7795
      %v7874 = vunpack.c.h.b16 %v7795
      %v7875 = vunpack.c.l.b16 %v7796
      %v7876 = vunpack.c.h.b16 %v7796
      %v7877 = vunpack.c.l.b16 %v7797
      %v7878 = vunpack.c.h.b16 %v7797
      %v7879 = vunpack.c.l.b16 %v7798
      %v7880 = vunpack.c.h.b16 %v7798
      %v7881 = vunpack.c.l.b16 %v7799
      %v7882 = vunpack.c.h.b16 %v7799
      %v7883 = vunpack.c.l.b16 %v7800
      %v7884 = vunpack.c.h.b16 %v7800
      %v7885 = vunpack.c.l.b16 %v7801
      %v7886 = vunpack.c.h.b16 %v7801
      %v7887 = vunpack.c.l.b16 %v7802
      %v7888 = vunpack.c.h.b16 %v7802
      %v7889 = vunpack.c.l.b16 %v7803
      %v7890 = vunpack.c.h.b16 %v7803
      %v7891 = vunpack.c.l.b16 %v7804
      %v7892 = vunpack.c.h.b16 %v7804
      %v7893 = vunpack.c.l.b16 %v7805
      %v7894 = vunpack.c.h.b16 %v7805
      %v7895 = vunpack.c.l.b16 %v7806
      %v7896 = vunpack.c.h.b16 %v7806
      %v7897 = vunpack.c.l.b16 %v7807
      %v7898 = vunpack.c.h.b16 %v7807
      %v7899 = vunpack.c.l.b16 %v7808
      %v7900 = vunpack.c.h.b16 %v7808
      %v7901 = vunpack.c.l.b16 %v7809
      %v7902 = vunpack.c.h.b16 %v7809
      %v7903 = vunpack.c.l.b16 %v7810
      %v7904 = vunpack.c.h.b16 %v7810
      %v7905 = vunpack.c.l.b16 %v7811
      %v7906 = vunpack.c.h.b16 %v7811
      %v7907 = vunpack.c.l.b16 %v7812
      %v7908 = vunpack.c.h.b16 %v7812
      %v7909 = vpack.c.b16 %v7847, %v7845
      %v7910 = vpack.c.b16 %v7848, %v7846
      %v7911 = vpack.c.b16 %v7851, %v7849
      %v7912 = vpack.c.b16 %v7852, %v7850
      %v7913 = vpack.c.b16 %v7855, %v7853
      %v7914 = vpack.c.b16 %v7856, %v7854
      %v7915 = vpack.c.b16 %v7859, %v7857
      %v7916 = vpack.c.b16 %v7860, %v7858
      %v7917 = vpack.c.b16 %v7863, %v7861
      %v7918 = vpack.c.b16 %v7864, %v7862
      %v7919 = vpack.c.b16 %v7867, %v7865
      %v7920 = vpack.c.b16 %v7868, %v7866
      %v7921 = vpack.c.b16 %v7871, %v7869
      %v7922 = vpack.c.b16 %v7872, %v7870
      %v7923 = vpack.c.b16 %v7875, %v7873
      %v7924 = vpack.c.b16 %v7876, %v7874
      %v7925 = vpack.c.b16 %v7879, %v7877
      %v7926 = vpack.c.b16 %v7880, %v7878
      %v7927 = vpack.c.b16 %v7883, %v7881
      %v7928 = vpack.c.b16 %v7884, %v7882
      %v7929 = vpack.c.b16 %v7887, %v7885
      %v7930 = vpack.c.b16 %v7888, %v7886
      %v7931 = vpack.c.b16 %v7891, %v7889
      %v7932 = vpack.c.b16 %v7892, %v7890
      %v7933 = vpack.c.b16 %v7895, %v7893
      %v7934 = vpack.c.b16 %v7896, %v7894
      %v7935 = vpack.c.b16 %v7899, %v7897
      %v7936 = vpack.c.b16 %v7900, %v7898
      %v7937 = vpack.c.b16 %v7903, %v7901
      %v7938 = vpack.c.b16 %v7904, %v7902
      %v7939 = vpack.c.b16 %v7907, %v7905
      %v7940 = vpack.c.b16 %v7908, %v7906
      %7973 = vrot.lane.b32.xlu0 %v6527, 32
      %v7974 = vpop.permute.xlu0 %7973
      %7975 = vrot.lane.b32.xlu0 %v6528, 32
      %v7976 = vpop.permute.xlu0 %7975
      %7977 = vrot.lane.b32.xlu0 %v6529, 32
      %v7978 = vpop.permute.xlu0 %7977
      %7979 = vrot.lane.b32.xlu0 %v6530, 32
      %v7980 = vpop.permute.xlu0 %7979
      %7981 = vrot.lane.b32.xlu0 %v6531, 32
      %v7982 = vpop.permute.xlu0 %7981
      %7983 = vrot.lane.b32.xlu0 %v6532, 32
      %v7984 = vpop.permute.xlu0 %7983
      %7985 = vrot.lane.b32.xlu0 %v6533, 32
      %v7986 = vpop.permute.xlu0 %7985
      %7987 = vrot.lane.b32.xlu0 %v6534, 32
      %v7988 = vpop.permute.xlu0 %7987
      %7989 = vrot.lane.b32.xlu0 %v6535, 32
      %v7990 = vpop.permute.xlu0 %7989
      %7991 = vrot.lane.b32.xlu0 %v6536, 32
      %v7992 = vpop.permute.xlu0 %7991
      %7993 = vrot.lane.b32.xlu0 %v6537, 32
      %v7994 = vpop.permute.xlu0 %7993
      %7995 = vrot.lane.b32.xlu0 %v6538, 32
      %v7996 = vpop.permute.xlu0 %7995
      %7997 = vrot.lane.b32.xlu0 %v6539, 32
      %v7998 = vpop.permute.xlu0 %7997
      %7999 = vrot.lane.b32.xlu0 %v6540, 32
      %v8000 = vpop.permute.xlu0 %7999
      %8001 = vrot.lane.b32.xlu0 %v6541, 32
      %v8002 = vpop.permute.xlu0 %8001
      %8003 = vrot.lane.b32.xlu0 %v6542, 32
      %v8004 = vpop.permute.xlu0 %8003
      %8021 = vmatprep.subr.bf16.mxu0 0
      %8022 = vmatpush1.bf16.msra.mxu0 %v7974
      %8023 = vmatprep.subr.bf16.mxu0 0
      %8024 = vmatpush1.bf16.msra.mxu0 %v7976
      %8025 = vmatprep.subr.bf16.mxu0 0
      %8026 = vmatpush1.bf16.msra.mxu0 %v7978
      %8027 = vmatprep.subr.bf16.mxu0 0
      %8028 = vmatpush1.bf16.msra.mxu0 %v7980
      %8029 = vmatprep.subr.bf16.mxu0 0
      %8030 = vmatpush1.bf16.msra.mxu0 %v7982
      %8031 = vmatprep.subr.bf16.mxu0 0
      %8032 = vmatpush1.bf16.msra.mxu0 %v7984
      %8033 = vmatprep.subr.bf16.mxu0 0
      %8034 = vmatpush1.bf16.msra.mxu0 %v7986
      %8035 = vmatprep.subr.bf16.mxu0 0
      %8036 = vmatpush1.bf16.msra.mxu0 %v7988
      %8037 = vmatprep.subr.bf16.mxu0 0
      %8038 = vmatpush1.bf16.msra.mxu0 %v7990
      %8039 = vmatprep.subr.bf16.mxu0 0
      %8040 = vmatpush1.bf16.msra.mxu0 %v7992
      %8041 = vmatprep.subr.bf16.mxu0 0
      %8042 = vmatpush1.bf16.msra.mxu0 %v7994
      %8043 = vmatprep.subr.bf16.mxu0 0
      %8044 = vmatpush1.bf16.msra.mxu0 %v7996
      %8045 = vmatprep.subr.bf16.mxu0 0
      %8046 = vmatpush1.bf16.msra.mxu0 %v7998
      %8047 = vmatprep.subr.bf16.mxu0 0
      %8048 = vmatpush1.bf16.msra.mxu0 %v8000
      %8049 = vmatprep.subr.bf16.mxu0 0
      %8050 = vmatpush1.bf16.msra.mxu0 %v8002
      %8051 = vmatprep.subr.bf16.mxu0 0
      %8052 = vmatpush1.bf16.msra.mxu0 %v8004
      %8053 = vmatprep.mubr.bf16.mxu0 %v7910
      %8054 = vmatmul.mubr.bf16.gmra.mrb[0].mxu0 %v7909
      %v8055 = vpop.f32.mrb[0].mxu0
      %v8056 = vadd.f32 0.0, %v8055
      %v8057 = vpop.f32.mrb[0].mxu0
      %v8058 = vpop.f32.mrb[0].mxu0
      %v8059 = vadd.f32 0.0, %v8058
      %v8060 = vpop.f32.mrb[0].mxu0
      %8061 = vmatprep.mubr.bf16.mxu0 %v7912
      %8062 = vmatmul.mubr.bf16.gmra.mrb[0].mxu0 %v7911
      %v8063 = vpop.f32.mrb[0].mxu0
      %v8064 = vadd.f32 0.0, %v8063
      %v8065 = vpop.f32.mrb[0].mxu0
      %v8066 = vpop.f32.mrb[0].mxu0
      %v8067 = vadd.f32 0.0, %v8066
      %v8068 = vpop.f32.mrb[0].mxu0
      %8069 = vmatprep.mubr.bf16.mxu0 %v7914
      %8070 = vmatmul.mubr.bf16.gmra.mrb[0].mxu0 %v7913
      %v8071 = vpop.f32.mrb[0].mxu0
      %v8072 = vadd.f32 0.0, %v8071
      %v8073 = vpop.f32.mrb[0].mxu0
      %v8074 = vpop.f32.mrb[0].mxu0
      %v8075 = vadd.f32 0.0, %v8074
      %v8076 = vpop.f32.mrb[0].mxu0
      %8077 = vmatprep.mubr.bf16.mxu0 %v7916
      %8078 = vmatmul.mubr.bf16.gmra.mrb[0].mxu0 %v7915
      %v8079 = vpop.f32.mrb[0].mxu0
      %v8080 = vadd.f32 0.0, %v8079
      %v8081 = vpop.f32.mrb[0].mxu0
      %v8082 = vpop.f32.mrb[0].mxu0
      %v8083 = vadd.f32 0.0, %v8082
      %v8084 = vpop.f32.mrb[0].mxu0
      %8085 = vmatprep.mubr.bf16.mxu0 %v7918
      %8086 = vmatmul.mubr.bf16.gmra.mrb[0].mxu0 %v7917
      %v8087 = vpop.f32.mrb[0].mxu0
      %v8088 = vadd.f32 0.0, %v8087
      %v8089 = vpop.f32.mrb[0].mxu0
      %v8090 = vpop.f32.mrb[0].mxu0
      %v8091 = vadd.f32 0.0, %v8090
      %v8092 = vpop.f32.mrb[0].mxu0
      %8093 = vmatprep.mubr.bf16.mxu0 %v7920
      %8094 = vmatmul.mubr.bf16.gmra.mrb[0].mxu0 %v7919
      %v8095 = vpop.f32.mrb[0].mxu0
      %v8096 = vadd.f32 0.0, %v8095
      %v8097 = vpop.f32.mrb[0].mxu0
      %v8098 = vpop.f32.mrb[0].mxu0
      %v8099 = vadd.f32 0.0, %v8098
      %v8100 = vpop.f32.mrb[0].mxu0
      %8101 = vmatprep.mubr.bf16.mxu0 %v7922
      %8102 = vmatmul.mubr.bf16.gmra.mrb[0].mxu0 %v7921
      %v8103 = vpop.f32.mrb[0].mxu0
      %v8104 = vadd.f32 0.0, %v8103
      %v8105 = vpop.f32.mrb[0].mxu0
      %v8106 = vpop.f32.mrb[0].mxu0
      %v8107 = vadd.f32 0.0, %v8106
      %v8108 = vpop.f32.mrb[0].mxu0
      %8109 = vmatprep.mubr.bf16.mxu0 %v7924
      %8110 = vmatmul.mubr.bf16.gmra.mrb[0].mxu0 %v7923
      %v8111 = vpop.f32.mrb[0].mxu0
      %v8112 = vadd.f32 0.0, %v8111
      %v8113 = vpop.f32.mrb[0].mxu0
      %v8114 = vpop.f32.mrb[0].mxu0
      %v8115 = vadd.f32 0.0, %v8114
      %v8116 = vpop.f32.mrb[0].mxu0
      %8117 = vmatprep.mubr.bf16.mxu0 %v7926
      %8118 = vmatmul.mubr.bf16.gmra.mrb[0].mxu0 %v7925
      %v8119 = vpop.f32.mrb[0].mxu0
      %v8120 = vadd.f32 0.0, %v8119
      %v8121 = vpop.f32.mrb[0].mxu0
      %v8122 = vpop.f32.mrb[0].mxu0
      %v8123 = vadd.f32 0.0, %v8122
      %v8124 = vpop.f32.mrb[0].mxu0
      %8125 = vmatprep.mubr.bf16.mxu0 %v7928
      %8126 = vmatmul.mubr.bf16.gmra.mrb[0].mxu0 %v7927
      %v8127 = vpop.f32.mrb[0].mxu0
      %v8128 = vadd.f32 0.0, %v8127
      %v8129 = vpop.f32.mrb[0].mxu0
      %v8130 = vpop.f32.mrb[0].mxu0
      %v8131 = vadd.f32 0.0, %v8130
      %v8132 = vpop.f32.mrb[0].mxu0
      %8133 = vmatprep.mubr.bf16.mxu0 %v7930
      %8134 = vmatmul.mubr.bf16.gmra.mrb[0].mxu0 %v7929
      %v8135 = vpop.f32.mrb[0].mxu0
      %v8136 = vadd.f32 0.0, %v8135
      %v8137 = vpop.f32.mrb[0].mxu0
      %v8138 = vpop.f32.mrb[0].mxu0
      %v8139 = vadd.f32 0.0, %v8138
      %v8140 = vpop.f32.mrb[0].mxu0
      %8141 = vmatprep.mubr.bf16.mxu0 %v7932
      %8142 = vmatmul.mubr.bf16.gmra.mrb[0].mxu0 %v7931
      %v8143 = vpop.f32.mrb[0].mxu0
      %v8144 = vadd.f32 0.0, %v8143
      %v8145 = vpop.f32.mrb[0].mxu0
      %v8146 = vpop.f32.mrb[0].mxu0
      %v8147 = vadd.f32 0.0, %v8146
      %v8148 = vpop.f32.mrb[0].mxu0
      %8149 = vmatprep.mubr.bf16.mxu0 %v7934
      %8150 = vmatmul.mubr.bf16.gmra.mrb[0].mxu0 %v7933
      %v8151 = vpop.f32.mrb[0].mxu0
      %v8152 = vadd.f32 0.0, %v8151
      %v8153 = vpop.f32.mrb[0].mxu0
      %v8154 = vpop.f32.mrb[0].mxu0
      %v8155 = vadd.f32 0.0, %v8154
      %v8156 = vpop.f32.mrb[0].mxu0
      %8157 = vmatprep.mubr.bf16.mxu0 %v7936
      %8158 = vmatmul.mubr.bf16.gmra.mrb[0].mxu0 %v7935
      %v8159 = vpop.f32.mrb[0].mxu0
      %v8160 = vadd.f32 0.0, %v8159
      %v8161 = vpop.f32.mrb[0].mxu0
      %v8162 = vpop.f32.mrb[0].mxu0
      %v8163 = vadd.f32 0.0, %v8162
      %v8164 = vpop.f32.mrb[0].mxu0
      %8165 = vmatprep.mubr.bf16.mxu0 %v7938
      %8166 = vmatmul.mubr.bf16.gmra.mrb[0].mxu0 %v7937
      %v8167 = vpop.f32.mrb[0].mxu0
      %v8168 = vadd.f32 0.0, %v8167
      %v8169 = vpop.f32.mrb[0].mxu0
      %v8170 = vpop.f32.mrb[0].mxu0
      %v8171 = vadd.f32 0.0, %v8170
      %v8172 = vpop.f32.mrb[0].mxu0
      %8173 = vmatprep.mubr.bf16.mxu0 %v7940
      %8174 = vmatmul.mubr.bf16.gmra.mrb[0].mxu0 %v7939
      %v8175 = vpop.f32.mrb[0].mxu0
      %v8176 = vadd.f32 0.0, %v8175
      %v8177 = vpop.f32.mrb[0].mxu0
      %v8178 = vpop.f32.mrb[0].mxu0
      %v8179 = vadd.f32 0.0, %v8178
      %v8180 = vpop.f32.mrb[0].mxu0
      %8181 = vdwg.mxu0
      %v8182 = vadd.f32 %v7748, %v8056
      %v8183 = vadd.f32 %v7749, %v8059
      %v8184 = vadd.f32 %v7750, %v8064
      %v8185 = vadd.f32 %v7751, %v8067
      %v8186 = vadd.f32 %v7752, %v8072
      %v8187 = vadd.f32 %v7753, %v8075
      %v8188 = vadd.f32 %v7754, %v8080
      %v8189 = vadd.f32 %v7755, %v8083
      %v8190 = vadd.f32 %v7756, %v8088
      %v8191 = vadd.f32 %v7757, %v8091
      %v8192 = vadd.f32 %v7758, %v8096
      %v8193 = vadd.f32 %v7759, %v8099
      %v8194 = vadd.f32 %v7760, %v8104
      %v8195 = vadd.f32 %v7761, %v8107
      %v8196 = vadd.f32 %v7762, %v8112
      %v8197 = vadd.f32 %v7763, %v8115
      %v8198 = vadd.f32 %v7764, %v8120
      %v8199 = vadd.f32 %v7765, %v8123
      %v8200 = vadd.f32 %v7766, %v8128
      %v8201 = vadd.f32 %v7767, %v8131
      %v8202 = vadd.f32 %v7768, %v8136
      %v8203 = vadd.f32 %v7769, %v8139
      %v8204 = vadd.f32 %v7770, %v8144
      %v8205 = vadd.f32 %v7771, %v8147
      %v8206 = vadd.f32 %v7772, %v8152
      %v8207 = vadd.f32 %v7773, %v8155
      %v8208 = vadd.f32 %v7774, %v8160
      %v8209 = vadd.f32 %v7775, %v8163
      %v8210 = vadd.f32 %v7776, %v8168
      %v8211 = vadd.f32 %v7777, %v8171
      %v8212 = vadd.f32 %v7778, %v8176
      %v8213 = vadd.f32 %v7779, %v8179
      %s8214 = scalar_lea.vmem %s5, 3072
      %v8215 = vld [vmem:[%s8214] sm:$0xff]
      %v8216 = vld [vmem:[%s8214 + $0x8] sm:$0xff]
      %v8217 = vld [vmem:[%s8214 + $0x10] sm:$0xff]
      %v8218 = vld [vmem:[%s8214 + $0x18] sm:$0xff]
      %v8219 = vld [vmem:[%s8214 + $0x20] sm:$0xff]
      %v8220 = vld [vmem:[%s8214 + $0x28] sm:$0xff]
      %v8221 = vld [vmem:[%s8214 + $0x30] sm:$0xff]
      %v8222 = vld [vmem:[%s8214 + $0x38] sm:$0xff]
      %v8223 = vld [vmem:[%s8214 + $0x40] sm:$0xff]
      %v8224 = vld [vmem:[%s8214 + $0x48] sm:$0xff]
      %v8225 = vld [vmem:[%s8214 + $0x50] sm:$0xff]
      %v8226 = vld [vmem:[%s8214 + $0x58] sm:$0xff]
      %v8227 = vld [vmem:[%s8214 + $0x60] sm:$0xff]
      %v8228 = vld [vmem:[%s8214 + $0x68] sm:$0xff]
      %v8229 = vld [vmem:[%s8214 + $0x70] sm:$0xff]
      %v8230 = vld [vmem:[%s8214 + $0x78] sm:$0xff]
      %v8231 = vld [vmem:[%s8214 + $0x80] sm:$0xff]
      %v8232 = vld [vmem:[%s8214 + $0x88] sm:$0xff]
      %v8233 = vld [vmem:[%s8214 + $0x90] sm:$0xff]
      %v8234 = vld [vmem:[%s8214 + $0x98] sm:$0xff]
      %v8235 = vld [vmem:[%s8214 + $0xa0] sm:$0xff]
      %v8236 = vld [vmem:[%s8214 + $0xa8] sm:$0xff]
      %v8237 = vld [vmem:[%s8214 + $0xb0] sm:$0xff]
      %v8238 = vld [vmem:[%s8214 + $0xb8] sm:$0xff]
      %v8239 = vld [vmem:[%s8214 + $0xc0] sm:$0xff]
      %v8240 = vld [vmem:[%s8214 + $0xc8] sm:$0xff]
      %v8241 = vld [vmem:[%s8214 + $0xd0] sm:$0xff]
      %v8242 = vld [vmem:[%s8214 + $0xd8] sm:$0xff]
      %v8243 = vld [vmem:[%s8214 + $0xe0] sm:$0xff]
      %v8244 = vld [vmem:[%s8214 + $0xe8] sm:$0xff]
      %v8245 = vld [vmem:[%s8214 + $0xf0] sm:$0xff]
      %v8246 = vld [vmem:[%s8214 + $0xf8] sm:$0xff]
      %v8247 = vpack.c.bf16 %v2967, %v2963
      %v8248 = vpack.c.bf16 %v2977, %v2973
      %v8249 = vpack.c.bf16 %v2987, %v2983
      %v8250 = vpack.c.bf16 %v2997, %v2993
      %v8251 = vpack.c.bf16 %v3007, %v3003
      %v8252 = vpack.c.bf16 %v3017, %v3013
      %v8253 = vpack.c.bf16 %v3027, %v3023
      %v8254 = vpack.c.bf16 %v3037, %v3033
      %v8255 = vpack.c.bf16 %v3047, %v3043
      %v8256 = vpack.c.bf16 %v3057, %v3053
      %v8257 = vpack.c.bf16 %v3067, %v3063
      %v8258 = vpack.c.bf16 %v3077, %v3073
      %v8259 = vpack.c.bf16 %v3087, %v3083
      %v8260 = vpack.c.bf16 %v3097, %v3093
      %v8261 = vpack.c.bf16 %v3107, %v3103
      %v8262 = vpack.c.bf16 %v3117, %v3113
      %v8295 = vunpack.c.l.b16 %v8215
      %v8296 = vunpack.c.h.b16 %v8215
      %v8297 = vunpack.c.l.b16 %v8216
      %v8298 = vunpack.c.h.b16 %v8216
      %v8299 = vunpack.c.l.b16 %v8217
      %v8300 = vunpack.c.h.b16 %v8217
      %v8301 = vunpack.c.l.b16 %v8218
      %v8302 = vunpack.c.h.b16 %v8218
      %v8303 = vunpack.c.l.b16 %v8219
      %v8304 = vunpack.c.h.b16 %v8219
      %v8305 = vunpack.c.l.b16 %v8220
      %v8306 = vunpack.c.h.b16 %v8220
      %v8307 = vunpack.c.l.b16 %v8221
      %v8308 = vunpack.c.h.b16 %v8221
      %v8309 = vunpack.c.l.b16 %v8222
      %v8310 = vunpack.c.h.b16 %v8222
      %v8311 = vunpack.c.l.b16 %v8223
      %v8312 = vunpack.c.h.b16 %v8223
      %v8313 = vunpack.c.l.b16 %v8224
      %v8314 = vunpack.c.h.b16 %v8224
      %v8315 = vunpack.c.l.b16 %v8225
      %v8316 = vunpack.c.h.b16 %v8225
      %v8317 = vunpack.c.l.b16 %v8226
      %v8318 = vunpack.c.h.b16 %v8226
      %v8319 = vunpack.c.l.b16 %v8227
      %v8320 = vunpack.c.h.b16 %v8227
      %v8321 = vunpack.c.l.b16 %v8228
      %v8322 = vunpack.c.h.b16 %v8228
      %v8323 = vunpack.c.l.b16 %v8229
      %v8324 = vunpack.c.h.b16 %v8229
      %v8325 = vunpack.c.l.b16 %v8230
      %v8326 = vunpack.c.h.b16 %v8230
      %v8327 = vunpack.c.l.b16 %v8231
      %v8328 = vunpack.c.h.b16 %v8231
      %v8329 = vunpack.c.l.b16 %v8232
      %v8330 = vunpack.c.h.b16 %v8232
      %v8331 = vunpack.c.l.b16 %v8233
      %v8332 = vunpack.c.h.b16 %v8233
      %v8333 = vunpack.c.l.b16 %v8234
      %v8334 = vunpack.c.h.b16 %v8234
      %v8335 = vunpack.c.l.b16 %v8235
      %v8336 = vunpack.c.h.b16 %v8235
      %v8337 = vunpack.c.l.b16 %v8236
      %v8338 = vunpack.c.h.b16 %v8236
      %v8339 = vunpack.c.l.b16 %v8237
      %v8340 = vunpack.c.h.b16 %v8237
      %v8341 = vunpack.c.l.b16 %v8238
      %v8342 = vunpack.c.h.b16 %v8238
      %v8343 = vunpack.c.l.b16 %v8239
      %v8344 = vunpack.c.h.b16 %v8239
      %v8345 = vunpack.c.l.b16 %v8240
      %v8346 = vunpack.c.h.b16 %v8240
      %v8347 = vunpack.c.l.b16 %v8241
      %v8348 = vunpack.c.h.b16 %v8241
      %v8349 = vunpack.c.l.b16 %v8242
      %v8350 = vunpack.c.h.b16 %v8242
      %v8351 = vunpack.c.l.b16 %v8243
      %v8352 = vunpack.c.h.b16 %v8243
      %v8353 = vunpack.c.l.b16 %v8244
      %v8354 = vunpack.c.h.b16 %v8244
      %v8355 = vunpack.c.l.b16 %v8245
      %v8356 = vunpack.c.h.b16 %v8245
      %v8357 = vunpack.c.l.b16 %v8246
      %v8358 = vunpack.c.h.b16 %v8246
      %v8359 = vpack.c.b16 %v8297, %v8295
      %v8360 = vpack.c.b16 %v8298, %v8296
      %v8361 = vpack.c.b16 %v8301, %v8299
      %v8362 = vpack.c.b16 %v8302, %v8300
      %v8363 = vpack.c.b16 %v8305, %v8303
      %v8364 = vpack.c.b16 %v8306, %v8304
      %v8365 = vpack.c.b16 %v8309, %v8307
      %v8366 = vpack.c.b16 %v8310, %v8308
      %v8367 = vpack.c.b16 %v8313, %v8311
      %v8368 = vpack.c.b16 %v8314, %v8312
      %v8369 = vpack.c.b16 %v8317, %v8315
      %v8370 = vpack.c.b16 %v8318, %v8316
      %v8371 = vpack.c.b16 %v8321, %v8319
      %v8372 = vpack.c.b16 %v8322, %v8320
      %v8373 = vpack.c.b16 %v8325, %v8323
      %v8374 = vpack.c.b16 %v8326, %v8324
      %v8375 = vpack.c.b16 %v8329, %v8327
      %v8376 = vpack.c.b16 %v8330, %v8328
      %v8377 = vpack.c.b16 %v8333, %v8331
      %v8378 = vpack.c.b16 %v8334, %v8332
      %v8379 = vpack.c.b16 %v8337, %v8335
      %v8380 = vpack.c.b16 %v8338, %v8336
      %v8381 = vpack.c.b16 %v8341, %v8339
      %v8382 = vpack.c.b16 %v8342, %v8340
      %v8383 = vpack.c.b16 %v8345, %v8343
      %v8384 = vpack.c.b16 %v8346, %v8344
      %v8385 = vpack.c.b16 %v8349, %v8347
      %v8386 = vpack.c.b16 %v8350, %v8348
      %v8387 = vpack.c.b16 %v8353, %v8351
      %v8388 = vpack.c.b16 %v8354, %v8352
      %v8389 = vpack.c.b16 %v8357, %v8355
      %v8390 = vpack.c.b16 %v8358, %v8356
      %8423 = vmatprep.subr.bf16.mxu0 0
      %8424 = vmatpush1.bf16.msra.mxu0 %v8247
      %8425 = vmatprep.subr.bf16.mxu0 0
      %8426 = vmatpush1.bf16.msra.mxu0 %v8248
      %8427 = vmatprep.subr.bf16.mxu0 0
      %8428 = vmatpush1.bf16.msra.mxu0 %v8249
      %8429 = vmatprep.subr.bf16.mxu0 0
      %8430 = vmatpush1.bf16.msra.mxu0 %v8250
      %8431 = vmatprep.subr.bf16.mxu0 0
      %8432 = vmatpush1.bf16.msra.mxu0 %v8251
      %8433 = vmatprep.subr.bf16.mxu0 0
      %8434 = vmatpush1.bf16.msra.mxu0 %v8252
      %8435 = vmatprep.subr.bf16.mxu0 0
      %8436 = vmatpush1.bf16.msra.mxu0 %v8253
      %8437 = vmatprep.subr.bf16.mxu0 0
      %8438 = vmatpush1.bf16.msra.mxu0 %v8254
      %8439 = vmatprep.subr.bf16.mxu0 0
      %8440 = vmatpush1.bf16.msra.mxu0 %v8255
      %8441 = vmatprep.subr.bf16.mxu0 0
      %8442 = vmatpush1.bf16.msra.mxu0 %v8256
      %8443 = vmatprep.subr.bf16.mxu0 0
      %8444 = vmatpush1.bf16.msra.mxu0 %v8257
      %8445 = vmatprep.subr.bf16.mxu0 0
      %8446 = vmatpush1.bf16.msra.mxu0 %v8258
      %8447 = vmatprep.subr.bf16.mxu0 0
      %8448 = vmatpush1.bf16.msra.mxu0 %v8259
      %8449 = vmatprep.subr.bf16.mxu0 0
      %8450 = vmatpush1.bf16.msra.mxu0 %v8260
      %8451 = vmatprep.subr.bf16.mxu0 0
      %8452 = vmatpush1.bf16.msra.mxu0 %v8261
      %8453 = vmatprep.subr.bf16.mxu0 0
      %8454 = vmatpush1.bf16.msra.mxu0 %v8262
      %8455 = vmatprep.mubr.bf16.mxu0 %v8360
      %8456 = vmatmul.mubr.bf16.gmra.mrb[0].mxu0 %v8359
      %v8457 = vpop.f32.mrb[0].mxu0
      %v8458 = vadd.f32 0.0, %v8457
      %v8459 = vpop.f32.mrb[0].mxu0
      %v8460 = vpop.f32.mrb[0].mxu0
      %v8461 = vadd.f32 0.0, %v8460
      %v8462 = vpop.f32.mrb[0].mxu0
      %8463 = vmatprep.mubr.bf16.mxu0 %v8362
      %8464 = vmatmul.mubr.bf16.gmra.mrb[0].mxu0 %v8361
      %v8465 = vpop.f32.mrb[0].mxu0
      %v8466 = vadd.f32 0.0, %v8465
      %v8467 = vpop.f32.mrb[0].mxu0
      %v8468 = vpop.f32.mrb[0].mxu0
      %v8469 = vadd.f32 0.0, %v8468
      %v8470 = vpop.f32.mrb[0].mxu0
      %8471 = vmatprep.mubr.bf16.mxu0 %v8364
      %8472 = vmatmul.mubr.bf16.gmra.mrb[0].mxu0 %v8363
      %v8473 = vpop.f32.mrb[0].mxu0
      %v8474 = vadd.f32 0.0, %v8473
      %v8475 = vpop.f32.mrb[0].mxu0
      %v8476 = vpop.f32.mrb[0].mxu0
      %v8477 = vadd.f32 0.0, %v8476
      %v8478 = vpop.f32.mrb[0].mxu0
      %8479 = vmatprep.mubr.bf16.mxu0 %v8366
      %8480 = vmatmul.mubr.bf16.gmra.mrb[0].mxu0 %v8365
      %v8481 = vpop.f32.mrb[0].mxu0
      %v8482 = vadd.f32 0.0, %v8481
      %v8483 = vpop.f32.mrb[0].mxu0
      %v8484 = vpop.f32.mrb[0].mxu0
      %v8485 = vadd.f32 0.0, %v8484
      %v8486 = vpop.f32.mrb[0].mxu0
      %8487 = vmatprep.mubr.bf16.mxu0 %v8368
      %8488 = vmatmul.mubr.bf16.gmra.mrb[0].mxu0 %v8367
      %v8489 = vpop.f32.mrb[0].mxu0
      %v8490 = vadd.f32 0.0, %v8489
      %v8491 = vpop.f32.mrb[0].mxu0
      %v8492 = vpop.f32.mrb[0].mxu0
      %v8493 = vadd.f32 0.0, %v8492
      %v8494 = vpop.f32.mrb[0].mxu0
      %8495 = vmatprep.mubr.bf16.mxu0 %v8370
      %8496 = vmatmul.mubr.bf16.gmra.mrb[0].mxu0 %v8369
      %v8497 = vpop.f32.mrb[0].mxu0
      %v8498 = vadd.f32 0.0, %v8497
      %v8499 = vpop.f32.mrb[0].mxu0
      %v8500 = vpop.f32.mrb[0].mxu0
      %v8501 = vadd.f32 0.0, %v8500
      %v8502 = vpop.f32.mrb[0].mxu0
      %8503 = vmatprep.mubr.bf16.mxu0 %v8372
      %8504 = vmatmul.mubr.bf16.gmra.mrb[0].mxu0 %v8371
      %v8505 = vpop.f32.mrb[0].mxu0
      %v8506 = vadd.f32 0.0, %v8505
      %v8507 = vpop.f32.mrb[0].mxu0
      %v8508 = vpop.f32.mrb[0].mxu0
      %v8509 = vadd.f32 0.0, %v8508
      %v8510 = vpop.f32.mrb[0].mxu0
      %8511 = vmatprep.mubr.bf16.mxu0 %v8374
      %8512 = vmatmul.mubr.bf16.gmra.mrb[0].mxu0 %v8373
      %v8513 = vpop.f32.mrb[0].mxu0
      %v8514 = vadd.f32 0.0, %v8513
      %v8515 = vpop.f32.mrb[0].mxu0
      %v8516 = vpop.f32.mrb[0].mxu0
      %v8517 = vadd.f32 0.0, %v8516
      %v8518 = vpop.f32.mrb[0].mxu0
      %8519 = vmatprep.mubr.bf16.mxu0 %v8376
      %8520 = vmatmul.mubr.bf16.gmra.mrb[0].mxu0 %v8375
      %v8521 = vpop.f32.mrb[0].mxu0
      %v8522 = vadd.f32 0.0, %v8521
      %v8523 = vpop.f32.mrb[0].mxu0
      %v8524 = vpop.f32.mrb[0].mxu0
      %v8525 = vadd.f32 0.0, %v8524
      %v8526 = vpop.f32.mrb[0].mxu0
      %8527 = vmatprep.mubr.bf16.mxu0 %v8378
      %8528 = vmatmul.mubr.bf16.gmra.mrb[0].mxu0 %v8377
      %v8529 = vpop.f32.mrb[0].mxu0
      %v8530 = vadd.f32 0.0, %v8529
      %v8531 = vpop.f32.mrb[0].mxu0
      %v8532 = vpop.f32.mrb[0].mxu0
      %v8533 = vadd.f32 0.0, %v8532
      %v8534 = vpop.f32.mrb[0].mxu0
      %8535 = vmatprep.mubr.bf16.mxu0 %v8380
      %8536 = vmatmul.mubr.bf16.gmra.mrb[0].mxu0 %v8379
      %v8537 = vpop.f32.mrb[0].mxu0
      %v8538 = vadd.f32 0.0, %v8537
      %v8539 = vpop.f32.mrb[0].mxu0
      %v8540 = vpop.f32.mrb[0].mxu0
      %v8541 = vadd.f32 0.0, %v8540
      %v8542 = vpop.f32.mrb[0].mxu0
      %8543 = vmatprep.mubr.bf16.mxu0 %v8382
      %8544 = vmatmul.mubr.bf16.gmra.mrb[0].mxu0 %v8381
      %v8545 = vpop.f32.mrb[0].mxu0
      %v8546 = vadd.f32 0.0, %v8545
      %v8547 = vpop.f32.mrb[0].mxu0
      %v8548 = vpop.f32.mrb[0].mxu0
      %v8549 = vadd.f32 0.0, %v8548
      %v8550 = vpop.f32.mrb[0].mxu0
      %8551 = vmatprep.mubr.bf16.mxu0 %v8384
      %8552 = vmatmul.mubr.bf16.gmra.mrb[0].mxu0 %v8383
      %v8553 = vpop.f32.mrb[0].mxu0
      %v8554 = vadd.f32 0.0, %v8553
      %v8555 = vpop.f32.mrb[0].mxu0
      %v8556 = vpop.f32.mrb[0].mxu0
      %v8557 = vadd.f32 0.0, %v8556
      %v8558 = vpop.f32.mrb[0].mxu0
      %8559 = vmatprep.mubr.bf16.mxu0 %v8386
      %8560 = vmatmul.mubr.bf16.gmra.mrb[0].mxu0 %v8385
      %v8561 = vpop.f32.mrb[0].mxu0
      %v8562 = vadd.f32 0.0, %v8561
      %v8563 = vpop.f32.mrb[0].mxu0
      %v8564 = vpop.f32.mrb[0].mxu0
      %v8565 = vadd.f32 0.0, %v8564
      %v8566 = vpop.f32.mrb[0].mxu0
      %8567 = vmatprep.mubr.bf16.mxu0 %v8388
      %8568 = vmatmul.mubr.bf16.gmra.mrb[0].mxu0 %v8387
      %v8569 = vpop.f32.mrb[0].mxu0
      %v8570 = vadd.f32 0.0, %v8569
      %v8571 = vpop.f32.mrb[0].mxu0
      %v8572 = vpop.f32.mrb[0].mxu0
      %v8573 = vadd.f32 0.0, %v8572
      %v8574 = vpop.f32.mrb[0].mxu0
      %8575 = vmatprep.mubr.bf16.mxu0 %v8390
      %8576 = vmatmul.mubr.bf16.gmra.mrb[0].mxu0 %v8389
      %v8577 = vpop.f32.mrb[0].mxu0
      %v8578 = vadd.f32 0.0, %v8577
      %v8579 = vpop.f32.mrb[0].mxu0
      %v8580 = vpop.f32.mrb[0].mxu0
      %v8581 = vadd.f32 0.0, %v8580
      %v8582 = vpop.f32.mrb[0].mxu0
      %8583 = vdwg.mxu0
      %v8584 = vadd.f32 %v8182, %v8458
      %v8585 = vadd.f32 %v8183, %v8461
      %v8586 = vadd.f32 %v8184, %v8466
      %v8587 = vadd.f32 %v8185, %v8469
      %v8588 = vadd.f32 %v8186, %v8474
      %v8589 = vadd.f32 %v8187, %v8477
      %v8590 = vadd.f32 %v8188, %v8482
      %v8591 = vadd.f32 %v8189, %v8485
      %v8592 = vadd.f32 %v8190, %v8490
      %v8593 = vadd.f32 %v8191, %v8493
      %v8594 = vadd.f32 %v8192, %v8498
      %v8595 = vadd.f32 %v8193, %v8501
      %v8596 = vadd.f32 %v8194, %v8506
      %v8597 = vadd.f32 %v8195, %v8509
      %v8598 = vadd.f32 %v8196, %v8514
      %v8599 = vadd.f32 %v8197, %v8517
      %v8600 = vadd.f32 %v8198, %v8522
      %v8601 = vadd.f32 %v8199, %v8525
      %v8602 = vadd.f32 %v8200, %v8530
      %v8603 = vadd.f32 %v8201, %v8533
      %v8604 = vadd.f32 %v8202, %v8538
      %v8605 = vadd.f32 %v8203, %v8541
      %v8606 = vadd.f32 %v8204, %v8546
      %v8607 = vadd.f32 %v8205, %v8549
      %v8608 = vadd.f32 %v8206, %v8554
      %v8609 = vadd.f32 %v8207, %v8557
      %v8610 = vadd.f32 %v8208, %v8562
      %v8611 = vadd.f32 %v8209, %v8565
      %v8612 = vadd.f32 %v8210, %v8570
      %v8613 = vadd.f32 %v8211, %v8573
      %v8614 = vadd.f32 %v8212, %v8578
      %v8615 = vadd.f32 %v8213, %v8581
      %s8616 = scalar_lea.vmem %s5, 3328
      %v8617 = vld [vmem:[%s8616] sm:$0xff]
      %v8618 = vld [vmem:[%s8616 + $0x8] sm:$0xff]
      %v8619 = vld [vmem:[%s8616 + $0x10] sm:$0xff]
      %v8620 = vld [vmem:[%s8616 + $0x18] sm:$0xff]
      %v8621 = vld [vmem:[%s8616 + $0x20] sm:$0xff]
      %v8622 = vld [vmem:[%s8616 + $0x28] sm:$0xff]
      %v8623 = vld [vmem:[%s8616 + $0x30] sm:$0xff]
      %v8624 = vld [vmem:[%s8616 + $0x38] sm:$0xff]
      %v8625 = vld [vmem:[%s8616 + $0x40] sm:$0xff]
      %v8626 = vld [vmem:[%s8616 + $0x48] sm:$0xff]
      %v8627 = vld [vmem:[%s8616 + $0x50] sm:$0xff]
      %v8628 = vld [vmem:[%s8616 + $0x58] sm:$0xff]
      %v8629 = vld [vmem:[%s8616 + $0x60] sm:$0xff]
      %v8630 = vld [vmem:[%s8616 + $0x68] sm:$0xff]
      %v8631 = vld [vmem:[%s8616 + $0x70] sm:$0xff]
      %v8632 = vld [vmem:[%s8616 + $0x78] sm:$0xff]
      %v8633 = vld [vmem:[%s8616 + $0x80] sm:$0xff]
      %v8634 = vld [vmem:[%s8616 + $0x88] sm:$0xff]
      %v8635 = vld [vmem:[%s8616 + $0x90] sm:$0xff]
      %v8636 = vld [vmem:[%s8616 + $0x98] sm:$0xff]
      %v8637 = vld [vmem:[%s8616 + $0xa0] sm:$0xff]
      %v8638 = vld [vmem:[%s8616 + $0xa8] sm:$0xff]
      %v8639 = vld [vmem:[%s8616 + $0xb0] sm:$0xff]
      %v8640 = vld [vmem:[%s8616 + $0xb8] sm:$0xff]
      %v8641 = vld [vmem:[%s8616 + $0xc0] sm:$0xff]
      %v8642 = vld [vmem:[%s8616 + $0xc8] sm:$0xff]
      %v8643 = vld [vmem:[%s8616 + $0xd0] sm:$0xff]
      %v8644 = vld [vmem:[%s8616 + $0xd8] sm:$0xff]
      %v8645 = vld [vmem:[%s8616 + $0xe0] sm:$0xff]
      %v8646 = vld [vmem:[%s8616 + $0xe8] sm:$0xff]
      %v8647 = vld [vmem:[%s8616 + $0xf0] sm:$0xff]
      %v8648 = vld [vmem:[%s8616 + $0xf8] sm:$0xff]
      %v8681 = vunpack.c.l.b16 %v8617
      %v8682 = vunpack.c.h.b16 %v8617
      %v8683 = vunpack.c.l.b16 %v8618
      %v8684 = vunpack.c.h.b16 %v8618
      %v8685 = vunpack.c.l.b16 %v8619
      %v8686 = vunpack.c.h.b16 %v8619
      %v8687 = vunpack.c.l.b16 %v8620
      %v8688 = vunpack.c.h.b16 %v8620
      %v8689 = vunpack.c.l.b16 %v8621
      %v8690 = vunpack.c.h.b16 %v8621
      %v8691 = vunpack.c.l.b16 %v8622
      %v8692 = vunpack.c.h.b16 %v8622
      %v8693 = vunpack.c.l.b16 %v8623
      %v8694 = vunpack.c.h.b16 %v8623
      %v8695 = vunpack.c.l.b16 %v8624
      %v8696 = vunpack.c.h.b16 %v8624
      %v8697 = vunpack.c.l.b16 %v8625
      %v8698 = vunpack.c.h.b16 %v8625
      %v8699 = vunpack.c.l.b16 %v8626
      %v8700 = vunpack.c.h.b16 %v8626
      %v8701 = vunpack.c.l.b16 %v8627
      %v8702 = vunpack.c.h.b16 %v8627
      %v8703 = vunpack.c.l.b16 %v8628
      %v8704 = vunpack.c.h.b16 %v8628
      %v8705 = vunpack.c.l.b16 %v8629
      %v8706 = vunpack.c.h.b16 %v8629
      %v8707 = vunpack.c.l.b16 %v8630
      %v8708 = vunpack.c.h.b16 %v8630
      %v8709 = vunpack.c.l.b16 %v8631
      %v8710 = vunpack.c.h.b16 %v8631
      %v8711 = vunpack.c.l.b16 %v8632
      %v8712 = vunpack.c.h.b16 %v8632
      %v8713 = vunpack.c.l.b16 %v8633
      %v8714 = vunpack.c.h.b16 %v8633
      %v8715 = vunpack.c.l.b16 %v8634
      %v8716 = vunpack.c.h.b16 %v8634
      %v8717 = vunpack.c.l.b16 %v8635
      %v8718 = vunpack.c.h.b16 %v8635
      %v8719 = vunpack.c.l.b16 %v8636
      %v8720 = vunpack.c.h.b16 %v8636
      %v8721 = vunpack.c.l.b16 %v8637
      %v8722 = vunpack.c.h.b16 %v8637
      %v8723 = vunpack.c.l.b16 %v8638
      %v8724 = vunpack.c.h.b16 %v8638
      %v8725 = vunpack.c.l.b16 %v8639
      %v8726 = vunpack.c.h.b16 %v8639
      %v8727 = vunpack.c.l.b16 %v8640
      %v8728 = vunpack.c.h.b16 %v8640
      %v8729 = vunpack.c.l.b16 %v8641
      %v8730 = vunpack.c.h.b16 %v8641
      %v8731 = vunpack.c.l.b16 %v8642
      %v8732 = vunpack.c.h.b16 %v8642
      %v8733 = vunpack.c.l.b16 %v8643
      %v8734 = vunpack.c.h.b16 %v8643
      %v8735 = vunpack.c.l.b16 %v8644
      %v8736 = vunpack.c.h.b16 %v8644
      %v8737 = vunpack.c.l.b16 %v8645
      %v8738 = vunpack.c.h.b16 %v8645
      %v8739 = vunpack.c.l.b16 %v8646
      %v8740 = vunpack.c.h.b16 %v8646
      %v8741 = vunpack.c.l.b16 %v8647
      %v8742 = vunpack.c.h.b16 %v8647
      %v8743 = vunpack.c.l.b16 %v8648
      %v8744 = vunpack.c.h.b16 %v8648
      %v8745 = vpack.c.b16 %v8683, %v8681
      %v8746 = vpack.c.b16 %v8684, %v8682
      %v8747 = vpack.c.b16 %v8687, %v8685
      %v8748 = vpack.c.b16 %v8688, %v8686
      %v8749 = vpack.c.b16 %v8691, %v8689
      %v8750 = vpack.c.b16 %v8692, %v8690
      %v8751 = vpack.c.b16 %v8695, %v8693
      %v8752 = vpack.c.b16 %v8696, %v8694
      %v8753 = vpack.c.b16 %v8699, %v8697
      %v8754 = vpack.c.b16 %v8700, %v8698
      %v8755 = vpack.c.b16 %v8703, %v8701
      %v8756 = vpack.c.b16 %v8704, %v8702
      %v8757 = vpack.c.b16 %v8707, %v8705
      %v8758 = vpack.c.b16 %v8708, %v8706
      %v8759 = vpack.c.b16 %v8711, %v8709
      %v8760 = vpack.c.b16 %v8712, %v8710
      %v8761 = vpack.c.b16 %v8715, %v8713
      %v8762 = vpack.c.b16 %v8716, %v8714
      %v8763 = vpack.c.b16 %v8719, %v8717
      %v8764 = vpack.c.b16 %v8720, %v8718
      %v8765 = vpack.c.b16 %v8723, %v8721
      %v8766 = vpack.c.b16 %v8724, %v8722
      %v8767 = vpack.c.b16 %v8727, %v8725
      %v8768 = vpack.c.b16 %v8728, %v8726
      %v8769 = vpack.c.b16 %v8731, %v8729
      %v8770 = vpack.c.b16 %v8732, %v8730
      %v8771 = vpack.c.b16 %v8735, %v8733
      %v8772 = vpack.c.b16 %v8736, %v8734
      %v8773 = vpack.c.b16 %v8739, %v8737
      %v8774 = vpack.c.b16 %v8740, %v8738
      %v8775 = vpack.c.b16 %v8743, %v8741
      %v8776 = vpack.c.b16 %v8744, %v8742
      %8825 = vrot.lane.b32.xlu0 %v8247, 96
      %v8826 = vpop.permute.xlu0 %8825
      %8827 = vrot.lane.b32.xlu0 %v8248, 96
      %v8828 = vpop.permute.xlu0 %8827
      %8829 = vrot.lane.b32.xlu0 %v8249, 96
      %v8830 = vpop.permute.xlu0 %8829
      %8831 = vrot.lane.b32.xlu0 %v8250, 96
      %v8832 = vpop.permute.xlu0 %8831
      %8833 = vrot.lane.b32.xlu0 %v8251, 96
      %v8834 = vpop.permute.xlu0 %8833
      %8835 = vrot.lane.b32.xlu0 %v8252, 96
      %v8836 = vpop.permute.xlu0 %8835
      %8837 = vrot.lane.b32.xlu0 %v8253, 96
      %v8838 = vpop.permute.xlu0 %8837
      %8839 = vrot.lane.b32.xlu0 %v8254, 96
      %v8840 = vpop.permute.xlu0 %8839
      %8841 = vrot.lane.b32.xlu0 %v8255, 96
      %v8842 = vpop.permute.xlu0 %8841
      %8843 = vrot.lane.b32.xlu0 %v8256, 96
      %v8844 = vpop.permute.xlu0 %8843
      %8845 = vrot.lane.b32.xlu0 %v8257, 96
      %v8846 = vpop.permute.xlu0 %8845
      %8847 = vrot.lane.b32.xlu0 %v8258, 96
      %v8848 = vpop.permute.xlu0 %8847
      %8849 = vrot.lane.b32.xlu0 %v8259, 96
      %v8850 = vpop.permute.xlu0 %8849
      %8851 = vrot.lane.b32.xlu0 %v8260, 96
      %v8852 = vpop.permute.xlu0 %8851
      %8853 = vrot.lane.b32.xlu0 %v8261, 96
      %v8854 = vpop.permute.xlu0 %8853
      %8855 = vrot.lane.b32.xlu0 %v8262, 96
      %v8856 = vpop.permute.xlu0 %8855
      %8873 = vmatprep.subr.bf16.mxu0 0
      %8874 = vmatpush1.bf16.msra.mxu0 %v8826
      %8875 = vmatprep.subr.bf16.mxu0 0
      %8876 = vmatpush1.bf16.msra.mxu0 %v8828
      %8877 = vmatprep.subr.bf16.mxu0 0
      %8878 = vmatpush1.bf16.msra.mxu0 %v8830
      %8879 = vmatprep.subr.bf16.mxu0 0
      %8880 = vmatpush1.bf16.msra.mxu0 %v8832
      %8881 = vmatprep.subr.bf16.mxu0 0
      %8882 = vmatpush1.bf16.msra.mxu0 %v8834
      %8883 = vmatprep.subr.bf16.mxu0 0
      %8884 = vmatpush1.bf16.msra.mxu0 %v8836
      %8885 = vmatprep.subr.bf16.mxu0 0
      %8886 = vmatpush1.bf16.msra.mxu0 %v8838
      %8887 = vmatprep.subr.bf16.mxu0 0
      %8888 = vmatpush1.bf16.msra.mxu0 %v8840
      %8889 = vmatprep.subr.bf16.mxu0 0
      %8890 = vmatpush1.bf16.msra.mxu0 %v8842
      %8891 = vmatprep.subr.bf16.mxu0 0
      %8892 = vmatpush1.bf16.msra.mxu0 %v8844
      %8893 = vmatprep.subr.bf16.mxu0 0
      %8894 = vmatpush1.bf16.msra.mxu0 %v8846
      %8895 = vmatprep.subr.bf16.mxu0 0
      %8896 = vmatpush1.bf16.msra.mxu0 %v8848
      %8897 = vmatprep.subr.bf16.mxu0 0
      %8898 = vmatpush1.bf16.msra.mxu0 %v8850
      %8899 = vmatprep.subr.bf16.mxu0 0
      %8900 = vmatpush1.bf16.msra.mxu0 %v8852
      %8901 = vmatprep.subr.bf16.mxu0 0
      %8902 = vmatpush1.bf16.msra.mxu0 %v8854
      %8903 = vmatprep.subr.bf16.mxu0 0
      %8904 = vmatpush1.bf16.msra.mxu0 %v8856
      %8905 = vmatprep.mubr.bf16.mxu0 %v8746
      %8906 = vmatmul.mubr.bf16.gmra.mrb[0].mxu0 %v8745
      %v8907 = vpop.f32.mrb[0].mxu0
      %v8908 = vadd.f32 0.0, %v8907
      %v8909 = vpop.f32.mrb[0].mxu0
      %v8910 = vpop.f32.mrb[0].mxu0
      %v8911 = vadd.f32 0.0, %v8910
      %v8912 = vpop.f32.mrb[0].mxu0
      %8913 = vmatprep.mubr.bf16.mxu0 %v8748
      %8914 = vmatmul.mubr.bf16.gmra.mrb[0].mxu0 %v8747
      %v8915 = vpop.f32.mrb[0].mxu0
      %v8916 = vadd.f32 0.0, %v8915
      %v8917 = vpop.f32.mrb[0].mxu0
      %v8918 = vpop.f32.mrb[0].mxu0
      %v8919 = vadd.f32 0.0, %v8918
      %v8920 = vpop.f32.mrb[0].mxu0
      %8921 = vmatprep.mubr.bf16.mxu0 %v8750
      %8922 = vmatmul.mubr.bf16.gmra.mrb[0].mxu0 %v8749
      %v8923 = vpop.f32.mrb[0].mxu0
      %v8924 = vadd.f32 0.0, %v8923
      %v8925 = vpop.f32.mrb[0].mxu0
      %v8926 = vpop.f32.mrb[0].mxu0
      %v8927 = vadd.f32 0.0, %v8926
      %v8928 = vpop.f32.mrb[0].mxu0
      %8929 = vmatprep.mubr.bf16.mxu0 %v8752
      %8930 = vmatmul.mubr.bf16.gmra.mrb[0].mxu0 %v8751
      %v8931 = vpop.f32.mrb[0].mxu0
      %v8932 = vadd.f32 0.0, %v8931
      %v8933 = vpop.f32.mrb[0].mxu0
      %v8934 = vpop.f32.mrb[0].mxu0
      %v8935 = vadd.f32 0.0, %v8934
      %v8936 = vpop.f32.mrb[0].mxu0
      %8937 = vmatprep.mubr.bf16.mxu0 %v8754
      %8938 = vmatmul.mubr.bf16.gmra.mrb[0].mxu0 %v8753
      %v8939 = vpop.f32.mrb[0].mxu0
      %v8940 = vadd.f32 0.0, %v8939
      %v8941 = vpop.f32.mrb[0].mxu0
      %v8942 = vpop.f32.mrb[0].mxu0
      %v8943 = vadd.f32 0.0, %v8942
      %v8944 = vpop.f32.mrb[0].mxu0
      %8945 = vmatprep.mubr.bf16.mxu0 %v8756
      %8946 = vmatmul.mubr.bf16.gmra.mrb[0].mxu0 %v8755
      %v8947 = vpop.f32.mrb[0].mxu0
      %v8948 = vadd.f32 0.0, %v8947
      %v8949 = vpop.f32.mrb[0].mxu0
      %v8950 = vpop.f32.mrb[0].mxu0
      %v8951 = vadd.f32 0.0, %v8950
      %v8952 = vpop.f32.mrb[0].mxu0
      %8953 = vmatprep.mubr.bf16.mxu0 %v8758
      %8954 = vmatmul.mubr.bf16.gmra.mrb[0].mxu0 %v8757
      %v8955 = vpop.f32.mrb[0].mxu0
      %v8956 = vadd.f32 0.0, %v8955
      %v8957 = vpop.f32.mrb[0].mxu0
      %v8958 = vpop.f32.mrb[0].mxu0
      %v8959 = vadd.f32 0.0, %v8958
      %v8960 = vpop.f32.mrb[0].mxu0
      %8961 = vmatprep.mubr.bf16.mxu0 %v8760
      %8962 = vmatmul.mubr.bf16.gmra.mrb[0].mxu0 %v8759
      %v8963 = vpop.f32.mrb[0].mxu0
      %v8964 = vadd.f32 0.0, %v8963
      %v8965 = vpop.f32.mrb[0].mxu0
      %v8966 = vpop.f32.mrb[0].mxu0
      %v8967 = vadd.f32 0.0, %v8966
      %v8968 = vpop.f32.mrb[0].mxu0
      %8969 = vmatprep.mubr.bf16.mxu0 %v8762
      %8970 = vmatmul.mubr.bf16.gmra.mrb[0].mxu0 %v8761
      %v8971 = vpop.f32.mrb[0].mxu0
      %v8972 = vadd.f32 0.0, %v8971
      %v8973 = vpop.f32.mrb[0].mxu0
      %v8974 = vpop.f32.mrb[0].mxu0
      %v8975 = vadd.f32 0.0, %v8974
      %v8976 = vpop.f32.mrb[0].mxu0
      %8977 = vmatprep.mubr.bf16.mxu0 %v8764
      %8978 = vmatmul.mubr.bf16.gmra.mrb[0].mxu0 %v8763
      %v8979 = vpop.f32.mrb[0].mxu0
      %v8980 = vadd.f32 0.0, %v8979
      %v8981 = vpop.f32.mrb[0].mxu0
      %v8982 = vpop.f32.mrb[0].mxu0
      %v8983 = vadd.f32 0.0, %v8982
      %v8984 = vpop.f32.mrb[0].mxu0
      %8985 = vmatprep.mubr.bf16.mxu0 %v8766
      %8986 = vmatmul.mubr.bf16.gmra.mrb[0].mxu0 %v8765
      %v8987 = vpop.f32.mrb[0].mxu0
      %v8988 = vadd.f32 0.0, %v8987
      %v8989 = vpop.f32.mrb[0].mxu0
      %v8990 = vpop.f32.mrb[0].mxu0
      %v8991 = vadd.f32 0.0, %v8990
      %v8992 = vpop.f32.mrb[0].mxu0
      %8993 = vmatprep.mubr.bf16.mxu0 %v8768
      %8994 = vmatmul.mubr.bf16.gmra.mrb[0].mxu0 %v8767
      %v8995 = vpop.f32.mrb[0].mxu0
      %v8996 = vadd.f32 0.0, %v8995
      %v8997 = vpop.f32.mrb[0].mxu0
      %v8998 = vpop.f32.mrb[0].mxu0
      %v8999 = vadd.f32 0.0, %v8998
      %v9000 = vpop.f32.mrb[0].mxu0
      %9001 = vmatprep.mubr.bf16.mxu0 %v8770
      %9002 = vmatmul.mubr.bf16.gmra.mrb[0].mxu0 %v8769
      %v9003 = vpop.f32.mrb[0].mxu0
      %v9004 = vadd.f32 0.0, %v9003
      %v9005 = vpop.f32.mrb[0].mxu0
      %v9006 = vpop.f32.mrb[0].mxu0
      %v9007 = vadd.f32 0.0, %v9006
      %v9008 = vpop.f32.mrb[0].mxu0
      %9009 = vmatprep.mubr.bf16.mxu0 %v8772
      %9010 = vmatmul.mubr.bf16.gmra.mrb[0].mxu0 %v8771
      %v9011 = vpop.f32.mrb[0].mxu0
      %v9012 = vadd.f32 0.0, %v9011
      %v9013 = vpop.f32.mrb[0].mxu0
      %v9014 = vpop.f32.mrb[0].mxu0
      %v9015 = vadd.f32 0.0, %v9014
      %v9016 = vpop.f32.mrb[0].mxu0
      %9017 = vmatprep.mubr.bf16.mxu0 %v8774
      %9018 = vmatmul.mubr.bf16.gmra.mrb[0].mxu0 %v8773
      %v9019 = vpop.f32.mrb[0].mxu0
      %v9020 = vadd.f32 0.0, %v9019
      %v9021 = vpop.f32.mrb[0].mxu0
      %v9022 = vpop.f32.mrb[0].mxu0
      %v9023 = vadd.f32 0.0, %v9022
      %v9024 = vpop.f32.mrb[0].mxu0
      %9025 = vmatprep.mubr.bf16.mxu0 %v8776
      %9026 = vmatmul.mubr.bf16.gmra.mrb[0].mxu0 %v8775
      %v9027 = vpop.f32.mrb[0].mxu0
      %v9028 = vadd.f32 0.0, %v9027
      %v9029 = vpop.f32.mrb[0].mxu0
      %v9030 = vpop.f32.mrb[0].mxu0
      %v9031 = vadd.f32 0.0, %v9030
      %v9032 = vpop.f32.mrb[0].mxu0
      %9033 = vdwg.mxu0
      %v9034 = vadd.f32 %v8584, %v8908
      %v9035 = vadd.f32 %v8585, %v8911
      %v9036 = vadd.f32 %v8586, %v8916
      %v9037 = vadd.f32 %v8587, %v8919
      %v9038 = vadd.f32 %v8588, %v8924
      %v9039 = vadd.f32 %v8589, %v8927
      %v9040 = vadd.f32 %v8590, %v8932
      %v9041 = vadd.f32 %v8591, %v8935
      %v9042 = vadd.f32 %v8592, %v8940
      %v9043 = vadd.f32 %v8593, %v8943
      %v9044 = vadd.f32 %v8594, %v8948
      %v9045 = vadd.f32 %v8595, %v8951
      %v9046 = vadd.f32 %v8596, %v8956
      %v9047 = vadd.f32 %v8597, %v8959
      %v9048 = vadd.f32 %v8598, %v8964
      %v9049 = vadd.f32 %v8599, %v8967
      %v9050 = vadd.f32 %v8600, %v8972
      %v9051 = vadd.f32 %v8601, %v8975
      %v9052 = vadd.f32 %v8602, %v8980
      %v9053 = vadd.f32 %v8603, %v8983
      %v9054 = vadd.f32 %v8604, %v8988
      %v9055 = vadd.f32 %v8605, %v8991
      %v9056 = vadd.f32 %v8606, %v8996
      %v9057 = vadd.f32 %v8607, %v8999
      %v9058 = vadd.f32 %v8608, %v9004
      %v9059 = vadd.f32 %v8609, %v9007
      %v9060 = vadd.f32 %v8610, %v9012
      %v9061 = vadd.f32 %v8611, %v9015
      %v9062 = vadd.f32 %v8612, %v9020
      %v9063 = vadd.f32 %v8613, %v9023
      %v9064 = vadd.f32 %v8614, %v9028
      %v9065 = vadd.f32 %v8615, %v9031
      %s9066 = scalar_lea.vmem %s5, 3584
      %v9067 = vld [vmem:[%s9066] sm:$0xff]
      %v9068 = vld [vmem:[%s9066 + $0x8] sm:$0xff]
      %v9069 = vld [vmem:[%s9066 + $0x10] sm:$0xff]
      %v9070 = vld [vmem:[%s9066 + $0x18] sm:$0xff]
      %v9071 = vld [vmem:[%s9066 + $0x20] sm:$0xff]
      %v9072 = vld [vmem:[%s9066 + $0x28] sm:$0xff]
      %v9073 = vld [vmem:[%s9066 + $0x30] sm:$0xff]
      %v9074 = vld [vmem:[%s9066 + $0x38] sm:$0xff]
      %v9075 = vld [vmem:[%s9066 + $0x40] sm:$0xff]
      %v9076 = vld [vmem:[%s9066 + $0x48] sm:$0xff]
      %v9077 = vld [vmem:[%s9066 + $0x50] sm:$0xff]
      %v9078 = vld [vmem:[%s9066 + $0x58] sm:$0xff]
      %v9079 = vld [vmem:[%s9066 + $0x60] sm:$0xff]
      %v9080 = vld [vmem:[%s9066 + $0x68] sm:$0xff]
      %v9081 = vld [vmem:[%s9066 + $0x70] sm:$0xff]
      %v9082 = vld [vmem:[%s9066 + $0x78] sm:$0xff]
      %v9083 = vld [vmem:[%s9066 + $0x80] sm:$0xff]
      %v9084 = vld [vmem:[%s9066 + $0x88] sm:$0xff]
      %v9085 = vld [vmem:[%s9066 + $0x90] sm:$0xff]
      %v9086 = vld [vmem:[%s9066 + $0x98] sm:$0xff]
      %v9087 = vld [vmem:[%s9066 + $0xa0] sm:$0xff]
      %v9088 = vld [vmem:[%s9066 + $0xa8] sm:$0xff]
      %v9089 = vld [vmem:[%s9066 + $0xb0] sm:$0xff]
      %v9090 = vld [vmem:[%s9066 + $0xb8] sm:$0xff]
      %v9091 = vld [vmem:[%s9066 + $0xc0] sm:$0xff]
      %v9092 = vld [vmem:[%s9066 + $0xc8] sm:$0xff]
      %v9093 = vld [vmem:[%s9066 + $0xd0] sm:$0xff]
      %v9094 = vld [vmem:[%s9066 + $0xd8] sm:$0xff]
      %v9095 = vld [vmem:[%s9066 + $0xe0] sm:$0xff]
      %v9096 = vld [vmem:[%s9066 + $0xe8] sm:$0xff]
      %v9097 = vld [vmem:[%s9066 + $0xf0] sm:$0xff]
      %v9098 = vld [vmem:[%s9066 + $0xf8] sm:$0xff]
      %v9131 = vunpack.c.l.b16 %v9067
      %v9132 = vunpack.c.h.b16 %v9067
      %v9133 = vunpack.c.l.b16 %v9068
      %v9134 = vunpack.c.h.b16 %v9068
      %v9135 = vunpack.c.l.b16 %v9069
      %v9136 = vunpack.c.h.b16 %v9069
      %v9137 = vunpack.c.l.b16 %v9070
      %v9138 = vunpack.c.h.b16 %v9070
      %v9139 = vunpack.c.l.b16 %v9071
      %v9140 = vunpack.c.h.b16 %v9071
      %v9141 = vunpack.c.l.b16 %v9072
      %v9142 = vunpack.c.h.b16 %v9072
      %v9143 = vunpack.c.l.b16 %v9073
      %v9144 = vunpack.c.h.b16 %v9073
      %v9145 = vunpack.c.l.b16 %v9074
      %v9146 = vunpack.c.h.b16 %v9074
      %v9147 = vunpack.c.l.b16 %v9075
      %v9148 = vunpack.c.h.b16 %v9075
      %v9149 = vunpack.c.l.b16 %v9076
      %v9150 = vunpack.c.h.b16 %v9076
      %v9151 = vunpack.c.l.b16 %v9077
      %v9152 = vunpack.c.h.b16 %v9077
      %v9153 = vunpack.c.l.b16 %v9078
      %v9154 = vunpack.c.h.b16 %v9078
      %v9155 = vunpack.c.l.b16 %v9079
      %v9156 = vunpack.c.h.b16 %v9079
      %v9157 = vunpack.c.l.b16 %v9080
      %v9158 = vunpack.c.h.b16 %v9080
      %v9159 = vunpack.c.l.b16 %v9081
      %v9160 = vunpack.c.h.b16 %v9081
      %v9161 = vunpack.c.l.b16 %v9082
      %v9162 = vunpack.c.h.b16 %v9082
      %v9163 = vunpack.c.l.b16 %v9083
      %v9164 = vunpack.c.h.b16 %v9083
      %v9165 = vunpack.c.l.b16 %v9084
      %v9166 = vunpack.c.h.b16 %v9084
      %v9167 = vunpack.c.l.b16 %v9085
      %v9168 = vunpack.c.h.b16 %v9085
      %v9169 = vunpack.c.l.b16 %v9086
      %v9170 = vunpack.c.h.b16 %v9086
      %v9171 = vunpack.c.l.b16 %v9087
      %v9172 = vunpack.c.h.b16 %v9087
      %v9173 = vunpack.c.l.b16 %v9088
      %v9174 = vunpack.c.h.b16 %v9088
      %v9175 = vunpack.c.l.b16 %v9089
      %v9176 = vunpack.c.h.b16 %v9089
      %v9177 = vunpack.c.l.b16 %v9090
      %v9178 = vunpack.c.h.b16 %v9090
      %v9179 = vunpack.c.l.b16 %v9091
      %v9180 = vunpack.c.h.b16 %v9091
      %v9181 = vunpack.c.l.b16 %v9092
      %v9182 = vunpack.c.h.b16 %v9092
      %v9183 = vunpack.c.l.b16 %v9093
      %v9184 = vunpack.c.h.b16 %v9093
      %v9185 = vunpack.c.l.b16 %v9094
      %v9186 = vunpack.c.h.b16 %v9094
      %v9187 = vunpack.c.l.b16 %v9095
      %v9188 = vunpack.c.h.b16 %v9095
      %v9189 = vunpack.c.l.b16 %v9096
      %v9190 = vunpack.c.h.b16 %v9096
      %v9191 = vunpack.c.l.b16 %v9097
      %v9192 = vunpack.c.h.b16 %v9097
      %v9193 = vunpack.c.l.b16 %v9098
      %v9194 = vunpack.c.h.b16 %v9098
      %v9195 = vpack.c.b16 %v9133, %v9131
      %v9196 = vpack.c.b16 %v9134, %v9132
      %v9197 = vpack.c.b16 %v9137, %v9135
      %v9198 = vpack.c.b16 %v9138, %v9136
      %v9199 = vpack.c.b16 %v9141, %v9139
      %v9200 = vpack.c.b16 %v9142, %v9140
      %v9201 = vpack.c.b16 %v9145, %v9143
      %v9202 = vpack.c.b16 %v9146, %v9144
      %v9203 = vpack.c.b16 %v9149, %v9147
      %v9204 = vpack.c.b16 %v9150, %v9148
      %v9205 = vpack.c.b16 %v9153, %v9151
      %v9206 = vpack.c.b16 %v9154, %v9152
      %v9207 = vpack.c.b16 %v9157, %v9155
      %v9208 = vpack.c.b16 %v9158, %v9156
      %v9209 = vpack.c.b16 %v9161, %v9159
      %v9210 = vpack.c.b16 %v9162, %v9160
      %v9211 = vpack.c.b16 %v9165, %v9163
      %v9212 = vpack.c.b16 %v9166, %v9164
      %v9213 = vpack.c.b16 %v9169, %v9167
      %v9214 = vpack.c.b16 %v9170, %v9168
      %v9215 = vpack.c.b16 %v9173, %v9171
      %v9216 = vpack.c.b16 %v9174, %v9172
      %v9217 = vpack.c.b16 %v9177, %v9175
      %v9218 = vpack.c.b16 %v9178, %v9176
      %v9219 = vpack.c.b16 %v9181, %v9179
      %v9220 = vpack.c.b16 %v9182, %v9180
      %v9221 = vpack.c.b16 %v9185, %v9183
      %v9222 = vpack.c.b16 %v9186, %v9184
      %v9223 = vpack.c.b16 %v9189, %v9187
      %v9224 = vpack.c.b16 %v9190, %v9188
      %v9225 = vpack.c.b16 %v9193, %v9191
      %v9226 = vpack.c.b16 %v9194, %v9192
      %9259 = vrot.lane.b32.xlu0 %v8247, 64
      %v9260 = vpop.permute.xlu0 %9259
      %9261 = vrot.lane.b32.xlu0 %v8248, 64
      %v9262 = vpop.permute.xlu0 %9261
      %9263 = vrot.lane.b32.xlu0 %v8249, 64
      %v9264 = vpop.permute.xlu0 %9263
      %9265 = vrot.lane.b32.xlu0 %v8250, 64
      %v9266 = vpop.permute.xlu0 %9265
      %9267 = vrot.lane.b32.xlu0 %v8251, 64
      %v9268 = vpop.permute.xlu0 %9267
      %9269 = vrot.lane.b32.xlu0 %v8252, 64
      %v9270 = vpop.permute.xlu0 %9269
      %9271 = vrot.lane.b32.xlu0 %v8253, 64
      %v9272 = vpop.permute.xlu0 %9271
      %9273 = vrot.lane.b32.xlu0 %v8254, 64
      %v9274 = vpop.permute.xlu0 %9273
      %9275 = vrot.lane.b32.xlu0 %v8255, 64
      %v9276 = vpop.permute.xlu0 %9275
      %9277 = vrot.lane.b32.xlu0 %v8256, 64
      %v9278 = vpop.permute.xlu0 %9277
      %9279 = vrot.lane.b32.xlu0 %v8257, 64
      %v9280 = vpop.permute.xlu0 %9279
      %9281 = vrot.lane.b32.xlu0 %v8258, 64
      %v9282 = vpop.permute.xlu0 %9281
      %9283 = vrot.lane.b32.xlu0 %v8259, 64
      %v9284 = vpop.permute.xlu0 %9283
      %9285 = vrot.lane.b32.xlu0 %v8260, 64
      %v9286 = vpop.permute.xlu0 %9285
      %9287 = vrot.lane.b32.xlu0 %v8261, 64
      %v9288 = vpop.permute.xlu0 %9287
      %9289 = vrot.lane.b32.xlu0 %v8262, 64
      %v9290 = vpop.permute.xlu0 %9289
      %9307 = vmatprep.subr.bf16.mxu0 0
      %9308 = vmatpush1.bf16.msra.mxu0 %v9260
      %9309 = vmatprep.subr.bf16.mxu0 0
      %9310 = vmatpush1.bf16.msra.mxu0 %v9262
      %9311 = vmatprep.subr.bf16.mxu0 0
      %9312 = vmatpush1.bf16.msra.mxu0 %v9264
      %9313 = vmatprep.subr.bf16.mxu0 0
      %9314 = vmatpush1.bf16.msra.mxu0 %v9266
      %9315 = vmatprep.subr.bf16.mxu0 0
      %9316 = vmatpush1.bf16.msra.mxu0 %v9268
      %9317 = vmatprep.subr.bf16.mxu0 0
      %9318 = vmatpush1.bf16.msra.mxu0 %v9270
      %9319 = vmatprep.subr.bf16.mxu0 0
      %9320 = vmatpush1.bf16.msra.mxu0 %v9272
      %9321 = vmatprep.subr.bf16.mxu0 0
      %9322 = vmatpush1.bf16.msra.mxu0 %v9274
      %9323 = vmatprep.subr.bf16.mxu0 0
      %9324 = vmatpush1.bf16.msra.mxu0 %v9276
      %9325 = vmatprep.subr.bf16.mxu0 0
      %9326 = vmatpush1.bf16.msra.mxu0 %v9278
      %9327 = vmatprep.subr.bf16.mxu0 0
      %9328 = vmatpush1.bf16.msra.mxu0 %v9280
      %9329 = vmatprep.subr.bf16.mxu0 0
      %9330 = vmatpush1.bf16.msra.mxu0 %v9282
      %9331 = vmatprep.subr.bf16.mxu0 0
      %9332 = vmatpush1.bf16.msra.mxu0 %v9284
      %9333 = vmatprep.subr.bf16.mxu0 0
      %9334 = vmatpush1.bf16.msra.mxu0 %v9286
      %9335 = vmatprep.subr.bf16.mxu0 0
      %9336 = vmatpush1.bf16.msra.mxu0 %v9288
      %9337 = vmatprep.subr.bf16.mxu0 0
      %9338 = vmatpush1.bf16.msra.mxu0 %v9290
      %9339 = vmatprep.mubr.bf16.mxu0 %v9196
      %9340 = vmatmul.mubr.bf16.gmra.mrb[0].mxu0 %v9195
      %v9341 = vpop.f32.mrb[0].mxu0
      %v9342 = vadd.f32 0.0, %v9341
      %v9343 = vpop.f32.mrb[0].mxu0
      %v9344 = vpop.f32.mrb[0].mxu0
      %v9345 = vadd.f32 0.0, %v9344
      %v9346 = vpop.f32.mrb[0].mxu0
      %9347 = vmatprep.mubr.bf16.mxu0 %v9198
      %9348 = vmatmul.mubr.bf16.gmra.mrb[0].mxu0 %v9197
      %v9349 = vpop.f32.mrb[0].mxu0
      %v9350 = vadd.f32 0.0, %v9349
      %v9351 = vpop.f32.mrb[0].mxu0
      %v9352 = vpop.f32.mrb[0].mxu0
      %v9353 = vadd.f32 0.0, %v9352
      %v9354 = vpop.f32.mrb[0].mxu0
      %9355 = vmatprep.mubr.bf16.mxu0 %v9200
      %9356 = vmatmul.mubr.bf16.gmra.mrb[0].mxu0 %v9199
      %v9357 = vpop.f32.mrb[0].mxu0
      %v9358 = vadd.f32 0.0, %v9357
      %v9359 = vpop.f32.mrb[0].mxu0
      %v9360 = vpop.f32.mrb[0].mxu0
      %v9361 = vadd.f32 0.0, %v9360
      %v9362 = vpop.f32.mrb[0].mxu0
      %9363 = vmatprep.mubr.bf16.mxu0 %v9202
      %9364 = vmatmul.mubr.bf16.gmra.mrb[0].mxu0 %v9201
      %v9365 = vpop.f32.mrb[0].mxu0
      %v9366 = vadd.f32 0.0, %v9365
      %v9367 = vpop.f32.mrb[0].mxu0
      %v9368 = vpop.f32.mrb[0].mxu0
      %v9369 = vadd.f32 0.0, %v9368
      %v9370 = vpop.f32.mrb[0].mxu0
      %9371 = vmatprep.mubr.bf16.mxu0 %v9204
      %9372 = vmatmul.mubr.bf16.gmra.mrb[0].mxu0 %v9203
      %v9373 = vpop.f32.mrb[0].mxu0
      %v9374 = vadd.f32 0.0, %v9373
      %v9375 = vpop.f32.mrb[0].mxu0
      %v9376 = vpop.f32.mrb[0].mxu0
      %v9377 = vadd.f32 0.0, %v9376
      %v9378 = vpop.f32.mrb[0].mxu0
      %9379 = vmatprep.mubr.bf16.mxu0 %v9206
      %9380 = vmatmul.mubr.bf16.gmra.mrb[0].mxu0 %v9205
      %v9381 = vpop.f32.mrb[0].mxu0
      %v9382 = vadd.f32 0.0, %v9381
      %v9383 = vpop.f32.mrb[0].mxu0
      %v9384 = vpop.f32.mrb[0].mxu0
      %v9385 = vadd.f32 0.0, %v9384
      %v9386 = vpop.f32.mrb[0].mxu0
      %9387 = vmatprep.mubr.bf16.mxu0 %v9208
      %9388 = vmatmul.mubr.bf16.gmra.mrb[0].mxu0 %v9207
      %v9389 = vpop.f32.mrb[0].mxu0
      %v9390 = vadd.f32 0.0, %v9389
      %v9391 = vpop.f32.mrb[0].mxu0
      %v9392 = vpop.f32.mrb[0].mxu0
      %v9393 = vadd.f32 0.0, %v9392
      %v9394 = vpop.f32.mrb[0].mxu0
      %9395 = vmatprep.mubr.bf16.mxu0 %v9210
      %9396 = vmatmul.mubr.bf16.gmra.mrb[0].mxu0 %v9209
      %v9397 = vpop.f32.mrb[0].mxu0
      %v9398 = vadd.f32 0.0, %v9397
      %v9399 = vpop.f32.mrb[0].mxu0
      %v9400 = vpop.f32.mrb[0].mxu0
      %v9401 = vadd.f32 0.0, %v9400
      %v9402 = vpop.f32.mrb[0].mxu0
      %9403 = vmatprep.mubr.bf16.mxu0 %v9212
      %9404 = vmatmul.mubr.bf16.gmra.mrb[0].mxu0 %v9211
      %v9405 = vpop.f32.mrb[0].mxu0
      %v9406 = vadd.f32 0.0, %v9405
      %v9407 = vpop.f32.mrb[0].mxu0
      %v9408 = vpop.f32.mrb[0].mxu0
      %v9409 = vadd.f32 0.0, %v9408
      %v9410 = vpop.f32.mrb[0].mxu0
      %9411 = vmatprep.mubr.bf16.mxu0 %v9214
      %9412 = vmatmul.mubr.bf16.gmra.mrb[0].mxu0 %v9213
      %v9413 = vpop.f32.mrb[0].mxu0
      %v9414 = vadd.f32 0.0, %v9413
      %v9415 = vpop.f32.mrb[0].mxu0
      %v9416 = vpop.f32.mrb[0].mxu0
      %v9417 = vadd.f32 0.0, %v9416
      %v9418 = vpop.f32.mrb[0].mxu0
      %9419 = vmatprep.mubr.bf16.mxu0 %v9216
      %9420 = vmatmul.mubr.bf16.gmra.mrb[0].mxu0 %v9215
      %v9421 = vpop.f32.mrb[0].mxu0
      %v9422 = vadd.f32 0.0, %v9421
      %v9423 = vpop.f32.mrb[0].mxu0
      %v9424 = vpop.f32.mrb[0].mxu0
      %v9425 = vadd.f32 0.0, %v9424
      %v9426 = vpop.f32.mrb[0].mxu0
      %9427 = vmatprep.mubr.bf16.mxu0 %v9218
      %9428 = vmatmul.mubr.bf16.gmra.mrb[0].mxu0 %v9217
      %v9429 = vpop.f32.mrb[0].mxu0
      %v9430 = vadd.f32 0.0, %v9429
      %v9431 = vpop.f32.mrb[0].mxu0
      %v9432 = vpop.f32.mrb[0].mxu0
      %v9433 = vadd.f32 0.0, %v9432
      %v9434 = vpop.f32.mrb[0].mxu0
      %9435 = vmatprep.mubr.bf16.mxu0 %v9220
      %9436 = vmatmul.mubr.bf16.gmra.mrb[0].mxu0 %v9219
      %v9437 = vpop.f32.mrb[0].mxu0
      %v9438 = vadd.f32 0.0, %v9437
      %v9439 = vpop.f32.mrb[0].mxu0
      %v9440 = vpop.f32.mrb[0].mxu0
      %v9441 = vadd.f32 0.0, %v9440
      %v9442 = vpop.f32.mrb[0].mxu0
      %9443 = vmatprep.mubr.bf16.mxu0 %v9222
      %9444 = vmatmul.mubr.bf16.gmra.mrb[0].mxu0 %v9221
      %v9445 = vpop.f32.mrb[0].mxu0
      %v9446 = vadd.f32 0.0, %v9445
      %v9447 = vpop.f32.mrb[0].mxu0
      %v9448 = vpop.f32.mrb[0].mxu0
      %v9449 = vadd.f32 0.0, %v9448
      %v9450 = vpop.f32.mrb[0].mxu0
      %9451 = vmatprep.mubr.bf16.mxu0 %v9224
      %9452 = vmatmul.mubr.bf16.gmra.mrb[0].mxu0 %v9223
      %v9453 = vpop.f32.mrb[0].mxu0
      %v9454 = vadd.f32 0.0, %v9453
      %v9455 = vpop.f32.mrb[0].mxu0
      %v9456 = vpop.f32.mrb[0].mxu0
      %v9457 = vadd.f32 0.0, %v9456
      %v9458 = vpop.f32.mrb[0].mxu0
      %9459 = vmatprep.mubr.bf16.mxu0 %v9226
      %9460 = vmatmul.mubr.bf16.gmra.mrb[0].mxu0 %v9225
      %v9461 = vpop.f32.mrb[0].mxu0
      %v9462 = vadd.f32 0.0, %v9461
      %v9463 = vpop.f32.mrb[0].mxu0
      %v9464 = vpop.f32.mrb[0].mxu0
      %v9465 = vadd.f32 0.0, %v9464
      %v9466 = vpop.f32.mrb[0].mxu0
      %9467 = vdwg.mxu0
      %v9468 = vadd.f32 %v9034, %v9342
      %v9469 = vadd.f32 %v9035, %v9345
      %v9470 = vadd.f32 %v9036, %v9350
      %v9471 = vadd.f32 %v9037, %v9353
      %v9472 = vadd.f32 %v9038, %v9358
      %v9473 = vadd.f32 %v9039, %v9361
      %v9474 = vadd.f32 %v9040, %v9366
      %v9475 = vadd.f32 %v9041, %v9369
      %v9476 = vadd.f32 %v9042, %v9374
      %v9477 = vadd.f32 %v9043, %v9377
      %v9478 = vadd.f32 %v9044, %v9382
      %v9479 = vadd.f32 %v9045, %v9385
      %v9480 = vadd.f32 %v9046, %v9390
      %v9481 = vadd.f32 %v9047, %v9393
      %v9482 = vadd.f32 %v9048, %v9398
      %v9483 = vadd.f32 %v9049, %v9401
      %v9484 = vadd.f32 %v9050, %v9406
      %v9485 = vadd.f32 %v9051, %v9409
      %v9486 = vadd.f32 %v9052, %v9414
      %v9487 = vadd.f32 %v9053, %v9417
      %v9488 = vadd.f32 %v9054, %v9422
      %v9489 = vadd.f32 %v9055, %v9425
      %v9490 = vadd.f32 %v9056, %v9430
      %v9491 = vadd.f32 %v9057, %v9433
      %v9492 = vadd.f32 %v9058, %v9438
      %v9493 = vadd.f32 %v9059, %v9441
      %v9494 = vadd.f32 %v9060, %v9446
      %v9495 = vadd.f32 %v9061, %v9449
      %v9496 = vadd.f32 %v9062, %v9454
      %v9497 = vadd.f32 %v9063, %v9457
      %v9498 = vadd.f32 %v9064, %v9462
      %v9499 = vadd.f32 %v9065, %v9465
      %s9500 = scalar_lea.vmem %s5, 3840
      %v9501 = vld [vmem:[%s9500] sm:$0xff]
      %v9502 = vld [vmem:[%s9500 + $0x8] sm:$0xff]
      %v9503 = vld [vmem:[%s9500 + $0x10] sm:$0xff]
      %v9504 = vld [vmem:[%s9500 + $0x18] sm:$0xff]
      %v9505 = vld [vmem:[%s9500 + $0x20] sm:$0xff]
      %v9506 = vld [vmem:[%s9500 + $0x28] sm:$0xff]
      %v9507 = vld [vmem:[%s9500 + $0x30] sm:$0xff]
      %v9508 = vld [vmem:[%s9500 + $0x38] sm:$0xff]
      %v9509 = vld [vmem:[%s9500 + $0x40] sm:$0xff]
      %v9510 = vld [vmem:[%s9500 + $0x48] sm:$0xff]
      %v9511 = vld [vmem:[%s9500 + $0x50] sm:$0xff]
      %v9512 = vld [vmem:[%s9500 + $0x58] sm:$0xff]
      %v9513 = vld [vmem:[%s9500 + $0x60] sm:$0xff]
      %v9514 = vld [vmem:[%s9500 + $0x68] sm:$0xff]
      %v9515 = vld [vmem:[%s9500 + $0x70] sm:$0xff]
      %v9516 = vld [vmem:[%s9500 + $0x78] sm:$0xff]
      %v9517 = vld [vmem:[%s9500 + $0x80] sm:$0xff]
      %v9518 = vld [vmem:[%s9500 + $0x88] sm:$0xff]
      %v9519 = vld [vmem:[%s9500 + $0x90] sm:$0xff]
      %v9520 = vld [vmem:[%s9500 + $0x98] sm:$0xff]
      %v9521 = vld [vmem:[%s9500 + $0xa0] sm:$0xff]
      %v9522 = vld [vmem:[%s9500 + $0xa8] sm:$0xff]
      %v9523 = vld [vmem:[%s9500 + $0xb0] sm:$0xff]
      %v9524 = vld [vmem:[%s9500 + $0xb8] sm:$0xff]
      %v9525 = vld [vmem:[%s9500 + $0xc0] sm:$0xff]
      %v9526 = vld [vmem:[%s9500 + $0xc8] sm:$0xff]
      %v9527 = vld [vmem:[%s9500 + $0xd0] sm:$0xff]
      %v9528 = vld [vmem:[%s9500 + $0xd8] sm:$0xff]
      %v9529 = vld [vmem:[%s9500 + $0xe0] sm:$0xff]
      %v9530 = vld [vmem:[%s9500 + $0xe8] sm:$0xff]
      %v9531 = vld [vmem:[%s9500 + $0xf0] sm:$0xff]
      %v9532 = vld [vmem:[%s9500 + $0xf8] sm:$0xff]
      %v9565 = vunpack.c.l.b16 %v9501
      %v9566 = vunpack.c.h.b16 %v9501
      %v9567 = vunpack.c.l.b16 %v9502
      %v9568 = vunpack.c.h.b16 %v9502
      %v9569 = vunpack.c.l.b16 %v9503
      %v9570 = vunpack.c.h.b16 %v9503
      %v9571 = vunpack.c.l.b16 %v9504
      %v9572 = vunpack.c.h.b16 %v9504
      %v9573 = vunpack.c.l.b16 %v9505
      %v9574 = vunpack.c.h.b16 %v9505
      %v9575 = vunpack.c.l.b16 %v9506
      %v9576 = vunpack.c.h.b16 %v9506
      %v9577 = vunpack.c.l.b16 %v9507
      %v9578 = vunpack.c.h.b16 %v9507
      %v9579 = vunpack.c.l.b16 %v9508
      %v9580 = vunpack.c.h.b16 %v9508
      %v9581 = vunpack.c.l.b16 %v9509
      %v9582 = vunpack.c.h.b16 %v9509
      %v9583 = vunpack.c.l.b16 %v9510
      %v9584 = vunpack.c.h.b16 %v9510
      %v9585 = vunpack.c.l.b16 %v9511
      %v9586 = vunpack.c.h.b16 %v9511
      %v9587 = vunpack.c.l.b16 %v9512
      %v9588 = vunpack.c.h.b16 %v9512
      %v9589 = vunpack.c.l.b16 %v9513
      %v9590 = vunpack.c.h.b16 %v9513
      %v9591 = vunpack.c.l.b16 %v9514
      %v9592 = vunpack.c.h.b16 %v9514
      %v9593 = vunpack.c.l.b16 %v9515
      %v9594 = vunpack.c.h.b16 %v9515
      %v9595 = vunpack.c.l.b16 %v9516
      %v9596 = vunpack.c.h.b16 %v9516
      %v9597 = vunpack.c.l.b16 %v9517
      %v9598 = vunpack.c.h.b16 %v9517
      %v9599 = vunpack.c.l.b16 %v9518
      %v9600 = vunpack.c.h.b16 %v9518
      %v9601 = vunpack.c.l.b16 %v9519
      %v9602 = vunpack.c.h.b16 %v9519
      %v9603 = vunpack.c.l.b16 %v9520
      %v9604 = vunpack.c.h.b16 %v9520
      %v9605 = vunpack.c.l.b16 %v9521
      %v9606 = vunpack.c.h.b16 %v9521
      %v9607 = vunpack.c.l.b16 %v9522
      %v9608 = vunpack.c.h.b16 %v9522
      %v9609 = vunpack.c.l.b16 %v9523
      %v9610 = vunpack.c.h.b16 %v9523
      %v9611 = vunpack.c.l.b16 %v9524
      %v9612 = vunpack.c.h.b16 %v9524
      %v9613 = vunpack.c.l.b16 %v9525
      %v9614 = vunpack.c.h.b16 %v9525
      %v9615 = vunpack.c.l.b16 %v9526
      %v9616 = vunpack.c.h.b16 %v9526
      %v9617 = vunpack.c.l.b16 %v9527
      %v9618 = vunpack.c.h.b16 %v9527
      %v9619 = vunpack.c.l.b16 %v9528
      %v9620 = vunpack.c.h.b16 %v9528
      %v9621 = vunpack.c.l.b16 %v9529
      %v9622 = vunpack.c.h.b16 %v9529
      %v9623 = vunpack.c.l.b16 %v9530
      %v9624 = vunpack.c.h.b16 %v9530
      %v9625 = vunpack.c.l.b16 %v9531
      %v9626 = vunpack.c.h.b16 %v9531
      %v9627 = vunpack.c.l.b16 %v9532
      %v9628 = vunpack.c.h.b16 %v9532
      %v9629 = vpack.c.b16 %v9567, %v9565
      %v9630 = vpack.c.b16 %v9568, %v9566
      %v9631 = vpack.c.b16 %v9571, %v9569
      %v9632 = vpack.c.b16 %v9572, %v9570
      %v9633 = vpack.c.b16 %v9575, %v9573
      %v9634 = vpack.c.b16 %v9576, %v9574
      %v9635 = vpack.c.b16 %v9579, %v9577
      %v9636 = vpack.c.b16 %v9580, %v9578
      %v9637 = vpack.c.b16 %v9583, %v9581
      %v9638 = vpack.c.b16 %v9584, %v9582
      %v9639 = vpack.c.b16 %v9587, %v9585
      %v9640 = vpack.c.b16 %v9588, %v9586
      %v9641 = vpack.c.b16 %v9591, %v9589
      %v9642 = vpack.c.b16 %v9592, %v9590
      %v9643 = vpack.c.b16 %v9595, %v9593
      %v9644 = vpack.c.b16 %v9596, %v9594
      %v9645 = vpack.c.b16 %v9599, %v9597
      %v9646 = vpack.c.b16 %v9600, %v9598
      %v9647 = vpack.c.b16 %v9603, %v9601
      %v9648 = vpack.c.b16 %v9604, %v9602
      %v9649 = vpack.c.b16 %v9607, %v9605
      %v9650 = vpack.c.b16 %v9608, %v9606
      %v9651 = vpack.c.b16 %v9611, %v9609
      %v9652 = vpack.c.b16 %v9612, %v9610
      %v9653 = vpack.c.b16 %v9615, %v9613
      %v9654 = vpack.c.b16 %v9616, %v9614
      %v9655 = vpack.c.b16 %v9619, %v9617
      %v9656 = vpack.c.b16 %v9620, %v9618
      %v9657 = vpack.c.b16 %v9623, %v9621
      %v9658 = vpack.c.b16 %v9624, %v9622
      %v9659 = vpack.c.b16 %v9627, %v9625
      %v9660 = vpack.c.b16 %v9628, %v9626
      %9693 = vrot.lane.b32.xlu0 %v8247, 32
      %v9694 = vpop.permute.xlu0 %9693
      %9695 = vrot.lane.b32.xlu0 %v8248, 32
      %v9696 = vpop.permute.xlu0 %9695
      %9697 = vrot.lane.b32.xlu0 %v8249, 32
      %v9698 = vpop.permute.xlu0 %9697
      %9699 = vrot.lane.b32.xlu0 %v8250, 32
      %v9700 = vpop.permute.xlu0 %9699
      %9701 = vrot.lane.b32.xlu0 %v8251, 32
      %v9702 = vpop.permute.xlu0 %9701
      %9703 = vrot.lane.b32.xlu0 %v8252, 32
      %v9704 = vpop.permute.xlu0 %9703
      %9705 = vrot.lane.b32.xlu0 %v8253, 32
      %v9706 = vpop.permute.xlu0 %9705
      %9707 = vrot.lane.b32.xlu0 %v8254, 32
      %v9708 = vpop.permute.xlu0 %9707
      %9709 = vrot.lane.b32.xlu0 %v8255, 32
      %v9710 = vpop.permute.xlu0 %9709
      %9711 = vrot.lane.b32.xlu0 %v8256, 32
      %v9712 = vpop.permute.xlu0 %9711
      %9713 = vrot.lane.b32.xlu0 %v8257, 32
      %v9714 = vpop.permute.xlu0 %9713
      %9715 = vrot.lane.b32.xlu0 %v8258, 32
      %v9716 = vpop.permute.xlu0 %9715
      %9717 = vrot.lane.b32.xlu0 %v8259, 32
      %v9718 = vpop.permute.xlu0 %9717
      %9719 = vrot.lane.b32.xlu0 %v8260, 32
      %v9720 = vpop.permute.xlu0 %9719
      %9721 = vrot.lane.b32.xlu0 %v8261, 32
      %v9722 = vpop.permute.xlu0 %9721
      %9723 = vrot.lane.b32.xlu0 %v8262, 32
      %v9724 = vpop.permute.xlu0 %9723
      %9741 = vmatprep.subr.bf16.mxu0 0
      %9742 = vmatpush1.bf16.msra.mxu0 %v9694
      %9743 = vmatprep.subr.bf16.mxu0 0
      %9744 = vmatpush1.bf16.msra.mxu0 %v9696
      %9745 = vmatprep.subr.bf16.mxu0 0
      %9746 = vmatpush1.bf16.msra.mxu0 %v9698
      %9747 = vmatprep.subr.bf16.mxu0 0
      %9748 = vmatpush1.bf16.msra.mxu0 %v9700
      %9749 = vmatprep.subr.bf16.mxu0 0
      %9750 = vmatpush1.bf16.msra.mxu0 %v9702
      %9751 = vmatprep.subr.bf16.mxu0 0
      %9752 = vmatpush1.bf16.msra.mxu0 %v9704
      %9753 = vmatprep.subr.bf16.mxu0 0
      %9754 = vmatpush1.bf16.msra.mxu0 %v9706
      %9755 = vmatprep.subr.bf16.mxu0 0
      %9756 = vmatpush1.bf16.msra.mxu0 %v9708
      %9757 = vmatprep.subr.bf16.mxu0 0
      %9758 = vmatpush1.bf16.msra.mxu0 %v9710
      %9759 = vmatprep.subr.bf16.mxu0 0
      %9760 = vmatpush1.bf16.msra.mxu0 %v9712
      %9761 = vmatprep.subr.bf16.mxu0 0
      %9762 = vmatpush1.bf16.msra.mxu0 %v9714
      %9763 = vmatprep.subr.bf16.mxu0 0
      %9764 = vmatpush1.bf16.msra.mxu0 %v9716
      %9765 = vmatprep.subr.bf16.mxu0 0
      %9766 = vmatpush1.bf16.msra.mxu0 %v9718
      %9767 = vmatprep.subr.bf16.mxu0 0
      %9768 = vmatpush1.bf16.msra.mxu0 %v9720
      %9769 = vmatprep.subr.bf16.mxu0 0
      %9770 = vmatpush1.bf16.msra.mxu0 %v9722
      %9771 = vmatprep.subr.bf16.mxu0 0
      %9772 = vmatpush1.bf16.msra.mxu0 %v9724
      %9773 = vmatprep.mubr.bf16.mxu0 %v9630
      %9774 = vmatmul.mubr.bf16.gmra.mrb[0].mxu0 %v9629
      %v9775 = vpop.f32.mrb[0].mxu0
      %v9776 = vadd.f32 0.0, %v9775
      %v9777 = vpop.f32.mrb[0].mxu0
      %v9778 = vpop.f32.mrb[0].mxu0
      %v9779 = vadd.f32 0.0, %v9778
      %v9780 = vpop.f32.mrb[0].mxu0
      %9781 = vmatprep.mubr.bf16.mxu0 %v9632
      %9782 = vmatmul.mubr.bf16.gmra.mrb[0].mxu0 %v9631
      %v9783 = vpop.f32.mrb[0].mxu0
      %v9784 = vadd.f32 0.0, %v9783
      %v9785 = vpop.f32.mrb[0].mxu0
      %v9786 = vpop.f32.mrb[0].mxu0
      %v9787 = vadd.f32 0.0, %v9786
      %v9788 = vpop.f32.mrb[0].mxu0
      %9789 = vmatprep.mubr.bf16.mxu0 %v9634
      %9790 = vmatmul.mubr.bf16.gmra.mrb[0].mxu0 %v9633
      %v9791 = vpop.f32.mrb[0].mxu0
      %v9792 = vadd.f32 0.0, %v9791
      %v9793 = vpop.f32.mrb[0].mxu0
      %v9794 = vpop.f32.mrb[0].mxu0
      %v9795 = vadd.f32 0.0, %v9794
      %v9796 = vpop.f32.mrb[0].mxu0
      %9797 = vmatprep.mubr.bf16.mxu0 %v9636
      %9798 = vmatmul.mubr.bf16.gmra.mrb[0].mxu0 %v9635
      %v9799 = vpop.f32.mrb[0].mxu0
      %v9800 = vadd.f32 0.0, %v9799
      %v9801 = vpop.f32.mrb[0].mxu0
      %v9802 = vpop.f32.mrb[0].mxu0
      %v9803 = vadd.f32 0.0, %v9802
      %v9804 = vpop.f32.mrb[0].mxu0
      %9805 = vmatprep.mubr.bf16.mxu0 %v9638
      %9806 = vmatmul.mubr.bf16.gmra.mrb[0].mxu0 %v9637
      %v9807 = vpop.f32.mrb[0].mxu0
      %v9808 = vadd.f32 0.0, %v9807
      %v9809 = vpop.f32.mrb[0].mxu0
      %v9810 = vpop.f32.mrb[0].mxu0
      %v9811 = vadd.f32 0.0, %v9810
      %v9812 = vpop.f32.mrb[0].mxu0
      %9813 = vmatprep.mubr.bf16.mxu0 %v9640
      %9814 = vmatmul.mubr.bf16.gmra.mrb[0].mxu0 %v9639
      %v9815 = vpop.f32.mrb[0].mxu0
      %v9816 = vadd.f32 0.0, %v9815
      %v9817 = vpop.f32.mrb[0].mxu0
      %v9818 = vpop.f32.mrb[0].mxu0
      %v9819 = vadd.f32 0.0, %v9818
      %v9820 = vpop.f32.mrb[0].mxu0
      %9821 = vmatprep.mubr.bf16.mxu0 %v9642
      %9822 = vmatmul.mubr.bf16.gmra.mrb[0].mxu0 %v9641
      %v9823 = vpop.f32.mrb[0].mxu0
      %v9824 = vadd.f32 0.0, %v9823
      %v9825 = vpop.f32.mrb[0].mxu0
      %v9826 = vpop.f32.mrb[0].mxu0
      %v9827 = vadd.f32 0.0, %v9826
      %v9828 = vpop.f32.mrb[0].mxu0
      %9829 = vmatprep.mubr.bf16.mxu0 %v9644
      %9830 = vmatmul.mubr.bf16.gmra.mrb[0].mxu0 %v9643
      %v9831 = vpop.f32.mrb[0].mxu0
      %v9832 = vadd.f32 0.0, %v9831
      %v9833 = vpop.f32.mrb[0].mxu0
      %v9834 = vpop.f32.mrb[0].mxu0
      %v9835 = vadd.f32 0.0, %v9834
      %v9836 = vpop.f32.mrb[0].mxu0
      %9837 = vmatprep.mubr.bf16.mxu0 %v9646
      %9838 = vmatmul.mubr.bf16.gmra.mrb[0].mxu0 %v9645
      %v9839 = vpop.f32.mrb[0].mxu0
      %v9840 = vadd.f32 0.0, %v9839
      %v9841 = vpop.f32.mrb[0].mxu0
      %v9842 = vpop.f32.mrb[0].mxu0
      %v9843 = vadd.f32 0.0, %v9842
      %v9844 = vpop.f32.mrb[0].mxu0
      %9845 = vmatprep.mubr.bf16.mxu0 %v9648
      %9846 = vmatmul.mubr.bf16.gmra.mrb[0].mxu0 %v9647
      %v9847 = vpop.f32.mrb[0].mxu0
      %v9848 = vadd.f32 0.0, %v9847
      %v9849 = vpop.f32.mrb[0].mxu0
      %v9850 = vpop.f32.mrb[0].mxu0
      %v9851 = vadd.f32 0.0, %v9850
      %v9852 = vpop.f32.mrb[0].mxu0
      %9853 = vmatprep.mubr.bf16.mxu0 %v9650
      %9854 = vmatmul.mubr.bf16.gmra.mrb[0].mxu0 %v9649
      %v9855 = vpop.f32.mrb[0].mxu0
      %v9856 = vadd.f32 0.0, %v9855
      %v9857 = vpop.f32.mrb[0].mxu0
      %v9858 = vpop.f32.mrb[0].mxu0
      %v9859 = vadd.f32 0.0, %v9858
      %v9860 = vpop.f32.mrb[0].mxu0
      %9861 = vmatprep.mubr.bf16.mxu0 %v9652
      %9862 = vmatmul.mubr.bf16.gmra.mrb[0].mxu0 %v9651
      %v9863 = vpop.f32.mrb[0].mxu0
      %v9864 = vadd.f32 0.0, %v9863
      %v9865 = vpop.f32.mrb[0].mxu0
      %v9866 = vpop.f32.mrb[0].mxu0
      %v9867 = vadd.f32 0.0, %v9866
      %v9868 = vpop.f32.mrb[0].mxu0
      %9869 = vmatprep.mubr.bf16.mxu0 %v9654
      %9870 = vmatmul.mubr.bf16.gmra.mrb[0].mxu0 %v9653
      %v9871 = vpop.f32.mrb[0].mxu0
      %v9872 = vadd.f32 0.0, %v9871
      %v9873 = vpop.f32.mrb[0].mxu0
      %v9874 = vpop.f32.mrb[0].mxu0
      %v9875 = vadd.f32 0.0, %v9874
      %v9876 = vpop.f32.mrb[0].mxu0
      %9877 = vmatprep.mubr.bf16.mxu0 %v9656
      %9878 = vmatmul.mubr.bf16.gmra.mrb[0].mxu0 %v9655
      %v9879 = vpop.f32.mrb[0].mxu0
      %v9880 = vadd.f32 0.0, %v9879
      %v9881 = vpop.f32.mrb[0].mxu0
      %v9882 = vpop.f32.mrb[0].mxu0
      %v9883 = vadd.f32 0.0, %v9882
      %v9884 = vpop.f32.mrb[0].mxu0
      %9885 = vmatprep.mubr.bf16.mxu0 %v9658
      %9886 = vmatmul.mubr.bf16.gmra.mrb[0].mxu0 %v9657
      %v9887 = vpop.f32.mrb[0].mxu0
      %v9888 = vadd.f32 0.0, %v9887
      %v9889 = vpop.f32.mrb[0].mxu0
      %v9890 = vpop.f32.mrb[0].mxu0
      %v9891 = vadd.f32 0.0, %v9890
      %v9892 = vpop.f32.mrb[0].mxu0
      %9893 = vmatprep.mubr.bf16.mxu0 %v9660
      %9894 = vmatmul.mubr.bf16.gmra.mrb[0].mxu0 %v9659
      %v9895 = vpop.f32.mrb[0].mxu0
      %v9896 = vadd.f32 0.0, %v9895
      %v9897 = vpop.f32.mrb[0].mxu0
      %v9898 = vpop.f32.mrb[0].mxu0
      %v9899 = vadd.f32 0.0, %v9898
      %v9900 = vpop.f32.mrb[0].mxu0
      %9901 = vdwg.mxu0
      %v9902 = vadd.f32 %v9468, %v9776
      %v9903 = vadd.f32 %v9469, %v9779
      %v9904 = vadd.f32 %v9470, %v9784
      %v9905 = vadd.f32 %v9471, %v9787
      %v9906 = vadd.f32 %v9472, %v9792
      %v9907 = vadd.f32 %v9473, %v9795
      %v9908 = vadd.f32 %v9474, %v9800
      %v9909 = vadd.f32 %v9475, %v9803
      %v9910 = vadd.f32 %v9476, %v9808
      %v9911 = vadd.f32 %v9477, %v9811
      %v9912 = vadd.f32 %v9478, %v9816
      %v9913 = vadd.f32 %v9479, %v9819
      %v9914 = vadd.f32 %v9480, %v9824
      %v9915 = vadd.f32 %v9481, %v9827
      %v9916 = vadd.f32 %v9482, %v9832
      %v9917 = vadd.f32 %v9483, %v9835
      %v9918 = vadd.f32 %v9484, %v9840
      %v9919 = vadd.f32 %v9485, %v9843
      %v9920 = vadd.f32 %v9486, %v9848
      %v9921 = vadd.f32 %v9487, %v9851
      %v9922 = vadd.f32 %v9488, %v9856
      %v9923 = vadd.f32 %v9489, %v9859
      %v9924 = vadd.f32 %v9490, %v9864
      %v9925 = vadd.f32 %v9491, %v9867
      %v9926 = vadd.f32 %v9492, %v9872
      %v9927 = vadd.f32 %v9493, %v9875
      %v9928 = vadd.f32 %v9494, %v9880
      %v9929 = vadd.f32 %v9495, %v9883
      %v9930 = vadd.f32 %v9496, %v9888
      %v9931 = vadd.f32 %v9497, %v9891
      %v9932 = vadd.f32 %v9498, %v9896
      %v9933 = vadd.f32 %v9499, %v9899
      %9934 = vset.pattern.permute.xlu0 1
      %9935 = vperm.xlu0 %9934, %v2109
      %v9936 = vpop.permute.xlu0 %9935
      %9938 = vset.pattern.permute.xlu0 1
      %9939 = vperm.xlu0 %9938, %v2110
      %v9940 = vpop.permute.xlu0 %9939
      %9942 = vset.pattern.permute.xlu0 1
      %9943 = vperm.xlu0 %9942, %v2111
      %v9944 = vpop.permute.xlu0 %9943
      %9946 = vset.pattern.permute.xlu0 1
      %9947 = vperm.xlu0 %9946, %v2112
      %v9948 = vpop.permute.xlu0 %9947
      %9950 = vset.pattern.permute.xlu0 1
      %9951 = vperm.xlu0 %9950, %v2113
      %v9952 = vpop.permute.xlu0 %9951
      %9954 = vset.pattern.permute.xlu0 1
      %9955 = vperm.xlu0 %9954, %v2114
      %v9956 = vpop.permute.xlu0 %9955
      %9958 = vset.pattern.permute.xlu0 1
      %9959 = vperm.xlu0 %9958, %v2115
      %v9960 = vpop.permute.xlu0 %9959
      %9962 = vset.pattern.permute.xlu0 1
      %9963 = vperm.xlu0 %9962, %v2116
      %v9964 = vpop.permute.xlu0 %9963
      %9966 = vset.pattern.permute.xlu0 1
      %9967 = vperm.xlu0 %9966, %v2117
      %v9968 = vpop.permute.xlu0 %9967
      %9970 = vset.pattern.permute.xlu0 1
      %9971 = vperm.xlu0 %9970, %v2118
      %v9972 = vpop.permute.xlu0 %9971
      %9974 = vset.pattern.permute.xlu0 1
      %9975 = vperm.xlu0 %9974, %v2119
      %v9976 = vpop.permute.xlu0 %9975
      %9978 = vset.pattern.permute.xlu0 1
      %9979 = vperm.xlu0 %9978, %v2120
      %v9980 = vpop.permute.xlu0 %9979
      %9982 = vset.pattern.permute.xlu0 1
      %9983 = vperm.xlu0 %9982, %v2121
      %v9984 = vpop.permute.xlu0 %9983
      %9986 = vset.pattern.permute.xlu0 1
      %9987 = vperm.xlu0 %9986, %v2122
      %v9988 = vpop.permute.xlu0 %9987
      %9990 = vset.pattern.permute.xlu0 1
      %9991 = vperm.xlu0 %9990, %v2123
      %v9992 = vpop.permute.xlu0 %9991
      %9994 = vset.pattern.permute.xlu0 1
      %9995 = vperm.xlu0 %9994, %v2124
      %v9996 = vpop.permute.xlu0 %9995
      %9998 = vset.pattern.permute.xlu0 1
      %9999 = vperm.xlu0 %9998, %v2125
      %v10000 = vpop.permute.xlu0 %9999
      %10002 = vset.pattern.permute.xlu0 1
      %10003 = vperm.xlu0 %10002, %v2126
      %v10004 = vpop.permute.xlu0 %10003
      %10006 = vset.pattern.permute.xlu0 1
      %10007 = vperm.xlu0 %10006, %v2127
      %v10008 = vpop.permute.xlu0 %10007
      %10010 = vset.pattern.permute.xlu0 1
      %10011 = vperm.xlu0 %10010, %v2128
      %v10012 = vpop.permute.xlu0 %10011
      %10014 = vset.pattern.permute.xlu0 1
      %10015 = vperm.xlu0 %10014, %v2129
      %v10016 = vpop.permute.xlu0 %10015
      %10018 = vset.pattern.permute.xlu0 1
      %10019 = vperm.xlu0 %10018, %v2130
      %v10020 = vpop.permute.xlu0 %10019
      %10022 = vset.pattern.permute.xlu0 1
      %10023 = vperm.xlu0 %10022, %v2131
      %v10024 = vpop.permute.xlu0 %10023
      %10026 = vset.pattern.permute.xlu0 1
      %10027 = vperm.xlu0 %10026, %v2132
      %v10028 = vpop.permute.xlu0 %10027
      %10030 = vset.pattern.permute.xlu0 1
      %10031 = vperm.xlu0 %10030, %v2133
      %v10032 = vpop.permute.xlu0 %10031
      %10034 = vset.pattern.permute.xlu0 1
      %10035 = vperm.xlu0 %10034, %v2134
      %v10036 = vpop.permute.xlu0 %10035
      %10038 = vset.pattern.permute.xlu0 1
      %10039 = vperm.xlu0 %10038, %v2135
      %v10040 = vpop.permute.xlu0 %10039
      %10042 = vset.pattern.permute.xlu0 1
      %10043 = vperm.xlu0 %10042, %v2136
      %v10044 = vpop.permute.xlu0 %10043
      %10046 = vset.pattern.permute.xlu0 1
      %10047 = vperm.xlu0 %10046, %v2137
      %v10048 = vpop.permute.xlu0 %10047
      %10050 = vset.pattern.permute.xlu0 1
      %10051 = vperm.xlu0 %10050, %v2138
      %v10052 = vpop.permute.xlu0 %10051
      %10054 = vset.pattern.permute.xlu0 1
      %10055 = vperm.xlu0 %10054, %v2139
      %v10056 = vpop.permute.xlu0 %10055
      %10058 = vset.pattern.permute.xlu0 1
      %10059 = vperm.xlu0 %10058, %v2140
      %v10060 = vpop.permute.xlu0 %10059
      %v10062 = vadd.f32 %v9902, %v9936
      %v10063 = vadd.f32 %v9903, %v9940
      %v10064 = vadd.f32 %v9904, %v9944
      %v10065 = vadd.f32 %v9905, %v9948
      %v10066 = vadd.f32 %v9906, %v9952
      %v10067 = vadd.f32 %v9907, %v9956
      %v10068 = vadd.f32 %v9908, %v9960
      %v10069 = vadd.f32 %v9909, %v9964
      %v10070 = vadd.f32 %v9910, %v9968
      %v10071 = vadd.f32 %v9911, %v9972
      %v10072 = vadd.f32 %v9912, %v9976
      %v10073 = vadd.f32 %v9913, %v9980
      %v10074 = vadd.f32 %v9914, %v9984
      %v10075 = vadd.f32 %v9915, %v9988
      %v10076 = vadd.f32 %v9916, %v9992
      %v10077 = vadd.f32 %v9917, %v9996
      %v10078 = vadd.f32 %v9918, %v10000
      %v10079 = vadd.f32 %v9919, %v10004
      %v10080 = vadd.f32 %v9920, %v10008
      %v10081 = vadd.f32 %v9921, %v10012
      %v10082 = vadd.f32 %v9922, %v10016
      %v10083 = vadd.f32 %v9923, %v10020
      %v10084 = vadd.f32 %v9924, %v10024
      %v10085 = vadd.f32 %v9925, %v10028
      %v10086 = vadd.f32 %v9926, %v10032
      %v10087 = vadd.f32 %v9927, %v10036
      %v10088 = vadd.f32 %v9928, %v10040
      %v10089 = vadd.f32 %v9929, %v10044
      %v10090 = vadd.f32 %v9930, %v10048
      %v10091 = vadd.f32 %v9931, %v10052
      %v10092 = vadd.f32 %v9932, %v10056
      %v10093 = vadd.f32 %v9933, %v10060
      %vm10094 = vcmp.gt.f32.partialorder %v10062, 0.0
      %vm10095 = vcmp.gt.f32.partialorder %v10063, 0.0
      %vm10096 = vcmp.gt.f32.partialorder %v10064, 0.0
      %vm10097 = vcmp.gt.f32.partialorder %v10065, 0.0
      %vm10098 = vcmp.gt.f32.partialorder %v10066, 0.0
      %vm10099 = vcmp.gt.f32.partialorder %v10067, 0.0
      %vm10100 = vcmp.gt.f32.partialorder %v10068, 0.0
      %vm10101 = vcmp.gt.f32.partialorder %v10069, 0.0
      %vm10102 = vcmp.gt.f32.partialorder %v10070, 0.0
      %vm10103 = vcmp.gt.f32.partialorder %v10071, 0.0
      %vm10104 = vcmp.gt.f32.partialorder %v10072, 0.0
      %vm10105 = vcmp.gt.f32.partialorder %v10073, 0.0
      %vm10106 = vcmp.gt.f32.partialorder %v10074, 0.0
      %vm10107 = vcmp.gt.f32.partialorder %v10075, 0.0
      %vm10108 = vcmp.gt.f32.partialorder %v10076, 0.0
      %vm10109 = vcmp.gt.f32.partialorder %v10077, 0.0
      %vm10110 = vcmp.gt.f32.partialorder %v10078, 0.0
      %vm10111 = vcmp.gt.f32.partialorder %v10079, 0.0
      %vm10112 = vcmp.gt.f32.partialorder %v10080, 0.0
      %vm10113 = vcmp.gt.f32.partialorder %v10081, 0.0
      %vm10114 = vcmp.gt.f32.partialorder %v10082, 0.0
      %vm10115 = vcmp.gt.f32.partialorder %v10083, 0.0
      %vm10116 = vcmp.gt.f32.partialorder %v10084, 0.0
      %vm10117 = vcmp.gt.f32.partialorder %v10085, 0.0
      %vm10118 = vcmp.gt.f32.partialorder %v10086, 0.0
      %vm10119 = vcmp.gt.f32.partialorder %v10087, 0.0
      %vm10120 = vcmp.gt.f32.partialorder %v10088, 0.0
      %vm10121 = vcmp.gt.f32.partialorder %v10089, 0.0
      %vm10122 = vcmp.gt.f32.partialorder %v10090, 0.0
      %vm10123 = vcmp.gt.f32.partialorder %v10091, 0.0
      %vm10124 = vcmp.gt.f32.partialorder %v10092, 0.0
      %vm10125 = vcmp.gt.f32.partialorder %v10093, 0.0
      %v10126 = vmin.f32 %v10062, 0.0
      %v10127 = vmin.f32 %v10063, 0.0
      %v10128 = vmin.f32 %v10064, 0.0
      %v10129 = vmin.f32 %v10065, 0.0
      %v10130 = vmin.f32 %v10066, 0.0
      %v10131 = vmin.f32 %v10067, 0.0
      %v10132 = vmin.f32 %v10068, 0.0
      %v10133 = vmin.f32 %v10069, 0.0
      %v10134 = vmin.f32 %v10070, 0.0
      %v10135 = vmin.f32 %v10071, 0.0
      %v10136 = vmin.f32 %v10072, 0.0
      %v10137 = vmin.f32 %v10073, 0.0
      %v10138 = vmin.f32 %v10074, 0.0
      %v10139 = vmin.f32 %v10075, 0.0
      %v10140 = vmin.f32 %v10076, 0.0
      %v10141 = vmin.f32 %v10077, 0.0
      %v10142 = vmin.f32 %v10078, 0.0
      %v10143 = vmin.f32 %v10079, 0.0
      %v10144 = vmin.f32 %v10080, 0.0
      %v10145 = vmin.f32 %v10081, 0.0
      %v10146 = vmin.f32 %v10082, 0.0
      %v10147 = vmin.f32 %v10083, 0.0
      %v10148 = vmin.f32 %v10084, 0.0
      %v10149 = vmin.f32 %v10085, 0.0
      %v10150 = vmin.f32 %v10086, 0.0
      %v10151 = vmin.f32 %v10087, 0.0
      %v10152 = vmin.f32 %v10088, 0.0
      %v10153 = vmin.f32 %v10089, 0.0
      %v10154 = vmin.f32 %v10090, 0.0
      %v10155 = vmin.f32 %v10091, 0.0
      %v10156 = vmin.f32 %v10092, 0.0
      %v10157 = vmin.f32 %v10093, 0.0
      %v10158 = vmul.f32 %v10126, 1.442695
      %v10159 = vpow.pop %v10158
      %v10160 = vmul.f32 %v10127, 1.442695
      %v10161 = vpow.pop %v10160
      %v10162 = vmul.f32 %v10128, 1.442695
      %v10163 = vpow.pop %v10162
      %v10164 = vmul.f32 %v10129, 1.442695
      %v10165 = vpow.pop %v10164
      %v10166 = vmul.f32 %v10130, 1.442695
      %v10167 = vpow.pop %v10166
      %v10168 = vmul.f32 %v10131, 1.442695
      %v10169 = vpow.pop %v10168
      %v10170 = vmul.f32 %v10132, 1.442695
      %v10171 = vpow.pop %v10170
      %v10172 = vmul.f32 %v10133, 1.442695
      %v10173 = vpow.pop %v10172
      %v10174 = vmul.f32 %v10134, 1.442695
      %v10175 = vpow.pop %v10174
      %v10176 = vmul.f32 %v10135, 1.442695
      %v10177 = vpow.pop %v10176
      %v10178 = vmul.f32 %v10136, 1.442695
      %v10179 = vpow.pop %v10178
      %v10180 = vmul.f32 %v10137, 1.442695
      %v10181 = vpow.pop %v10180
      %v10182 = vmul.f32 %v10138, 1.442695
      %v10183 = vpow.pop %v10182
      %v10184 = vmul.f32 %v10139, 1.442695
      %v10185 = vpow.pop %v10184
      %v10186 = vmul.f32 %v10140, 1.442695
      %v10187 = vpow.pop %v10186
      %v10188 = vmul.f32 %v10141, 1.442695
      %v10189 = vpow.pop %v10188
      %v10190 = vmul.f32 %v10142, 1.442695
      %v10191 = vpow.pop %v10190
      %v10192 = vmul.f32 %v10143, 1.442695
      %v10193 = vpow.pop %v10192
      %v10194 = vmul.f32 %v10144, 1.442695
      %v10195 = vpow.pop %v10194
      %v10196 = vmul.f32 %v10145, 1.442695
      %v10197 = vpow.pop %v10196
      %v10198 = vmul.f32 %v10146, 1.442695
      %v10199 = vpow.pop %v10198
      %v10200 = vmul.f32 %v10147, 1.442695
      %v10201 = vpow.pop %v10200
      %v10202 = vmul.f32 %v10148, 1.442695
      %v10203 = vpow.pop %v10202
      %v10204 = vmul.f32 %v10149, 1.442695
      %v10205 = vpow.pop %v10204
      %v10206 = vmul.f32 %v10150, 1.442695
      %v10207 = vpow.pop %v10206
      %v10208 = vmul.f32 %v10151, 1.442695
      %v10209 = vpow.pop %v10208
      %v10210 = vmul.f32 %v10152, 1.442695
      %v10211 = vpow.pop %v10210
      %v10212 = vmul.f32 %v10153, 1.442695
      %v10213 = vpow.pop %v10212
      %v10214 = vmul.f32 %v10154, 1.442695
      %v10215 = vpow.pop %v10214
      %v10216 = vmul.f32 %v10155, 1.442695
      %v10217 = vpow.pop %v10216
      %v10218 = vmul.f32 %v10156, 1.442695
      %v10219 = vpow.pop %v10218
      %v10220 = vmul.f32 %v10157, 1.442695
      %v10221 = vpow.pop %v10220
      %v10222 = vsub.f32 %v10159, 1.0
      %v10223 = vsub.f32 %v10161, 1.0
      %v10224 = vsub.f32 %v10163, 1.0
      %v10225 = vsub.f32 %v10165, 1.0
      %v10226 = vsub.f32 %v10167, 1.0
      %v10227 = vsub.f32 %v10169, 1.0
      %v10228 = vsub.f32 %v10171, 1.0
      %v10229 = vsub.f32 %v10173, 1.0
      %v10230 = vsub.f32 %v10175, 1.0
      %v10231 = vsub.f32 %v10177, 1.0
      %v10232 = vsub.f32 %v10179, 1.0
      %v10233 = vsub.f32 %v10181, 1.0
      %v10234 = vsub.f32 %v10183, 1.0
      %v10235 = vsub.f32 %v10185, 1.0
      %v10236 = vsub.f32 %v10187, 1.0
      %v10237 = vsub.f32 %v10189, 1.0
      %v10238 = vsub.f32 %v10191, 1.0
      %v10239 = vsub.f32 %v10193, 1.0
      %v10240 = vsub.f32 %v10195, 1.0
      %v10241 = vsub.f32 %v10197, 1.0
      %v10242 = vsub.f32 %v10199, 1.0
      %v10243 = vsub.f32 %v10201, 1.0
      %v10244 = vsub.f32 %v10203, 1.0
      %v10245 = vsub.f32 %v10205, 1.0
      %v10246 = vsub.f32 %v10207, 1.0
      %v10247 = vsub.f32 %v10209, 1.0
      %v10248 = vsub.f32 %v10211, 1.0
      %v10249 = vsub.f32 %v10213, 1.0
      %v10250 = vsub.f32 %v10215, 1.0
      %v10251 = vsub.f32 %v10217, 1.0
      %v10252 = vsub.f32 %v10219, 1.0
      %v10253 = vsub.f32 %v10221, 1.0
      %v10254 = vsel %vm10094, %v10062, %v10222
      %v10255 = vsel %vm10095, %v10063, %v10223
      %v10256 = vsel %vm10096, %v10064, %v10224
      %v10257 = vsel %vm10097, %v10065, %v10225
      %v10258 = vsel %vm10098, %v10066, %v10226
      %v10259 = vsel %vm10099, %v10067, %v10227
      %v10260 = vsel %vm10100, %v10068, %v10228
      %v10261 = vsel %vm10101, %v10069, %v10229
      %v10262 = vsel %vm10102, %v10070, %v10230
      %v10263 = vsel %vm10103, %v10071, %v10231
      %v10264 = vsel %vm10104, %v10072, %v10232
      %v10265 = vsel %vm10105, %v10073, %v10233
      %v10266 = vsel %vm10106, %v10074, %v10234
      %v10267 = vsel %vm10107, %v10075, %v10235
      %v10268 = vsel %vm10108, %v10076, %v10236
      %v10269 = vsel %vm10109, %v10077, %v10237
      %v10270 = vsel %vm10110, %v10078, %v10238
      %v10271 = vsel %vm10111, %v10079, %v10239
      %v10272 = vsel %vm10112, %v10080, %v10240
      %v10273 = vsel %vm10113, %v10081, %v10241
      %v10274 = vsel %vm10114, %v10082, %v10242
      %v10275 = vsel %vm10115, %v10083, %v10243
      %v10276 = vsel %vm10116, %v10084, %v10244
      %v10277 = vsel %vm10117, %v10085, %v10245
      %v10278 = vsel %vm10118, %v10086, %v10246
      %v10279 = vsel %vm10119, %v10087, %v10247
      %v10280 = vsel %vm10120, %v10088, %v10248
      %v10281 = vsel %vm10121, %v10089, %v10249
      %v10282 = vsel %vm10122, %v10090, %v10250
      %v10283 = vsel %vm10123, %v10091, %v10251
      %v10284 = vsel %vm10124, %v10092, %v10252
      %v10285 = vsel %vm10125, %v10093, %v10253
      %v10286 = vpack.c.bf16 %v10255, %v10254
      %v10287 = vpack.c.bf16 %v10257, %v10256
      %v10288 = vpack.c.bf16 %v10259, %v10258
      %v10289 = vpack.c.bf16 %v10261, %v10260
      %v10290 = vpack.c.bf16 %v10263, %v10262
      %v10291 = vpack.c.bf16 %v10265, %v10264
      %v10292 = vpack.c.bf16 %v10267, %v10266
      %v10293 = vpack.c.bf16 %v10269, %v10268
      %v10294 = vpack.c.bf16 %v10271, %v10270
      %v10295 = vpack.c.bf16 %v10273, %v10272
      %v10296 = vpack.c.bf16 %v10275, %v10274
      %v10297 = vpack.c.bf16 %v10277, %v10276
      %v10298 = vpack.c.bf16 %v10279, %v10278
      %v10299 = vpack.c.bf16 %v10281, %v10280
      %v10300 = vpack.c.bf16 %v10283, %v10282
      %v10301 = vpack.c.bf16 %v10285, %v10284
      %v10302 = vld [vmem:[%s6] sm:$0xf]
      %v10303 = vld [vmem:[%s6 + $0x4] sm:$0xf]
      %v10304 = vld [vmem:[%s6 + $0x8] sm:$0xf]
      %v10305 = vld [vmem:[%s6 + $0xc] sm:$0xf]
      %s10306 = scalar_lea.vmem %s6, 16
      %v10307 = vld [vmem:[%s10306] sm:$0xf]
      %v10308 = vld [vmem:[%s10306 + $0x4] sm:$0xf]
      %v10309 = vld [vmem:[%s10306 + $0x8] sm:$0xf]
      %v10310 = vld [vmem:[%s10306 + $0xc] sm:$0xf]
      %v10315 = vunpack.c.l.b16 %v10307
      %v10316 = vunpack.c.l.b16 %v10308
      %v10317 = vunpack.c.l.b16 %v10309
      %v10318 = vunpack.c.l.b16 %v10310
      %v10319 = vpack.c.b16 %v10316, %v10315
      %v10320 = vpack.c.b16 %v10318, %v10317
      %vm10323 = vcmask 261120
      %v10325 = vsel %vm10323, %v10287, 0
      %10327 = vmatprep.subr.bf16.mxu0 0
      %10328 = vmatpush1.bf16.msra.mxu0 %v10319
      %10329 = vmatprep.subr.bf16.mxu0 0
      %10330 = vmatpush1.bf16.msra.mxu0 %v10320
      %10331 = vmatprep.subr.bf16.mxu0 0
      %10332 = vmatpush1.bf16.msra.mxu0 0
      %10333 = vmatprep.subr.bf16.mxu0 0
      %10334 = vmatpush1.bf16.msra.mxu0 0
      %10335 = vmatprep.subr.bf16.mxu0 0
      %10336 = vmatpush1.bf16.msra.mxu0 0
      %10337 = vmatprep.subr.bf16.mxu0 0
      %10338 = vmatpush1.bf16.msra.mxu0 0
      %10339 = vmatprep.subr.bf16.mxu0 0
      %10340 = vmatpush1.bf16.msra.mxu0 0
      %10341 = vmatprep.subr.bf16.mxu0 0
      %10342 = vmatpush1.bf16.msra.mxu0 0
      %10343 = vmatprep.subr.bf16.mxu0 0
      %10344 = vmatpush1.bf16.msra.mxu0 0
      %10345 = vmatprep.subr.bf16.mxu0 0
      %10346 = vmatpush1.bf16.msra.mxu0 0
      %10347 = vmatprep.subr.bf16.mxu0 0
      %10348 = vmatpush1.bf16.msra.mxu0 0
      %10349 = vmatprep.subr.bf16.mxu0 0
      %10350 = vmatpush1.bf16.msra.mxu0 0
      %10351 = vmatprep.subr.bf16.mxu0 0
      %10352 = vmatpush1.bf16.msra.mxu0 0
      %10353 = vmatprep.subr.bf16.mxu0 0
      %10354 = vmatpush1.bf16.msra.mxu0 0
      %10355 = vmatprep.subr.bf16.mxu0 0
      %10356 = vmatpush1.bf16.msra.mxu0 0
      %10357 = vmatprep.subr.bf16.mxu0 0
      %10358 = vmatpush1.bf16.msra.mxu0 0
      %10359 = vmatprep.mubr.bf16.mxu0 0
      %10360 = vmatmul.mubr.bf16.gmra.mrb[0].mxu0 %v10325
      %v10361 = vpop.f32.mrb[0].mxu0
      %v10362 = vadd.f32 0.0, %v10361
      %v10363 = vpop.f32.mrb[0].mxu0
      %v10364 = vpop.f32.mrb[0].mxu0
      %v10365 = vadd.f32 0.0, %v10364
      %v10366 = vpop.f32.mrb[0].mxu0
      %10367 = vdwg.mxu0
      %v10372 = vunpack.c.l.b16 %v10302
      %v10373 = vunpack.c.l.b16 %v10303
      %v10374 = vunpack.c.l.b16 %v10304
      %v10375 = vunpack.c.l.b16 %v10305
      %v10376 = vpack.c.b16 %v10373, %v10372
      %v10377 = vpack.c.b16 %v10375, %v10374
      %v10381 = vsel %vm10323, %v10286, 0
      %10383 = vmatprep.subr.bf16.mxu0 0
      %10384 = vmatpush1.bf16.msra.mxu0 %v10376
      %10385 = vmatprep.subr.bf16.mxu0 0
      %10386 = vmatpush1.bf16.msra.mxu0 %v10377
      %10387 = vmatprep.subr.bf16.mxu0 0
      %10388 = vmatpush1.bf16.msra.mxu0 0
      %10389 = vmatprep.subr.bf16.mxu0 0
      %10390 = vmatpush1.bf16.msra.mxu0 0
      %10391 = vmatprep.subr.bf16.mxu0 0
      %10392 = vmatpush1.bf16.msra.mxu0 0
      %10393 = vmatprep.subr.bf16.mxu0 0
      %10394 = vmatpush1.bf16.msra.mxu0 0
      %10395 = vmatprep.subr.bf16.mxu0 0
      %10396 = vmatpush1.bf16.msra.mxu0 0
      %10397 = vmatprep.subr.bf16.mxu0 0
      %10398 = vmatpush1.bf16.msra.mxu0 0
      %10399 = vmatprep.subr.bf16.mxu0 0
      %10400 = vmatpush1.bf16.msra.mxu0 0
      %10401 = vmatprep.subr.bf16.mxu0 0
      %10402 = vmatpush1.bf16.msra.mxu0 0
      %10403 = vmatprep.subr.bf16.mxu0 0
      %10404 = vmatpush1.bf16.msra.mxu0 0
      %10405 = vmatprep.subr.bf16.mxu0 0
      %10406 = vmatpush1.bf16.msra.mxu0 0
      %10407 = vmatprep.subr.bf16.mxu0 0
      %10408 = vmatpush1.bf16.msra.mxu0 0
      %10409 = vmatprep.subr.bf16.mxu0 0
      %10410 = vmatpush1.bf16.msra.mxu0 0
      %10411 = vmatprep.subr.bf16.mxu0 0
      %10412 = vmatpush1.bf16.msra.mxu0 0
      %10413 = vmatprep.subr.bf16.mxu0 0
      %10414 = vmatpush1.bf16.msra.mxu0 0
      %10415 = vmatprep.mubr.bf16.mxu0 0
      %10416 = vmatmul.mubr.bf16.gmra.mrb[0].mxu0 %v10381
      %v10417 = vpop.f32.mrb[0].mxu0
      %v10418 = vadd.f32 %v10362, %v10417
      %v10419 = vpop.f32.mrb[0].mxu0
      %v10420 = vpop.f32.mrb[0].mxu0
      %v10421 = vadd.f32 %v10365, %v10420
      %v10422 = vpop.f32.mrb[0].mxu0
      %10423 = vdwg.mxu0
      %s10424 = scalar_lea.vmem %s6, 32
      %v10425 = vld [vmem:[%s10424] sm:$0xf]
      %v10426 = vld [vmem:[%s10424 + $0x4] sm:$0xf]
      %v10427 = vld [vmem:[%s10424 + $0x8] sm:$0xf]
      %v10428 = vld [vmem:[%s10424 + $0xc] sm:$0xf]
      %v10433 = vunpack.c.l.b16 %v10425
      %v10434 = vunpack.c.l.b16 %v10426
      %v10435 = vunpack.c.l.b16 %v10427
      %v10436 = vunpack.c.l.b16 %v10428
      %v10437 = vpack.c.b16 %v10434, %v10433
      %v10438 = vpack.c.b16 %v10436, %v10435
      %v10442 = vsel %vm10323, %v10288, 0
      %10444 = vmatprep.subr.bf16.mxu0 0
      %10445 = vmatpush1.bf16.msra.mxu0 %v10437
      %10446 = vmatprep.subr.bf16.mxu0 0
      %10447 = vmatpush1.bf16.msra.mxu0 %v10438
      %10448 = vmatprep.subr.bf16.mxu0 0
      %10449 = vmatpush1.bf16.msra.mxu0 0
      %10450 = vmatprep.subr.bf16.mxu0 0
      %10451 = vmatpush1.bf16.msra.mxu0 0
      %10452 = vmatprep.subr.bf16.mxu0 0
      %10453 = vmatpush1.bf16.msra.mxu0 0
      %10454 = vmatprep.subr.bf16.mxu0 0
      %10455 = vmatpush1.bf16.msra.mxu0 0
      %10456 = vmatprep.subr.bf16.mxu0 0
      %10457 = vmatpush1.bf16.msra.mxu0 0
      %10458 = vmatprep.subr.bf16.mxu0 0
      %10459 = vmatpush1.bf16.msra.mxu0 0
      %10460 = vmatprep.subr.bf16.mxu0 0
      %10461 = vmatpush1.bf16.msra.mxu0 0
      %10462 = vmatprep.subr.bf16.mxu0 0
      %10463 = vmatpush1.bf16.msra.mxu0 0
      %10464 = vmatprep.subr.bf16.mxu0 0
      %10465 = vmatpush1.bf16.msra.mxu0 0
      %10466 = vmatprep.subr.bf16.mxu0 0
      %10467 = vmatpush1.bf16.msra.mxu0 0
      %10468 = vmatprep.subr.bf16.mxu0 0
      %10469 = vmatpush1.bf16.msra.mxu0 0
      %10470 = vmatprep.subr.bf16.mxu0 0
      %10471 = vmatpush1.bf16.msra.mxu0 0
      %10472 = vmatprep.subr.bf16.mxu0 0
      %10473 = vmatpush1.bf16.msra.mxu0 0
      %10474 = vmatprep.subr.bf16.mxu0 0
      %10475 = vmatpush1.bf16.msra.mxu0 0
      %10476 = vmatprep.mubr.bf16.mxu0 0
      %10477 = vmatmul.mubr.bf16.gmra.mrb[0].mxu0 %v10442
      %v10478 = vpop.f32.mrb[0].mxu0
      %v10479 = vadd.f32 0.0, %v10478
      %v10480 = vpop.f32.mrb[0].mxu0
      %v10481 = vpop.f32.mrb[0].mxu0
      %v10482 = vadd.f32 0.0, %v10481
      %v10483 = vpop.f32.mrb[0].mxu0
      %10484 = vdwg.mxu0
      %v10485 = vadd.f32 %v10418, %v10479
      %v10486 = vadd.f32 %v10421, %v10482
      %s10487 = scalar_lea.vmem %s6, 48
      %v10488 = vld [vmem:[%s10487] sm:$0xf]
      %v10489 = vld [vmem:[%s10487 + $0x4] sm:$0xf]
      %v10490 = vld [vmem:[%s10487 + $0x8] sm:$0xf]
      %v10491 = vld [vmem:[%s10487 + $0xc] sm:$0xf]
      %v10496 = vunpack.c.l.b16 %v10488
      %v10497 = vunpack.c.l.b16 %v10489
      %v10498 = vunpack.c.l.b16 %v10490
      %v10499 = vunpack.c.l.b16 %v10491
      %v10500 = vpack.c.b16 %v10497, %v10496
      %v10501 = vpack.c.b16 %v10499, %v10498
      %v10505 = vsel %vm10323, %v10289, 0
      %10507 = vmatprep.subr.bf16.mxu0 0
      %10508 = vmatpush1.bf16.msra.mxu0 %v10500
      %10509 = vmatprep.subr.bf16.mxu0 0
      %10510 = vmatpush1.bf16.msra.mxu0 %v10501
      %10511 = vmatprep.subr.bf16.mxu0 0
      %10512 = vmatpush1.bf16.msra.mxu0 0
      %10513 = vmatprep.subr.bf16.mxu0 0
      %10514 = vmatpush1.bf16.msra.mxu0 0
      %10515 = vmatprep.subr.bf16.mxu0 0
      %10516 = vmatpush1.bf16.msra.mxu0 0
      %10517 = vmatprep.subr.bf16.mxu0 0
      %10518 = vmatpush1.bf16.msra.mxu0 0
      %10519 = vmatprep.subr.bf16.mxu0 0
      %10520 = vmatpush1.bf16.msra.mxu0 0
      %10521 = vmatprep.subr.bf16.mxu0 0
      %10522 = vmatpush1.bf16.msra.mxu0 0
      %10523 = vmatprep.subr.bf16.mxu0 0
      %10524 = vmatpush1.bf16.msra.mxu0 0
      %10525 = vmatprep.subr.bf16.mxu0 0
      %10526 = vmatpush1.bf16.msra.mxu0 0
      %10527 = vmatprep.subr.bf16.mxu0 0
      %10528 = vmatpush1.bf16.msra.mxu0 0
      %10529 = vmatprep.subr.bf16.mxu0 0
      %10530 = vmatpush1.bf16.msra.mxu0 0
      %10531 = vmatprep.subr.bf16.mxu0 0
      %10532 = vmatpush1.bf16.msra.mxu0 0
      %10533 = vmatprep.subr.bf16.mxu0 0
      %10534 = vmatpush1.bf16.msra.mxu0 0
      %10535 = vmatprep.subr.bf16.mxu0 0
      %10536 = vmatpush1.bf16.msra.mxu0 0
      %10537 = vmatprep.subr.bf16.mxu0 0
      %10538 = vmatpush1.bf16.msra.mxu0 0
      %10539 = vmatprep.mubr.bf16.mxu0 0
      %10540 = vmatmul.mubr.bf16.gmra.mrb[0].mxu0 %v10505
      %v10541 = vpop.f32.mrb[0].mxu0
      %v10542 = vadd.f32 0.0, %v10541
      %v10543 = vpop.f32.mrb[0].mxu0
      %v10544 = vpop.f32.mrb[0].mxu0
      %v10545 = vadd.f32 0.0, %v10544
      %v10546 = vpop.f32.mrb[0].mxu0
      %10547 = vdwg.mxu0
      %v10548 = vadd.f32 %v10485, %v10542
      %v10549 = vadd.f32 %v10486, %v10545
      %s10550 = scalar_lea.vmem %s6, 64
      %v10551 = vld [vmem:[%s10550] sm:$0xf]
      %v10552 = vld [vmem:[%s10550 + $0x4] sm:$0xf]
      %v10553 = vld [vmem:[%s10550 + $0x8] sm:$0xf]
      %v10554 = vld [vmem:[%s10550 + $0xc] sm:$0xf]
      %v10559 = vunpack.c.l.b16 %v10551
      %v10560 = vunpack.c.l.b16 %v10552
      %v10561 = vunpack.c.l.b16 %v10553
      %v10562 = vunpack.c.l.b16 %v10554
      %v10563 = vpack.c.b16 %v10560, %v10559
      %v10564 = vpack.c.b16 %v10562, %v10561
      %v10568 = vsel %vm10323, %v10290, 0
      %10570 = vmatprep.subr.bf16.mxu0 0
      %10571 = vmatpush1.bf16.msra.mxu0 %v10563
      %10572 = vmatprep.subr.bf16.mxu0 0
      %10573 = vmatpush1.bf16.msra.mxu0 %v10564
      %10574 = vmatprep.subr.bf16.mxu0 0
      %10575 = vmatpush1.bf16.msra.mxu0 0
      %10576 = vmatprep.subr.bf16.mxu0 0
      %10577 = vmatpush1.bf16.msra.mxu0 0
      %10578 = vmatprep.subr.bf16.mxu0 0
      %10579 = vmatpush1.bf16.msra.mxu0 0
      %10580 = vmatprep.subr.bf16.mxu0 0
      %10581 = vmatpush1.bf16.msra.mxu0 0
      %10582 = vmatprep.subr.bf16.mxu0 0
      %10583 = vmatpush1.bf16.msra.mxu0 0
      %10584 = vmatprep.subr.bf16.mxu0 0
      %10585 = vmatpush1.bf16.msra.mxu0 0
      %10586 = vmatprep.subr.bf16.mxu0 0
      %10587 = vmatpush1.bf16.msra.mxu0 0
      %10588 = vmatprep.subr.bf16.mxu0 0
      %10589 = vmatpush1.bf16.msra.mxu0 0
      %10590 = vmatprep.subr.bf16.mxu0 0
      %10591 = vmatpush1.bf16.msra.mxu0 0
      %10592 = vmatprep.subr.bf16.mxu0 0
      %10593 = vmatpush1.bf16.msra.mxu0 0
      %10594 = vmatprep.subr.bf16.mxu0 0
      %10595 = vmatpush1.bf16.msra.mxu0 0
      %10596 = vmatprep.subr.bf16.mxu0 0
      %10597 = vmatpush1.bf16.msra.mxu0 0
      %10598 = vmatprep.subr.bf16.mxu0 0
      %10599 = vmatpush1.bf16.msra.mxu0 0
      %10600 = vmatprep.subr.bf16.mxu0 0
      %10601 = vmatpush1.bf16.msra.mxu0 0
      %10602 = vmatprep.mubr.bf16.mxu0 0
      %10603 = vmatmul.mubr.bf16.gmra.mrb[0].mxu0 %v10568
      %v10604 = vpop.f32.mrb[0].mxu0
      %v10605 = vadd.f32 0.0, %v10604
      %v10606 = vpop.f32.mrb[0].mxu0
      %v10607 = vpop.f32.mrb[0].mxu0
      %v10608 = vadd.f32 0.0, %v10607
      %v10609 = vpop.f32.mrb[0].mxu0
      %10610 = vdwg.mxu0
      %v10611 = vadd.f32 %v10548, %v10605
      %v10612 = vadd.f32 %v10549, %v10608
      %s10613 = scalar_lea.vmem %s6, 80
      %v10614 = vld [vmem:[%s10613] sm:$0xf]
      %v10615 = vld [vmem:[%s10613 + $0x4] sm:$0xf]
      %v10616 = vld [vmem:[%s10613 + $0x8] sm:$0xf]
      %v10617 = vld [vmem:[%s10613 + $0xc] sm:$0xf]
      %v10622 = vunpack.c.l.b16 %v10614
      %v10623 = vunpack.c.l.b16 %v10615
      %v10624 = vunpack.c.l.b16 %v10616
      %v10625 = vunpack.c.l.b16 %v10617
      %v10626 = vpack.c.b16 %v10623, %v10622
      %v10627 = vpack.c.b16 %v10625, %v10624
      %v10631 = vsel %vm10323, %v10291, 0
      %10633 = vmatprep.subr.bf16.mxu0 0
      %10634 = vmatpush1.bf16.msra.mxu0 %v10626
      %10635 = vmatprep.subr.bf16.mxu0 0
      %10636 = vmatpush1.bf16.msra.mxu0 %v10627
      %10637 = vmatprep.subr.bf16.mxu0 0
      %10638 = vmatpush1.bf16.msra.mxu0 0
      %10639 = vmatprep.subr.bf16.mxu0 0
      %10640 = vmatpush1.bf16.msra.mxu0 0
      %10641 = vmatprep.subr.bf16.mxu0 0
      %10642 = vmatpush1.bf16.msra.mxu0 0
      %10643 = vmatprep.subr.bf16.mxu0 0
      %10644 = vmatpush1.bf16.msra.mxu0 0
      %10645 = vmatprep.subr.bf16.mxu0 0
      %10646 = vmatpush1.bf16.msra.mxu0 0
      %10647 = vmatprep.subr.bf16.mxu0 0
      %10648 = vmatpush1.bf16.msra.mxu0 0
      %10649 = vmatprep.subr.bf16.mxu0 0
      %10650 = vmatpush1.bf16.msra.mxu0 0
      %10651 = vmatprep.subr.bf16.mxu0 0
      %10652 = vmatpush1.bf16.msra.mxu0 0
      %10653 = vmatprep.subr.bf16.mxu0 0
      %10654 = vmatpush1.bf16.msra.mxu0 0
      %10655 = vmatprep.subr.bf16.mxu0 0
      %10656 = vmatpush1.bf16.msra.mxu0 0
      %10657 = vmatprep.subr.bf16.mxu0 0
      %10658 = vmatpush1.bf16.msra.mxu0 0
      %10659 = vmatprep.subr.bf16.mxu0 0
      %10660 = vmatpush1.bf16.msra.mxu0 0
      %10661 = vmatprep.subr.bf16.mxu0 0
      %10662 = vmatpush1.bf16.msra.mxu0 0
      %10663 = vmatprep.subr.bf16.mxu0 0
      %10664 = vmatpush1.bf16.msra.mxu0 0
      %10665 = vmatprep.mubr.bf16.mxu0 0
      %10666 = vmatmul.mubr.bf16.gmra.mrb[0].mxu0 %v10631
      %v10667 = vpop.f32.mrb[0].mxu0
      %v10668 = vadd.f32 0.0, %v10667
      %v10669 = vpop.f32.mrb[0].mxu0
      %v10670 = vpop.f32.mrb[0].mxu0
      %v10671 = vadd.f32 0.0, %v10670
      %v10672 = vpop.f32.mrb[0].mxu0
      %10673 = vdwg.mxu0
      %v10674 = vadd.f32 %v10611, %v10668
      %v10675 = vadd.f32 %v10612, %v10671
      %s10676 = scalar_lea.vmem %s6, 96
      %v10677 = vld [vmem:[%s10676] sm:$0xf]
      %v10678 = vld [vmem:[%s10676 + $0x4] sm:$0xf]
      %v10679 = vld [vmem:[%s10676 + $0x8] sm:$0xf]
      %v10680 = vld [vmem:[%s10676 + $0xc] sm:$0xf]
      %v10685 = vunpack.c.l.b16 %v10677
      %v10686 = vunpack.c.l.b16 %v10678
      %v10687 = vunpack.c.l.b16 %v10679
      %v10688 = vunpack.c.l.b16 %v10680
      %v10689 = vpack.c.b16 %v10686, %v10685
      %v10690 = vpack.c.b16 %v10688, %v10687
      %v10694 = vsel %vm10323, %v10292, 0
      %10696 = vmatprep.subr.bf16.mxu0 0
      %10697 = vmatpush1.bf16.msra.mxu0 %v10689
      %10698 = vmatprep.subr.bf16.mxu0 0
      %10699 = vmatpush1.bf16.msra.mxu0 %v10690
      %10700 = vmatprep.subr.bf16.mxu0 0
      %10701 = vmatpush1.bf16.msra.mxu0 0
      %10702 = vmatprep.subr.bf16.mxu0 0
      %10703 = vmatpush1.bf16.msra.mxu0 0
      %10704 = vmatprep.subr.bf16.mxu0 0
      %10705 = vmatpush1.bf16.msra.mxu0 0
      %10706 = vmatprep.subr.bf16.mxu0 0
      %10707 = vmatpush1.bf16.msra.mxu0 0
      %10708 = vmatprep.subr.bf16.mxu0 0
      %10709 = vmatpush1.bf16.msra.mxu0 0
      %10710 = vmatprep.subr.bf16.mxu0 0
      %10711 = vmatpush1.bf16.msra.mxu0 0
      %10712 = vmatprep.subr.bf16.mxu0 0
      %10713 = vmatpush1.bf16.msra.mxu0 0
      %10714 = vmatprep.subr.bf16.mxu0 0
      %10715 = vmatpush1.bf16.msra.mxu0 0
      %10716 = vmatprep.subr.bf16.mxu0 0
      %10717 = vmatpush1.bf16.msra.mxu0 0
      %10718 = vmatprep.subr.bf16.mxu0 0
      %10719 = vmatpush1.bf16.msra.mxu0 0
      %10720 = vmatprep.subr.bf16.mxu0 0
      %10721 = vmatpush1.bf16.msra.mxu0 0
      %10722 = vmatprep.subr.bf16.mxu0 0
      %10723 = vmatpush1.bf16.msra.mxu0 0
      %10724 = vmatprep.subr.bf16.mxu0 0
      %10725 = vmatpush1.bf16.msra.mxu0 0
      %10726 = vmatprep.subr.bf16.mxu0 0
      %10727 = vmatpush1.bf16.msra.mxu0 0
      %10728 = vmatprep.mubr.bf16.mxu0 0
      %10729 = vmatmul.mubr.bf16.gmra.mrb[0].mxu0 %v10694
      %v10730 = vpop.f32.mrb[0].mxu0
      %v10731 = vadd.f32 0.0, %v10730
      %v10732 = vpop.f32.mrb[0].mxu0
      %v10733 = vpop.f32.mrb[0].mxu0
      %v10734 = vadd.f32 0.0, %v10733
      %v10735 = vpop.f32.mrb[0].mxu0
      %10736 = vdwg.mxu0
      %v10737 = vadd.f32 %v10674, %v10731
      %v10738 = vadd.f32 %v10675, %v10734
      %s10739 = scalar_lea.vmem %s6, 112
      %v10740 = vld [vmem:[%s10739] sm:$0xf]
      %v10741 = vld [vmem:[%s10739 + $0x4] sm:$0xf]
      %v10742 = vld [vmem:[%s10739 + $0x8] sm:$0xf]
      %v10743 = vld [vmem:[%s10739 + $0xc] sm:$0xf]
      %v10748 = vunpack.c.l.b16 %v10740
      %v10749 = vunpack.c.l.b16 %v10741
      %v10750 = vunpack.c.l.b16 %v10742
      %v10751 = vunpack.c.l.b16 %v10743
      %v10752 = vpack.c.b16 %v10749, %v10748
      %v10753 = vpack.c.b16 %v10751, %v10750
      %v10757 = vsel %vm10323, %v10293, 0
      %10759 = vmatprep.subr.bf16.mxu0 0
      %10760 = vmatpush1.bf16.msra.mxu0 %v10752
      %10761 = vmatprep.subr.bf16.mxu0 0
      %10762 = vmatpush1.bf16.msra.mxu0 %v10753
      %10763 = vmatprep.subr.bf16.mxu0 0
      %10764 = vmatpush1.bf16.msra.mxu0 0
      %10765 = vmatprep.subr.bf16.mxu0 0
      %10766 = vmatpush1.bf16.msra.mxu0 0
      %10767 = vmatprep.subr.bf16.mxu0 0
      %10768 = vmatpush1.bf16.msra.mxu0 0
      %10769 = vmatprep.subr.bf16.mxu0 0
      %10770 = vmatpush1.bf16.msra.mxu0 0
      %10771 = vmatprep.subr.bf16.mxu0 0
      %10772 = vmatpush1.bf16.msra.mxu0 0
      %10773 = vmatprep.subr.bf16.mxu0 0
      %10774 = vmatpush1.bf16.msra.mxu0 0
      %10775 = vmatprep.subr.bf16.mxu0 0
      %10776 = vmatpush1.bf16.msra.mxu0 0
      %10777 = vmatprep.subr.bf16.mxu0 0
      %10778 = vmatpush1.bf16.msra.mxu0 0
      %10779 = vmatprep.subr.bf16.mxu0 0
      %10780 = vmatpush1.bf16.msra.mxu0 0
      %10781 = vmatprep.subr.bf16.mxu0 0
      %10782 = vmatpush1.bf16.msra.mxu0 0
      %10783 = vmatprep.subr.bf16.mxu0 0
      %10784 = vmatpush1.bf16.msra.mxu0 0
      %10785 = vmatprep.subr.bf16.mxu0 0
      %10786 = vmatpush1.bf16.msra.mxu0 0
      %10787 = vmatprep.subr.bf16.mxu0 0
      %10788 = vmatpush1.bf16.msra.mxu0 0
      %10789 = vmatprep.subr.bf16.mxu0 0
      %10790 = vmatpush1.bf16.msra.mxu0 0
      %10791 = vmatprep.mubr.bf16.mxu0 0
      %10792 = vmatmul.mubr.bf16.gmra.mrb[0].mxu0 %v10757
      %v10793 = vpop.f32.mrb[0].mxu0
      %v10794 = vadd.f32 0.0, %v10793
      %v10795 = vpop.f32.mrb[0].mxu0
      %v10796 = vpop.f32.mrb[0].mxu0
      %v10797 = vadd.f32 0.0, %v10796
      %v10798 = vpop.f32.mrb[0].mxu0
      %10799 = vdwg.mxu0
      %v10800 = vadd.f32 %v10737, %v10794
      %v10801 = vadd.f32 %v10738, %v10797
      %s10802 = scalar_lea.vmem %s6, 128
      %v10803 = vld [vmem:[%s10802] sm:$0xf]
      %v10804 = vld [vmem:[%s10802 + $0x4] sm:$0xf]
      %v10805 = vld [vmem:[%s10802 + $0x8] sm:$0xf]
      %v10806 = vld [vmem:[%s10802 + $0xc] sm:$0xf]
      %v10811 = vunpack.c.l.b16 %v10803
      %v10812 = vunpack.c.l.b16 %v10804
      %v10813 = vunpack.c.l.b16 %v10805
      %v10814 = vunpack.c.l.b16 %v10806
      %v10815 = vpack.c.b16 %v10812, %v10811
      %v10816 = vpack.c.b16 %v10814, %v10813
      %v10820 = vsel %vm10323, %v10294, 0
      %10822 = vmatprep.subr.bf16.mxu0 0
      %10823 = vmatpush1.bf16.msra.mxu0 %v10815
      %10824 = vmatprep.subr.bf16.mxu0 0
      %10825 = vmatpush1.bf16.msra.mxu0 %v10816
      %10826 = vmatprep.subr.bf16.mxu0 0
      %10827 = vmatpush1.bf16.msra.mxu0 0
      %10828 = vmatprep.subr.bf16.mxu0 0
      %10829 = vmatpush1.bf16.msra.mxu0 0
      %10830 = vmatprep.subr.bf16.mxu0 0
      %10831 = vmatpush1.bf16.msra.mxu0 0
      %10832 = vmatprep.subr.bf16.mxu0 0
      %10833 = vmatpush1.bf16.msra.mxu0 0
      %10834 = vmatprep.subr.bf16.mxu0 0
      %10835 = vmatpush1.bf16.msra.mxu0 0
      %10836 = vmatprep.subr.bf16.mxu0 0
      %10837 = vmatpush1.bf16.msra.mxu0 0
      %10838 = vmatprep.subr.bf16.mxu0 0
      %10839 = vmatpush1.bf16.msra.mxu0 0
      %10840 = vmatprep.subr.bf16.mxu0 0
      %10841 = vmatpush1.bf16.msra.mxu0 0
      %10842 = vmatprep.subr.bf16.mxu0 0
      %10843 = vmatpush1.bf16.msra.mxu0 0
      %10844 = vmatprep.subr.bf16.mxu0 0
      %10845 = vmatpush1.bf16.msra.mxu0 0
      %10846 = vmatprep.subr.bf16.mxu0 0
      %10847 = vmatpush1.bf16.msra.mxu0 0
      %10848 = vmatprep.subr.bf16.mxu0 0
      %10849 = vmatpush1.bf16.msra.mxu0 0
      %10850 = vmatprep.subr.bf16.mxu0 0
      %10851 = vmatpush1.bf16.msra.mxu0 0
      %10852 = vmatprep.subr.bf16.mxu0 0
      %10853 = vmatpush1.bf16.msra.mxu0 0
      %10854 = vmatprep.mubr.bf16.mxu0 0
      %10855 = vmatmul.mubr.bf16.gmra.mrb[0].mxu0 %v10820
      %v10856 = vpop.f32.mrb[0].mxu0
      %v10857 = vadd.f32 0.0, %v10856
      %v10858 = vpop.f32.mrb[0].mxu0
      %v10859 = vpop.f32.mrb[0].mxu0
      %v10860 = vadd.f32 0.0, %v10859
      %v10861 = vpop.f32.mrb[0].mxu0
      %10862 = vdwg.mxu0
      %v10863 = vadd.f32 %v10800, %v10857
      %v10864 = vadd.f32 %v10801, %v10860
      %s10865 = scalar_lea.vmem %s6, 144
      %v10866 = vld [vmem:[%s10865] sm:$0xf]
      %v10867 = vld [vmem:[%s10865 + $0x4] sm:$0xf]
      %v10868 = vld [vmem:[%s10865 + $0x8] sm:$0xf]
      %v10869 = vld [vmem:[%s10865 + $0xc] sm:$0xf]
      %v10874 = vunpack.c.l.b16 %v10866
      %v10875 = vunpack.c.l.b16 %v10867
      %v10876 = vunpack.c.l.b16 %v10868
      %v10877 = vunpack.c.l.b16 %v10869
      %v10878 = vpack.c.b16 %v10875, %v10874
      %v10879 = vpack.c.b16 %v10877, %v10876
      %v10883 = vsel %vm10323, %v10295, 0
      %10885 = vmatprep.subr.bf16.mxu0 0
      %10886 = vmatpush1.bf16.msra.mxu0 %v10878
      %10887 = vmatprep.subr.bf16.mxu0 0
      %10888 = vmatpush1.bf16.msra.mxu0 %v10879
      %10889 = vmatprep.subr.bf16.mxu0 0
      %10890 = vmatpush1.bf16.msra.mxu0 0
      %10891 = vmatprep.subr.bf16.mxu0 0
      %10892 = vmatpush1.bf16.msra.mxu0 0
      %10893 = vmatprep.subr.bf16.mxu0 0
      %10894 = vmatpush1.bf16.msra.mxu0 0
      %10895 = vmatprep.subr.bf16.mxu0 0
      %10896 = vmatpush1.bf16.msra.mxu0 0
      %10897 = vmatprep.subr.bf16.mxu0 0
      %10898 = vmatpush1.bf16.msra.mxu0 0
      %10899 = vmatprep.subr.bf16.mxu0 0
      %10900 = vmatpush1.bf16.msra.mxu0 0
      %10901 = vmatprep.subr.bf16.mxu0 0
      %10902 = vmatpush1.bf16.msra.mxu0 0
      %10903 = vmatprep.subr.bf16.mxu0 0
      %10904 = vmatpush1.bf16.msra.mxu0 0
      %10905 = vmatprep.subr.bf16.mxu0 0
      %10906 = vmatpush1.bf16.msra.mxu0 0
      %10907 = vmatprep.subr.bf16.mxu0 0
      %10908 = vmatpush1.bf16.msra.mxu0 0
      %10909 = vmatprep.subr.bf16.mxu0 0
      %10910 = vmatpush1.bf16.msra.mxu0 0
      %10911 = vmatprep.subr.bf16.mxu0 0
      %10912 = vmatpush1.bf16.msra.mxu0 0
      %10913 = vmatprep.subr.bf16.mxu0 0
      %10914 = vmatpush1.bf16.msra.mxu0 0
      %10915 = vmatprep.subr.bf16.mxu0 0
      %10916 = vmatpush1.bf16.msra.mxu0 0
      %10917 = vmatprep.mubr.bf16.mxu0 0
      %10918 = vmatmul.mubr.bf16.gmra.mrb[0].mxu0 %v10883
      %v10919 = vpop.f32.mrb[0].mxu0
      %v10920 = vadd.f32 0.0, %v10919
      %v10921 = vpop.f32.mrb[0].mxu0
      %v10922 = vpop.f32.mrb[0].mxu0
      %v10923 = vadd.f32 0.0, %v10922
      %v10924 = vpop.f32.mrb[0].mxu0
      %10925 = vdwg.mxu0
      %v10926 = vadd.f32 %v10863, %v10920
      %v10927 = vadd.f32 %v10864, %v10923
      %s10928 = scalar_lea.vmem %s6, 160
      %v10929 = vld [vmem:[%s10928] sm:$0xf]
      %v10930 = vld [vmem:[%s10928 + $0x4] sm:$0xf]
      %v10931 = vld [vmem:[%s10928 + $0x8] sm:$0xf]
      %v10932 = vld [vmem:[%s10928 + $0xc] sm:$0xf]
      %v10937 = vunpack.c.l.b16 %v10929
      %v10938 = vunpack.c.l.b16 %v10930
      %v10939 = vunpack.c.l.b16 %v10931
      %v10940 = vunpack.c.l.b16 %v10932
      %v10941 = vpack.c.b16 %v10938, %v10937
      %v10942 = vpack.c.b16 %v10940, %v10939
      %v10946 = vsel %vm10323, %v10296, 0
      %10948 = vmatprep.subr.bf16.mxu0 0
      %10949 = vmatpush1.bf16.msra.mxu0 %v10941
      %10950 = vmatprep.subr.bf16.mxu0 0
      %10951 = vmatpush1.bf16.msra.mxu0 %v10942
      %10952 = vmatprep.subr.bf16.mxu0 0
      %10953 = vmatpush1.bf16.msra.mxu0 0
      %10954 = vmatprep.subr.bf16.mxu0 0
      %10955 = vmatpush1.bf16.msra.mxu0 0
      %10956 = vmatprep.subr.bf16.mxu0 0
      %10957 = vmatpush1.bf16.msra.mxu0 0
      %10958 = vmatprep.subr.bf16.mxu0 0
      %10959 = vmatpush1.bf16.msra.mxu0 0
      %10960 = vmatprep.subr.bf16.mxu0 0
      %10961 = vmatpush1.bf16.msra.mxu0 0
      %10962 = vmatprep.subr.bf16.mxu0 0
      %10963 = vmatpush1.bf16.msra.mxu0 0
      %10964 = vmatprep.subr.bf16.mxu0 0
      %10965 = vmatpush1.bf16.msra.mxu0 0
      %10966 = vmatprep.subr.bf16.mxu0 0
      %10967 = vmatpush1.bf16.msra.mxu0 0
      %10968 = vmatprep.subr.bf16.mxu0 0
      %10969 = vmatpush1.bf16.msra.mxu0 0
      %10970 = vmatprep.subr.bf16.mxu0 0
      %10971 = vmatpush1.bf16.msra.mxu0 0
      %10972 = vmatprep.subr.bf16.mxu0 0
      %10973 = vmatpush1.bf16.msra.mxu0 0
      %10974 = vmatprep.subr.bf16.mxu0 0
      %10975 = vmatpush1.bf16.msra.mxu0 0
      %10976 = vmatprep.subr.bf16.mxu0 0
      %10977 = vmatpush1.bf16.msra.mxu0 0
      %10978 = vmatprep.subr.bf16.mxu0 0
      %10979 = vmatpush1.bf16.msra.mxu0 0
      %10980 = vmatprep.mubr.bf16.mxu0 0
      %10981 = vmatmul.mubr.bf16.gmra.mrb[0].mxu0 %v10946
      %v10982 = vpop.f32.mrb[0].mxu0
      %v10983 = vadd.f32 0.0, %v10982
      %v10984 = vpop.f32.mrb[0].mxu0
      %v10985 = vpop.f32.mrb[0].mxu0
      %v10986 = vadd.f32 0.0, %v10985
      %v10987 = vpop.f32.mrb[0].mxu0
      %10988 = vdwg.mxu0
      %v10989 = vadd.f32 %v10926, %v10983
      %v10990 = vadd.f32 %v10927, %v10986
      %s10991 = scalar_lea.vmem %s6, 176
      %v10992 = vld [vmem:[%s10991] sm:$0xf]
      %v10993 = vld [vmem:[%s10991 + $0x4] sm:$0xf]
      %v10994 = vld [vmem:[%s10991 + $0x8] sm:$0xf]
      %v10995 = vld [vmem:[%s10991 + $0xc] sm:$0xf]
      %v11000 = vunpack.c.l.b16 %v10992
      %v11001 = vunpack.c.l.b16 %v10993
      %v11002 = vunpack.c.l.b16 %v10994
      %v11003 = vunpack.c.l.b16 %v10995
      %v11004 = vpack.c.b16 %v11001, %v11000
      %v11005 = vpack.c.b16 %v11003, %v11002
      %v11009 = vsel %vm10323, %v10297, 0
      %11011 = vmatprep.subr.bf16.mxu0 0
      %11012 = vmatpush1.bf16.msra.mxu0 %v11004
      %11013 = vmatprep.subr.bf16.mxu0 0
      %11014 = vmatpush1.bf16.msra.mxu0 %v11005
      %11015 = vmatprep.subr.bf16.mxu0 0
      %11016 = vmatpush1.bf16.msra.mxu0 0
      %11017 = vmatprep.subr.bf16.mxu0 0
      %11018 = vmatpush1.bf16.msra.mxu0 0
      %11019 = vmatprep.subr.bf16.mxu0 0
      %11020 = vmatpush1.bf16.msra.mxu0 0
      %11021 = vmatprep.subr.bf16.mxu0 0
      %11022 = vmatpush1.bf16.msra.mxu0 0
      %11023 = vmatprep.subr.bf16.mxu0 0
      %11024 = vmatpush1.bf16.msra.mxu0 0
      %11025 = vmatprep.subr.bf16.mxu0 0
      %11026 = vmatpush1.bf16.msra.mxu0 0
      %11027 = vmatprep.subr.bf16.mxu0 0
      %11028 = vmatpush1.bf16.msra.mxu0 0
      %11029 = vmatprep.subr.bf16.mxu0 0
      %11030 = vmatpush1.bf16.msra.mxu0 0
      %11031 = vmatprep.subr.bf16.mxu0 0
      %11032 = vmatpush1.bf16.msra.mxu0 0
      %11033 = vmatprep.subr.bf16.mxu0 0
      %11034 = vmatpush1.bf16.msra.mxu0 0
      %11035 = vmatprep.subr.bf16.mxu0 0
      %11036 = vmatpush1.bf16.msra.mxu0 0
      %11037 = vmatprep.subr.bf16.mxu0 0
      %11038 = vmatpush1.bf16.msra.mxu0 0
      %11039 = vmatprep.subr.bf16.mxu0 0
      %11040 = vmatpush1.bf16.msra.mxu0 0
      %11041 = vmatprep.subr.bf16.mxu0 0
      %11042 = vmatpush1.bf16.msra.mxu0 0
      %11043 = vmatprep.mubr.bf16.mxu0 0
      %11044 = vmatmul.mubr.bf16.gmra.mrb[0].mxu0 %v11009
      %v11045 = vpop.f32.mrb[0].mxu0
      %v11046 = vadd.f32 0.0, %v11045
      %v11047 = vpop.f32.mrb[0].mxu0
      %v11048 = vpop.f32.mrb[0].mxu0
      %v11049 = vadd.f32 0.0, %v11048
      %v11050 = vpop.f32.mrb[0].mxu0
      %11051 = vdwg.mxu0
      %v11052 = vadd.f32 %v10989, %v11046
      %v11053 = vadd.f32 %v10990, %v11049
      %s11054 = scalar_lea.vmem %s6, 192
      %v11055 = vld [vmem:[%s11054] sm:$0xf]
      %v11056 = vld [vmem:[%s11054 + $0x4] sm:$0xf]
      %v11057 = vld [vmem:[%s11054 + $0x8] sm:$0xf]
      %v11058 = vld [vmem:[%s11054 + $0xc] sm:$0xf]
      %v11063 = vunpack.c.l.b16 %v11055
      %v11064 = vunpack.c.l.b16 %v11056
      %v11065 = vunpack.c.l.b16 %v11057
      %v11066 = vunpack.c.l.b16 %v11058
      %v11067 = vpack.c.b16 %v11064, %v11063
      %v11068 = vpack.c.b16 %v11066, %v11065
      %v11072 = vsel %vm10323, %v10298, 0
      %11074 = vmatprep.subr.bf16.mxu0 0
      %11075 = vmatpush1.bf16.msra.mxu0 %v11067
      %11076 = vmatprep.subr.bf16.mxu0 0
      %11077 = vmatpush1.bf16.msra.mxu0 %v11068
      %11078 = vmatprep.subr.bf16.mxu0 0
      %11079 = vmatpush1.bf16.msra.mxu0 0
      %11080 = vmatprep.subr.bf16.mxu0 0
      %11081 = vmatpush1.bf16.msra.mxu0 0
      %11082 = vmatprep.subr.bf16.mxu0 0
      %11083 = vmatpush1.bf16.msra.mxu0 0
      %11084 = vmatprep.subr.bf16.mxu0 0
      %11085 = vmatpush1.bf16.msra.mxu0 0
      %11086 = vmatprep.subr.bf16.mxu0 0
      %11087 = vmatpush1.bf16.msra.mxu0 0
      %11088 = vmatprep.subr.bf16.mxu0 0
      %11089 = vmatpush1.bf16.msra.mxu0 0
      %11090 = vmatprep.subr.bf16.mxu0 0
      %11091 = vmatpush1.bf16.msra.mxu0 0
      %11092 = vmatprep.subr.bf16.mxu0 0
      %11093 = vmatpush1.bf16.msra.mxu0 0
      %11094 = vmatprep.subr.bf16.mxu0 0
      %11095 = vmatpush1.bf16.msra.mxu0 0
      %11096 = vmatprep.subr.bf16.mxu0 0
      %11097 = vmatpush1.bf16.msra.mxu0 0
      %11098 = vmatprep.subr.bf16.mxu0 0
      %11099 = vmatpush1.bf16.msra.mxu0 0
      %11100 = vmatprep.subr.bf16.mxu0 0
      %11101 = vmatpush1.bf16.msra.mxu0 0
      %11102 = vmatprep.subr.bf16.mxu0 0
      %11103 = vmatpush1.bf16.msra.mxu0 0
      %11104 = vmatprep.subr.bf16.mxu0 0
      %11105 = vmatpush1.bf16.msra.mxu0 0
      %11106 = vmatprep.mubr.bf16.mxu0 0
      %11107 = vmatmul.mubr.bf16.gmra.mrb[0].mxu0 %v11072
      %v11108 = vpop.f32.mrb[0].mxu0
      %v11109 = vadd.f32 0.0, %v11108
      %v11110 = vpop.f32.mrb[0].mxu0
      %v11111 = vpop.f32.mrb[0].mxu0
      %v11112 = vadd.f32 0.0, %v11111
      %v11113 = vpop.f32.mrb[0].mxu0
      %11114 = vdwg.mxu0
      %v11115 = vadd.f32 %v11052, %v11109
      %v11116 = vadd.f32 %v11053, %v11112
      %s11117 = scalar_lea.vmem %s6, 208
      %v11118 = vld [vmem:[%s11117] sm:$0xf]
      %v11119 = vld [vmem:[%s11117 + $0x4] sm:$0xf]
      %v11120 = vld [vmem:[%s11117 + $0x8] sm:$0xf]
      %v11121 = vld [vmem:[%s11117 + $0xc] sm:$0xf]
      %v11126 = vunpack.c.l.b16 %v11118
      %v11127 = vunpack.c.l.b16 %v11119
      %v11128 = vunpack.c.l.b16 %v11120
      %v11129 = vunpack.c.l.b16 %v11121
      %v11130 = vpack.c.b16 %v11127, %v11126
      %v11131 = vpack.c.b16 %v11129, %v11128
      %v11135 = vsel %vm10323, %v10299, 0
      %11137 = vmatprep.subr.bf16.mxu0 0
      %11138 = vmatpush1.bf16.msra.mxu0 %v11130
      %11139 = vmatprep.subr.bf16.mxu0 0
      %11140 = vmatpush1.bf16.msra.mxu0 %v11131
      %11141 = vmatprep.subr.bf16.mxu0 0
      %11142 = vmatpush1.bf16.msra.mxu0 0
      %11143 = vmatprep.subr.bf16.mxu0 0
      %11144 = vmatpush1.bf16.msra.mxu0 0
      %11145 = vmatprep.subr.bf16.mxu0 0
      %11146 = vmatpush1.bf16.msra.mxu0 0
      %11147 = vmatprep.subr.bf16.mxu0 0
      %11148 = vmatpush1.bf16.msra.mxu0 0
      %11149 = vmatprep.subr.bf16.mxu0 0
      %11150 = vmatpush1.bf16.msra.mxu0 0
      %11151 = vmatprep.subr.bf16.mxu0 0
      %11152 = vmatpush1.bf16.msra.mxu0 0
      %11153 = vmatprep.subr.bf16.mxu0 0
      %11154 = vmatpush1.bf16.msra.mxu0 0
      %11155 = vmatprep.subr.bf16.mxu0 0
      %11156 = vmatpush1.bf16.msra.mxu0 0
      %11157 = vmatprep.subr.bf16.mxu0 0
      %11158 = vmatpush1.bf16.msra.mxu0 0
      %11159 = vmatprep.subr.bf16.mxu0 0
      %11160 = vmatpush1.bf16.msra.mxu0 0
      %11161 = vmatprep.subr.bf16.mxu0 0
      %11162 = vmatpush1.bf16.msra.mxu0 0
      %11163 = vmatprep.subr.bf16.mxu0 0
      %11164 = vmatpush1.bf16.msra.mxu0 0
      %11165 = vmatprep.subr.bf16.mxu0 0
      %11166 = vmatpush1.bf16.msra.mxu0 0
      %11167 = vmatprep.subr.bf16.mxu0 0
      %11168 = vmatpush1.bf16.msra.mxu0 0
      %11169 = vmatprep.mubr.bf16.mxu0 0
      %11170 = vmatmul.mubr.bf16.gmra.mrb[0].mxu0 %v11135
      %v11171 = vpop.f32.mrb[0].mxu0
      %v11172 = vadd.f32 0.0, %v11171
      %v11173 = vpop.f32.mrb[0].mxu0
      %v11174 = vpop.f32.mrb[0].mxu0
      %v11175 = vadd.f32 0.0, %v11174
      %v11176 = vpop.f32.mrb[0].mxu0
      %11177 = vdwg.mxu0
      %v11178 = vadd.f32 %v11115, %v11172
      %v11179 = vadd.f32 %v11116, %v11175
      %s11180 = scalar_lea.vmem %s6, 224
      %v11181 = vld [vmem:[%s11180] sm:$0xf]
      %v11182 = vld [vmem:[%s11180 + $0x4] sm:$0xf]
      %v11183 = vld [vmem:[%s11180 + $0x8] sm:$0xf]
      %v11184 = vld [vmem:[%s11180 + $0xc] sm:$0xf]
      %v11189 = vunpack.c.l.b16 %v11181
      %v11190 = vunpack.c.l.b16 %v11182
      %v11191 = vunpack.c.l.b16 %v11183
      %v11192 = vunpack.c.l.b16 %v11184
      %v11193 = vpack.c.b16 %v11190, %v11189
      %v11194 = vpack.c.b16 %v11192, %v11191
      %v11198 = vsel %vm10323, %v10300, 0
      %11200 = vmatprep.subr.bf16.mxu0 0
      %11201 = vmatpush1.bf16.msra.mxu0 %v11193
      %11202 = vmatprep.subr.bf16.mxu0 0
      %11203 = vmatpush1.bf16.msra.mxu0 %v11194
      %11204 = vmatprep.subr.bf16.mxu0 0
      %11205 = vmatpush1.bf16.msra.mxu0 0
      %11206 = vmatprep.subr.bf16.mxu0 0
      %11207 = vmatpush1.bf16.msra.mxu0 0
      %11208 = vmatprep.subr.bf16.mxu0 0
      %11209 = vmatpush1.bf16.msra.mxu0 0
      %11210 = vmatprep.subr.bf16.mxu0 0
      %11211 = vmatpush1.bf16.msra.mxu0 0
      %11212 = vmatprep.subr.bf16.mxu0 0
      %11213 = vmatpush1.bf16.msra.mxu0 0
      %11214 = vmatprep.subr.bf16.mxu0 0
      %11215 = vmatpush1.bf16.msra.mxu0 0
      %11216 = vmatprep.subr.bf16.mxu0 0
      %11217 = vmatpush1.bf16.msra.mxu0 0
      %11218 = vmatprep.subr.bf16.mxu0 0
      %11219 = vmatpush1.bf16.msra.mxu0 0
      %11220 = vmatprep.subr.bf16.mxu0 0
      %11221 = vmatpush1.bf16.msra.mxu0 0
      %11222 = vmatprep.subr.bf16.mxu0 0
      %11223 = vmatpush1.bf16.msra.mxu0 0
      %11224 = vmatprep.subr.bf16.mxu0 0
      %11225 = vmatpush1.bf16.msra.mxu0 0
      %11226 = vmatprep.subr.bf16.mxu0 0
      %11227 = vmatpush1.bf16.msra.mxu0 0
      %11228 = vmatprep.subr.bf16.mxu0 0
      %11229 = vmatpush1.bf16.msra.mxu0 0
      %11230 = vmatprep.subr.bf16.mxu0 0
      %11231 = vmatpush1.bf16.msra.mxu0 0
      %11232 = vmatprep.mubr.bf16.mxu0 0
      %11233 = vmatmul.mubr.bf16.gmra.mrb[0].mxu0 %v11198
      %v11234 = vpop.f32.mrb[0].mxu0
      %v11235 = vadd.f32 0.0, %v11234
      %v11236 = vpop.f32.mrb[0].mxu0
      %v11237 = vpop.f32.mrb[0].mxu0
      %v11238 = vadd.f32 0.0, %v11237
      %v11239 = vpop.f32.mrb[0].mxu0
      %11240 = vdwg.mxu0
      %v11241 = vadd.f32 %v11178, %v11235
      %v11242 = vadd.f32 %v11179, %v11238
      %s11243 = scalar_lea.vmem %s6, 240
      %v11244 = vld [vmem:[%s11243] sm:$0xf]
      %v11245 = vld [vmem:[%s11243 + $0x4] sm:$0xf]
      %v11246 = vld [vmem:[%s11243 + $0x8] sm:$0xf]
      %v11247 = vld [vmem:[%s11243 + $0xc] sm:$0xf]
      %v11252 = vunpack.c.l.b16 %v11244
      %v11253 = vunpack.c.l.b16 %v11245
      %v11254 = vunpack.c.l.b16 %v11246
      %v11255 = vunpack.c.l.b16 %v11247
      %v11256 = vpack.c.b16 %v11253, %v11252
      %v11257 = vpack.c.b16 %v11255, %v11254
      %v11261 = vsel %vm10323, %v10301, 0
      %11263 = vmatprep.subr.bf16.mxu0 0
      %11264 = vmatpush1.bf16.msra.mxu0 %v11256
      %11265 = vmatprep.subr.bf16.mxu0 0
      %11266 = vmatpush1.bf16.msra.mxu0 %v11257
      %11267 = vmatprep.subr.bf16.mxu0 0
      %11268 = vmatpush1.bf16.msra.mxu0 0
      %11269 = vmatprep.subr.bf16.mxu0 0
      %11270 = vmatpush1.bf16.msra.mxu0 0
      %11271 = vmatprep.subr.bf16.mxu0 0
      %11272 = vmatpush1.bf16.msra.mxu0 0
      %11273 = vmatprep.subr.bf16.mxu0 0
      %11274 = vmatpush1.bf16.msra.mxu0 0
      %11275 = vmatprep.subr.bf16.mxu0 0
      %11276 = vmatpush1.bf16.msra.mxu0 0
      %11277 = vmatprep.subr.bf16.mxu0 0
      %11278 = vmatpush1.bf16.msra.mxu0 0
      %11279 = vmatprep.subr.bf16.mxu0 0
      %11280 = vmatpush1.bf16.msra.mxu0 0
      %11281 = vmatprep.subr.bf16.mxu0 0
      %11282 = vmatpush1.bf16.msra.mxu0 0
      %11283 = vmatprep.subr.bf16.mxu0 0
      %11284 = vmatpush1.bf16.msra.mxu0 0
      %11285 = vmatprep.subr.bf16.mxu0 0
      %11286 = vmatpush1.bf16.msra.mxu0 0
      %11287 = vmatprep.subr.bf16.mxu0 0
      %11288 = vmatpush1.bf16.msra.mxu0 0
      %11289 = vmatprep.subr.bf16.mxu0 0
      %11290 = vmatpush1.bf16.msra.mxu0 0
      %11291 = vmatprep.subr.bf16.mxu0 0
      %11292 = vmatpush1.bf16.msra.mxu0 0
      %11293 = vmatprep.subr.bf16.mxu0 0
      %11294 = vmatpush1.bf16.msra.mxu0 0
      %11295 = vmatprep.mubr.bf16.mxu0 0
      %11296 = vmatmul.mubr.bf16.gmra.mrb[0].mxu0 %v11261
      %v11297 = vpop.f32.mrb[0].mxu0
      %v11298 = vadd.f32 0.0, %v11297
      %v11299 = vpop.f32.mrb[0].mxu0
      %v11300 = vpop.f32.mrb[0].mxu0
      %v11301 = vadd.f32 0.0, %v11300
      %v11302 = vpop.f32.mrb[0].mxu0
      %11303 = vdwg.mxu0
      %v11304 = vadd.f32 %v11241, %v11298
      %v11305 = vadd.f32 %v11242, %v11301
      %v11306 = vld [vmem:[%s7] sm:$0x1]
      %v11308 = vlaneseq
      %v11309 = vshrl.u32 %v11308, 7
      %v11310 = vsub.s32 0, %v11309
      %v11311 = vrot.slane %v11306, %v11310
      %v11313 = vadd.f32 %v11304, %v11311
      %v11314 = vadd.f32 %v11305, %v11311
      %11315 = vst [vmem:[%s310] sm:$0xff] %v11313
      %11316 = vst [vmem:[%s310 + $0x8] sm:$0xff] %v11314
      %s11317 = smul.u32 2, %s19
      %p11318 = scmp.lt.s32.totalorder %s11317, 3
      %s11319 = scalar_select %p11318, %s11317, 3
      %s11320 = smul.addr %s11319, 8
      %s11321 = scalar_lea.vmem %s8, %s11320
      // Predicated region
      $region53: #{eegnet_forward.1} parent=51 // pred_check
        %p11322 = pneg %p210
      $region54: #{eegnet_forward.1} parent=51 // pred_check_branch
        %11324 = sbr.rel (%p11322) target = $region56
      $region55: #{eegnet_forward.1} parent=51 // pred_region
        %s11325 = smul.u32 2, %s19
      $region56: #{eegnet_forward.1} parent=51 // pred_fallthru
        _
    $region52: #{eegnet_forward.1} parent=5 // pred_fallthru
      _
    %p11326 = scmp.le.s32.totalorder 2, %s14
    // Predicated region
    $region57: #{eegnet_forward.1} parent=5 // pred_check
      %p11327 = pneg %p11326
    $region58: #{eegnet_forward.1} parent=5 // pred_check_branch
      %11329 = sbr.rel (%p11327) target = $region60
    $region59: #{eegnet_forward.1} parent=5 // pred_region
      %s11330 = ssub.s32 %s14, 2
      // Predicated region
      $region61: #{eegnet_forward.1} parent=59 // pred_check
        %p11331 = pneg %p216
      $region62: #{eegnet_forward.1} parent=59 // pred_check_branch
        %11333 = sbr.rel (%p11331) target = $region64
      $region63: #{eegnet_forward.1} parent=59 // pred_region
        %s11334 = smul.u32 2, %s20
        %p11335 = scmp.lt.s32.totalorder %s11334, 3
        %s11336 = scalar_select %p11335, %s11334, 3
        %s11337 = smul.addr %s11336, 8
        %s11338 = scalar_lea.vmem %s8, %s11337
      $region64: #{eegnet_forward.1} parent=59 // pred_fallthru
        _
    $region60: #{eegnet_forward.1} parent=5 // pred_fallthru
      _
  $region6: #{eegnet_forward.1} parent=0 // loop_footer
    %s18 = sadd.s32 1, %s14
  $region7: #{eegnet_forward.1} parent=0 // loop_footer_branch
    %13 = sbr.rel target = $region3
  $region8: #{eegnet_forward.1} parent=0 // loop_exit
    _

</llo_original>
